<compile_context>
chip_gen: v7x
topology: tpu7x:2x2x1
jax: 0.10.0
libtpu: 0.0.40
codegen_flags: <defaults>
</compile_context>

<pallas_src>
import functools

import jax
import jax.numpy as jnp
from jax.experimental import pallas as pl
from jax.experimental.pallas import tpu as pltpu  # noqa: F401  (TPU backend)

DIM = 64          # "dim" in the reference module
K_HIDDEN = 32     # hidden width of the edge NN:  Linear(1, 32)
BOND_TYPE = 4     # output classes
NUM_FEATURES = 8  # dataset.num_features (synthetic)
N_NODES = 16
N_EDGES = 32
N_ITERS = 3

# ---- row layout of the packed "small" operand (shared wrapper <-> kernel) ----
_R_LIN0_B = 0
_R_CONV_B = 1
_R_BIH = 2          # rows 2,3,4 : GRU b_ih (r, z, n)
_R_BHH = 5          # rows 5,6,7 : GRU b_hh (r, z, n)
_R_LINLAST_B = 8    # cols 0:BOND_TYPE
_R_NN_W1 = 9        # cols 0:K_HIDDEN
_R_NN_B1 = 10       # cols 0:K_HIDDEN
_R_LIN0_W = 16      # rows 16 .. 16+NUM_FEATURES-1
_SMALL_ROWS = 24


# ----------------------------- fused Pallas kernel -----------------------------

def _fused_net_kernel(x_ref, ea_ref, graph_ref, w2cat_ref, sq_ref, gru_ref,
                      small_ref, o_ref, *, n_nodes, n_edges, dim, k_hidden,
                      n_iters):
    f32 = jnp.float32
    assert (dim & (dim - 1)) == 0, "dim must be a power of two"
    kd = k_hidden * dim

    # ---- unpack the small (lane-padded) parameter block ----
    small = small_ref[...]                               # [24, D]
    n_feat = x_ref.shape[1]
    lin0_w = small[_R_LIN0_W:_R_LIN0_W + n_feat, :]      # [F, D]
    lin0_b = small[_R_LIN0_B:_R_LIN0_B + 1, :]           # [1, D]
    nn_w1 = small[_R_NN_W1:_R_NN_W1 + 1, 0:k_hidden]     # [1, K]
    nn_b1 = small[_R_NN_B1:_R_NN_B1 + 1, 0:k_hidden]     # [1, K]
    lin_last_b = small[_R_LINLAST_B:_R_LINLAST_B + 1, 0:BOND_TYPE]  # [1, 4]
    # Bias broadcasts hoisted out of the 3-iteration loop:
    conv_b = jnp.broadcast_to(small[_R_CONV_B:_R_CONV_B + 1, :], (n_nodes, dim))
    b_ir = jnp.broadcast_to(small[_R_BIH + 0:_R_BIH + 1, :], (n_nodes, dim))
    b_iz = jnp.broadcast_to(small[_R_BIH + 1:_R_BIH + 2, :], (n_nodes, dim))
    b_in = jnp.broadcast_to(small[_R_BIH + 2:_R_BIH + 3, :], (n_nodes, dim))
    b_hr = jnp.broadcast_to(small[_R_BHH + 0:_R_BHH + 1, :], (n_nodes, dim))
    b_hz = jnp.broadcast_to(small[_R_BHH + 1:_R_BHH + 2, :], (n_nodes, dim))
    b_hn = jnp.broadcast_to(small[_R_BHH + 2:_R_BHH + 3, :], (n_nodes, dim))

    # ---- unpack graph matrices (g: one-hot gather, a: scatter-mean, ag = a@g)
    graph = graph_ref[...]                               # [E+2N, max(E,N)]
    g = graph[0:n_edges, 0:n_nodes]                      # [E, N]
    a = graph[n_edges:n_edges + n_nodes, 0:n_edges]      # [N, E]
    ag = graph[n_edges + n_nodes:n_edges + 2 * n_nodes, 0:n_nodes]  # [N, N]

    # ---- square weights ----
    b2mat = sq_ref[0]                                    # [D, D] edge-NN out bias
    root = sq_ref[1]                                     # [D, D]
    lin_last_w = sq_ref[2]                               # [D, D] (cols >=4 zero)
    w_ir, w_iz, w_in = gru_ref[0], gru_ref[1], gru_ref[2]
    w_hr, w_hz, w_hn = gru_ref[3], gru_ref[4], gru_ref[5]
    w2cat = w2cat_ref[...]                               # [D, K*D]

    # ---- lin0 + ReLU ----
    out = jnp.maximum(
        jnp.dot(x_ref[...], lin0_w, preferred_element_type=f32) + lin0_b, 0.0)
    h = out                                              # GRU hidden, [N, D]

    # ---- edge NN (constant across iterations) ----
    # phi = relu(edge_attr @ W1 + b1); contraction dim is 1 -> VPU broadcast mul.
    phi = jnp.maximum(ea_ref[...] * nn_w1 + nn_b1, 0.0)  # [E, K]

    # Constant selection matrices, generated IN-KERNEL (no HBM traffic):
    #   rexp[k, c] = 1  iff  c in [k*D, (k+1)*D)      -> phi_exp[e, k*D+f] = phi[e,k]
    #   ssum[r, f] = 1  iff  (r mod D) == f           -> sums over k
    row_k = jax.lax.broadcasted_iota(jnp.int32, (k_hidden, kd), 0)
    col_c = jax.lax.broadcasted_iota(jnp.int32, (k_hidden, kd), 1)
    rexp = jnp.logical_and(col_c >= row_k * dim,
                           col_c < (row_k + 1) * dim).astype(f32)       # [K, K*D]
    row_r = jax.lax.broadcasted_iota(jnp.int32, (kd, dim), 0)
    col_f = jax.lax.broadcasted_iota(jnp.int32, (kd, dim), 1)
    ssum = (jnp.bitwise_and(row_r, dim - 1) == col_f).astype(f32)        # [K*D, D]

    phi_exp = jnp.dot(phi, rexp, preferred_element_type=f32)             # [E, K*D]

    # ---- 3 message-passing steps, fully unrolled, VMEM-resident state ----
    for _ in range(n_iters):
        # project at node granularity first, then gather (reassociated):
        y = jnp.dot(out, w2cat, preferred_element_type=f32)              # [N, K*D]
        c_all = jnp.dot(g, y, preferred_element_type=f32)                # [E, K*D]
        msgs = jnp.dot(phi_exp * c_all, ssum, preferred_element_type=f32)  # [E, D]
        # aggr='mean' at dst + edge-NN bias path (ag @ out @ B2) + root + bias
        m = (jnp.dot(a, msgs, preferred_element_type=f32)
             + jnp.dot(ag, jnp.dot(out, b2mat, preferred_element_type=f32),
                       preferred_element_type=f32)
             + jnp.dot(out, root, preferred_element_type=f32)
             + conv_b)
        m = jnp.maximum(m, 0.0)                                          # [N, D]
        # GRU cell (torch gate order r, z, n), gates split structurally.
        r = jax.nn.sigmoid(jnp.dot(m, w_ir, preferred_element_type=f32) + b_ir
                           + jnp.dot(h, w_hr, preferred_element_type=f32) + b_hr)
        z = jax.nn.sigmoid(jnp.dot(m, w_iz, preferred_element_type=f32) + b_iz
                           + jnp.dot(h, w_hz, preferred_element_type=f32) + b_hz)
        ng = jnp.tanh(jnp.dot(m, w_in, preferred_element_type=f32) + b_in
                      + r * (jnp.dot(h, w_hn, preferred_element_type=f32) + b_hn))
        h = (1.0 - z) * ng + z * h
        out = h

    # ---- linLast + log_softmax (single tiny [N,4] store at the very end) ----
    logits = (jnp.dot(out, lin_last_w, preferred_element_type=f32)[:, 0:BOND_TYPE]
              + lin_last_b)
    s = logits - jnp.max(logits, axis=-1, keepdims=True)
    o_ref[...] = s - jnp.log(jnp.sum(jnp.exp(s), axis=-1, keepdims=True))


# ----------------------------- wrappers -----------------------------

def prepare_packed(params, src, dst, n_nodes, n_edges):
    """One-time (outside jit) parameter + graph packing.

    Returns a dict of arrays that are passed unchanged to every forward call,
    so no transpose/reshape/one-hot XLA glue runs per call.
    """
    f32 = jnp.float32
    idn = jnp.arange(n_nodes)
    g = (src[:, None] == idn[None, :]).astype(f32)                       # [E, N]
    onehot_dst = (dst[None, :] == idn[:, None]).astype(f32)              # [N, E]
    deg = jnp.sum(onehot_dst, axis=1)
    a = onehot_dst / jnp.maximum(deg, 1.0)[:, None]                      # [N, E]
    ag = a @ g                                                            # [N, N]
    gw = max(n_edges, n_nodes)
    graph = jnp.zeros((n_edges + 2 * n_nodes, gw), f32)
    graph = graph.at[:n_edges, :n_nodes].set(g)
    graph = graph.at[n_edges:n_edges + n_nodes, :n_edges].set(a)
    graph = graph.at[n_edges + n_nodes:, :n_nodes].set(ag)

    # w2cat[d, k*D + f] = W2[k, d, f]
    w2cat = (params['nn_w2'].reshape(K_HIDDEN, DIM, DIM)
             .transpose(1, 0, 2).reshape(DIM, K_HIDDEN * DIM))            # [D, K*D]
    b2mat = params['nn_b2'].reshape(DIM, DIM)                             # [D, D]
    lin_last_w_pad = jnp.zeros((DIM, DIM), f32).at[:, :BOND_TYPE].set(
        params['lin_last_w'])
    sq_w = jnp.stack([b2mat, params['root'], lin_last_w_pad])             # [3, D, D]
    gru_w = jnp.concatenate([params['w_ih3'], params['w_hh3']], axis=0)   # [6, D, D]

    small = jnp.zeros((_SMALL_ROWS, DIM), f32)
    small = small.at[_R_LIN0_B].set(params['lin0_b'])
    small = small.at[_R_CONV_B].set(params['conv_b'])
    small = small.at[_R_BIH:_R_BIH + 3].set(params['b_ih3'])
    small = small.at[_R_BHH:_R_BHH + 3].set(params['b_hh3'])
    small = small.at[_R_LINLAST_B, :BOND_TYPE].set(params['lin_last_b'])
    small = small.at[_R_NN_W1, :K_HIDDEN].set(params['nn_w1'][0])
    small = small.at[_R_NN_B1, :K_HIDDEN].set(params['nn_b1'])
    small = small.at[_R_LIN0_W:_R_LIN0_W + NUM_FEATURES].set(params['lin0_w'])

    return {'graph': graph, 'w2cat': w2cat, 'sq_w': sq_w, 'gru_w': gru_w,
            'small': small}


@jax.jit
def net_forward(packed, x, edge_attr):
    n = x.shape[0]
    e = edge_attr.shape[0]
    kernel = functools.partial(_fused_net_kernel, n_nodes=n, n_edges=e,
                               dim=DIM, k_hidden=K_HIDDEN, n_iters=N_ITERS)
    return pl.pallas_call(
        kernel,
        out_shape=jax.ShapeDtypeStruct((n, BOND_TYPE), jnp.float32),
        cost_estimate=pl.CostEstimate(flops=50_000_000,
                                      transcendentals=10_000,
                                      bytes_accessed=700_000),
    )(x, edge_attr, packed['graph'], packed['w2cat'],
      packed['sq_w'], packed['gru_w'], packed['small'])


# ----------------------------- pure-JAX reference -----------------------------

def _reference_forward(params, x, src, dst, edge_attr):
    n = x.shape[0]
    out = jax.nn.relu(x @ params['lin0_w'] + params['lin0_b'])
    h = out
    phi = jax.nn.relu(edge_attr @ params['nn_w1'] + params['nn_b1'])
    w_edges = (phi @ params['nn_w2'] + params['nn_b2']).reshape(-1, DIM, DIM)
    onehot_dst = (dst[None, :] == jnp.arange(n)[:, None]).astype(jnp.float32)
    deg = onehot_dst.sum(axis=1)
    a = onehot_dst / jnp.maximum(deg, 1.0)[:, None]
    for _ in range(N_ITERS):
        x_src = out[src]
        msgs = jnp.einsum('ed,edf->ef', x_src, w_edges)
        m = jax.nn.relu(a @ msgs + out @ params['root'] + params['conv_b'])
        r = jax.nn.sigmoid(m @ params['w_ih3'][0] + params['b_ih3'][0]
                           + h @ params['w_hh3'][0] + params['b_hh3'][0])
        z = jax.nn.sigmoid(m @ params['w_ih3'][1] + params['b_ih3'][1]
                           + h @ params['w_hh3'][1] + params['b_hh3'][1])
        ng = jnp.tanh(m @ params['w_ih3'][2] + params['b_ih3'][2]
                      + r * (h @ params['w_hh3'][2] + params['b_hh3'][2]))
        h = (1.0 - z) * ng + z * h
        out = h
    return jax.nn.log_softmax(out @ params['lin_last_w'] + params['lin_last_b'],
                              axis=-1)


# ----------------------------- params / main -----------------------------

def init_params(key):
    ks = jax.random.split(key, 14)
    s = 0.1
    nrm = jax.random.normal
    return {
        'lin0_w': s * nrm(ks[0], (NUM_FEATURES, DIM), jnp.float32),
        'lin0_b': s * nrm(ks[1], (DIM,), jnp.float32),
        'nn_w1': s * nrm(ks[2], (1, K_HIDDEN), jnp.float32),
        'nn_b1': s * nrm(ks[3], (K_HIDDEN,), jnp.float32),
        'nn_w2': s * nrm(ks[4], (K_HIDDEN, DIM * DIM), jnp.float32),
        'nn_b2': s * nrm(ks[5], (DIM * DIM,), jnp.float32),
        'root': s * nrm(ks[6], (DIM, DIM), jnp.float32),
        'conv_b': s * nrm(ks[7], (DIM,), jnp.float32),
        # GRU weights stored pre-transposed & gate-split (gate order r, z, n):
        #   gi_g = x @ w_ih3[g] + b_ih3[g]
        'w_ih3': s * nrm(ks[8], (3, DIM, DIM), jnp.float32),
        'w_hh3': s * nrm(ks[9], (3, DIM, DIM), jnp.float32),
        'b_ih3': s * nrm(ks[10], (3, DIM), jnp.float32),
        'b_hh3': s * nrm(ks[11], (3, DIM), jnp.float32),
        'lin_last_w': s * nrm(ks[12], (DIM, BOND_TYPE), jnp.float32),
        'lin_last_b': s * nrm(ks[13], (BOND_TYPE,), jnp.float32),
    }


if __name__ == "__main__":
    key = jax.random.PRNGKey(0)
    k_x, k_src, k_dst, k_ea, k_p = jax.random.split(key, 5)

    # Synthetic graph consistent with the module's forward:
    #   data.x            : [N, num_features]
    #   data.edge_index_2 : [2, E]  (row 0 = source j, row 1 = target i)
    #   data.edge_attr_2  : [E, 1]
    x = jax.random.normal(k_x, (N_NODES, NUM_FEATURES), jnp.float32)
    src = jax.random.randint(k_src, (N_EDGES,), 0, N_NODES)
    dst = jax.random.randint(k_dst, (N_EDGES,), 0, N_NODES)
    edge_attr = jax.random.normal(k_ea, (N_EDGES, 1), jnp.float32)

    params = init_params(k_p)

    # One-time packing (graph matrices + repacked weights), OUTSIDE the jit.
    packed = jax.tree.map(jax.block_until_ready,
                          prepare_packed(params, src, dst, N_NODES, N_EDGES))

    out = jax.block_until_ready(net_forward(packed, x, edge_attr))

    assert out.shape == (N_NODES, BOND_TYPE)
    assert bool(jnp.all(jnp.isfinite(out)))

    ref = _reference_forward(params, x, src, dst, edge_attr)
    assert bool(jnp.max(jnp.abs(out - ref)) < 1e-4), "mismatch vs. pure-JAX reference"

    print("KERNEL_OK")
</pallas_src>

<mosaic_0001>
module attributes {stable_mosaic.version = 11 : i64} {
  func.func @_fused_net_kernel(%arg0: memref<16x8xf32, #tpu.memory_space<vmem>>, %arg1: memref<32x1xf32, #tpu.memory_space<vmem>>, %arg2: memref<64x32xf32, #tpu.memory_space<vmem>>, %arg3: memref<64x2048xf32, #tpu.memory_space<vmem>>, %arg4: memref<3x64x64xf32, #tpu.memory_space<vmem>>, %arg5: memref<6x64x64xf32, #tpu.memory_space<vmem>>, %arg6: memref<24x64xf32, #tpu.memory_space<vmem>>, %arg7: memref<16x4xf32, #tpu.memory_space<vmem>>) attributes {dimension_semantics = [], scalar_prefetch = 0 : i64, scratch_operands = 0 : i64, tpu.core_type = #tpu.core_type<tc>} {
    %c0 = arith.constant 0 : index
    %c0_0 = arith.constant 0 : index
    %0 = vector.load %arg6[%c0, %c0_0] : memref<24x64xf32, #tpu.memory_space<vmem>>, vector<24x64xf32>
    %1 = vector.extract_strided_slice %0 {offsets = [16, 0], sizes = [8, 64], strides = [1, 1]} : vector<24x64xf32> to vector<8x64xf32>
    %2 = vector.extract_strided_slice %0 {offsets = [0, 0], sizes = [1, 64], strides = [1, 1]} : vector<24x64xf32> to vector<1x64xf32>
    %3 = vector.extract_strided_slice %0 {offsets = [9, 0], sizes = [1, 32], strides = [1, 1]} : vector<24x64xf32> to vector<1x32xf32>
    %4 = vector.extract_strided_slice %0 {offsets = [10, 0], sizes = [1, 32], strides = [1, 1]} : vector<24x64xf32> to vector<1x32xf32>
    %5 = vector.extract_strided_slice %0 {offsets = [8, 0], sizes = [1, 4], strides = [1, 1]} : vector<24x64xf32> to vector<1x4xf32>
    %6 = vector.extract_strided_slice %0 {offsets = [1, 0], sizes = [1, 64], strides = [1, 1]} : vector<24x64xf32> to vector<1x64xf32>
    %7 = vector.shape_cast %6 : vector<1x64xf32> to vector<1x64xf32>
    %8 = vector.broadcast %7 : vector<1x64xf32> to vector<16x64xf32>
    %9 = vector.extract_strided_slice %0 {offsets = [2, 0], sizes = [1, 64], strides = [1, 1]} : vector<24x64xf32> to vector<1x64xf32>
    %10 = vector.shape_cast %9 : vector<1x64xf32> to vector<1x64xf32>
    %11 = vector.broadcast %10 : vector<1x64xf32> to vector<16x64xf32>
    %12 = vector.extract_strided_slice %0 {offsets = [3, 0], sizes = [1, 64], strides = [1, 1]} : vector<24x64xf32> to vector<1x64xf32>
    %13 = vector.shape_cast %12 : vector<1x64xf32> to vector<1x64xf32>
    %14 = vector.broadcast %13 : vector<1x64xf32> to vector<16x64xf32>
    %15 = vector.extract_strided_slice %0 {offsets = [4, 0], sizes = [1, 64], strides = [1, 1]} : vector<24x64xf32> to vector<1x64xf32>
    %16 = vector.shape_cast %15 : vector<1x64xf32> to vector<1x64xf32>
    %17 = vector.broadcast %16 : vector<1x64xf32> to vector<16x64xf32>
    %18 = vector.extract_strided_slice %0 {offsets = [5, 0], sizes = [1, 64], strides = [1, 1]} : vector<24x64xf32> to vector<1x64xf32>
    %19 = vector.shape_cast %18 : vector<1x64xf32> to vector<1x64xf32>
    %20 = vector.broadcast %19 : vector<1x64xf32> to vector<16x64xf32>
    %21 = vector.extract_strided_slice %0 {offsets = [6, 0], sizes = [1, 64], strides = [1, 1]} : vector<24x64xf32> to vector<1x64xf32>
    %22 = vector.shape_cast %21 : vector<1x64xf32> to vector<1x64xf32>
    %23 = vector.broadcast %22 : vector<1x64xf32> to vector<16x64xf32>
    %24 = vector.extract_strided_slice %0 {offsets = [7, 0], sizes = [1, 64], strides = [1, 1]} : vector<24x64xf32> to vector<1x64xf32>
    %25 = vector.shape_cast %24 : vector<1x64xf32> to vector<1x64xf32>
    %26 = vector.broadcast %25 : vector<1x64xf32> to vector<16x64xf32>
    %c0_1 = arith.constant 0 : index
    %c0_2 = arith.constant 0 : index
    %27 = vector.load %arg2[%c0_1, %c0_2] : memref<64x32xf32, #tpu.memory_space<vmem>>, vector<64x32xf32>
    %28 = vector.extract_strided_slice %27 {offsets = [0, 0], sizes = [32, 16], strides = [1, 1]} : vector<64x32xf32> to vector<32x16xf32>
    %29 = vector.extract_strided_slice %27 {offsets = [32, 0], sizes = [16, 32], strides = [1, 1]} : vector<64x32xf32> to vector<16x32xf32>
    %30 = vector.extract_strided_slice %27 {offsets = [48, 0], sizes = [16, 16], strides = [1, 1]} : vector<64x32xf32> to vector<16x16xf32>
    %c0_3 = arith.constant 0 : index
    %c0_4 = arith.constant 0 : index
    %c0_5 = arith.constant 0 : index
    %31 = vector.load %arg4[%c0_3, %c0_4, %c0_5] : memref<3x64x64xf32, #tpu.memory_space<vmem>>, vector<1x64x64xf32>
    %32 = vector.shape_cast %31 : vector<1x64x64xf32> to vector<64x64xf32>
    %c1 = arith.constant 1 : index
    %c0_6 = arith.constant 0 : index
    %c0_7 = arith.constant 0 : index
    %33 = vector.load %arg4[%c1, %c0_6, %c0_7] : memref<3x64x64xf32, #tpu.memory_space<vmem>>, vector<1x64x64xf32>
    %34 = vector.shape_cast %33 : vector<1x64x64xf32> to vector<64x64xf32>
    %c2 = arith.constant 2 : index
    %c0_8 = arith.constant 0 : index
    %c0_9 = arith.constant 0 : index
    %35 = vector.load %arg4[%c2, %c0_8, %c0_9] : memref<3x64x64xf32, #tpu.memory_space<vmem>>, vector<1x64x64xf32>
    %36 = vector.shape_cast %35 : vector<1x64x64xf32> to vector<64x64xf32>
    %c0_10 = arith.constant 0 : index
    %c0_11 = arith.constant 0 : index
    %c0_12 = arith.constant 0 : index
    %37 = vector.load %arg5[%c0_10, %c0_11, %c0_12] : memref<6x64x64xf32, #tpu.memory_space<vmem>>, vector<1x64x64xf32>
    %38 = vector.shape_cast %37 : vector<1x64x64xf32> to vector<64x64xf32>
    %c1_13 = arith.constant 1 : index
    %c0_14 = arith.constant 0 : index
    %c0_15 = arith.constant 0 : index
    %39 = vector.load %arg5[%c1_13, %c0_14, %c0_15] : memref<6x64x64xf32, #tpu.memory_space<vmem>>, vector<1x64x64xf32>
    %40 = vector.shape_cast %39 : vector<1x64x64xf32> to vector<64x64xf32>
    %c2_16 = arith.constant 2 : index
    %c0_17 = arith.constant 0 : index
    %c0_18 = arith.constant 0 : index
    %41 = vector.load %arg5[%c2_16, %c0_17, %c0_18] : memref<6x64x64xf32, #tpu.memory_space<vmem>>, vector<1x64x64xf32>
    %42 = vector.shape_cast %41 : vector<1x64x64xf32> to vector<64x64xf32>
    %c3 = arith.constant 3 : index
    %c0_19 = arith.constant 0 : index
    %c0_20 = arith.constant 0 : index
    %43 = vector.load %arg5[%c3, %c0_19, %c0_20] : memref<6x64x64xf32, #tpu.memory_space<vmem>>, vector<1x64x64xf32>
    %44 = vector.shape_cast %43 : vector<1x64x64xf32> to vector<64x64xf32>
    %c4 = arith.constant 4 : index
    %c0_21 = arith.constant 0 : index
    %c0_22 = arith.constant 0 : index
    %45 = vector.load %arg5[%c4, %c0_21, %c0_22] : memref<6x64x64xf32, #tpu.memory_space<vmem>>, vector<1x64x64xf32>
    %46 = vector.shape_cast %45 : vector<1x64x64xf32> to vector<64x64xf32>
    %c5 = arith.constant 5 : index
    %c0_23 = arith.constant 0 : index
    %c0_24 = arith.constant 0 : index
    %47 = vector.load %arg5[%c5, %c0_23, %c0_24] : memref<6x64x64xf32, #tpu.memory_space<vmem>>, vector<1x64x64xf32>
    %48 = vector.shape_cast %47 : vector<1x64x64xf32> to vector<64x64xf32>
    %c0_25 = arith.constant 0 : index
    %c0_26 = arith.constant 0 : index
    %49 = vector.load %arg3[%c0_25, %c0_26] : memref<64x2048xf32, #tpu.memory_space<vmem>>, vector<64x2048xf32>
    %c0_27 = arith.constant 0 : index
    %c0_28 = arith.constant 0 : index
    %50 = vector.load %arg0[%c0_27, %c0_28] : memref<16x8xf32, #tpu.memory_space<vmem>>, vector<16x8xf32>
    %cst = arith.constant dense<0.000000e+00> : vector<16x64xf32>
    %51 = tpu.matmul %50, %1, %cst {dimension_numbers = #tpu.dot_dimension_numbers<[1], [0], [0], [1], [0, 0, 1, 1], [], []>} : vector<16x8xf32>, vector<8x64xf32>, vector<16x64xf32> -> vector<16x64xf32>
    %52 = vector.broadcast %2 : vector<1x64xf32> to vector<16x64xf32>
    %53 = arith.addf %51, %52 : vector<16x64xf32>
    %cst_29 = arith.constant 0.000000e+00 : f32
    %54 = vector.broadcast %cst_29 : f32 to vector<16x64xf32>
    %55 = arith.maximumf %53, %54 : vector<16x64xf32>
    %c0_30 = arith.constant 0 : index
    %c0_31 = arith.constant 0 : index
    %56 = vector.load %arg1[%c0_30, %c0_31] : memref<32x1xf32, #tpu.memory_space<vmem>>, vector<32x1xf32>
    %57 = vector.broadcast %56 : vector<32x1xf32> to vector<32x32xf32>
    %58 = vector.broadcast %3 : vector<1x32xf32> to vector<32x32xf32>
    %59 = arith.mulf %57, %58 : vector<32x32xf32>
    %60 = vector.broadcast %4 : vector<1x32xf32> to vector<32x32xf32>
    %61 = arith.addf %59, %60 : vector<32x32xf32>
    %cst_32 = arith.constant 0.000000e+00 : f32
    %62 = vector.broadcast %cst_32 : f32 to vector<32x32xf32>
    %63 = arith.maximumf %61, %62 : vector<32x32xf32>
    %64 = tpu.iota {dimensions = array<i32: 0>} : vector<32x2048xi32>
    %65 = tpu.iota {dimensions = array<i32: 1>} : vector<32x2048xi32>
    %c64_i32 = arith.constant 64 : i32
    %66 = vector.broadcast %c64_i32 : i32 to vector<32x2048xi32>
    %67 = arith.muli %64, %66 : vector<32x2048xi32>
    %68 = arith.cmpi sge, %65, %67 : vector<32x2048xi32>
    %c1_i32 = arith.constant 1 : i32
    %69 = vector.broadcast %c1_i32 : i32 to vector<32x2048xi32>
    %70 = arith.addi %64, %69 : vector<32x2048xi32>
    %c64_i32_33 = arith.constant 64 : i32
    %71 = vector.broadcast %c64_i32_33 : i32 to vector<32x2048xi32>
    %72 = arith.muli %70, %71 : vector<32x2048xi32>
    %73 = arith.cmpi slt, %65, %72 : vector<32x2048xi32>
    %74 = arith.andi %68, %73 : vector<32x2048xi1>
    %75 = arith.extui %74 : vector<32x2048xi1> to vector<32x2048xi32>
    %76 = arith.sitofp %75 : vector<32x2048xi32> to vector<32x2048xf32>
    %77 = tpu.iota {dimensions = array<i32: 0>} : vector<2048x64xi32>
    %78 = tpu.iota {dimensions = array<i32: 1>} : vector<2048x64xi32>
    %c63_i32 = arith.constant 63 : i32
    %79 = vector.broadcast %c63_i32 : i32 to vector<2048x64xi32>
    %80 = arith.andi %77, %79 : vector<2048x64xi32>
    %81 = arith.cmpi eq, %80, %78 : vector<2048x64xi32>
    %82 = arith.extui %81 : vector<2048x64xi1> to vector<2048x64xi32>
    %83 = arith.sitofp %82 : vector<2048x64xi32> to vector<2048x64xf32>
    %cst_34 = arith.constant dense<0.000000e+00> : vector<32x2048xf32>
    %84 = tpu.matmul %63, %76, %cst_34 {dimension_numbers = #tpu.dot_dimension_numbers<[1], [0], [0], [1], [0, 0, 1, 1], [], []>} : vector<32x32xf32>, vector<32x2048xf32>, vector<32x2048xf32> -> vector<32x2048xf32>
    %cst_35 = arith.constant dense<0.000000e+00> : vector<16x2048xf32>
    %85 = tpu.matmul %55, %49, %cst_35 {dimension_numbers = #tpu.dot_dimension_numbers<[1], [0], [0], [1], [0, 0, 1, 1], [], []>} : vector<16x64xf32>, vector<64x2048xf32>, vector<16x2048xf32> -> vector<16x2048xf32>
    %cst_36 = arith.constant dense<0.000000e+00> : vector<32x2048xf32>
    %86 = tpu.matmul %28, %85, %cst_36 {dimension_numbers = #tpu.dot_dimension_numbers<[1], [0], [0], [1], [0, 0, 1, 1], [], []>} : vector<32x16xf32>, vector<16x2048xf32>, vector<32x2048xf32> -> vector<32x2048xf32>
    %87 = arith.mulf %84, %86 : vector<32x2048xf32>
    %cst_37 = arith.constant dense<0.000000e+00> : vector<32x64xf32>
    %88 = tpu.matmul %87, %83, %cst_37 {dimension_numbers = #tpu.dot_dimension_numbers<[1], [0], [0], [1], [0, 0, 1, 1], [], []>} : vector<32x2048xf32>, vector<2048x64xf32>, vector<32x64xf32> -> vector<32x64xf32>
    %cst_38 = arith.constant dense<0.000000e+00> : vector<16x64xf32>
    %89 = tpu.matmul %29, %88, %cst_38 {dimension_numbers = #tpu.dot_dimension_numbers<[1], [0], [0], [1], [0, 0, 1, 1], [], []>} : vector<16x32xf32>, vector<32x64xf32>, vector<16x64xf32> -> vector<16x64xf32>
    %cst_39 = arith.constant dense<0.000000e+00> : vector<16x64xf32>
    %90 = tpu.matmul %55, %32, %cst_39 {dimension_numbers = #tpu.dot_dimension_numbers<[1], [0], [0], [1], [0, 0, 1, 1], [], []>} : vector<16x64xf32>, vector<64x64xf32>, vector<16x64xf32> -> vector<16x64xf32>
    %cst_40 = arith.constant dense<0.000000e+00> : vector<16x64xf32>
    %91 = tpu.matmul %30, %90, %cst_40 {dimension_numbers = #tpu.dot_dimension_numbers<[1], [0], [0], [1], [0, 0, 1, 1], [], []>} : vector<16x16xf32>, vector<16x64xf32>, vector<16x64xf32> -> vector<16x64xf32>
    %92 = arith.addf %89, %91 : vector<16x64xf32>
    %cst_41 = arith.constant dense<0.000000e+00> : vector<16x64xf32>
    %93 = tpu.matmul %55, %34, %cst_41 {dimension_numbers = #tpu.dot_dimension_numbers<[1], [0], [0], [1], [0, 0, 1, 1], [], []>} : vector<16x64xf32>, vector<64x64xf32>, vector<16x64xf32> -> vector<16x64xf32>
    %94 = arith.addf %92, %93 : vector<16x64xf32>
    %95 = arith.addf %94, %8 : vector<16x64xf32>
    %cst_42 = arith.constant 0.000000e+00 : f32
    %96 = vector.broadcast %cst_42 : f32 to vector<16x64xf32>
    %97 = arith.maximumf %95, %96 : vector<16x64xf32>
    %cst_43 = arith.constant dense<0.000000e+00> : vector<16x64xf32>
    %98 = tpu.matmul %97, %38, %cst_43 {dimension_numbers = #tpu.dot_dimension_numbers<[1], [0], [0], [1], [0, 0, 1, 1], [], []>} : vector<16x64xf32>, vector<64x64xf32>, vector<16x64xf32> -> vector<16x64xf32>
    %99 = arith.addf %98, %11 : vector<16x64xf32>
    %cst_44 = arith.constant dense<0.000000e+00> : vector<16x64xf32>
    %100 = tpu.matmul %55, %44, %cst_44 {dimension_numbers = #tpu.dot_dimension_numbers<[1], [0], [0], [1], [0, 0, 1, 1], [], []>} : vector<16x64xf32>, vector<64x64xf32>, vector<16x64xf32> -> vector<16x64xf32>
    %101 = arith.addf %99, %100 : vector<16x64xf32>
    %102 = arith.addf %101, %20 : vector<16x64xf32>
    %103 = arith.negf %102 : vector<16x64xf32>
    %104 = math.exp %103 : vector<16x64xf32>
    %cst_45 = arith.constant 1.000000e+00 : f32
    %105 = vector.broadcast %cst_45 : f32 to vector<16x64xf32>
    %106 = arith.addf %105, %104 : vector<16x64xf32>
    %107 = arith.divf %105, %106 : vector<16x64xf32>
    %cst_46 = arith.constant dense<0.000000e+00> : vector<16x64xf32>
    %108 = tpu.matmul %97, %40, %cst_46 {dimension_numbers = #tpu.dot_dimension_numbers<[1], [0], [0], [1], [0, 0, 1, 1], [], []>} : vector<16x64xf32>, vector<64x64xf32>, vector<16x64xf32> -> vector<16x64xf32>
    %109 = arith.addf %108, %14 : vector<16x64xf32>
    %cst_47 = arith.constant dense<0.000000e+00> : vector<16x64xf32>
    %110 = tpu.matmul %55, %46, %cst_47 {dimension_numbers = #tpu.dot_dimension_numbers<[1], [0], [0], [1], [0, 0, 1, 1], [], []>} : vector<16x64xf32>, vector<64x64xf32>, vector<16x64xf32> -> vector<16x64xf32>
    %111 = arith.addf %109, %110 : vector<16x64xf32>
    %112 = arith.addf %111, %23 : vector<16x64xf32>
    %113 = arith.negf %112 : vector<16x64xf32>
    %114 = math.exp %113 : vector<16x64xf32>
    %cst_48 = arith.constant 1.000000e+00 : f32
    %115 = vector.broadcast %cst_48 : f32 to vector<16x64xf32>
    %116 = arith.addf %115, %114 : vector<16x64xf32>
    %117 = arith.divf %115, %116 : vector<16x64xf32>
    %cst_49 = arith.constant dense<0.000000e+00> : vector<16x64xf32>
    %118 = tpu.matmul %97, %42, %cst_49 {dimension_numbers = #tpu.dot_dimension_numbers<[1], [0], [0], [1], [0, 0, 1, 1], [], []>} : vector<16x64xf32>, vector<64x64xf32>, vector<16x64xf32> -> vector<16x64xf32>
    %119 = arith.addf %118, %17 : vector<16x64xf32>
    %cst_50 = arith.constant dense<0.000000e+00> : vector<16x64xf32>
    %120 = tpu.matmul %55, %48, %cst_50 {dimension_numbers = #tpu.dot_dimension_numbers<[1], [0], [0], [1], [0, 0, 1, 1], [], []>} : vector<16x64xf32>, vector<64x64xf32>, vector<16x64xf32> -> vector<16x64xf32>
    %121 = arith.addf %120, %26 : vector<16x64xf32>
    %122 = arith.mulf %107, %121 : vector<16x64xf32>
    %123 = arith.addf %119, %122 : vector<16x64xf32>
    %124 = math.tanh %123 : vector<16x64xf32>
    %cst_51 = arith.constant 1.000000e+00 : f32
    %125 = vector.broadcast %cst_51 : f32 to vector<16x64xf32>
    %126 = arith.subf %125, %117 : vector<16x64xf32>
    %127 = arith.mulf %126, %124 : vector<16x64xf32>
    %128 = arith.mulf %117, %55 : vector<16x64xf32>
    %129 = arith.addf %127, %128 : vector<16x64xf32>
    %cst_52 = arith.constant dense<0.000000e+00> : vector<16x2048xf32>
    %130 = tpu.matmul %129, %49, %cst_52 {dimension_numbers = #tpu.dot_dimension_numbers<[1], [0], [0], [1], [0, 0, 1, 1], [], []>} : vector<16x64xf32>, vector<64x2048xf32>, vector<16x2048xf32> -> vector<16x2048xf32>
    %cst_53 = arith.constant dense<0.000000e+00> : vector<32x2048xf32>
    %131 = tpu.matmul %28, %130, %cst_53 {dimension_numbers = #tpu.dot_dimension_numbers<[1], [0], [0], [1], [0, 0, 1, 1], [], []>} : vector<32x16xf32>, vector<16x2048xf32>, vector<32x2048xf32> -> vector<32x2048xf32>
    %132 = arith.mulf %84, %131 : vector<32x2048xf32>
    %cst_54 = arith.constant dense<0.000000e+00> : vector<32x64xf32>
    %133 = tpu.matmul %132, %83, %cst_54 {dimension_numbers = #tpu.dot_dimension_numbers<[1], [0], [0], [1], [0, 0, 1, 1], [], []>} : vector<32x2048xf32>, vector<2048x64xf32>, vector<32x64xf32> -> vector<32x64xf32>
    %cst_55 = arith.constant dense<0.000000e+00> : vector<16x64xf32>
    %134 = tpu.matmul %29, %133, %cst_55 {dimension_numbers = #tpu.dot_dimension_numbers<[1], [0], [0], [1], [0, 0, 1, 1], [], []>} : vector<16x32xf32>, vector<32x64xf32>, vector<16x64xf32> -> vector<16x64xf32>
    %cst_56 = arith.constant dense<0.000000e+00> : vector<16x64xf32>
    %135 = tpu.matmul %129, %32, %cst_56 {dimension_numbers = #tpu.dot_dimension_numbers<[1], [0], [0], [1], [0, 0, 1, 1], [], []>} : vector<16x64xf32>, vector<64x64xf32>, vector<16x64xf32> -> vector<16x64xf32>
    %cst_57 = arith.constant dense<0.000000e+00> : vector<16x64xf32>
    %136 = tpu.matmul %30, %135, %cst_57 {dimension_numbers = #tpu.dot_dimension_numbers<[1], [0], [0], [1], [0, 0, 1, 1], [], []>} : vector<16x16xf32>, vector<16x64xf32>, vector<16x64xf32> -> vector<16x64xf32>
    %137 = arith.addf %134, %136 : vector<16x64xf32>
    %cst_58 = arith.constant dense<0.000000e+00> : vector<16x64xf32>
    %138 = tpu.matmul %129, %34, %cst_58 {dimension_numbers = #tpu.dot_dimension_numbers<[1], [0], [0], [1], [0, 0, 1, 1], [], []>} : vector<16x64xf32>, vector<64x64xf32>, vector<16x64xf32> -> vector<16x64xf32>
    %139 = arith.addf %137, %138 : vector<16x64xf32>
    %140 = arith.addf %139, %8 : vector<16x64xf32>
    %cst_59 = arith.constant 0.000000e+00 : f32
    %141 = vector.broadcast %cst_59 : f32 to vector<16x64xf32>
    %142 = arith.maximumf %140, %141 : vector<16x64xf32>
    %cst_60 = arith.constant dense<0.000000e+00> : vector<16x64xf32>
    %143 = tpu.matmul %142, %38, %cst_60 {dimension_numbers = #tpu.dot_dimension_numbers<[1], [0], [0], [1], [0, 0, 1, 1], [], []>} : vector<16x64xf32>, vector<64x64xf32>, vector<16x64xf32> -> vector<16x64xf32>
    %144 = arith.addf %143, %11 : vector<16x64xf32>
    %cst_61 = arith.constant dense<0.000000e+00> : vector<16x64xf32>
    %145 = tpu.matmul %129, %44, %cst_61 {dimension_numbers = #tpu.dot_dimension_numbers<[1], [0], [0], [1], [0, 0, 1, 1], [], []>} : vector<16x64xf32>, vector<64x64xf32>, vector<16x64xf32> -> vector<16x64xf32>
    %146 = arith.addf %144, %145 : vector<16x64xf32>
    %147 = arith.addf %146, %20 : vector<16x64xf32>
    %148 = arith.negf %147 : vector<16x64xf32>
    %149 = math.exp %148 : vector<16x64xf32>
    %cst_62 = arith.constant 1.000000e+00 : f32
    %150 = vector.broadcast %cst_62 : f32 to vector<16x64xf32>
    %151 = arith.addf %150, %149 : vector<16x64xf32>
    %152 = arith.divf %150, %151 : vector<16x64xf32>
    %cst_63 = arith.constant dense<0.000000e+00> : vector<16x64xf32>
    %153 = tpu.matmul %142, %40, %cst_63 {dimension_numbers = #tpu.dot_dimension_numbers<[1], [0], [0], [1], [0, 0, 1, 1], [], []>} : vector<16x64xf32>, vector<64x64xf32>, vector<16x64xf32> -> vector<16x64xf32>
    %154 = arith.addf %153, %14 : vector<16x64xf32>
    %cst_64 = arith.constant dense<0.000000e+00> : vector<16x64xf32>
    %155 = tpu.matmul %129, %46, %cst_64 {dimension_numbers = #tpu.dot_dimension_numbers<[1], [0], [0], [1], [0, 0, 1, 1], [], []>} : vector<16x64xf32>, vector<64x64xf32>, vector<16x64xf32> -> vector<16x64xf32>
    %156 = arith.addf %154, %155 : vector<16x64xf32>
    %157 = arith.addf %156, %23 : vector<16x64xf32>
    %158 = arith.negf %157 : vector<16x64xf32>
    %159 = math.exp %158 : vector<16x64xf32>
    %cst_65 = arith.constant 1.000000e+00 : f32
    %160 = vector.broadcast %cst_65 : f32 to vector<16x64xf32>
    %161 = arith.addf %160, %159 : vector<16x64xf32>
    %162 = arith.divf %160, %161 : vector<16x64xf32>
    %cst_66 = arith.constant dense<0.000000e+00> : vector<16x64xf32>
    %163 = tpu.matmul %142, %42, %cst_66 {dimension_numbers = #tpu.dot_dimension_numbers<[1], [0], [0], [1], [0, 0, 1, 1], [], []>} : vector<16x64xf32>, vector<64x64xf32>, vector<16x64xf32> -> vector<16x64xf32>
    %164 = arith.addf %163, %17 : vector<16x64xf32>
    %cst_67 = arith.constant dense<0.000000e+00> : vector<16x64xf32>
    %165 = tpu.matmul %129, %48, %cst_67 {dimension_numbers = #tpu.dot_dimension_numbers<[1], [0], [0], [1], [0, 0, 1, 1], [], []>} : vector<16x64xf32>, vector<64x64xf32>, vector<16x64xf32> -> vector<16x64xf32>
    %166 = arith.addf %165, %26 : vector<16x64xf32>
    %167 = arith.mulf %152, %166 : vector<16x64xf32>
    %168 = arith.addf %164, %167 : vector<16x64xf32>
    %169 = math.tanh %168 : vector<16x64xf32>
    %cst_68 = arith.constant 1.000000e+00 : f32
    %170 = vector.broadcast %cst_68 : f32 to vector<16x64xf32>
    %171 = arith.subf %170, %162 : vector<16x64xf32>
    %172 = arith.mulf %171, %169 : vector<16x64xf32>
    %173 = arith.mulf %162, %129 : vector<16x64xf32>
    %174 = arith.addf %172, %173 : vector<16x64xf32>
    %cst_69 = arith.constant dense<0.000000e+00> : vector<16x2048xf32>
    %175 = tpu.matmul %174, %49, %cst_69 {dimension_numbers = #tpu.dot_dimension_numbers<[1], [0], [0], [1], [0, 0, 1, 1], [], []>} : vector<16x64xf32>, vector<64x2048xf32>, vector<16x2048xf32> -> vector<16x2048xf32>
    %cst_70 = arith.constant dense<0.000000e+00> : vector<32x2048xf32>
    %176 = tpu.matmul %28, %175, %cst_70 {dimension_numbers = #tpu.dot_dimension_numbers<[1], [0], [0], [1], [0, 0, 1, 1], [], []>} : vector<32x16xf32>, vector<16x2048xf32>, vector<32x2048xf32> -> vector<32x2048xf32>
    %177 = arith.mulf %84, %176 : vector<32x2048xf32>
    %cst_71 = arith.constant dense<0.000000e+00> : vector<32x64xf32>
    %178 = tpu.matmul %177, %83, %cst_71 {dimension_numbers = #tpu.dot_dimension_numbers<[1], [0], [0], [1], [0, 0, 1, 1], [], []>} : vector<32x2048xf32>, vector<2048x64xf32>, vector<32x64xf32> -> vector<32x64xf32>
    %cst_72 = arith.constant dense<0.000000e+00> : vector<16x64xf32>
    %179 = tpu.matmul %29, %178, %cst_72 {dimension_numbers = #tpu.dot_dimension_numbers<[1], [0], [0], [1], [0, 0, 1, 1], [], []>} : vector<16x32xf32>, vector<32x64xf32>, vector<16x64xf32> -> vector<16x64xf32>
    %cst_73 = arith.constant dense<0.000000e+00> : vector<16x64xf32>
    %180 = tpu.matmul %174, %32, %cst_73 {dimension_numbers = #tpu.dot_dimension_numbers<[1], [0], [0], [1], [0, 0, 1, 1], [], []>} : vector<16x64xf32>, vector<64x64xf32>, vector<16x64xf32> -> vector<16x64xf32>
    %cst_74 = arith.constant dense<0.000000e+00> : vector<16x64xf32>
    %181 = tpu.matmul %30, %180, %cst_74 {dimension_numbers = #tpu.dot_dimension_numbers<[1], [0], [0], [1], [0, 0, 1, 1], [], []>} : vector<16x16xf32>, vector<16x64xf32>, vector<16x64xf32> -> vector<16x64xf32>
    %182 = arith.addf %179, %181 : vector<16x64xf32>
    %cst_75 = arith.constant dense<0.000000e+00> : vector<16x64xf32>
    %183 = tpu.matmul %174, %34, %cst_75 {dimension_numbers = #tpu.dot_dimension_numbers<[1], [0], [0], [1], [0, 0, 1, 1], [], []>} : vector<16x64xf32>, vector<64x64xf32>, vector<16x64xf32> -> vector<16x64xf32>
    %184 = arith.addf %182, %183 : vector<16x64xf32>
    %185 = arith.addf %184, %8 : vector<16x64xf32>
    %cst_76 = arith.constant 0.000000e+00 : f32
    %186 = vector.broadcast %cst_76 : f32 to vector<16x64xf32>
    %187 = arith.maximumf %185, %186 : vector<16x64xf32>
    %cst_77 = arith.constant dense<0.000000e+00> : vector<16x64xf32>
    %188 = tpu.matmul %187, %38, %cst_77 {dimension_numbers = #tpu.dot_dimension_numbers<[1], [0], [0], [1], [0, 0, 1, 1], [], []>} : vector<16x64xf32>, vector<64x64xf32>, vector<16x64xf32> -> vector<16x64xf32>
    %189 = arith.addf %188, %11 : vector<16x64xf32>
    %cst_78 = arith.constant dense<0.000000e+00> : vector<16x64xf32>
    %190 = tpu.matmul %174, %44, %cst_78 {dimension_numbers = #tpu.dot_dimension_numbers<[1], [0], [0], [1], [0, 0, 1, 1], [], []>} : vector<16x64xf32>, vector<64x64xf32>, vector<16x64xf32> -> vector<16x64xf32>
    %191 = arith.addf %189, %190 : vector<16x64xf32>
    %192 = arith.addf %191, %20 : vector<16x64xf32>
    %193 = arith.negf %192 : vector<16x64xf32>
    %194 = math.exp %193 : vector<16x64xf32>
    %cst_79 = arith.constant 1.000000e+00 : f32
    %195 = vector.broadcast %cst_79 : f32 to vector<16x64xf32>
    %196 = arith.addf %195, %194 : vector<16x64xf32>
    %197 = arith.divf %195, %196 : vector<16x64xf32>
    %cst_80 = arith.constant dense<0.000000e+00> : vector<16x64xf32>
    %198 = tpu.matmul %187, %40, %cst_80 {dimension_numbers = #tpu.dot_dimension_numbers<[1], [0], [0], [1], [0, 0, 1, 1], [], []>} : vector<16x64xf32>, vector<64x64xf32>, vector<16x64xf32> -> vector<16x64xf32>
    %199 = arith.addf %198, %14 : vector<16x64xf32>
    %cst_81 = arith.constant dense<0.000000e+00> : vector<16x64xf32>
    %200 = tpu.matmul %174, %46, %cst_81 {dimension_numbers = #tpu.dot_dimension_numbers<[1], [0], [0], [1], [0, 0, 1, 1], [], []>} : vector<16x64xf32>, vector<64x64xf32>, vector<16x64xf32> -> vector<16x64xf32>
    %201 = arith.addf %199, %200 : vector<16x64xf32>
    %202 = arith.addf %201, %23 : vector<16x64xf32>
    %203 = arith.negf %202 : vector<16x64xf32>
    %204 = math.exp %203 : vector<16x64xf32>
    %cst_82 = arith.constant 1.000000e+00 : f32
    %205 = vector.broadcast %cst_82 : f32 to vector<16x64xf32>
    %206 = arith.addf %205, %204 : vector<16x64xf32>
    %207 = arith.divf %205, %206 : vector<16x64xf32>
    %cst_83 = arith.constant dense<0.000000e+00> : vector<16x64xf32>
    %208 = tpu.matmul %187, %42, %cst_83 {dimension_numbers = #tpu.dot_dimension_numbers<[1], [0], [0], [1], [0, 0, 1, 1], [], []>} : vector<16x64xf32>, vector<64x64xf32>, vector<16x64xf32> -> vector<16x64xf32>
    %209 = arith.addf %208, %17 : vector<16x64xf32>
    %cst_84 = arith.constant dense<0.000000e+00> : vector<16x64xf32>
    %210 = tpu.matmul %174, %48, %cst_84 {dimension_numbers = #tpu.dot_dimension_numbers<[1], [0], [0], [1], [0, 0, 1, 1], [], []>} : vector<16x64xf32>, vector<64x64xf32>, vector<16x64xf32> -> vector<16x64xf32>
    %211 = arith.addf %210, %26 : vector<16x64xf32>
    %212 = arith.mulf %197, %211 : vector<16x64xf32>
    %213 = arith.addf %209, %212 : vector<16x64xf32>
    %214 = math.tanh %213 : vector<16x64xf32>
    %cst_85 = arith.constant 1.000000e+00 : f32
    %215 = vector.broadcast %cst_85 : f32 to vector<16x64xf32>
    %216 = arith.subf %215, %207 : vector<16x64xf32>
    %217 = arith.mulf %216, %214 : vector<16x64xf32>
    %218 = arith.mulf %207, %174 : vector<16x64xf32>
    %219 = arith.addf %217, %218 : vector<16x64xf32>
    %cst_86 = arith.constant dense<0.000000e+00> : vector<16x64xf32>
    %220 = tpu.matmul %219, %36, %cst_86 {dimension_numbers = #tpu.dot_dimension_numbers<[1], [0], [0], [1], [0, 0, 1, 1], [], []>} : vector<16x64xf32>, vector<64x64xf32>, vector<16x64xf32> -> vector<16x64xf32>
    %221 = vector.extract_strided_slice %220 {offsets = [0, 0], sizes = [16, 4], strides = [1, 1]} : vector<16x64xf32> to vector<16x4xf32>
    %222 = vector.broadcast %5 : vector<1x4xf32> to vector<16x4xf32>
    %223 = arith.addf %221, %222 : vector<16x4xf32>
    %cst_87 = arith.constant dense<0xFF800000> : vector<16xf32>
    %224 = vector.multi_reduction <maximumf>, %223, %cst_87 [1] : vector<16x4xf32> to vector<16xf32>
    %225 = vector.shape_cast %224 : vector<16xf32> to vector<16x1xf32>
    %226 = vector.broadcast %225 : vector<16x1xf32> to vector<16x4xf32>
    %227 = arith.subf %223, %226 : vector<16x4xf32>
    %228 = math.exp %227 : vector<16x4xf32>
    %cst_88 = arith.constant dense<0.000000e+00> : vector<16xf32>
    %229 = vector.multi_reduction <add>, %228, %cst_88 [1] : vector<16x4xf32> to vector<16xf32>
    %230 = vector.shape_cast %229 : vector<16xf32> to vector<16x1xf32>
    %231 = math.log %230 : vector<16x1xf32>
    %232 = vector.broadcast %231 : vector<16x1xf32> to vector<16x4xf32>
    %233 = arith.subf %227, %232 : vector<16x4xf32>
    %c0_89 = arith.constant 0 : index
    %c0_90 = arith.constant 0 : index
    %234 = vector.load %arg7[%c0_89, %c0_90] : memref<16x4xf32, #tpu.memory_space<vmem>>, vector<16x4xf32>
    tpu.vector_store %arg7[%c0_89, %c0_90], %233 {strides = array<i32>} : memref<16x4xf32, #tpu.memory_space<vmem>>, vector<16x4xf32>,
    return
  }
}

</mosaic_0001>

<llo_original>
// kernel: net_forward.1
$region0: #{net_forward.1}
  #allocation0 [shape = 'u32[]', space=smem, size = 0x4, offset = 0x4, fixed_abs, tag = 'smem constant byte address 0x4 - core index']
  #allocation1 [shape = 'u32[144,128]{1,0:T(1,128)}', space=vmem, size = 0x12000, scoped, tag = 'internal scratch']
  %s0 = inlined_call_operand.vmem [shape: f32[16,8], index: 0, kind: input, shape index: {}]
  %s1 = inlined_call_operand.vmem [shape: f32[32,1], index: 1, kind: input, shape index: {}]
  %s2 = inlined_call_operand.vmem [shape: f32[64,32], index: 2, kind: input, shape index: {}]
  %s3 = inlined_call_operand.hbm [shape: f32[64,2048], index: 3, kind: input, shape index: {}]
  %s4 = inlined_call_operand.hbm [shape: f32[3,64,64], index: 4, kind: input, shape index: {}]
  %s5 = inlined_call_operand.hbm [shape: f32[6,64,64], index: 5, kind: input, shape index: {}]
  %s6 = inlined_call_operand.vmem [shape: f32[24,64], index: 6, kind: input, shape index: {}]
  %s7 = inlined_call_operand.vmem [shape: f32[16,4], index: 7, kind: output, shape index: {}]
  %s8 = sld [smem:[#allocation0]]
  $region50: #{net_forward.1} parent=0
    _
  %s10 = ssub.s32 1, %s8
  %s11 = scalar_select 0, %s10, %s8
  $region1: #{net_forward.1} parent=0
    #allocation2 [shape = 'u8[524288]{0}', space=vmem, size = 0x80000, scoped, tag = 'input window, operand 3, single buffered']
    #allocation3 [shape = 's32[1]{0}', space=sflag, size = 0x4, scoped, tag = 'scoped memory for net_forward.1']
    #allocation4 [shape = 'u8[98304]{0}', space=vmem, size = 0x18000, scoped, tag = 'input window, operand 4, single buffered']
    #allocation5 [shape = 's32[1]{0}', space=sflag, size = 0x4, scoped, tag = 'scoped memory for net_forward.1']
    #allocation6 [shape = 'u8[196608]{0}', space=vmem, size = 0x30000, scoped, tag = 'input window, operand 5, single buffered']
    %12 = vsyncpa [#allocation3], 0
    %13 = vsyncpa [#allocation5], 0
    // Predicated region
    $region2: #{net_forward.1} parent=1 // pred_check
      _
    $region3: #{net_forward.1} parent=1 // pred_check_branch
      %15 = sbr.rel (0) target = $region5
    $region4: #{net_forward.1} parent=1 // pred_region
      _
    $region5: #{net_forward.1} parent=1 // pred_fallthru
      _
    // Predicated region
    $region6: #{net_forward.1} parent=1 // pred_check
      _
    $region7: #{net_forward.1} parent=1 // pred_check_branch
      %17 = sbr.rel (0) target = $region9
    $region8: #{net_forward.1} parent=1 // pred_region
      _
    $region9: #{net_forward.1} parent=1 // pred_fallthru
      _
    // Predicated region
    $region10: #{net_forward.1} parent=1 // pred_check
      _
    $region11: #{net_forward.1} parent=1 // pred_check_branch
      %19 = sbr.rel (0) target = $region13
    $region12: #{net_forward.1} parent=1 // pred_region
      _
    $region13: #{net_forward.1} parent=1 // pred_fallthru
      _
    // Predicated region
    $region14: #{net_forward.1} parent=1 // pred_check
      _
    $region15: #{net_forward.1} parent=1 // pred_check_branch
      %21 = sbr.rel (0) target = $region17
    $region16: #{net_forward.1} parent=1 // pred_region
      %s23 = ssub.s32 16384, 16384
      %24 = vsyncadd [#allocation3], %s23
      %s25 = sshll.u32 [#allocation2], 4
      %s26 = int_to_ptr.vmem [resolvable:$true] %s25
      %31 = dma.hbm_to_vmem [thread:$0]  %s3, 16384, %s26, [#allocation3], 2048, 2048, 128
    $region17: #{net_forward.1} parent=1 // pred_fallthru
      _
    // Predicated region
    $region18: #{net_forward.1} parent=1 // pred_check
      _
    $region19: #{net_forward.1} parent=1 // pred_check_branch
      %33 = sbr.rel (0) target = $region21
    $region20: #{net_forward.1} parent=1 // pred_region
      %s35 = ssub.s32 3072, 3072
      %36 = vsyncadd [#allocation5], %s35
      %s37 = sshll.u32 [#allocation4], 4
      %s38 = int_to_ptr.vmem [resolvable:$true] %s37
      %43 = dma.hbm_to_vmem [thread:$0]  %s4, 3072, %s38, [#allocation5], 128, 128, 8
    $region21: #{net_forward.1} parent=1 // pred_fallthru
      _
    // Predicated region
    $region22: #{net_forward.1} parent=1 // pred_check
      _
    $region23: #{net_forward.1} parent=1 // pred_check_branch
      %45 = sbr.rel (0) target = $region25
    $region24: #{net_forward.1} parent=1 // pred_region
      %s47 = ssub.s32 6144, 6144
      %48 = vsyncadd [#allocation5], %s47
      %s49 = sshll.u32 [#allocation6], 4
      %s50 = int_to_ptr.vmem [resolvable:$true] %s49
      %55 = dma.hbm_to_vmem [thread:$0]  %s5, 6144, %s50, [#allocation5], 128, 128, 8
    $region25: #{net_forward.1} parent=1 // pred_fallthru
      _
    // Predicated region
    $region26: #{net_forward.1} parent=1 // pred_check
      _
    $region27: #{net_forward.1} parent=1 // pred_check_branch
      %57 = sbr.rel (0) target = $region29
    $region28: #{net_forward.1} parent=1 // pred_region
      _
    $region29: #{net_forward.1} parent=1 // pred_fallthru
      _
    // Predicated region
    $region30: #{net_forward.1} parent=1 // pred_check
      _
    $region31: #{net_forward.1} parent=1 // pred_check_branch
      %59 = sbr.rel (0) target = $region33
    $region32: #{net_forward.1} parent=1 // pred_region
      %60 = dma.done [#allocation3], 16384
    $region33: #{net_forward.1} parent=1 // pred_fallthru
      _
    // Predicated region
    $region34: #{net_forward.1} parent=1 // pred_check
      _
    $region35: #{net_forward.1} parent=1 // pred_check_branch
      %62 = sbr.rel (0) target = $region37
    $region36: #{net_forward.1} parent=1 // pred_region
      %63 = dma.done [#allocation5], 3072
    $region37: #{net_forward.1} parent=1 // pred_fallthru
      _
    // Predicated region
    $region38: #{net_forward.1} parent=1 // pred_check
      _
    $region39: #{net_forward.1} parent=1 // pred_check_branch
      %65 = sbr.rel (0) target = $region41
    $region40: #{net_forward.1} parent=1 // pred_region
      %66 = dma.done [#allocation5], 6144
    $region41: #{net_forward.1} parent=1 // pred_fallthru
      _
    %v67 = vld [vmem:[%s6] sm:$0xff]
    %v68 = vld [vmem:[%s6 + $0x8] sm:$0xff]
    %v69 = vld [vmem:[%s6 + $0x10] sm:$0xff]
    %v70 = vlaneseq
    %v71 = vshrl.u32 %v70, 7
    %v72 = vsub.s32 1, %v71
    %v73 = vrot.slane %v67, %v72
    %v74 = vlaneseq
    %v75 = vshrl.u32 %v74, 7
    %v76 = vsub.s32 2, %v75
    %v77 = vrot.slane %v67, %v76
    %v78 = vlaneseq
    %v79 = vshrl.u32 %v78, 7
    %v80 = vsub.s32 3, %v79
    %v81 = vrot.slane %v67, %v80
    %v82 = vlaneseq
    %v83 = vshrl.u32 %v82, 7
    %v84 = vsub.s32 4, %v83
    %v85 = vrot.slane %v67, %v84
    %v86 = vlaneseq
    %v87 = vshrl.u32 %v86, 7
    %v88 = vsub.s32 5, %v87
    %v89 = vrot.slane %v67, %v88
    %v90 = vlaneseq
    %v91 = vshrl.u32 %v90, 7
    %v92 = vsub.s32 6, %v91
    %v93 = vrot.slane %v67, %v92
    %v94 = vlaneseq
    %v95 = vshrl.u32 %v94, 7
    %v96 = vsub.s32 7, %v95
    %v97 = vrot.slane %v67, %v96
    %v98 = vld [vmem:[%s2] sm:$0xff]
    %v99 = vld [vmem:[%s2 + $0x8] sm:$0xff]
    %v100 = vld [vmem:[%s2 + $0x10] sm:$0xff]
    %v101 = vld [vmem:[%s2 + $0x18] sm:$0xff]
    %v102 = vld [vmem:[%s2 + $0x20] sm:$0xff]
    %v103 = vld [vmem:[%s2 + $0x28] sm:$0xff]
    %v104 = vld [vmem:[%s2 + $0x30] sm:$0xff]
    %v105 = vld [vmem:[%s2 + $0x38] sm:$0xff]
    %v106 = vld [vmem:[#allocation4] sm:$0xff]
    %v107 = vld [vmem:[#allocation4 + $0x8] sm:$0xff]
    %v108 = vld [vmem:[#allocation4 + $0x10] sm:$0xff]
    %v109 = vld [vmem:[#allocation4 + $0x18] sm:$0xff]
    %v110 = vld [vmem:[#allocation4 + $0x20] sm:$0xff]
    %v111 = vld [vmem:[#allocation4 + $0x28] sm:$0xff]
    %v112 = vld [vmem:[#allocation4 + $0x30] sm:$0xff]
    %v113 = vld [vmem:[#allocation4 + $0x38] sm:$0xff]
    %s114 = scalar_lea.vmem [#allocation4], 64
    %v115 = vld [vmem:[%s114] sm:$0xff]
    %v116 = vld [vmem:[%s114 + $0x8] sm:$0xff]
    %v117 = vld [vmem:[%s114 + $0x10] sm:$0xff]
    %v118 = vld [vmem:[%s114 + $0x18] sm:$0xff]
    %v119 = vld [vmem:[%s114 + $0x20] sm:$0xff]
    %v120 = vld [vmem:[%s114 + $0x28] sm:$0xff]
    %v121 = vld [vmem:[%s114 + $0x30] sm:$0xff]
    %v122 = vld [vmem:[%s114 + $0x38] sm:$0xff]
    %s123 = scalar_lea.vmem [#allocation4], 128
    %v124 = vld [vmem:[%s123] sm:$0xff]
    %v125 = vld [vmem:[%s123 + $0x8] sm:$0xff]
    %v126 = vld [vmem:[%s123 + $0x10] sm:$0xff]
    %v127 = vld [vmem:[%s123 + $0x18] sm:$0xff]
    %v128 = vld [vmem:[%s123 + $0x20] sm:$0xff]
    %v129 = vld [vmem:[%s123 + $0x28] sm:$0xff]
    %v130 = vld [vmem:[%s123 + $0x30] sm:$0xff]
    %v131 = vld [vmem:[%s123 + $0x38] sm:$0xff]
    %v132 = vld [vmem:[#allocation6] sm:$0xff]
    %v133 = vld [vmem:[#allocation6 + $0x8] sm:$0xff]
    %v134 = vld [vmem:[#allocation6 + $0x10] sm:$0xff]
    %v135 = vld [vmem:[#allocation6 + $0x18] sm:$0xff]
    %v136 = vld [vmem:[#allocation6 + $0x20] sm:$0xff]
    %v137 = vld [vmem:[#allocation6 + $0x28] sm:$0xff]
    %v138 = vld [vmem:[#allocation6 + $0x30] sm:$0xff]
    %v139 = vld [vmem:[#allocation6 + $0x38] sm:$0xff]
    %s140 = scalar_lea.vmem [#allocation6], 64
    %v141 = vld [vmem:[%s140] sm:$0xff]
    %v142 = vld [vmem:[%s140 + $0x8] sm:$0xff]
    %v143 = vld [vmem:[%s140 + $0x10] sm:$0xff]
    %v144 = vld [vmem:[%s140 + $0x18] sm:$0xff]
    %v145 = vld [vmem:[%s140 + $0x20] sm:$0xff]
    %v146 = vld [vmem:[%s140 + $0x28] sm:$0xff]
    %v147 = vld [vmem:[%s140 + $0x30] sm:$0xff]
    %v148 = vld [vmem:[%s140 + $0x38] sm:$0xff]
    %s149 = scalar_lea.vmem [#allocation6], 128
    %v150 = vld [vmem:[%s149] sm:$0xff]
    %v151 = vld [vmem:[%s149 + $0x8] sm:$0xff]
    %v152 = vld [vmem:[%s149 + $0x10] sm:$0xff]
    %v153 = vld [vmem:[%s149 + $0x18] sm:$0xff]
    %v154 = vld [vmem:[%s149 + $0x20] sm:$0xff]
    %v155 = vld [vmem:[%s149 + $0x28] sm:$0xff]
    %v156 = vld [vmem:[%s149 + $0x30] sm:$0xff]
    %v157 = vld [vmem:[%s149 + $0x38] sm:$0xff]
    %s158 = scalar_lea.vmem [#allocation6], 192
    %v159 = vld [vmem:[%s158] sm:$0xff]
    %v160 = vld [vmem:[%s158 + $0x8] sm:$0xff]
    %v161 = vld [vmem:[%s158 + $0x10] sm:$0xff]
    %v162 = vld [vmem:[%s158 + $0x18] sm:$0xff]
    %v163 = vld [vmem:[%s158 + $0x20] sm:$0xff]
    %v164 = vld [vmem:[%s158 + $0x28] sm:$0xff]
    %v165 = vld [vmem:[%s158 + $0x30] sm:$0xff]
    %v166 = vld [vmem:[%s158 + $0x38] sm:$0xff]
    %s167 = scalar_lea.vmem [#allocation6], 256
    %v168 = vld [vmem:[%s167] sm:$0xff]
    %v169 = vld [vmem:[%s167 + $0x8] sm:$0xff]
    %v170 = vld [vmem:[%s167 + $0x10] sm:$0xff]
    %v171 = vld [vmem:[%s167 + $0x18] sm:$0xff]
    %v172 = vld [vmem:[%s167 + $0x20] sm:$0xff]
    %v173 = vld [vmem:[%s167 + $0x28] sm:$0xff]
    %v174 = vld [vmem:[%s167 + $0x30] sm:$0xff]
    %v175 = vld [vmem:[%s167 + $0x38] sm:$0xff]
    %s176 = scalar_lea.vmem [#allocation6], 320
    %v177 = vld [vmem:[%s176] sm:$0xff]
    %v178 = vld [vmem:[%s176 + $0x8] sm:$0xff]
    %v179 = vld [vmem:[%s176 + $0x10] sm:$0xff]
    %v180 = vld [vmem:[%s176 + $0x18] sm:$0xff]
    %v181 = vld [vmem:[%s176 + $0x20] sm:$0xff]
    %v182 = vld [vmem:[%s176 + $0x28] sm:$0xff]
    %v183 = vld [vmem:[%s176 + $0x30] sm:$0xff]
    %v184 = vld [vmem:[%s176 + $0x38] sm:$0xff]
    %v185 = vld [vmem:[#allocation2] sm:$0xff]
    %v186 = vld [vmem:[#allocation2 + $0x8] sm:$0xff]
    %v187 = vld [vmem:[#allocation2 + $0x10] sm:$0xff]
    %v188 = vld [vmem:[#allocation2 + $0x18] sm:$0xff]
    %v189 = vld [vmem:[#allocation2 + $0x20] sm:$0xff]
    %v190 = vld [vmem:[#allocation2 + $0x28] sm:$0xff]
    %v191 = vld [vmem:[#allocation2 + $0x30] sm:$0xff]
    %v192 = vld [vmem:[#allocation2 + $0x38] sm:$0xff]
    %v193 = vld [vmem:[#allocation2 + $0x40] sm:$0xff]
    %v194 = vld [vmem:[#allocation2 + $0x48] sm:$0xff]
    %v195 = vld [vmem:[#allocation2 + $0x50] sm:$0xff]
    %v196 = vld [vmem:[#allocation2 + $0x58] sm:$0xff]
    %v197 = vld [vmem:[#allocation2 + $0x60] sm:$0xff]
    %v198 = vld [vmem:[#allocation2 + $0x68] sm:$0xff]
    %v199 = vld [vmem:[#allocation2 + $0x70] sm:$0xff]
    %v200 = vld [vmem:[#allocation2 + $0x78] sm:$0xff]
    %v201 = vld [vmem:[#allocation2 + $0x80] sm:$0xff]
    %v202 = vld [vmem:[#allocation2 + $0x88] sm:$0xff]
    %v203 = vld [vmem:[#allocation2 + $0x90] sm:$0xff]
    %v204 = vld [vmem:[#allocation2 + $0x98] sm:$0xff]
    %v205 = vld [vmem:[#allocation2 + $0xa0] sm:$0xff]
    %v206 = vld [vmem:[#allocation2 + $0xa8] sm:$0xff]
    %v207 = vld [vmem:[#allocation2 + $0xb0] sm:$0xff]
    %v208 = vld [vmem:[#allocation2 + $0xb8] sm:$0xff]
    %v209 = vld [vmem:[#allocation2 + $0xc0] sm:$0xff]
    %v210 = vld [vmem:[#allocation2 + $0xc8] sm:$0xff]
    %v211 = vld [vmem:[#allocation2 + $0xd0] sm:$0xff]
    %v212 = vld [vmem:[#allocation2 + $0xd8] sm:$0xff]
    %v213 = vld [vmem:[#allocation2 + $0xe0] sm:$0xff]
    %v214 = vld [vmem:[#allocation2 + $0xe8] sm:$0xff]
    %v215 = vld [vmem:[#allocation2 + $0xf0] sm:$0xff]
    %v216 = vld [vmem:[#allocation2 + $0xf8] sm:$0xff]
    %v217 = vld [vmem:[#allocation2 + $0x100] sm:$0xff]
    %v218 = vld [vmem:[#allocation2 + $0x108] sm:$0xff]
    %v219 = vld [vmem:[#allocation2 + $0x110] sm:$0xff]
    %v220 = vld [vmem:[#allocation2 + $0x118] sm:$0xff]
    %v221 = vld [vmem:[#allocation2 + $0x120] sm:$0xff]
    %v222 = vld [vmem:[#allocation2 + $0x128] sm:$0xff]
    %v223 = vld [vmem:[#allocation2 + $0x130] sm:$0xff]
    %v224 = vld [vmem:[#allocation2 + $0x138] sm:$0xff]
    %v225 = vld [vmem:[#allocation2 + $0x140] sm:$0xff]
    %v226 = vld [vmem:[#allocation2 + $0x148] sm:$0xff]
    %v227 = vld [vmem:[#allocation2 + $0x150] sm:$0xff]
    %v228 = vld [vmem:[#allocation2 + $0x158] sm:$0xff]
    %v229 = vld [vmem:[#allocation2 + $0x160] sm:$0xff]
    %v230 = vld [vmem:[#allocation2 + $0x168] sm:$0xff]
    %v231 = vld [vmem:[#allocation2 + $0x170] sm:$0xff]
    %v232 = vld [vmem:[#allocation2 + $0x178] sm:$0xff]
    %v233 = vld [vmem:[#allocation2 + $0x180] sm:$0xff]
    %v234 = vld [vmem:[#allocation2 + $0x188] sm:$0xff]
    %v235 = vld [vmem:[#allocation2 + $0x190] sm:$0xff]
    %v236 = vld [vmem:[#allocation2 + $0x198] sm:$0xff]
    %v237 = vld [vmem:[#allocation2 + $0x1a0] sm:$0xff]
    %v238 = vld [vmem:[#allocation2 + $0x1a8] sm:$0xff]
    %v239 = vld [vmem:[#allocation2 + $0x1b0] sm:$0xff]
    %v240 = vld [vmem:[#allocation2 + $0x1b8] sm:$0xff]
    %v241 = vld [vmem:[#allocation2 + $0x1c0] sm:$0xff]
    %v242 = vld [vmem:[#allocation2 + $0x1c8] sm:$0xff]
    %v243 = vld [vmem:[#allocation2 + $0x1d0] sm:$0xff]
    %v244 = vld [vmem:[#allocation2 + $0x1d8] sm:$0xff]
    %v245 = vld [vmem:[#allocation2 + $0x1e0] sm:$0xff]
    %v246 = vld [vmem:[#allocation2 + $0x1e8] sm:$0xff]
    %v247 = vld [vmem:[#allocation2 + $0x1f0] sm:$0xff]
    %v248 = vld [vmem:[#allocation2 + $0x1f8] sm:$0xff]
    %v249 = vld [vmem:[#allocation2 + $0x200] sm:$0xff]
    %v250 = vld [vmem:[#allocation2 + $0x208] sm:$0xff]
    %v251 = vld [vmem:[#allocation2 + $0x210] sm:$0xff]
    %v252 = vld [vmem:[#allocation2 + $0x218] sm:$0xff]
    %v253 = vld [vmem:[#allocation2 + $0x220] sm:$0xff]
    %v254 = vld [vmem:[#allocation2 + $0x228] sm:$0xff]
    %v255 = vld [vmem:[#allocation2 + $0x230] sm:$0xff]
    %v256 = vld [vmem:[#allocation2 + $0x238] sm:$0xff]
    %v257 = vld [vmem:[#allocation2 + $0x240] sm:$0xff]
    %v258 = vld [vmem:[#allocation2 + $0x248] sm:$0xff]
    %v259 = vld [vmem:[#allocation2 + $0x250] sm:$0xff]
    %v260 = vld [vmem:[#allocation2 + $0x258] sm:$0xff]
    %v261 = vld [vmem:[#allocation2 + $0x260] sm:$0xff]
    %v262 = vld [vmem:[#allocation2 + $0x268] sm:$0xff]
    %v263 = vld [vmem:[#allocation2 + $0x270] sm:$0xff]
    %v264 = vld [vmem:[#allocation2 + $0x278] sm:$0xff]
    %v265 = vld [vmem:[#allocation2 + $0x280] sm:$0xff]
    %v266 = vld [vmem:[#allocation2 + $0x288] sm:$0xff]
    %v267 = vld [vmem:[#allocation2 + $0x290] sm:$0xff]
    %v268 = vld [vmem:[#allocation2 + $0x298] sm:$0xff]
    %v269 = vld [vmem:[#allocation2 + $0x2a0] sm:$0xff]
    %v270 = vld [vmem:[#allocation2 + $0x2a8] sm:$0xff]
    %v271 = vld [vmem:[#allocation2 + $0x2b0] sm:$0xff]
    %v272 = vld [vmem:[#allocation2 + $0x2b8] sm:$0xff]
    %v273 = vld [vmem:[#allocation2 + $0x2c0] sm:$0xff]
    %v274 = vld [vmem:[#allocation2 + $0x2c8] sm:$0xff]
    %v275 = vld [vmem:[#allocation2 + $0x2d0] sm:$0xff]
    %v276 = vld [vmem:[#allocation2 + $0x2d8] sm:$0xff]
    %v277 = vld [vmem:[#allocation2 + $0x2e0] sm:$0xff]
    %v278 = vld [vmem:[#allocation2 + $0x2e8] sm:$0xff]
    %v279 = vld [vmem:[#allocation2 + $0x2f0] sm:$0xff]
    %v280 = vld [vmem:[#allocation2 + $0x2f8] sm:$0xff]
    %v281 = vld [vmem:[#allocation2 + $0x300] sm:$0xff]
    %v282 = vld [vmem:[#allocation2 + $0x308] sm:$0xff]
    %v283 = vld [vmem:[#allocation2 + $0x310] sm:$0xff]
    %v284 = vld [vmem:[#allocation2 + $0x318] sm:$0xff]
    %v285 = vld [vmem:[#allocation2 + $0x320] sm:$0xff]
    %v286 = vld [vmem:[#allocation2 + $0x328] sm:$0xff]
    %v287 = vld [vmem:[#allocation2 + $0x330] sm:$0xff]
    %v288 = vld [vmem:[#allocation2 + $0x338] sm:$0xff]
    %v289 = vld [vmem:[#allocation2 + $0x340] sm:$0xff]
    %v290 = vld [vmem:[#allocation2 + $0x348] sm:$0xff]
    %v291 = vld [vmem:[#allocation2 + $0x350] sm:$0xff]
    %v292 = vld [vmem:[#allocation2 + $0x358] sm:$0xff]
    %v293 = vld [vmem:[#allocation2 + $0x360] sm:$0xff]
    %v294 = vld [vmem:[#allocation2 + $0x368] sm:$0xff]
    %v295 = vld [vmem:[#allocation2 + $0x370] sm:$0xff]
    %v296 = vld [vmem:[#allocation2 + $0x378] sm:$0xff]
    %v297 = vld [vmem:[#allocation2 + $0x380] sm:$0xff]
    %v298 = vld [vmem:[#allocation2 + $0x388] sm:$0xff]
    %v299 = vld [vmem:[#allocation2 + $0x390] sm:$0xff]
    %v300 = vld [vmem:[#allocation2 + $0x398] sm:$0xff]
    %v301 = vld [vmem:[#allocation2 + $0x3a0] sm:$0xff]
    %v302 = vld [vmem:[#allocation2 + $0x3a8] sm:$0xff]
    %v303 = vld [vmem:[#allocation2 + $0x3b0] sm:$0xff]
    %v304 = vld [vmem:[#allocation2 + $0x3b8] sm:$0xff]
    %v305 = vld [vmem:[#allocation2 + $0x3c0] sm:$0xff]
    %v306 = vld [vmem:[#allocation2 + $0x3c8] sm:$0xff]
    %v307 = vld [vmem:[#allocation2 + $0x3d0] sm:$0xff]
    %v308 = vld [vmem:[#allocation2 + $0x3d8] sm:$0xff]
    %v309 = vld [vmem:[#allocation2 + $0x3e0] sm:$0xff]
    %v310 = vld [vmem:[#allocation2 + $0x3e8] sm:$0xff]
    %v311 = vld [vmem:[#allocation2 + $0x3f0] sm:$0xff]
    %v312 = vld [vmem:[#allocation2 + $0x3f8] sm:$0xff]
    %v313 = vld [vmem:[%s0] sm:$0xff]
    %v314 = vld [vmem:[%s0 + $0x8] sm:$0xff]
    %v315 = vlaneseq
    %v316 = vshrl.u32 %v315, 7
    %v317 = vsub.s32 0, %v316
    %v318 = vrot.slane %v67, %v317
    %vm319 = vcmask 64512
    %v321 = vsel %vm319, %v313, 0
    %v324 = vsel %vm319, %v314, 0
    %326 = vmatprep.subr.mxu0 0.0
    %327 = vmatpush1.msra.mxu0 %v69
    %328 = vmatprep.subr.mxu0 0.0
    %329 = vmatpush1.msra.mxu0 0.0
    %330 = vmatprep.subr.mxu0 0.0
    %331 = vmatpush1.msra.mxu0 0.0
    %332 = vmatprep.subr.mxu0 0.0
    %333 = vmatpush1.msra.mxu0 0.0
    %334 = vmatprep.subr.mxu0 0.0
    %335 = vmatpush1.msra.mxu0 0.0
    %336 = vmatprep.subr.mxu0 0.0
    %337 = vmatpush1.msra.mxu0 0.0
    %338 = vmatprep.subr.mxu0 0.0
    %339 = vmatpush1.msra.mxu0 0.0
    %340 = vmatprep.subr.mxu0 0.0
    %341 = vmatpush1.msra.mxu0 0.0
    %342 = vmatprep.subr.mxu0 0.0
    %343 = vmatpush1.msra.mxu0 0.0
    %344 = vmatprep.subr.mxu0 0.0
    %345 = vmatpush1.msra.mxu0 0.0
    %346 = vmatprep.subr.mxu0 0.0
    %347 = vmatpush1.msra.mxu0 0.0
    %348 = vmatprep.subr.mxu0 0.0
    %349 = vmatpush1.msra.mxu0 0.0
    %350 = vmatprep.subr.mxu0 0.0
    %351 = vmatpush1.msra.mxu0 0.0
    %352 = vmatprep.subr.mxu0 0.0
    %353 = vmatpush1.msra.mxu0 0.0
    %354 = vmatprep.subr.mxu0 0.0
    %355 = vmatpush1.msra.mxu0 0.0
    %356 = vmatprep.subr.mxu0 0.0
    %357 = vmatpush1.msra.mxu0 0.0
    %358 = vmatprep.subr.mxu0 0.0
    %359 = vmatpush1.msra.mxu0 0.0
    %360 = vmatprep.subr.mxu0 0.0
    %361 = vmatpush1.msra.mxu0 0.0
    %362 = vmatprep.subr.mxu0 0.0
    %363 = vmatpush1.msra.mxu0 0.0
    %364 = vmatprep.subr.mxu0 0.0
    %365 = vmatpush1.msra.mxu0 0.0
    %366 = vmatprep.subr.mxu0 0.0
    %367 = vmatpush1.msra.mxu0 0.0
    %368 = vmatprep.subr.mxu0 0.0
    %369 = vmatpush1.msra.mxu0 0.0
    %370 = vmatprep.subr.mxu0 0.0
    %371 = vmatpush1.msra.mxu0 0.0
    %372 = vmatprep.subr.mxu0 0.0
    %373 = vmatpush1.msra.mxu0 0.0
    %374 = vmatprep.subr.mxu0 0.0
    %375 = vmatpush1.msra.mxu0 0.0
    %376 = vmatprep.subr.mxu0 0.0
    %377 = vmatpush1.msra.mxu0 0.0
    %378 = vmatprep.subr.mxu0 0.0
    %379 = vmatpush1.msra.mxu0 0.0
    %380 = vmatprep.subr.mxu0 0.0
    %381 = vmatpush1.msra.mxu0 0.0
    %382 = vmatprep.subr.mxu0 0.0
    %383 = vmatpush1.msra.mxu0 0.0
    %384 = vmatprep.subr.mxu0 0.0
    %385 = vmatpush1.msra.mxu0 0.0
    %386 = vmatprep.subr.mxu0 0.0
    %387 = vmatpush1.msra.mxu0 0.0
    %388 = vmatprep.subr.mxu0 0.0
    %389 = vmatpush1.msra.mxu0 0.0
    %390 = vmatprep.mubr.f32.mxu0 0.0
    %391 = vmatmul.mubr.f32.gmra.mrb[0].mxu0 %v321
    %v392 = vpop.f32.mrb[0].mxu0
    %v393 = vadd.f32 %v318, %v392
    %v394 = vpop.f32.mrb[0].mxu0
    %395 = vmatprep.mubr.f32.mxu0 0.0
    %396 = vmatmul.mubr.f32.gmra.mrb[0].mxu0 %v324
    %v397 = vpop.f32.mrb[0].mxu0
    %v398 = vadd.f32 %v318, %v397
    %v399 = vpop.f32.mrb[0].mxu0
    %400 = vdwg.mxu0
    %v401 = vmax.f32 %v393, 0.0
    %v402 = vmax.f32 %v398, 0.0
    %v403 = vld [vmem:[%s1] sm:$0xff]
    %v404 = vld [vmem:[%s1 + $0x8] sm:$0xff]
    %v405 = vld [vmem:[%s1 + $0x10] sm:$0xff]
    %v406 = vld [vmem:[%s1 + $0x18] sm:$0xff]
    %408 = vset.pattern.permute.xlu0 0
    %409 = vperm.xlu0 %408, %v403
    %v410 = vpop.permute.xlu0 %409
    %413 = vset.pattern.permute.xlu0 0
    %414 = vperm.xlu0 %413, %v404
    %v415 = vpop.permute.xlu0 %414
    %418 = vset.pattern.permute.xlu0 0
    %419 = vperm.xlu0 %418, %v405
    %v420 = vpop.permute.xlu0 %419
    %423 = vset.pattern.permute.xlu0 0
    %424 = vperm.xlu0 %423, %v406
    %v425 = vpop.permute.xlu0 %424
    %v427 = vlaneseq
    %v428 = vshrl.u32 %v427, 7
    %v429 = vsub.s32 1, %v428
    %v430 = vrot.slane %v68, %v429
    %v431 = vmul.f32 %v410, %v430
    %v432 = vmul.f32 %v415, %v430
    %v433 = vmul.f32 %v420, %v430
    %v434 = vmul.f32 %v425, %v430
    %v435 = vlaneseq
    %v436 = vshrl.u32 %v435, 7
    %v437 = vsub.s32 2, %v436
    %v438 = vrot.slane %v68, %v437
    %v439 = vadd.f32 %v431, %v438
    %v440 = vadd.f32 %v432, %v438
    %v441 = vadd.f32 %v433, %v438
    %v442 = vadd.f32 %v434, %v438
    %v443 = vmax.f32 %v439, 0.0
    %v444 = vmax.f32 %v440, 0.0
    %v445 = vmax.f32 %v441, 0.0
    %v446 = vmax.f32 %v442, 0.0
    %v447 = vlaneseq
    %v448 = vshrl.u32 %v447, 7
    %v449 = vadd.s32 %v448, 8
    %v450 = vadd.s32 %v448, 16
    %v451 = vadd.s32 %v448, 24
    %v452 = vlaneseq
    %v453 = vand.u32 %v452, 127
    %v454 = vadd.s32 %v453, 128
    %v455 = vadd.s32 %v453, 256
    %v456 = vadd.s32 %v453, 384
    %v457 = vadd.s32 %v453, 512
    %v458 = vadd.s32 %v453, 640
    %v459 = vadd.s32 %v453, 768
    %v460 = vadd.s32 %v453, 896
    %v461 = vadd.s32 %v453, 1024
    %v462 = vadd.s32 %v453, 1152
    %v463 = vadd.s32 %v453, 1280
    %v464 = vadd.s32 %v453, 1408
    %v465 = vadd.s32 %v453, 1536
    %v466 = vadd.s32 %v453, 1664
    %v467 = vadd.s32 %v453, 1792
    %v468 = vadd.s32 %v453, 1920
    %v469 = vmul.u32 %v448, 64
    %v470 = vmul.u32 %v449, 64
    %v471 = vmul.u32 %v450, 64
    %v472 = vmul.u32 %v451, 64
    %vm473 = vcmp.ge.s32.totalorder %v453, %v469
    %vm474 = vcmp.ge.s32.totalorder %v454, %v469
    %vm475 = vcmp.ge.s32.totalorder %v455, %v469
    %vm476 = vcmp.ge.s32.totalorder %v456, %v469
    %vm477 = vcmp.ge.s32.totalorder %v457, %v469
    %vm478 = vcmp.ge.s32.totalorder %v458, %v469
    %vm479 = vcmp.ge.s32.totalorder %v459, %v469
    %vm480 = vcmp.ge.s32.totalorder %v460, %v469
    %vm481 = vcmp.ge.s32.totalorder %v461, %v469
    %vm482 = vcmp.ge.s32.totalorder %v462, %v469
    %vm483 = vcmp.ge.s32.totalorder %v463, %v469
    %vm484 = vcmp.ge.s32.totalorder %v464, %v469
    %vm485 = vcmp.ge.s32.totalorder %v465, %v469
    %vm486 = vcmp.ge.s32.totalorder %v466, %v469
    %vm487 = vcmp.ge.s32.totalorder %v467, %v469
    %vm488 = vcmp.ge.s32.totalorder %v468, %v469
    %vm489 = vcmp.ge.s32.totalorder %v453, %v470
    %vm490 = vcmp.ge.s32.totalorder %v454, %v470
    %vm491 = vcmp.ge.s32.totalorder %v455, %v470
    %vm492 = vcmp.ge.s32.totalorder %v456, %v470
    %vm493 = vcmp.ge.s32.totalorder %v457, %v470
    %vm494 = vcmp.ge.s32.totalorder %v458, %v470
    %vm495 = vcmp.ge.s32.totalorder %v459, %v470
    %vm496 = vcmp.ge.s32.totalorder %v460, %v470
    %vm497 = vcmp.ge.s32.totalorder %v461, %v470
    %vm498 = vcmp.ge.s32.totalorder %v462, %v470
    %vm499 = vcmp.ge.s32.totalorder %v463, %v470
    %vm500 = vcmp.ge.s32.totalorder %v464, %v470
    %vm501 = vcmp.ge.s32.totalorder %v465, %v470
    %vm502 = vcmp.ge.s32.totalorder %v466, %v470
    %vm503 = vcmp.ge.s32.totalorder %v467, %v470
    %vm504 = vcmp.ge.s32.totalorder %v468, %v470
    %vm505 = vcmp.ge.s32.totalorder %v453, %v471
    %vm506 = vcmp.ge.s32.totalorder %v454, %v471
    %vm507 = vcmp.ge.s32.totalorder %v455, %v471
    %vm508 = vcmp.ge.s32.totalorder %v456, %v471
    %vm509 = vcmp.ge.s32.totalorder %v457, %v471
    %vm510 = vcmp.ge.s32.totalorder %v458, %v471
    %vm511 = vcmp.ge.s32.totalorder %v459, %v471
    %vm512 = vcmp.ge.s32.totalorder %v460, %v471
    %vm513 = vcmp.ge.s32.totalorder %v461, %v471
    %vm514 = vcmp.ge.s32.totalorder %v462, %v471
    %vm515 = vcmp.ge.s32.totalorder %v463, %v471
    %vm516 = vcmp.ge.s32.totalorder %v464, %v471
    %vm517 = vcmp.ge.s32.totalorder %v465, %v471
    %vm518 = vcmp.ge.s32.totalorder %v466, %v471
    %vm519 = vcmp.ge.s32.totalorder %v467, %v471
    %vm520 = vcmp.ge.s32.totalorder %v468, %v471
    %vm521 = vcmp.ge.s32.totalorder %v453, %v472
    %vm522 = vcmp.ge.s32.totalorder %v454, %v472
    %vm523 = vcmp.ge.s32.totalorder %v455, %v472
    %vm524 = vcmp.ge.s32.totalorder %v456, %v472
    %vm525 = vcmp.ge.s32.totalorder %v457, %v472
    %vm526 = vcmp.ge.s32.totalorder %v458, %v472
    %vm527 = vcmp.ge.s32.totalorder %v459, %v472
    %vm528 = vcmp.ge.s32.totalorder %v460, %v472
    %vm529 = vcmp.ge.s32.totalorder %v461, %v472
    %vm530 = vcmp.ge.s32.totalorder %v462, %v472
    %vm531 = vcmp.ge.s32.totalorder %v463, %v472
    %vm532 = vcmp.ge.s32.totalorder %v464, %v472
    %vm533 = vcmp.ge.s32.totalorder %v465, %v472
    %vm534 = vcmp.ge.s32.totalorder %v466, %v472
    %vm535 = vcmp.ge.s32.totalorder %v467, %v472
    %vm536 = vcmp.ge.s32.totalorder %v468, %v472
    %v537 = vadd.s32 %v448, 1
    %v538 = vadd.s32 %v449, 1
    %v539 = vadd.s32 %v450, 1
    %v540 = vadd.s32 %v451, 1
    %v541 = vmul.u32 %v537, 64
    %v542 = vmul.u32 %v538, 64
    %v543 = vmul.u32 %v539, 64
    %v544 = vmul.u32 %v540, 64
    %vm545 = vcmp.lt.s32.totalorder %v453, %v541
    %vm546 = vcmp.lt.s32.totalorder %v454, %v541
    %vm547 = vcmp.lt.s32.totalorder %v455, %v541
    %vm548 = vcmp.lt.s32.totalorder %v456, %v541
    %vm549 = vcmp.lt.s32.totalorder %v457, %v541
    %vm550 = vcmp.lt.s32.totalorder %v458, %v541
    %vm551 = vcmp.lt.s32.totalorder %v459, %v541
    %vm552 = vcmp.lt.s32.totalorder %v460, %v541
    %vm553 = vcmp.lt.s32.totalorder %v461, %v541
    %vm554 = vcmp.lt.s32.totalorder %v462, %v541
    %vm555 = vcmp.lt.s32.totalorder %v463, %v541
    %vm556 = vcmp.lt.s32.totalorder %v464, %v541
    %vm557 = vcmp.lt.s32.totalorder %v465, %v541
    %vm558 = vcmp.lt.s32.totalorder %v466, %v541
    %vm559 = vcmp.lt.s32.totalorder %v467, %v541
    %vm560 = vcmp.lt.s32.totalorder %v468, %v541
    %vm561 = vcmp.lt.s32.totalorder %v453, %v542
    %vm562 = vcmp.lt.s32.totalorder %v454, %v542
    %vm563 = vcmp.lt.s32.totalorder %v455, %v542
    %vm564 = vcmp.lt.s32.totalorder %v456, %v542
    %vm565 = vcmp.lt.s32.totalorder %v457, %v542
    %vm566 = vcmp.lt.s32.totalorder %v458, %v542
    %vm567 = vcmp.lt.s32.totalorder %v459, %v542
    %vm568 = vcmp.lt.s32.totalorder %v460, %v542
    %vm569 = vcmp.lt.s32.totalorder %v461, %v542
    %vm570 = vcmp.lt.s32.totalorder %v462, %v542
    %vm571 = vcmp.lt.s32.totalorder %v463, %v542
    %vm572 = vcmp.lt.s32.totalorder %v464, %v542
    %vm573 = vcmp.lt.s32.totalorder %v465, %v542
    %vm574 = vcmp.lt.s32.totalorder %v466, %v542
    %vm575 = vcmp.lt.s32.totalorder %v467, %v542
    %vm576 = vcmp.lt.s32.totalorder %v468, %v542
    %vm577 = vcmp.lt.s32.totalorder %v453, %v543
    %vm578 = vcmp.lt.s32.totalorder %v454, %v543
    %vm579 = vcmp.lt.s32.totalorder %v455, %v543
    %vm580 = vcmp.lt.s32.totalorder %v456, %v543
    %vm581 = vcmp.lt.s32.totalorder %v457, %v543
    %vm582 = vcmp.lt.s32.totalorder %v458, %v543
    %vm583 = vcmp.lt.s32.totalorder %v459, %v543
    %vm584 = vcmp.lt.s32.totalorder %v460, %v543
    %vm585 = vcmp.lt.s32.totalorder %v461, %v543
    %vm586 = vcmp.lt.s32.totalorder %v462, %v543
    %vm587 = vcmp.lt.s32.totalorder %v463, %v543
    %vm588 = vcmp.lt.s32.totalorder %v464, %v543
    %vm589 = vcmp.lt.s32.totalorder %v465, %v543
    %vm590 = vcmp.lt.s32.totalorder %v466, %v543
    %vm591 = vcmp.lt.s32.totalorder %v467, %v543
    %vm592 = vcmp.lt.s32.totalorder %v468, %v543
    %vm593 = vcmp.lt.s32.totalorder %v453, %v544
    %vm594 = vcmp.lt.s32.totalorder %v454, %v544
    %vm595 = vcmp.lt.s32.totalorder %v455, %v544
    %vm596 = vcmp.lt.s32.totalorder %v456, %v544
    %vm597 = vcmp.lt.s32.totalorder %v457, %v544
    %vm598 = vcmp.lt.s32.totalorder %v458, %v544
    %vm599 = vcmp.lt.s32.totalorder %v459, %v544
    %vm600 = vcmp.lt.s32.totalorder %v460, %v544
    %vm601 = vcmp.lt.s32.totalorder %v461, %v544
    %vm602 = vcmp.lt.s32.totalorder %v462, %v544
    %vm603 = vcmp.lt.s32.totalorder %v463, %v544
    %vm604 = vcmp.lt.s32.totalorder %v464, %v544
    %vm605 = vcmp.lt.s32.totalorder %v465, %v544
    %vm606 = vcmp.lt.s32.totalorder %v466, %v544
    %vm607 = vcmp.lt.s32.totalorder %v467, %v544
    %vm608 = vcmp.lt.s32.totalorder %v468, %v544
    %vm609 = vmand %vm473, %vm545
    %vm610 = vmand %vm474, %vm546
    %vm611 = vmand %vm475, %vm547
    %vm612 = vmand %vm476, %vm548
    %vm613 = vmand %vm477, %vm549
    %vm614 = vmand %vm478, %vm550
    %vm615 = vmand %vm479, %vm551
    %vm616 = vmand %vm480, %vm552
    %vm617 = vmand %vm481, %vm553
    %vm618 = vmand %vm482, %vm554
    %vm619 = vmand %vm483, %vm555
    %vm620 = vmand %vm484, %vm556
    %vm621 = vmand %vm485, %vm557
    %vm622 = vmand %vm486, %vm558
    %vm623 = vmand %vm487, %vm559
    %vm624 = vmand %vm488, %vm560
    %vm625 = vmand %vm489, %vm561
    %vm626 = vmand %vm490, %vm562
    %vm627 = vmand %vm491, %vm563
    %vm628 = vmand %vm492, %vm564
    %vm629 = vmand %vm493, %vm565
    %vm630 = vmand %vm494, %vm566
    %vm631 = vmand %vm495, %vm567
    %vm632 = vmand %vm496, %vm568
    %vm633 = vmand %vm497, %vm569
    %vm634 = vmand %vm498, %vm570
    %vm635 = vmand %vm499, %vm571
    %vm636 = vmand %vm500, %vm572
    %vm637 = vmand %vm501, %vm573
    %vm638 = vmand %vm502, %vm574
    %vm639 = vmand %vm503, %vm575
    %vm640 = vmand %vm504, %vm576
    %vm641 = vmand %vm505, %vm577
    %vm642 = vmand %vm506, %vm578
    %vm643 = vmand %vm507, %vm579
    %vm644 = vmand %vm508, %vm580
    %vm645 = vmand %vm509, %vm581
    %vm646 = vmand %vm510, %vm582
    %vm647 = vmand %vm511, %vm583
    %vm648 = vmand %vm512, %vm584
    %vm649 = vmand %vm513, %vm585
    %vm650 = vmand %vm514, %vm586
    %vm651 = vmand %vm515, %vm587
    %vm652 = vmand %vm516, %vm588
    %vm653 = vmand %vm517, %vm589
    %vm654 = vmand %vm518, %vm590
    %vm655 = vmand %vm519, %vm591
    %vm656 = vmand %vm520, %vm592
    %vm657 = vmand %vm521, %vm593
    %vm658 = vmand %vm522, %vm594
    %vm659 = vmand %vm523, %vm595
    %vm660 = vmand %vm524, %vm596
    %vm661 = vmand %vm525, %vm597
    %vm662 = vmand %vm526, %vm598
    %vm663 = vmand %vm527, %vm599
    %vm664 = vmand %vm528, %vm600
    %vm665 = vmand %vm529, %vm601
    %vm666 = vmand %vm530, %vm602
    %vm667 = vmand %vm531, %vm603
    %vm668 = vmand %vm532, %vm604
    %vm669 = vmand %vm533, %vm605
    %vm670 = vmand %vm534, %vm606
    %vm671 = vmand %vm535, %vm607
    %vm672 = vmand %vm536, %vm608
    %v673 = vsel %vm609, 1, 0
    %v674 = vsel %vm610, 1, 0
    %v675 = vsel %vm611, 1, 0
    %v676 = vsel %vm612, 1, 0
    %v677 = vsel %vm613, 1, 0
    %v678 = vsel %vm614, 1, 0
    %v679 = vsel %vm615, 1, 0
    %v680 = vsel %vm616, 1, 0
    %v681 = vsel %vm617, 1, 0
    %v682 = vsel %vm618, 1, 0
    %v683 = vsel %vm619, 1, 0
    %v684 = vsel %vm620, 1, 0
    %v685 = vsel %vm621, 1, 0
    %v686 = vsel %vm622, 1, 0
    %v687 = vsel %vm623, 1, 0
    %v688 = vsel %vm624, 1, 0
    %v689 = vsel %vm625, 1, 0
    %v690 = vsel %vm626, 1, 0
    %v691 = vsel %vm627, 1, 0
    %v692 = vsel %vm628, 1, 0
    %v693 = vsel %vm629, 1, 0
    %v694 = vsel %vm630, 1, 0
    %v695 = vsel %vm631, 1, 0
    %v696 = vsel %vm632, 1, 0
    %v697 = vsel %vm633, 1, 0
    %v698 = vsel %vm634, 1, 0
    %v699 = vsel %vm635, 1, 0
    %v700 = vsel %vm636, 1, 0
    %v701 = vsel %vm637, 1, 0
    %v702 = vsel %vm638, 1, 0
    %v703 = vsel %vm639, 1, 0
    %v704 = vsel %vm640, 1, 0
    %v705 = vsel %vm641, 1, 0
    %v706 = vsel %vm642, 1, 0
    %v707 = vsel %vm643, 1, 0
    %v708 = vsel %vm644, 1, 0
    %v709 = vsel %vm645, 1, 0
    %v710 = vsel %vm646, 1, 0
    %v711 = vsel %vm647, 1, 0
    %v712 = vsel %vm648, 1, 0
    %v713 = vsel %vm649, 1, 0
    %v714 = vsel %vm650, 1, 0
    %v715 = vsel %vm651, 1, 0
    %v716 = vsel %vm652, 1, 0
    %v717 = vsel %vm653, 1, 0
    %v718 = vsel %vm654, 1, 0
    %v719 = vsel %vm655, 1, 0
    %v720 = vsel %vm656, 1, 0
    %v721 = vsel %vm657, 1, 0
    %v722 = vsel %vm658, 1, 0
    %v723 = vsel %vm659, 1, 0
    %v724 = vsel %vm660, 1, 0
    %v725 = vsel %vm661, 1, 0
    %v726 = vsel %vm662, 1, 0
    %v727 = vsel %vm663, 1, 0
    %v728 = vsel %vm664, 1, 0
    %v729 = vsel %vm665, 1, 0
    %v730 = vsel %vm666, 1, 0
    %v731 = vsel %vm667, 1, 0
    %v732 = vsel %vm668, 1, 0
    %v733 = vsel %vm669, 1, 0
    %v734 = vsel %vm670, 1, 0
    %v735 = vsel %vm671, 1, 0
    %v736 = vsel %vm672, 1, 0
    %v737 = vcvt.s32.f32 %v673
    %v738 = vcvt.s32.f32 %v674
    %v739 = vcvt.s32.f32 %v675
    %v740 = vcvt.s32.f32 %v676
    %v741 = vcvt.s32.f32 %v677
    %v742 = vcvt.s32.f32 %v678
    %v743 = vcvt.s32.f32 %v679
    %v744 = vcvt.s32.f32 %v680
    %v745 = vcvt.s32.f32 %v681
    %v746 = vcvt.s32.f32 %v682
    %v747 = vcvt.s32.f32 %v683
    %v748 = vcvt.s32.f32 %v684
    %v749 = vcvt.s32.f32 %v685
    %v750 = vcvt.s32.f32 %v686
    %v751 = vcvt.s32.f32 %v687
    %v752 = vcvt.s32.f32 %v688
    %v753 = vcvt.s32.f32 %v689
    %v754 = vcvt.s32.f32 %v690
    %v755 = vcvt.s32.f32 %v691
    %v756 = vcvt.s32.f32 %v692
    %v757 = vcvt.s32.f32 %v693
    %v758 = vcvt.s32.f32 %v694
    %v759 = vcvt.s32.f32 %v695
    %v760 = vcvt.s32.f32 %v696
    %v761 = vcvt.s32.f32 %v697
    %v762 = vcvt.s32.f32 %v698
    %v763 = vcvt.s32.f32 %v699
    %v764 = vcvt.s32.f32 %v700
    %v765 = vcvt.s32.f32 %v701
    %v766 = vcvt.s32.f32 %v702
    %v767 = vcvt.s32.f32 %v703
    %v768 = vcvt.s32.f32 %v704
    %v769 = vcvt.s32.f32 %v705
    %v770 = vcvt.s32.f32 %v706
    %v771 = vcvt.s32.f32 %v707
    %v772 = vcvt.s32.f32 %v708
    %v773 = vcvt.s32.f32 %v709
    %v774 = vcvt.s32.f32 %v710
    %v775 = vcvt.s32.f32 %v711
    %v776 = vcvt.s32.f32 %v712
    %v777 = vcvt.s32.f32 %v713
    %v778 = vcvt.s32.f32 %v714
    %v779 = vcvt.s32.f32 %v715
    %v780 = vcvt.s32.f32 %v716
    %v781 = vcvt.s32.f32 %v717
    %v782 = vcvt.s32.f32 %v718
    %v783 = vcvt.s32.f32 %v719
    %v784 = vcvt.s32.f32 %v720
    %v785 = vcvt.s32.f32 %v721
    %v786 = vcvt.s32.f32 %v722
    %v787 = vcvt.s32.f32 %v723
    %v788 = vcvt.s32.f32 %v724
    %v789 = vcvt.s32.f32 %v725
    %v790 = vcvt.s32.f32 %v726
    %v791 = vcvt.s32.f32 %v727
    %v792 = vcvt.s32.f32 %v728
    %v793 = vcvt.s32.f32 %v729
    %v794 = vcvt.s32.f32 %v730
    %v795 = vcvt.s32.f32 %v731
    %v796 = vcvt.s32.f32 %v732
    %v797 = vcvt.s32.f32 %v733
    %v798 = vcvt.s32.f32 %v734
    %v799 = vcvt.s32.f32 %v735
    %v800 = vcvt.s32.f32 %v736
    %v801 = vadd.s32 %v448, 32
    %v802 = vadd.s32 %v448, 40
    %v803 = vadd.s32 %v448, 48
    %v804 = vadd.s32 %v448, 56
    %v805 = vadd.s32 %v448, 64
    %v806 = vadd.s32 %v448, 72
    %v807 = vadd.s32 %v448, 80
    %v808 = vadd.s32 %v448, 88
    %v809 = vadd.s32 %v448, 96
    %v810 = vadd.s32 %v448, 104
    %v811 = vadd.s32 %v448, 112
    %v812 = vadd.s32 %v448, 120
    %v813 = vadd.s32 %v448, 128
    %v814 = vadd.s32 %v448, 136
    %v815 = vadd.s32 %v448, 144
    %v816 = vadd.s32 %v448, 152
    %v817 = vadd.s32 %v448, 160
    %v818 = vadd.s32 %v448, 168
    %v819 = vadd.s32 %v448, 176
    %v820 = vadd.s32 %v448, 184
    %v821 = vadd.s32 %v448, 192
    %v822 = vadd.s32 %v448, 200
    %v823 = vadd.s32 %v448, 208
    %v824 = vadd.s32 %v448, 216
    %v825 = vadd.s32 %v448, 224
    %v826 = vadd.s32 %v448, 232
    %v827 = vadd.s32 %v448, 240
    %v828 = vadd.s32 %v448, 248
    %v829 = vadd.s32 %v448, 256
    %v830 = vadd.s32 %v448, 264
    %v831 = vadd.s32 %v448, 272
    %v832 = vadd.s32 %v448, 280
    %v833 = vadd.s32 %v448, 288
    %v834 = vadd.s32 %v448, 296
    %v835 = vadd.s32 %v448, 304
    %v836 = vadd.s32 %v448, 312
    %v837 = vadd.s32 %v448, 320
    %v838 = vadd.s32 %v448, 328
    %v839 = vadd.s32 %v448, 336
    %v840 = vadd.s32 %v448, 344
    %v841 = vadd.s32 %v448, 352
    %v842 = vadd.s32 %v448, 360
    %v843 = vadd.s32 %v448, 368
    %v844 = vadd.s32 %v448, 376
    %v845 = vadd.s32 %v448, 384
    %v846 = vadd.s32 %v448, 392
    %v847 = vadd.s32 %v448, 400
    %v848 = vadd.s32 %v448, 408
    %v849 = vadd.s32 %v448, 416
    %v850 = vadd.s32 %v448, 424
    %v851 = vadd.s32 %v448, 432
    %v852 = vadd.s32 %v448, 440
    %v853 = vadd.s32 %v448, 448
    %v854 = vadd.s32 %v448, 456
    %v855 = vadd.s32 %v448, 464
    %v856 = vadd.s32 %v448, 472
    %v857 = vadd.s32 %v448, 480
    %v858 = vadd.s32 %v448, 488
    %v859 = vadd.s32 %v448, 496
    %v860 = vadd.s32 %v448, 504
    %v861 = vadd.s32 %v448, 512
    %v862 = vadd.s32 %v448, 520
    %v863 = vadd.s32 %v448, 528
    %v864 = vadd.s32 %v448, 536
    %v865 = vadd.s32 %v448, 544
    %v866 = vadd.s32 %v448, 552
    %v867 = vadd.s32 %v448, 560
    %v868 = vadd.s32 %v448, 568
    %v869 = vadd.s32 %v448, 576
    %v870 = vadd.s32 %v448, 584
    %v871 = vadd.s32 %v448, 592
    %v872 = vadd.s32 %v448, 600
    %v873 = vadd.s32 %v448, 608
    %v874 = vadd.s32 %v448, 616
    %v875 = vadd.s32 %v448, 624
    %v876 = vadd.s32 %v448, 632
    %v877 = vadd.s32 %v448, 640
    %v878 = vadd.s32 %v448, 648
    %v879 = vadd.s32 %v448, 656
    %v880 = vadd.s32 %v448, 664
    %v881 = vadd.s32 %v448, 672
    %v882 = vadd.s32 %v448, 680
    %v883 = vadd.s32 %v448, 688
    %v884 = vadd.s32 %v448, 696
    %v885 = vadd.s32 %v448, 704
    %v886 = vadd.s32 %v448, 712
    %v887 = vadd.s32 %v448, 720
    %v888 = vadd.s32 %v448, 728
    %v889 = vadd.s32 %v448, 736
    %v890 = vadd.s32 %v448, 744
    %v891 = vadd.s32 %v448, 752
    %v892 = vadd.s32 %v448, 760
    %v893 = vadd.s32 %v448, 768
    %v894 = vadd.s32 %v448, 776
    %v895 = vadd.s32 %v448, 784
    %v896 = vadd.s32 %v448, 792
    %v897 = vadd.s32 %v448, 800
    %v898 = vadd.s32 %v448, 808
    %v899 = vadd.s32 %v448, 816
    %v900 = vadd.s32 %v448, 824
    %v901 = vadd.s32 %v448, 832
    %v902 = vadd.s32 %v448, 840
    %v903 = vadd.s32 %v448, 848
    %v904 = vadd.s32 %v448, 856
    %v905 = vadd.s32 %v448, 864
    %v906 = vadd.s32 %v448, 872
    %v907 = vadd.s32 %v448, 880
    %v908 = vadd.s32 %v448, 888
    %v909 = vadd.s32 %v448, 896
    %v910 = vadd.s32 %v448, 904
    %v911 = vadd.s32 %v448, 912
    %v912 = vadd.s32 %v448, 920
    %v913 = vadd.s32 %v448, 928
    %v914 = vadd.s32 %v448, 936
    %v915 = vadd.s32 %v448, 944
    %v916 = vadd.s32 %v448, 952
    %v917 = vadd.s32 %v448, 960
    %v918 = vadd.s32 %v448, 968
    %v919 = vadd.s32 %v448, 976
    %v920 = vadd.s32 %v448, 984
    %v921 = vadd.s32 %v448, 992
    %v922 = vadd.s32 %v448, 1000
    %v923 = vadd.s32 %v448, 1008
    %v924 = vadd.s32 %v448, 1016
    %v925 = vadd.s32 %v448, 1024
    %v926 = vadd.s32 %v448, 1032
    %v927 = vadd.s32 %v448, 1040
    %v928 = vadd.s32 %v448, 1048
    %v929 = vadd.s32 %v448, 1056
    %v930 = vadd.s32 %v448, 1064
    %v931 = vadd.s32 %v448, 1072
    %v932 = vadd.s32 %v448, 1080
    %v933 = vadd.s32 %v448, 1088
    %v934 = vadd.s32 %v448, 1096
    %v935 = vadd.s32 %v448, 1104
    %v936 = vadd.s32 %v448, 1112
    %v937 = vadd.s32 %v448, 1120
    %v938 = vadd.s32 %v448, 1128
    %v939 = vadd.s32 %v448, 1136
    %v940 = vadd.s32 %v448, 1144
    %v941 = vadd.s32 %v448, 1152
    %v942 = vadd.s32 %v448, 1160
    %v943 = vadd.s32 %v448, 1168
    %v944 = vadd.s32 %v448, 1176
    %v945 = vadd.s32 %v448, 1184
    %v946 = vadd.s32 %v448, 1192
    %v947 = vadd.s32 %v448, 1200
    %v948 = vadd.s32 %v448, 1208
    %v949 = vadd.s32 %v448, 1216
    %v950 = vadd.s32 %v448, 1224
    %v951 = vadd.s32 %v448, 1232
    %v952 = vadd.s32 %v448, 1240
    %v953 = vadd.s32 %v448, 1248
    %v954 = vadd.s32 %v448, 1256
    %v955 = vadd.s32 %v448, 1264
    %v956 = vadd.s32 %v448, 1272
    %v957 = vadd.s32 %v448, 1280
    %v958 = vadd.s32 %v448, 1288
    %v959 = vadd.s32 %v448, 1296
    %v960 = vadd.s32 %v448, 1304
    %v961 = vadd.s32 %v448, 1312
    %v962 = vadd.s32 %v448, 1320
    %v963 = vadd.s32 %v448, 1328
    %v964 = vadd.s32 %v448, 1336
    %v965 = vadd.s32 %v448, 1344
    %v966 = vadd.s32 %v448, 1352
    %v967 = vadd.s32 %v448, 1360
    %v968 = vadd.s32 %v448, 1368
    %v969 = vadd.s32 %v448, 1376
    %v970 = vadd.s32 %v448, 1384
    %v971 = vadd.s32 %v448, 1392
    %v972 = vadd.s32 %v448, 1400
    %v973 = vadd.s32 %v448, 1408
    %v974 = vadd.s32 %v448, 1416
    %v975 = vadd.s32 %v448, 1424
    %v976 = vadd.s32 %v448, 1432
    %v977 = vadd.s32 %v448, 1440
    %v978 = vadd.s32 %v448, 1448
    %v979 = vadd.s32 %v448, 1456
    %v980 = vadd.s32 %v448, 1464
    %v981 = vadd.s32 %v448, 1472
    %v982 = vadd.s32 %v448, 1480
    %v983 = vadd.s32 %v448, 1488
    %v984 = vadd.s32 %v448, 1496
    %v985 = vadd.s32 %v448, 1504
    %v986 = vadd.s32 %v448, 1512
    %v987 = vadd.s32 %v448, 1520
    %v988 = vadd.s32 %v448, 1528
    %v989 = vadd.s32 %v448, 1536
    %v990 = vadd.s32 %v448, 1544
    %v991 = vadd.s32 %v448, 1552
    %v992 = vadd.s32 %v448, 1560
    %v993 = vadd.s32 %v448, 1568
    %v994 = vadd.s32 %v448, 1576
    %v995 = vadd.s32 %v448, 1584
    %v996 = vadd.s32 %v448, 1592
    %v997 = vadd.s32 %v448, 1600
    %v998 = vadd.s32 %v448, 1608
    %v999 = vadd.s32 %v448, 1616
    %v1000 = vadd.s32 %v448, 1624
    %v1001 = vadd.s32 %v448, 1632
    %v1002 = vadd.s32 %v448, 1640
    %v1003 = vadd.s32 %v448, 1648
    %v1004 = vadd.s32 %v448, 1656
    %v1005 = vadd.s32 %v448, 1664
    %v1006 = vadd.s32 %v448, 1672
    %v1007 = vadd.s32 %v448, 1680
    %v1008 = vadd.s32 %v448, 1688
    %v1009 = vadd.s32 %v448, 1696
    %v1010 = vadd.s32 %v448, 1704
    %v1011 = vadd.s32 %v448, 1712
    %v1012 = vadd.s32 %v448, 1720
    %v1013 = vadd.s32 %v448, 1728
    %v1014 = vadd.s32 %v448, 1736
    %v1015 = vadd.s32 %v448, 1744
    %v1016 = vadd.s32 %v448, 1752
    %v1017 = vadd.s32 %v448, 1760
    %v1018 = vadd.s32 %v448, 1768
    %v1019 = vadd.s32 %v448, 1776
    %v1020 = vadd.s32 %v448, 1784
    %v1021 = vadd.s32 %v448, 1792
    %v1022 = vadd.s32 %v448, 1800
    %v1023 = vadd.s32 %v448, 1808
    %v1024 = vadd.s32 %v448, 1816
    %v1025 = vadd.s32 %v448, 1824
    %v1026 = vadd.s32 %v448, 1832
    %v1027 = vadd.s32 %v448, 1840
    %v1028 = vadd.s32 %v448, 1848
    %v1029 = vadd.s32 %v448, 1856
    %v1030 = vadd.s32 %v448, 1864
    %v1031 = vadd.s32 %v448, 1872
    %v1032 = vadd.s32 %v448, 1880
    %v1033 = vadd.s32 %v448, 1888
    %v1034 = vadd.s32 %v448, 1896
    %v1035 = vadd.s32 %v448, 1904
    %v1036 = vadd.s32 %v448, 1912
    %v1037 = vadd.s32 %v448, 1920
    %v1038 = vadd.s32 %v448, 1928
    %v1039 = vadd.s32 %v448, 1936
    %v1040 = vadd.s32 %v448, 1944
    %v1041 = vadd.s32 %v448, 1952
    %v1042 = vadd.s32 %v448, 1960
    %v1043 = vadd.s32 %v448, 1968
    %v1044 = vadd.s32 %v448, 1976
    %v1045 = vadd.s32 %v448, 1984
    %v1046 = vadd.s32 %v448, 1992
    %v1047 = vadd.s32 %v448, 2000
    %v1048 = vadd.s32 %v448, 2008
    %v1049 = vadd.s32 %v448, 2016
    %v1050 = vadd.s32 %v448, 2024
    %v1051 = vadd.s32 %v448, 2032
    %v1052 = vadd.s32 %v448, 2040
    %v1053 = vand.u32 %v448, 63
    %v1054 = vand.u32 %v449, 63
    %v1055 = vand.u32 %v450, 63
    %v1056 = vand.u32 %v451, 63
    %v1057 = vand.u32 %v801, 63
    %v1058 = vand.u32 %v802, 63
    %v1059 = vand.u32 %v803, 63
    %v1060 = vand.u32 %v804, 63
    %v1061 = vand.u32 %v805, 63
    %v1062 = vand.u32 %v806, 63
    %v1063 = vand.u32 %v807, 63
    %v1064 = vand.u32 %v808, 63
    %v1065 = vand.u32 %v809, 63
    %v1066 = vand.u32 %v810, 63
    %v1067 = vand.u32 %v811, 63
    %v1068 = vand.u32 %v812, 63
    %v1069 = vand.u32 %v813, 63
    %v1070 = vand.u32 %v814, 63
    %v1071 = vand.u32 %v815, 63
    %v1072 = vand.u32 %v816, 63
    %v1073 = vand.u32 %v817, 63
    %v1074 = vand.u32 %v818, 63
    %v1075 = vand.u32 %v819, 63
    %v1076 = vand.u32 %v820, 63
    %v1077 = vand.u32 %v821, 63
    %v1078 = vand.u32 %v822, 63
    %v1079 = vand.u32 %v823, 63
    %v1080 = vand.u32 %v824, 63
    %v1081 = vand.u32 %v825, 63
    %v1082 = vand.u32 %v826, 63
    %v1083 = vand.u32 %v827, 63
    %v1084 = vand.u32 %v828, 63
    %v1085 = vand.u32 %v829, 63
    %v1086 = vand.u32 %v830, 63
    %v1087 = vand.u32 %v831, 63
    %v1088 = vand.u32 %v832, 63
    %v1089 = vand.u32 %v833, 63
    %v1090 = vand.u32 %v834, 63
    %v1091 = vand.u32 %v835, 63
    %v1092 = vand.u32 %v836, 63
    %v1093 = vand.u32 %v837, 63
    %v1094 = vand.u32 %v838, 63
    %v1095 = vand.u32 %v839, 63
    %v1096 = vand.u32 %v840, 63
    %v1097 = vand.u32 %v841, 63
    %v1098 = vand.u32 %v842, 63
    %v1099 = vand.u32 %v843, 63
    %v1100 = vand.u32 %v844, 63
    %v1101 = vand.u32 %v845, 63
    %v1102 = vand.u32 %v846, 63
    %v1103 = vand.u32 %v847, 63
    %v1104 = vand.u32 %v848, 63
    %v1105 = vand.u32 %v849, 63
    %v1106 = vand.u32 %v850, 63
    %v1107 = vand.u32 %v851, 63
    %v1108 = vand.u32 %v852, 63
    %v1109 = vand.u32 %v853, 63
    %v1110 = vand.u32 %v854, 63
    %v1111 = vand.u32 %v855, 63
    %v1112 = vand.u32 %v856, 63
    %v1113 = vand.u32 %v857, 63
    %v1114 = vand.u32 %v858, 63
    %v1115 = vand.u32 %v859, 63
    %v1116 = vand.u32 %v860, 63
    %v1117 = vand.u32 %v861, 63
    %v1118 = vand.u32 %v862, 63
    %v1119 = vand.u32 %v863, 63
    %v1120 = vand.u32 %v864, 63
    %v1121 = vand.u32 %v865, 63
    %v1122 = vand.u32 %v866, 63
    %v1123 = vand.u32 %v867, 63
    %v1124 = vand.u32 %v868, 63
    %v1125 = vand.u32 %v869, 63
    %v1126 = vand.u32 %v870, 63
    %v1127 = vand.u32 %v871, 63
    %v1128 = vand.u32 %v872, 63
    %v1129 = vand.u32 %v873, 63
    %v1130 = vand.u32 %v874, 63
    %v1131 = vand.u32 %v875, 63
    %v1132 = vand.u32 %v876, 63
    %v1133 = vand.u32 %v877, 63
    %v1134 = vand.u32 %v878, 63
    %v1135 = vand.u32 %v879, 63
    %v1136 = vand.u32 %v880, 63
    %v1137 = vand.u32 %v881, 63
    %v1138 = vand.u32 %v882, 63
    %v1139 = vand.u32 %v883, 63
    %v1140 = vand.u32 %v884, 63
    %v1141 = vand.u32 %v885, 63
    %v1142 = vand.u32 %v886, 63
    %v1143 = vand.u32 %v887, 63
    %v1144 = vand.u32 %v888, 63
    %v1145 = vand.u32 %v889, 63
    %v1146 = vand.u32 %v890, 63
    %v1147 = vand.u32 %v891, 63
    %v1148 = vand.u32 %v892, 63
    %v1149 = vand.u32 %v893, 63
    %v1150 = vand.u32 %v894, 63
    %v1151 = vand.u32 %v895, 63
    %v1152 = vand.u32 %v896, 63
    %v1153 = vand.u32 %v897, 63
    %v1154 = vand.u32 %v898, 63
    %v1155 = vand.u32 %v899, 63
    %v1156 = vand.u32 %v900, 63
    %v1157 = vand.u32 %v901, 63
    %v1158 = vand.u32 %v902, 63
    %v1159 = vand.u32 %v903, 63
    %v1160 = vand.u32 %v904, 63
    %v1161 = vand.u32 %v905, 63
    %v1162 = vand.u32 %v906, 63
    %v1163 = vand.u32 %v907, 63
    %v1164 = vand.u32 %v908, 63
    %v1165 = vand.u32 %v909, 63
    %v1166 = vand.u32 %v910, 63
    %v1167 = vand.u32 %v911, 63
    %v1168 = vand.u32 %v912, 63
    %v1169 = vand.u32 %v913, 63
    %v1170 = vand.u32 %v914, 63
    %v1171 = vand.u32 %v915, 63
    %v1172 = vand.u32 %v916, 63
    %v1173 = vand.u32 %v917, 63
    %v1174 = vand.u32 %v918, 63
    %v1175 = vand.u32 %v919, 63
    %v1176 = vand.u32 %v920, 63
    %v1177 = vand.u32 %v921, 63
    %v1178 = vand.u32 %v922, 63
    %v1179 = vand.u32 %v923, 63
    %v1180 = vand.u32 %v924, 63
    %v1181 = vand.u32 %v925, 63
    %v1182 = vand.u32 %v926, 63
    %v1183 = vand.u32 %v927, 63
    %v1184 = vand.u32 %v928, 63
    %v1185 = vand.u32 %v929, 63
    %v1186 = vand.u32 %v930, 63
    %v1187 = vand.u32 %v931, 63
    %v1188 = vand.u32 %v932, 63
    %v1189 = vand.u32 %v933, 63
    %v1190 = vand.u32 %v934, 63
    %v1191 = vand.u32 %v935, 63
    %v1192 = vand.u32 %v936, 63
    %v1193 = vand.u32 %v937, 63
    %v1194 = vand.u32 %v938, 63
    %v1195 = vand.u32 %v939, 63
    %v1196 = vand.u32 %v940, 63
    %v1197 = vand.u32 %v941, 63
    %v1198 = vand.u32 %v942, 63
    %v1199 = vand.u32 %v943, 63
    %v1200 = vand.u32 %v944, 63
    %v1201 = vand.u32 %v945, 63
    %v1202 = vand.u32 %v946, 63
    %v1203 = vand.u32 %v947, 63
    %v1204 = vand.u32 %v948, 63
    %v1205 = vand.u32 %v949, 63
    %v1206 = vand.u32 %v950, 63
    %v1207 = vand.u32 %v951, 63
    %v1208 = vand.u32 %v952, 63
    %v1209 = vand.u32 %v953, 63
    %v1210 = vand.u32 %v954, 63
    %v1211 = vand.u32 %v955, 63
    %v1212 = vand.u32 %v956, 63
    %v1213 = vand.u32 %v957, 63
    %v1214 = vand.u32 %v958, 63
    %v1215 = vand.u32 %v959, 63
    %v1216 = vand.u32 %v960, 63
    %v1217 = vand.u32 %v961, 63
    %v1218 = vand.u32 %v962, 63
    %v1219 = vand.u32 %v963, 63
    %v1220 = vand.u32 %v964, 63
    %v1221 = vand.u32 %v965, 63
    %v1222 = vand.u32 %v966, 63
    %v1223 = vand.u32 %v967, 63
    %v1224 = vand.u32 %v968, 63
    %v1225 = vand.u32 %v969, 63
    %v1226 = vand.u32 %v970, 63
    %v1227 = vand.u32 %v971, 63
    %v1228 = vand.u32 %v972, 63
    %v1229 = vand.u32 %v973, 63
    %v1230 = vand.u32 %v974, 63
    %v1231 = vand.u32 %v975, 63
    %v1232 = vand.u32 %v976, 63
    %v1233 = vand.u32 %v977, 63
    %v1234 = vand.u32 %v978, 63
    %v1235 = vand.u32 %v979, 63
    %v1236 = vand.u32 %v980, 63
    %v1237 = vand.u32 %v981, 63
    %v1238 = vand.u32 %v982, 63
    %v1239 = vand.u32 %v983, 63
    %v1240 = vand.u32 %v984, 63
    %v1241 = vand.u32 %v985, 63
    %v1242 = vand.u32 %v986, 63
    %v1243 = vand.u32 %v987, 63
    %v1244 = vand.u32 %v988, 63
    %v1245 = vand.u32 %v989, 63
    %v1246 = vand.u32 %v990, 63
    %v1247 = vand.u32 %v991, 63
    %v1248 = vand.u32 %v992, 63
    %v1249 = vand.u32 %v993, 63
    %v1250 = vand.u32 %v994, 63
    %v1251 = vand.u32 %v995, 63
    %v1252 = vand.u32 %v996, 63
    %v1253 = vand.u32 %v997, 63
    %v1254 = vand.u32 %v998, 63
    %v1255 = vand.u32 %v999, 63
    %v1256 = vand.u32 %v1000, 63
    %v1257 = vand.u32 %v1001, 63
    %v1258 = vand.u32 %v1002, 63
    %v1259 = vand.u32 %v1003, 63
    %v1260 = vand.u32 %v1004, 63
    %v1261 = vand.u32 %v1005, 63
    %v1262 = vand.u32 %v1006, 63
    %v1263 = vand.u32 %v1007, 63
    %v1264 = vand.u32 %v1008, 63
    %v1265 = vand.u32 %v1009, 63
    %v1266 = vand.u32 %v1010, 63
    %v1267 = vand.u32 %v1011, 63
    %v1268 = vand.u32 %v1012, 63
    %v1269 = vand.u32 %v1013, 63
    %v1270 = vand.u32 %v1014, 63
    %v1271 = vand.u32 %v1015, 63
    %v1272 = vand.u32 %v1016, 63
    %v1273 = vand.u32 %v1017, 63
    %v1274 = vand.u32 %v1018, 63
    %v1275 = vand.u32 %v1019, 63
    %v1276 = vand.u32 %v1020, 63
    %v1277 = vand.u32 %v1021, 63
    %v1278 = vand.u32 %v1022, 63
    %v1279 = vand.u32 %v1023, 63
    %v1280 = vand.u32 %v1024, 63
    %v1281 = vand.u32 %v1025, 63
    %v1282 = vand.u32 %v1026, 63
    %v1283 = vand.u32 %v1027, 63
    %v1284 = vand.u32 %v1028, 63
    %v1285 = vand.u32 %v1029, 63
    %v1286 = vand.u32 %v1030, 63
    %v1287 = vand.u32 %v1031, 63
    %v1288 = vand.u32 %v1032, 63
    %v1289 = vand.u32 %v1033, 63
    %v1290 = vand.u32 %v1034, 63
    %v1291 = vand.u32 %v1035, 63
    %v1292 = vand.u32 %v1036, 63
    %v1293 = vand.u32 %v1037, 63
    %v1294 = vand.u32 %v1038, 63
    %v1295 = vand.u32 %v1039, 63
    %v1296 = vand.u32 %v1040, 63
    %v1297 = vand.u32 %v1041, 63
    %v1298 = vand.u32 %v1042, 63
    %v1299 = vand.u32 %v1043, 63
    %v1300 = vand.u32 %v1044, 63
    %v1301 = vand.u32 %v1045, 63
    %v1302 = vand.u32 %v1046, 63
    %v1303 = vand.u32 %v1047, 63
    %v1304 = vand.u32 %v1048, 63
    %v1305 = vand.u32 %v1049, 63
    %v1306 = vand.u32 %v1050, 63
    %v1307 = vand.u32 %v1051, 63
    %v1308 = vand.u32 %v1052, 63
    %vm1309 = vcmp.eq.s32.totalorder %v1053, %v453
    %vm1310 = vcmp.eq.s32.totalorder %v1054, %v453
    %vm1311 = vcmp.eq.s32.totalorder %v1055, %v453
    %vm1312 = vcmp.eq.s32.totalorder %v1056, %v453
    %vm1313 = vcmp.eq.s32.totalorder %v1057, %v453
    %vm1314 = vcmp.eq.s32.totalorder %v1058, %v453
    %vm1315 = vcmp.eq.s32.totalorder %v1059, %v453
    %vm1316 = vcmp.eq.s32.totalorder %v1060, %v453
    %vm1317 = vcmp.eq.s32.totalorder %v1061, %v453
    %vm1318 = vcmp.eq.s32.totalorder %v1062, %v453
    %vm1319 = vcmp.eq.s32.totalorder %v1063, %v453
    %vm1320 = vcmp.eq.s32.totalorder %v1064, %v453
    %vm1321 = vcmp.eq.s32.totalorder %v1065, %v453
    %vm1322 = vcmp.eq.s32.totalorder %v1066, %v453
    %vm1323 = vcmp.eq.s32.totalorder %v1067, %v453
    %vm1324 = vcmp.eq.s32.totalorder %v1068, %v453
    %vm1325 = vcmp.eq.s32.totalorder %v1069, %v453
    %vm1326 = vcmp.eq.s32.totalorder %v1070, %v453
    %vm1327 = vcmp.eq.s32.totalorder %v1071, %v453
    %vm1328 = vcmp.eq.s32.totalorder %v1072, %v453
    %vm1329 = vcmp.eq.s32.totalorder %v1073, %v453
    %vm1330 = vcmp.eq.s32.totalorder %v1074, %v453
    %vm1331 = vcmp.eq.s32.totalorder %v1075, %v453
    %vm1332 = vcmp.eq.s32.totalorder %v1076, %v453
    %vm1333 = vcmp.eq.s32.totalorder %v1077, %v453
    %vm1334 = vcmp.eq.s32.totalorder %v1078, %v453
    %vm1335 = vcmp.eq.s32.totalorder %v1079, %v453
    %vm1336 = vcmp.eq.s32.totalorder %v1080, %v453
    %vm1337 = vcmp.eq.s32.totalorder %v1081, %v453
    %vm1338 = vcmp.eq.s32.totalorder %v1082, %v453
    %vm1339 = vcmp.eq.s32.totalorder %v1083, %v453
    %vm1340 = vcmp.eq.s32.totalorder %v1084, %v453
    %vm1341 = vcmp.eq.s32.totalorder %v1085, %v453
    %vm1342 = vcmp.eq.s32.totalorder %v1086, %v453
    %vm1343 = vcmp.eq.s32.totalorder %v1087, %v453
    %vm1344 = vcmp.eq.s32.totalorder %v1088, %v453
    %vm1345 = vcmp.eq.s32.totalorder %v1089, %v453
    %vm1346 = vcmp.eq.s32.totalorder %v1090, %v453
    %vm1347 = vcmp.eq.s32.totalorder %v1091, %v453
    %vm1348 = vcmp.eq.s32.totalorder %v1092, %v453
    %vm1349 = vcmp.eq.s32.totalorder %v1093, %v453
    %vm1350 = vcmp.eq.s32.totalorder %v1094, %v453
    %vm1351 = vcmp.eq.s32.totalorder %v1095, %v453
    %vm1352 = vcmp.eq.s32.totalorder %v1096, %v453
    %vm1353 = vcmp.eq.s32.totalorder %v1097, %v453
    %vm1354 = vcmp.eq.s32.totalorder %v1098, %v453
    %vm1355 = vcmp.eq.s32.totalorder %v1099, %v453
    %vm1356 = vcmp.eq.s32.totalorder %v1100, %v453
    %vm1357 = vcmp.eq.s32.totalorder %v1101, %v453
    %vm1358 = vcmp.eq.s32.totalorder %v1102, %v453
    %vm1359 = vcmp.eq.s32.totalorder %v1103, %v453
    %vm1360 = vcmp.eq.s32.totalorder %v1104, %v453
    %vm1361 = vcmp.eq.s32.totalorder %v1105, %v453
    %vm1362 = vcmp.eq.s32.totalorder %v1106, %v453
    %vm1363 = vcmp.eq.s32.totalorder %v1107, %v453
    %vm1364 = vcmp.eq.s32.totalorder %v1108, %v453
    %vm1365 = vcmp.eq.s32.totalorder %v1109, %v453
    %vm1366 = vcmp.eq.s32.totalorder %v1110, %v453
    %vm1367 = vcmp.eq.s32.totalorder %v1111, %v453
    %vm1368 = vcmp.eq.s32.totalorder %v1112, %v453
    %vm1369 = vcmp.eq.s32.totalorder %v1113, %v453
    %vm1370 = vcmp.eq.s32.totalorder %v1114, %v453
    %vm1371 = vcmp.eq.s32.totalorder %v1115, %v453
    %vm1372 = vcmp.eq.s32.totalorder %v1116, %v453
    %vm1373 = vcmp.eq.s32.totalorder %v1117, %v453
    %vm1374 = vcmp.eq.s32.totalorder %v1118, %v453
    %vm1375 = vcmp.eq.s32.totalorder %v1119, %v453
    %vm1376 = vcmp.eq.s32.totalorder %v1120, %v453
    %vm1377 = vcmp.eq.s32.totalorder %v1121, %v453
    %vm1378 = vcmp.eq.s32.totalorder %v1122, %v453
    %vm1379 = vcmp.eq.s32.totalorder %v1123, %v453
    %vm1380 = vcmp.eq.s32.totalorder %v1124, %v453
    %vm1381 = vcmp.eq.s32.totalorder %v1125, %v453
    %vm1382 = vcmp.eq.s32.totalorder %v1126, %v453
    %vm1383 = vcmp.eq.s32.totalorder %v1127, %v453
    %vm1384 = vcmp.eq.s32.totalorder %v1128, %v453
    %vm1385 = vcmp.eq.s32.totalorder %v1129, %v453
    %vm1386 = vcmp.eq.s32.totalorder %v1130, %v453
    %vm1387 = vcmp.eq.s32.totalorder %v1131, %v453
    %vm1388 = vcmp.eq.s32.totalorder %v1132, %v453
    %vm1389 = vcmp.eq.s32.totalorder %v1133, %v453
    %vm1390 = vcmp.eq.s32.totalorder %v1134, %v453
    %vm1391 = vcmp.eq.s32.totalorder %v1135, %v453
    %vm1392 = vcmp.eq.s32.totalorder %v1136, %v453
    %vm1393 = vcmp.eq.s32.totalorder %v1137, %v453
    %vm1394 = vcmp.eq.s32.totalorder %v1138, %v453
    %vm1395 = vcmp.eq.s32.totalorder %v1139, %v453
    %vm1396 = vcmp.eq.s32.totalorder %v1140, %v453
    %vm1397 = vcmp.eq.s32.totalorder %v1141, %v453
    %vm1398 = vcmp.eq.s32.totalorder %v1142, %v453
    %vm1399 = vcmp.eq.s32.totalorder %v1143, %v453
    %vm1400 = vcmp.eq.s32.totalorder %v1144, %v453
    %vm1401 = vcmp.eq.s32.totalorder %v1145, %v453
    %vm1402 = vcmp.eq.s32.totalorder %v1146, %v453
    %vm1403 = vcmp.eq.s32.totalorder %v1147, %v453
    %vm1404 = vcmp.eq.s32.totalorder %v1148, %v453
    %vm1405 = vcmp.eq.s32.totalorder %v1149, %v453
    %vm1406 = vcmp.eq.s32.totalorder %v1150, %v453
    %vm1407 = vcmp.eq.s32.totalorder %v1151, %v453
    %vm1408 = vcmp.eq.s32.totalorder %v1152, %v453
    %vm1409 = vcmp.eq.s32.totalorder %v1153, %v453
    %vm1410 = vcmp.eq.s32.totalorder %v1154, %v453
    %vm1411 = vcmp.eq.s32.totalorder %v1155, %v453
    %vm1412 = vcmp.eq.s32.totalorder %v1156, %v453
    %vm1413 = vcmp.eq.s32.totalorder %v1157, %v453
    %vm1414 = vcmp.eq.s32.totalorder %v1158, %v453
    %vm1415 = vcmp.eq.s32.totalorder %v1159, %v453
    %vm1416 = vcmp.eq.s32.totalorder %v1160, %v453
    %vm1417 = vcmp.eq.s32.totalorder %v1161, %v453
    %vm1418 = vcmp.eq.s32.totalorder %v1162, %v453
    %vm1419 = vcmp.eq.s32.totalorder %v1163, %v453
    %vm1420 = vcmp.eq.s32.totalorder %v1164, %v453
    %vm1421 = vcmp.eq.s32.totalorder %v1165, %v453
    %vm1422 = vcmp.eq.s32.totalorder %v1166, %v453
    %vm1423 = vcmp.eq.s32.totalorder %v1167, %v453
    %vm1424 = vcmp.eq.s32.totalorder %v1168, %v453
    %vm1425 = vcmp.eq.s32.totalorder %v1169, %v453
    %vm1426 = vcmp.eq.s32.totalorder %v1170, %v453
    %vm1427 = vcmp.eq.s32.totalorder %v1171, %v453
    %vm1428 = vcmp.eq.s32.totalorder %v1172, %v453
    %vm1429 = vcmp.eq.s32.totalorder %v1173, %v453
    %vm1430 = vcmp.eq.s32.totalorder %v1174, %v453
    %vm1431 = vcmp.eq.s32.totalorder %v1175, %v453
    %vm1432 = vcmp.eq.s32.totalorder %v1176, %v453
    %vm1433 = vcmp.eq.s32.totalorder %v1177, %v453
    %vm1434 = vcmp.eq.s32.totalorder %v1178, %v453
    %vm1435 = vcmp.eq.s32.totalorder %v1179, %v453
    %vm1436 = vcmp.eq.s32.totalorder %v1180, %v453
    %vm1437 = vcmp.eq.s32.totalorder %v1181, %v453
    %vm1438 = vcmp.eq.s32.totalorder %v1182, %v453
    %vm1439 = vcmp.eq.s32.totalorder %v1183, %v453
    %vm1440 = vcmp.eq.s32.totalorder %v1184, %v453
    %vm1441 = vcmp.eq.s32.totalorder %v1185, %v453
    %vm1442 = vcmp.eq.s32.totalorder %v1186, %v453
    %vm1443 = vcmp.eq.s32.totalorder %v1187, %v453
    %vm1444 = vcmp.eq.s32.totalorder %v1188, %v453
    %vm1445 = vcmp.eq.s32.totalorder %v1189, %v453
    %vm1446 = vcmp.eq.s32.totalorder %v1190, %v453
    %vm1447 = vcmp.eq.s32.totalorder %v1191, %v453
    %vm1448 = vcmp.eq.s32.totalorder %v1192, %v453
    %vm1449 = vcmp.eq.s32.totalorder %v1193, %v453
    %vm1450 = vcmp.eq.s32.totalorder %v1194, %v453
    %vm1451 = vcmp.eq.s32.totalorder %v1195, %v453
    %vm1452 = vcmp.eq.s32.totalorder %v1196, %v453
    %vm1453 = vcmp.eq.s32.totalorder %v1197, %v453
    %vm1454 = vcmp.eq.s32.totalorder %v1198, %v453
    %vm1455 = vcmp.eq.s32.totalorder %v1199, %v453
    %vm1456 = vcmp.eq.s32.totalorder %v1200, %v453
    %vm1457 = vcmp.eq.s32.totalorder %v1201, %v453
    %vm1458 = vcmp.eq.s32.totalorder %v1202, %v453
    %vm1459 = vcmp.eq.s32.totalorder %v1203, %v453
    %vm1460 = vcmp.eq.s32.totalorder %v1204, %v453
    %vm1461 = vcmp.eq.s32.totalorder %v1205, %v453
    %vm1462 = vcmp.eq.s32.totalorder %v1206, %v453
    %vm1463 = vcmp.eq.s32.totalorder %v1207, %v453
    %vm1464 = vcmp.eq.s32.totalorder %v1208, %v453
    %vm1465 = vcmp.eq.s32.totalorder %v1209, %v453
    %vm1466 = vcmp.eq.s32.totalorder %v1210, %v453
    %vm1467 = vcmp.eq.s32.totalorder %v1211, %v453
    %vm1468 = vcmp.eq.s32.totalorder %v1212, %v453
    %vm1469 = vcmp.eq.s32.totalorder %v1213, %v453
    %vm1470 = vcmp.eq.s32.totalorder %v1214, %v453
    %vm1471 = vcmp.eq.s32.totalorder %v1215, %v453
    %vm1472 = vcmp.eq.s32.totalorder %v1216, %v453
    %vm1473 = vcmp.eq.s32.totalorder %v1217, %v453
    %vm1474 = vcmp.eq.s32.totalorder %v1218, %v453
    %vm1475 = vcmp.eq.s32.totalorder %v1219, %v453
    %vm1476 = vcmp.eq.s32.totalorder %v1220, %v453
    %vm1477 = vcmp.eq.s32.totalorder %v1221, %v453
    %vm1478 = vcmp.eq.s32.totalorder %v1222, %v453
    %vm1479 = vcmp.eq.s32.totalorder %v1223, %v453
    %vm1480 = vcmp.eq.s32.totalorder %v1224, %v453
    %vm1481 = vcmp.eq.s32.totalorder %v1225, %v453
    %vm1482 = vcmp.eq.s32.totalorder %v1226, %v453
    %vm1483 = vcmp.eq.s32.totalorder %v1227, %v453
    %vm1484 = vcmp.eq.s32.totalorder %v1228, %v453
    %vm1485 = vcmp.eq.s32.totalorder %v1229, %v453
    %vm1486 = vcmp.eq.s32.totalorder %v1230, %v453
    %vm1487 = vcmp.eq.s32.totalorder %v1231, %v453
    %vm1488 = vcmp.eq.s32.totalorder %v1232, %v453
    %vm1489 = vcmp.eq.s32.totalorder %v1233, %v453
    %vm1490 = vcmp.eq.s32.totalorder %v1234, %v453
    %vm1491 = vcmp.eq.s32.totalorder %v1235, %v453
    %vm1492 = vcmp.eq.s32.totalorder %v1236, %v453
    %vm1493 = vcmp.eq.s32.totalorder %v1237, %v453
    %vm1494 = vcmp.eq.s32.totalorder %v1238, %v453
    %vm1495 = vcmp.eq.s32.totalorder %v1239, %v453
    %vm1496 = vcmp.eq.s32.totalorder %v1240, %v453
    %vm1497 = vcmp.eq.s32.totalorder %v1241, %v453
    %vm1498 = vcmp.eq.s32.totalorder %v1242, %v453
    %vm1499 = vcmp.eq.s32.totalorder %v1243, %v453
    %vm1500 = vcmp.eq.s32.totalorder %v1244, %v453
    %vm1501 = vcmp.eq.s32.totalorder %v1245, %v453
    %vm1502 = vcmp.eq.s32.totalorder %v1246, %v453
    %vm1503 = vcmp.eq.s32.totalorder %v1247, %v453
    %vm1504 = vcmp.eq.s32.totalorder %v1248, %v453
    %vm1505 = vcmp.eq.s32.totalorder %v1249, %v453
    %vm1506 = vcmp.eq.s32.totalorder %v1250, %v453
    %vm1507 = vcmp.eq.s32.totalorder %v1251, %v453
    %vm1508 = vcmp.eq.s32.totalorder %v1252, %v453
    %vm1509 = vcmp.eq.s32.totalorder %v1253, %v453
    %vm1510 = vcmp.eq.s32.totalorder %v1254, %v453
    %vm1511 = vcmp.eq.s32.totalorder %v1255, %v453
    %vm1512 = vcmp.eq.s32.totalorder %v1256, %v453
    %vm1513 = vcmp.eq.s32.totalorder %v1257, %v453
    %vm1514 = vcmp.eq.s32.totalorder %v1258, %v453
    %vm1515 = vcmp.eq.s32.totalorder %v1259, %v453
    %vm1516 = vcmp.eq.s32.totalorder %v1260, %v453
    %vm1517 = vcmp.eq.s32.totalorder %v1261, %v453
    %vm1518 = vcmp.eq.s32.totalorder %v1262, %v453
    %vm1519 = vcmp.eq.s32.totalorder %v1263, %v453
    %vm1520 = vcmp.eq.s32.totalorder %v1264, %v453
    %vm1521 = vcmp.eq.s32.totalorder %v1265, %v453
    %vm1522 = vcmp.eq.s32.totalorder %v1266, %v453
    %vm1523 = vcmp.eq.s32.totalorder %v1267, %v453
    %vm1524 = vcmp.eq.s32.totalorder %v1268, %v453
    %vm1525 = vcmp.eq.s32.totalorder %v1269, %v453
    %vm1526 = vcmp.eq.s32.totalorder %v1270, %v453
    %vm1527 = vcmp.eq.s32.totalorder %v1271, %v453
    %vm1528 = vcmp.eq.s32.totalorder %v1272, %v453
    %vm1529 = vcmp.eq.s32.totalorder %v1273, %v453
    %vm1530 = vcmp.eq.s32.totalorder %v1274, %v453
    %vm1531 = vcmp.eq.s32.totalorder %v1275, %v453
    %vm1532 = vcmp.eq.s32.totalorder %v1276, %v453
    %vm1533 = vcmp.eq.s32.totalorder %v1277, %v453
    %vm1534 = vcmp.eq.s32.totalorder %v1278, %v453
    %vm1535 = vcmp.eq.s32.totalorder %v1279, %v453
    %vm1536 = vcmp.eq.s32.totalorder %v1280, %v453
    %vm1537 = vcmp.eq.s32.totalorder %v1281, %v453
    %vm1538 = vcmp.eq.s32.totalorder %v1282, %v453
    %vm1539 = vcmp.eq.s32.totalorder %v1283, %v453
    %vm1540 = vcmp.eq.s32.totalorder %v1284, %v453
    %vm1541 = vcmp.eq.s32.totalorder %v1285, %v453
    %vm1542 = vcmp.eq.s32.totalorder %v1286, %v453
    %vm1543 = vcmp.eq.s32.totalorder %v1287, %v453
    %vm1544 = vcmp.eq.s32.totalorder %v1288, %v453
    %vm1545 = vcmp.eq.s32.totalorder %v1289, %v453
    %vm1546 = vcmp.eq.s32.totalorder %v1290, %v453
    %vm1547 = vcmp.eq.s32.totalorder %v1291, %v453
    %vm1548 = vcmp.eq.s32.totalorder %v1292, %v453
    %vm1549 = vcmp.eq.s32.totalorder %v1293, %v453
    %vm1550 = vcmp.eq.s32.totalorder %v1294, %v453
    %vm1551 = vcmp.eq.s32.totalorder %v1295, %v453
    %vm1552 = vcmp.eq.s32.totalorder %v1296, %v453
    %vm1553 = vcmp.eq.s32.totalorder %v1297, %v453
    %vm1554 = vcmp.eq.s32.totalorder %v1298, %v453
    %vm1555 = vcmp.eq.s32.totalorder %v1299, %v453
    %vm1556 = vcmp.eq.s32.totalorder %v1300, %v453
    %vm1557 = vcmp.eq.s32.totalorder %v1301, %v453
    %vm1558 = vcmp.eq.s32.totalorder %v1302, %v453
    %vm1559 = vcmp.eq.s32.totalorder %v1303, %v453
    %vm1560 = vcmp.eq.s32.totalorder %v1304, %v453
    %vm1561 = vcmp.eq.s32.totalorder %v1305, %v453
    %vm1562 = vcmp.eq.s32.totalorder %v1306, %v453
    %vm1563 = vcmp.eq.s32.totalorder %v1307, %v453
    %vm1564 = vcmp.eq.s32.totalorder %v1308, %v453
    %v1565 = vsel %vm1309, 1, 0
    %v1566 = vsel %vm1310, 1, 0
    %v1567 = vsel %vm1311, 1, 0
    %v1568 = vsel %vm1312, 1, 0
    %v1569 = vsel %vm1313, 1, 0
    %v1570 = vsel %vm1314, 1, 0
    %v1571 = vsel %vm1315, 1, 0
    %v1572 = vsel %vm1316, 1, 0
    %v1573 = vsel %vm1317, 1, 0
    %v1574 = vsel %vm1318, 1, 0
    %v1575 = vsel %vm1319, 1, 0
    %v1576 = vsel %vm1320, 1, 0
    %v1577 = vsel %vm1321, 1, 0
    %v1578 = vsel %vm1322, 1, 0
    %v1579 = vsel %vm1323, 1, 0
    %v1580 = vsel %vm1324, 1, 0
    %v1581 = vsel %vm1325, 1, 0
    %v1582 = vsel %vm1326, 1, 0
    %v1583 = vsel %vm1327, 1, 0
    %v1584 = vsel %vm1328, 1, 0
    %v1585 = vsel %vm1329, 1, 0
    %v1586 = vsel %vm1330, 1, 0
    %v1587 = vsel %vm1331, 1, 0
    %v1588 = vsel %vm1332, 1, 0
    %v1589 = vsel %vm1333, 1, 0
    %v1590 = vsel %vm1334, 1, 0
    %v1591 = vsel %vm1335, 1, 0
    %v1592 = vsel %vm1336, 1, 0
    %v1593 = vsel %vm1337, 1, 0
    %v1594 = vsel %vm1338, 1, 0
    %v1595 = vsel %vm1339, 1, 0
    %v1596 = vsel %vm1340, 1, 0
    %v1597 = vsel %vm1341, 1, 0
    %v1598 = vsel %vm1342, 1, 0
    %v1599 = vsel %vm1343, 1, 0
    %v1600 = vsel %vm1344, 1, 0
    %v1601 = vsel %vm1345, 1, 0
    %v1602 = vsel %vm1346, 1, 0
    %v1603 = vsel %vm1347, 1, 0
    %v1604 = vsel %vm1348, 1, 0
    %v1605 = vsel %vm1349, 1, 0
    %v1606 = vsel %vm1350, 1, 0
    %v1607 = vsel %vm1351, 1, 0
    %v1608 = vsel %vm1352, 1, 0
    %v1609 = vsel %vm1353, 1, 0
    %v1610 = vsel %vm1354, 1, 0
    %v1611 = vsel %vm1355, 1, 0
    %v1612 = vsel %vm1356, 1, 0
    %v1613 = vsel %vm1357, 1, 0
    %v1614 = vsel %vm1358, 1, 0
    %v1615 = vsel %vm1359, 1, 0
    %v1616 = vsel %vm1360, 1, 0
    %v1617 = vsel %vm1361, 1, 0
    %v1618 = vsel %vm1362, 1, 0
    %v1619 = vsel %vm1363, 1, 0
    %v1620 = vsel %vm1364, 1, 0
    %v1621 = vsel %vm1365, 1, 0
    %v1622 = vsel %vm1366, 1, 0
    %v1623 = vsel %vm1367, 1, 0
    %v1624 = vsel %vm1368, 1, 0
    %v1625 = vsel %vm1369, 1, 0
    %v1626 = vsel %vm1370, 1, 0
    %v1627 = vsel %vm1371, 1, 0
    %v1628 = vsel %vm1372, 1, 0
    %v1629 = vsel %vm1373, 1, 0
    %v1630 = vsel %vm1374, 1, 0
    %v1631 = vsel %vm1375, 1, 0
    %v1632 = vsel %vm1376, 1, 0
    %v1633 = vsel %vm1377, 1, 0
    %v1634 = vsel %vm1378, 1, 0
    %v1635 = vsel %vm1379, 1, 0
    %v1636 = vsel %vm1380, 1, 0
    %v1637 = vsel %vm1381, 1, 0
    %v1638 = vsel %vm1382, 1, 0
    %v1639 = vsel %vm1383, 1, 0
    %v1640 = vsel %vm1384, 1, 0
    %v1641 = vsel %vm1385, 1, 0
    %v1642 = vsel %vm1386, 1, 0
    %v1643 = vsel %vm1387, 1, 0
    %v1644 = vsel %vm1388, 1, 0
    %v1645 = vsel %vm1389, 1, 0
    %v1646 = vsel %vm1390, 1, 0
    %v1647 = vsel %vm1391, 1, 0
    %v1648 = vsel %vm1392, 1, 0
    %v1649 = vsel %vm1393, 1, 0
    %v1650 = vsel %vm1394, 1, 0
    %v1651 = vsel %vm1395, 1, 0
    %v1652 = vsel %vm1396, 1, 0
    %v1653 = vsel %vm1397, 1, 0
    %v1654 = vsel %vm1398, 1, 0
    %v1655 = vsel %vm1399, 1, 0
    %v1656 = vsel %vm1400, 1, 0
    %v1657 = vsel %vm1401, 1, 0
    %v1658 = vsel %vm1402, 1, 0
    %v1659 = vsel %vm1403, 1, 0
    %v1660 = vsel %vm1404, 1, 0
    %v1661 = vsel %vm1405, 1, 0
    %v1662 = vsel %vm1406, 1, 0
    %v1663 = vsel %vm1407, 1, 0
    %v1664 = vsel %vm1408, 1, 0
    %v1665 = vsel %vm1409, 1, 0
    %v1666 = vsel %vm1410, 1, 0
    %v1667 = vsel %vm1411, 1, 0
    %v1668 = vsel %vm1412, 1, 0
    %v1669 = vsel %vm1413, 1, 0
    %v1670 = vsel %vm1414, 1, 0
    %v1671 = vsel %vm1415, 1, 0
    %v1672 = vsel %vm1416, 1, 0
    %v1673 = vsel %vm1417, 1, 0
    %v1674 = vsel %vm1418, 1, 0
    %v1675 = vsel %vm1419, 1, 0
    %v1676 = vsel %vm1420, 1, 0
    %v1677 = vsel %vm1421, 1, 0
    %v1678 = vsel %vm1422, 1, 0
    %v1679 = vsel %vm1423, 1, 0
    %v1680 = vsel %vm1424, 1, 0
    %v1681 = vsel %vm1425, 1, 0
    %v1682 = vsel %vm1426, 1, 0
    %v1683 = vsel %vm1427, 1, 0
    %v1684 = vsel %vm1428, 1, 0
    %v1685 = vsel %vm1429, 1, 0
    %v1686 = vsel %vm1430, 1, 0
    %v1687 = vsel %vm1431, 1, 0
    %v1688 = vsel %vm1432, 1, 0
    %v1689 = vsel %vm1433, 1, 0
    %v1690 = vsel %vm1434, 1, 0
    %v1691 = vsel %vm1435, 1, 0
    %v1692 = vsel %vm1436, 1, 0
    %v1693 = vsel %vm1437, 1, 0
    %v1694 = vsel %vm1438, 1, 0
    %v1695 = vsel %vm1439, 1, 0
    %v1696 = vsel %vm1440, 1, 0
    %v1697 = vsel %vm1441, 1, 0
    %v1698 = vsel %vm1442, 1, 0
    %v1699 = vsel %vm1443, 1, 0
    %v1700 = vsel %vm1444, 1, 0
    %v1701 = vsel %vm1445, 1, 0
    %v1702 = vsel %vm1446, 1, 0
    %v1703 = vsel %vm1447, 1, 0
    %v1704 = vsel %vm1448, 1, 0
    %v1705 = vsel %vm1449, 1, 0
    %v1706 = vsel %vm1450, 1, 0
    %v1707 = vsel %vm1451, 1, 0
    %v1708 = vsel %vm1452, 1, 0
    %v1709 = vsel %vm1453, 1, 0
    %v1710 = vsel %vm1454, 1, 0
    %v1711 = vsel %vm1455, 1, 0
    %v1712 = vsel %vm1456, 1, 0
    %v1713 = vsel %vm1457, 1, 0
    %v1714 = vsel %vm1458, 1, 0
    %v1715 = vsel %vm1459, 1, 0
    %v1716 = vsel %vm1460, 1, 0
    %v1717 = vsel %vm1461, 1, 0
    %v1718 = vsel %vm1462, 1, 0
    %v1719 = vsel %vm1463, 1, 0
    %v1720 = vsel %vm1464, 1, 0
    %v1721 = vsel %vm1465, 1, 0
    %v1722 = vsel %vm1466, 1, 0
    %v1723 = vsel %vm1467, 1, 0
    %v1724 = vsel %vm1468, 1, 0
    %v1725 = vsel %vm1469, 1, 0
    %v1726 = vsel %vm1470, 1, 0
    %v1727 = vsel %vm1471, 1, 0
    %v1728 = vsel %vm1472, 1, 0
    %v1729 = vsel %vm1473, 1, 0
    %v1730 = vsel %vm1474, 1, 0
    %v1731 = vsel %vm1475, 1, 0
    %v1732 = vsel %vm1476, 1, 0
    %v1733 = vsel %vm1477, 1, 0
    %v1734 = vsel %vm1478, 1, 0
    %v1735 = vsel %vm1479, 1, 0
    %v1736 = vsel %vm1480, 1, 0
    %v1737 = vsel %vm1481, 1, 0
    %v1738 = vsel %vm1482, 1, 0
    %v1739 = vsel %vm1483, 1, 0
    %v1740 = vsel %vm1484, 1, 0
    %v1741 = vsel %vm1485, 1, 0
    %v1742 = vsel %vm1486, 1, 0
    %v1743 = vsel %vm1487, 1, 0
    %v1744 = vsel %vm1488, 1, 0
    %v1745 = vsel %vm1489, 1, 0
    %v1746 = vsel %vm1490, 1, 0
    %v1747 = vsel %vm1491, 1, 0
    %v1748 = vsel %vm1492, 1, 0
    %v1749 = vsel %vm1493, 1, 0
    %v1750 = vsel %vm1494, 1, 0
    %v1751 = vsel %vm1495, 1, 0
    %v1752 = vsel %vm1496, 1, 0
    %v1753 = vsel %vm1497, 1, 0
    %v1754 = vsel %vm1498, 1, 0
    %v1755 = vsel %vm1499, 1, 0
    %v1756 = vsel %vm1500, 1, 0
    %v1757 = vsel %vm1501, 1, 0
    %v1758 = vsel %vm1502, 1, 0
    %v1759 = vsel %vm1503, 1, 0
    %v1760 = vsel %vm1504, 1, 0
    %v1761 = vsel %vm1505, 1, 0
    %v1762 = vsel %vm1506, 1, 0
    %v1763 = vsel %vm1507, 1, 0
    %v1764 = vsel %vm1508, 1, 0
    %v1765 = vsel %vm1509, 1, 0
    %v1766 = vsel %vm1510, 1, 0
    %v1767 = vsel %vm1511, 1, 0
    %v1768 = vsel %vm1512, 1, 0
    %v1769 = vsel %vm1513, 1, 0
    %v1770 = vsel %vm1514, 1, 0
    %v1771 = vsel %vm1515, 1, 0
    %v1772 = vsel %vm1516, 1, 0
    %v1773 = vsel %vm1517, 1, 0
    %v1774 = vsel %vm1518, 1, 0
    %v1775 = vsel %vm1519, 1, 0
    %v1776 = vsel %vm1520, 1, 0
    %v1777 = vsel %vm1521, 1, 0
    %v1778 = vsel %vm1522, 1, 0
    %v1779 = vsel %vm1523, 1, 0
    %v1780 = vsel %vm1524, 1, 0
    %v1781 = vsel %vm1525, 1, 0
    %v1782 = vsel %vm1526, 1, 0
    %v1783 = vsel %vm1527, 1, 0
    %v1784 = vsel %vm1528, 1, 0
    %v1785 = vsel %vm1529, 1, 0
    %v1786 = vsel %vm1530, 1, 0
    %v1787 = vsel %vm1531, 1, 0
    %v1788 = vsel %vm1532, 1, 0
    %v1789 = vsel %vm1533, 1, 0
    %v1790 = vsel %vm1534, 1, 0
    %v1791 = vsel %vm1535, 1, 0
    %v1792 = vsel %vm1536, 1, 0
    %v1793 = vsel %vm1537, 1, 0
    %v1794 = vsel %vm1538, 1, 0
    %v1795 = vsel %vm1539, 1, 0
    %v1796 = vsel %vm1540, 1, 0
    %v1797 = vsel %vm1541, 1, 0
    %v1798 = vsel %vm1542, 1, 0
    %v1799 = vsel %vm1543, 1, 0
    %v1800 = vsel %vm1544, 1, 0
    %v1801 = vsel %vm1545, 1, 0
    %v1802 = vsel %vm1546, 1, 0
    %v1803 = vsel %vm1547, 1, 0
    %v1804 = vsel %vm1548, 1, 0
    %v1805 = vsel %vm1549, 1, 0
    %v1806 = vsel %vm1550, 1, 0
    %v1807 = vsel %vm1551, 1, 0
    %v1808 = vsel %vm1552, 1, 0
    %v1809 = vsel %vm1553, 1, 0
    %v1810 = vsel %vm1554, 1, 0
    %v1811 = vsel %vm1555, 1, 0
    %v1812 = vsel %vm1556, 1, 0
    %v1813 = vsel %vm1557, 1, 0
    %v1814 = vsel %vm1558, 1, 0
    %v1815 = vsel %vm1559, 1, 0
    %v1816 = vsel %vm1560, 1, 0
    %v1817 = vsel %vm1561, 1, 0
    %v1818 = vsel %vm1562, 1, 0
    %v1819 = vsel %vm1563, 1, 0
    %v1820 = vsel %vm1564, 1, 0
    %v1821 = vcvt.s32.f32 %v1565
    %v1822 = vcvt.s32.f32 %v1566
    %v1823 = vcvt.s32.f32 %v1567
    %v1824 = vcvt.s32.f32 %v1568
    %v1825 = vcvt.s32.f32 %v1569
    %v1826 = vcvt.s32.f32 %v1570
    %v1827 = vcvt.s32.f32 %v1571
    %v1828 = vcvt.s32.f32 %v1572
    %v1829 = vcvt.s32.f32 %v1573
    %v1830 = vcvt.s32.f32 %v1574
    %v1831 = vcvt.s32.f32 %v1575
    %v1832 = vcvt.s32.f32 %v1576
    %v1833 = vcvt.s32.f32 %v1577
    %v1834 = vcvt.s32.f32 %v1578
    %v1835 = vcvt.s32.f32 %v1579
    %v1836 = vcvt.s32.f32 %v1580
    %v1837 = vcvt.s32.f32 %v1581
    %v1838 = vcvt.s32.f32 %v1582
    %v1839 = vcvt.s32.f32 %v1583
    %v1840 = vcvt.s32.f32 %v1584
    %v1841 = vcvt.s32.f32 %v1585
    %v1842 = vcvt.s32.f32 %v1586
    %v1843 = vcvt.s32.f32 %v1587
    %v1844 = vcvt.s32.f32 %v1588
    %v1845 = vcvt.s32.f32 %v1589
    %v1846 = vcvt.s32.f32 %v1590
    %v1847 = vcvt.s32.f32 %v1591
    %v1848 = vcvt.s32.f32 %v1592
    %v1849 = vcvt.s32.f32 %v1593
    %v1850 = vcvt.s32.f32 %v1594
    %v1851 = vcvt.s32.f32 %v1595
    %v1852 = vcvt.s32.f32 %v1596
    %v1853 = vcvt.s32.f32 %v1597
    %v1854 = vcvt.s32.f32 %v1598
    %v1855 = vcvt.s32.f32 %v1599
    %v1856 = vcvt.s32.f32 %v1600
    %v1857 = vcvt.s32.f32 %v1601
    %v1858 = vcvt.s32.f32 %v1602
    %v1859 = vcvt.s32.f32 %v1603
    %v1860 = vcvt.s32.f32 %v1604
    %v1861 = vcvt.s32.f32 %v1605
    %v1862 = vcvt.s32.f32 %v1606
    %v1863 = vcvt.s32.f32 %v1607
    %v1864 = vcvt.s32.f32 %v1608
    %v1865 = vcvt.s32.f32 %v1609
    %v1866 = vcvt.s32.f32 %v1610
    %v1867 = vcvt.s32.f32 %v1611
    %v1868 = vcvt.s32.f32 %v1612
    %v1869 = vcvt.s32.f32 %v1613
    %v1870 = vcvt.s32.f32 %v1614
    %v1871 = vcvt.s32.f32 %v1615
    %v1872 = vcvt.s32.f32 %v1616
    %v1873 = vcvt.s32.f32 %v1617
    %v1874 = vcvt.s32.f32 %v1618
    %v1875 = vcvt.s32.f32 %v1619
    %v1876 = vcvt.s32.f32 %v1620
    %v1877 = vcvt.s32.f32 %v1621
    %v1878 = vcvt.s32.f32 %v1622
    %v1879 = vcvt.s32.f32 %v1623
    %v1880 = vcvt.s32.f32 %v1624
    %v1881 = vcvt.s32.f32 %v1625
    %v1882 = vcvt.s32.f32 %v1626
    %v1883 = vcvt.s32.f32 %v1627
    %v1884 = vcvt.s32.f32 %v1628
    %v1885 = vcvt.s32.f32 %v1629
    %v1886 = vcvt.s32.f32 %v1630
    %v1887 = vcvt.s32.f32 %v1631
    %v1888 = vcvt.s32.f32 %v1632
    %v1889 = vcvt.s32.f32 %v1633
    %v1890 = vcvt.s32.f32 %v1634
    %v1891 = vcvt.s32.f32 %v1635
    %v1892 = vcvt.s32.f32 %v1636
    %v1893 = vcvt.s32.f32 %v1637
    %v1894 = vcvt.s32.f32 %v1638
    %v1895 = vcvt.s32.f32 %v1639
    %v1896 = vcvt.s32.f32 %v1640
    %v1897 = vcvt.s32.f32 %v1641
    %v1898 = vcvt.s32.f32 %v1642
    %v1899 = vcvt.s32.f32 %v1643
    %v1900 = vcvt.s32.f32 %v1644
    %v1901 = vcvt.s32.f32 %v1645
    %v1902 = vcvt.s32.f32 %v1646
    %v1903 = vcvt.s32.f32 %v1647
    %v1904 = vcvt.s32.f32 %v1648
    %v1905 = vcvt.s32.f32 %v1649
    %v1906 = vcvt.s32.f32 %v1650
    %v1907 = vcvt.s32.f32 %v1651
    %v1908 = vcvt.s32.f32 %v1652
    %v1909 = vcvt.s32.f32 %v1653
    %v1910 = vcvt.s32.f32 %v1654
    %v1911 = vcvt.s32.f32 %v1655
    %v1912 = vcvt.s32.f32 %v1656
    %v1913 = vcvt.s32.f32 %v1657
    %v1914 = vcvt.s32.f32 %v1658
    %v1915 = vcvt.s32.f32 %v1659
    %v1916 = vcvt.s32.f32 %v1660
    %v1917 = vcvt.s32.f32 %v1661
    %v1918 = vcvt.s32.f32 %v1662
    %v1919 = vcvt.s32.f32 %v1663
    %v1920 = vcvt.s32.f32 %v1664
    %v1921 = vcvt.s32.f32 %v1665
    %v1922 = vcvt.s32.f32 %v1666
    %v1923 = vcvt.s32.f32 %v1667
    %v1924 = vcvt.s32.f32 %v1668
    %v1925 = vcvt.s32.f32 %v1669
    %v1926 = vcvt.s32.f32 %v1670
    %v1927 = vcvt.s32.f32 %v1671
    %v1928 = vcvt.s32.f32 %v1672
    %v1929 = vcvt.s32.f32 %v1673
    %v1930 = vcvt.s32.f32 %v1674
    %v1931 = vcvt.s32.f32 %v1675
    %v1932 = vcvt.s32.f32 %v1676
    %v1933 = vcvt.s32.f32 %v1677
    %v1934 = vcvt.s32.f32 %v1678
    %v1935 = vcvt.s32.f32 %v1679
    %v1936 = vcvt.s32.f32 %v1680
    %v1937 = vcvt.s32.f32 %v1681
    %v1938 = vcvt.s32.f32 %v1682
    %v1939 = vcvt.s32.f32 %v1683
    %v1940 = vcvt.s32.f32 %v1684
    %v1941 = vcvt.s32.f32 %v1685
    %v1942 = vcvt.s32.f32 %v1686
    %v1943 = vcvt.s32.f32 %v1687
    %v1944 = vcvt.s32.f32 %v1688
    %v1945 = vcvt.s32.f32 %v1689
    %v1946 = vcvt.s32.f32 %v1690
    %v1947 = vcvt.s32.f32 %v1691
    %v1948 = vcvt.s32.f32 %v1692
    %v1949 = vcvt.s32.f32 %v1693
    %v1950 = vcvt.s32.f32 %v1694
    %v1951 = vcvt.s32.f32 %v1695
    %v1952 = vcvt.s32.f32 %v1696
    %v1953 = vcvt.s32.f32 %v1697
    %v1954 = vcvt.s32.f32 %v1698
    %v1955 = vcvt.s32.f32 %v1699
    %v1956 = vcvt.s32.f32 %v1700
    %v1957 = vcvt.s32.f32 %v1701
    %v1958 = vcvt.s32.f32 %v1702
    %v1959 = vcvt.s32.f32 %v1703
    %v1960 = vcvt.s32.f32 %v1704
    %v1961 = vcvt.s32.f32 %v1705
    %v1962 = vcvt.s32.f32 %v1706
    %v1963 = vcvt.s32.f32 %v1707
    %v1964 = vcvt.s32.f32 %v1708
    %v1965 = vcvt.s32.f32 %v1709
    %v1966 = vcvt.s32.f32 %v1710
    %v1967 = vcvt.s32.f32 %v1711
    %v1968 = vcvt.s32.f32 %v1712
    %v1969 = vcvt.s32.f32 %v1713
    %v1970 = vcvt.s32.f32 %v1714
    %v1971 = vcvt.s32.f32 %v1715
    %v1972 = vcvt.s32.f32 %v1716
    %v1973 = vcvt.s32.f32 %v1717
    %v1974 = vcvt.s32.f32 %v1718
    %v1975 = vcvt.s32.f32 %v1719
    %v1976 = vcvt.s32.f32 %v1720
    %v1977 = vcvt.s32.f32 %v1721
    %v1978 = vcvt.s32.f32 %v1722
    %v1979 = vcvt.s32.f32 %v1723
    %v1980 = vcvt.s32.f32 %v1724
    %v1981 = vcvt.s32.f32 %v1725
    %v1982 = vcvt.s32.f32 %v1726
    %v1983 = vcvt.s32.f32 %v1727
    %v1984 = vcvt.s32.f32 %v1728
    %v1985 = vcvt.s32.f32 %v1729
    %v1986 = vcvt.s32.f32 %v1730
    %v1987 = vcvt.s32.f32 %v1731
    %v1988 = vcvt.s32.f32 %v1732
    %v1989 = vcvt.s32.f32 %v1733
    %v1990 = vcvt.s32.f32 %v1734
    %v1991 = vcvt.s32.f32 %v1735
    %v1992 = vcvt.s32.f32 %v1736
    %v1993 = vcvt.s32.f32 %v1737
    %v1994 = vcvt.s32.f32 %v1738
    %v1995 = vcvt.s32.f32 %v1739
    %v1996 = vcvt.s32.f32 %v1740
    %v1997 = vcvt.s32.f32 %v1741
    %v1998 = vcvt.s32.f32 %v1742
    %v1999 = vcvt.s32.f32 %v1743
    %v2000 = vcvt.s32.f32 %v1744
    %v2001 = vcvt.s32.f32 %v1745
    %v2002 = vcvt.s32.f32 %v1746
    %v2003 = vcvt.s32.f32 %v1747
    %v2004 = vcvt.s32.f32 %v1748
    %v2005 = vcvt.s32.f32 %v1749
    %v2006 = vcvt.s32.f32 %v1750
    %v2007 = vcvt.s32.f32 %v1751
    %v2008 = vcvt.s32.f32 %v1752
    %v2009 = vcvt.s32.f32 %v1753
    %v2010 = vcvt.s32.f32 %v1754
    %v2011 = vcvt.s32.f32 %v1755
    %v2012 = vcvt.s32.f32 %v1756
    %v2013 = vcvt.s32.f32 %v1757
    %v2014 = vcvt.s32.f32 %v1758
    %v2015 = vcvt.s32.f32 %v1759
    %v2016 = vcvt.s32.f32 %v1760
    %v2017 = vcvt.s32.f32 %v1761
    %v2018 = vcvt.s32.f32 %v1762
    %v2019 = vcvt.s32.f32 %v1763
    %v2020 = vcvt.s32.f32 %v1764
    %v2021 = vcvt.s32.f32 %v1765
    %v2022 = vcvt.s32.f32 %v1766
    %v2023 = vcvt.s32.f32 %v1767
    %v2024 = vcvt.s32.f32 %v1768
    %v2025 = vcvt.s32.f32 %v1769
    %v2026 = vcvt.s32.f32 %v1770
    %v2027 = vcvt.s32.f32 %v1771
    %v2028 = vcvt.s32.f32 %v1772
    %v2029 = vcvt.s32.f32 %v1773
    %v2030 = vcvt.s32.f32 %v1774
    %v2031 = vcvt.s32.f32 %v1775
    %v2032 = vcvt.s32.f32 %v1776
    %v2033 = vcvt.s32.f32 %v1777
    %v2034 = vcvt.s32.f32 %v1778
    %v2035 = vcvt.s32.f32 %v1779
    %v2036 = vcvt.s32.f32 %v1780
    %v2037 = vcvt.s32.f32 %v1781
    %v2038 = vcvt.s32.f32 %v1782
    %v2039 = vcvt.s32.f32 %v1783
    %v2040 = vcvt.s32.f32 %v1784
    %v2041 = vcvt.s32.f32 %v1785
    %v2042 = vcvt.s32.f32 %v1786
    %v2043 = vcvt.s32.f32 %v1787
    %v2044 = vcvt.s32.f32 %v1788
    %v2045 = vcvt.s32.f32 %v1789
    %v2046 = vcvt.s32.f32 %v1790
    %v2047 = vcvt.s32.f32 %v1791
    %v2048 = vcvt.s32.f32 %v1792
    %v2049 = vcvt.s32.f32 %v1793
    %v2050 = vcvt.s32.f32 %v1794
    %v2051 = vcvt.s32.f32 %v1795
    %v2052 = vcvt.s32.f32 %v1796
    %v2053 = vcvt.s32.f32 %v1797
    %v2054 = vcvt.s32.f32 %v1798
    %v2055 = vcvt.s32.f32 %v1799
    %v2056 = vcvt.s32.f32 %v1800
    %v2057 = vcvt.s32.f32 %v1801
    %v2058 = vcvt.s32.f32 %v1802
    %v2059 = vcvt.s32.f32 %v1803
    %v2060 = vcvt.s32.f32 %v1804
    %v2061 = vcvt.s32.f32 %v1805
    %v2062 = vcvt.s32.f32 %v1806
    %v2063 = vcvt.s32.f32 %v1807
    %v2064 = vcvt.s32.f32 %v1808
    %v2065 = vcvt.s32.f32 %v1809
    %v2066 = vcvt.s32.f32 %v1810
    %v2067 = vcvt.s32.f32 %v1811
    %v2068 = vcvt.s32.f32 %v1812
    %v2069 = vcvt.s32.f32 %v1813
    %v2070 = vcvt.s32.f32 %v1814
    %v2071 = vcvt.s32.f32 %v1815
    %v2072 = vcvt.s32.f32 %v1816
    %v2073 = vcvt.s32.f32 %v1817
    %v2074 = vcvt.s32.f32 %v1818
    %v2075 = vcvt.s32.f32 %v1819
    %v2076 = vcvt.s32.f32 %v1820
    %vm2077 = vcmask 261120
    %v2079 = vsel %vm2077, %v443, 0
    %v2082 = vsel %vm2077, %v444, 0
    %v2085 = vsel %vm2077, %v445, 0
    %v2088 = vsel %vm2077, %v446, 0
    %2090 = vmatprep.subr.mxu0 %v738
    %2091 = vmatpush1.msra.mxu0 %v737
    %2092 = vmatprep.subr.mxu0 %v754
    %2093 = vmatpush1.msra.mxu0 %v753
    %2094 = vmatprep.subr.mxu0 %v770
    %2095 = vmatpush1.msra.mxu0 %v769
    %2096 = vmatprep.subr.mxu0 %v786
    %2097 = vmatpush1.msra.mxu0 %v785
    %2098 = vmatprep.subr.mxu0 0.0
    %2099 = vmatpush1.msra.mxu0 0.0
    %2100 = vmatprep.subr.mxu0 0.0
    %2101 = vmatpush1.msra.mxu0 0.0
    %2102 = vmatprep.subr.mxu0 0.0
    %2103 = vmatpush1.msra.mxu0 0.0
    %2104 = vmatprep.subr.mxu0 0.0
    %2105 = vmatpush1.msra.mxu0 0.0
    %2106 = vmatprep.subr.mxu0 0.0
    %2107 = vmatpush1.msra.mxu0 0.0
    %2108 = vmatprep.subr.mxu0 0.0
    %2109 = vmatpush1.msra.mxu0 0.0
    %2110 = vmatprep.subr.mxu0 0.0
    %2111 = vmatpush1.msra.mxu0 0.0
    %2112 = vmatprep.subr.mxu0 0.0
    %2113 = vmatpush1.msra.mxu0 0.0
    %2114 = vmatprep.subr.mxu0 0.0
    %2115 = vmatpush1.msra.mxu0 0.0
    %2116 = vmatprep.subr.mxu0 0.0
    %2117 = vmatpush1.msra.mxu0 0.0
    %2118 = vmatprep.subr.mxu0 0.0
    %2119 = vmatpush1.msra.mxu0 0.0
    %2120 = vmatprep.subr.mxu0 0.0
    %2121 = vmatpush1.msra.mxu0 0.0
    %2122 = vmatprep.subr.mxu0 0.0
    %2123 = vmatpush1.msra.mxu0 0.0
    %2124 = vmatprep.subr.mxu0 0.0
    %2125 = vmatpush1.msra.mxu0 0.0
    %2126 = vmatprep.subr.mxu0 0.0
    %2127 = vmatpush1.msra.mxu0 0.0
    %2128 = vmatprep.subr.mxu0 0.0
    %2129 = vmatpush1.msra.mxu0 0.0
    %2130 = vmatprep.subr.mxu0 0.0
    %2131 = vmatpush1.msra.mxu0 0.0
    %2132 = vmatprep.subr.mxu0 0.0
    %2133 = vmatpush1.msra.mxu0 0.0
    %2134 = vmatprep.subr.mxu0 0.0
    %2135 = vmatpush1.msra.mxu0 0.0
    %2136 = vmatprep.subr.mxu0 0.0
    %2137 = vmatpush1.msra.mxu0 0.0
    %2138 = vmatprep.subr.mxu0 0.0
    %2139 = vmatpush1.msra.mxu0 0.0
    %2140 = vmatprep.subr.mxu0 0.0
    %2141 = vmatpush1.msra.mxu0 0.0
    %2142 = vmatprep.subr.mxu0 0.0
    %2143 = vmatpush1.msra.mxu0 0.0
    %2144 = vmatprep.subr.mxu0 0.0
    %2145 = vmatpush1.msra.mxu0 0.0
    %2146 = vmatprep.subr.mxu0 0.0
    %2147 = vmatpush1.msra.mxu0 0.0
    %2148 = vmatprep.subr.mxu0 0.0
    %2149 = vmatpush1.msra.mxu0 0.0
    %2150 = vmatprep.subr.mxu0 0.0
    %2151 = vmatpush1.msra.mxu0 0.0
    %2152 = vmatprep.subr.mxu0 0.0
    %2153 = vmatpush1.msra.mxu0 0.0
    %2154 = vmatprep.mubr.f32.mxu0 0.0
    %2155 = vmatmul.mubr.f32.gmra.mrb[0].mxu0 %v2079
    %v2156 = vpop.f32.mrb[0].mxu0
    %v2157 = vadd.f32 0.0, %v2156
    %v2158 = vpop.f32.mrb[0].mxu0
    %v2159 = vadd.f32 0.0, %v2158
    %2160 = vmatprep.mubr.f32.mxu0 0.0
    %2161 = vmatmul.mubr.f32.gmra.mrb[0].mxu0 %v2082
    %v2162 = vpop.f32.mrb[0].mxu0
    %v2163 = vadd.f32 0.0, %v2162
    %v2164 = vpop.f32.mrb[0].mxu0
    %v2165 = vadd.f32 0.0, %v2164
    %2166 = vmatprep.mubr.f32.mxu0 0.0
    %2167 = vmatmul.mubr.f32.gmra.mrb[0].mxu0 %v2085
    %v2168 = vpop.f32.mrb[0].mxu0
    %v2169 = vadd.f32 0.0, %v2168
    %v2170 = vpop.f32.mrb[0].mxu0
    %v2171 = vadd.f32 0.0, %v2170
    %2172 = vmatprep.mubr.f32.mxu0 0.0
    %2173 = vmatmul.mubr.f32.gmra.mrb[0].mxu0 %v2088
    %v2174 = vpop.f32.mrb[0].mxu0
    %v2175 = vadd.f32 0.0, %v2174
    %v2176 = vpop.f32.mrb[0].mxu0
    %v2177 = vadd.f32 0.0, %v2176
    %2178 = vdwg.mxu0
    %2179 = vmatprep.subr.mxu0 %v740
    %2180 = vmatpush1.msra.mxu0 %v739
    %2181 = vmatprep.subr.mxu0 %v756
    %2182 = vmatpush1.msra.mxu0 %v755
    %2183 = vmatprep.subr.mxu0 %v772
    %2184 = vmatpush1.msra.mxu0 %v771
    %2185 = vmatprep.subr.mxu0 %v788
    %2186 = vmatpush1.msra.mxu0 %v787
    %2187 = vmatprep.subr.mxu0 0.0
    %2188 = vmatpush1.msra.mxu0 0.0
    %2189 = vmatprep.subr.mxu0 0.0
    %2190 = vmatpush1.msra.mxu0 0.0
    %2191 = vmatprep.subr.mxu0 0.0
    %2192 = vmatpush1.msra.mxu0 0.0
    %2193 = vmatprep.subr.mxu0 0.0
    %2194 = vmatpush1.msra.mxu0 0.0
    %2195 = vmatprep.subr.mxu0 0.0
    %2196 = vmatpush1.msra.mxu0 0.0
    %2197 = vmatprep.subr.mxu0 0.0
    %2198 = vmatpush1.msra.mxu0 0.0
    %2199 = vmatprep.subr.mxu0 0.0
    %2200 = vmatpush1.msra.mxu0 0.0
    %2201 = vmatprep.subr.mxu0 0.0
    %2202 = vmatpush1.msra.mxu0 0.0
    %2203 = vmatprep.subr.mxu0 0.0
    %2204 = vmatpush1.msra.mxu0 0.0
    %2205 = vmatprep.subr.mxu0 0.0
    %2206 = vmatpush1.msra.mxu0 0.0
    %2207 = vmatprep.subr.mxu0 0.0
    %2208 = vmatpush1.msra.mxu0 0.0
    %2209 = vmatprep.subr.mxu0 0.0
    %2210 = vmatpush1.msra.mxu0 0.0
    %2211 = vmatprep.subr.mxu0 0.0
    %2212 = vmatpush1.msra.mxu0 0.0
    %2213 = vmatprep.subr.mxu0 0.0
    %2214 = vmatpush1.msra.mxu0 0.0
    %2215 = vmatprep.subr.mxu0 0.0
    %2216 = vmatpush1.msra.mxu0 0.0
    %2217 = vmatprep.subr.mxu0 0.0
    %2218 = vmatpush1.msra.mxu0 0.0
    %2219 = vmatprep.subr.mxu0 0.0
    %2220 = vmatpush1.msra.mxu0 0.0
    %2221 = vmatprep.subr.mxu0 0.0
    %2222 = vmatpush1.msra.mxu0 0.0
    %2223 = vmatprep.subr.mxu0 0.0
    %2224 = vmatpush1.msra.mxu0 0.0
    %2225 = vmatprep.subr.mxu0 0.0
    %2226 = vmatpush1.msra.mxu0 0.0
    %2227 = vmatprep.subr.mxu0 0.0
    %2228 = vmatpush1.msra.mxu0 0.0
    %2229 = vmatprep.subr.mxu0 0.0
    %2230 = vmatpush1.msra.mxu0 0.0
    %2231 = vmatprep.subr.mxu0 0.0
    %2232 = vmatpush1.msra.mxu0 0.0
    %2233 = vmatprep.subr.mxu0 0.0
    %2234 = vmatpush1.msra.mxu0 0.0
    %2235 = vmatprep.subr.mxu0 0.0
    %2236 = vmatpush1.msra.mxu0 0.0
    %2237 = vmatprep.subr.mxu0 0.0
    %2238 = vmatpush1.msra.mxu0 0.0
    %2239 = vmatprep.subr.mxu0 0.0
    %2240 = vmatpush1.msra.mxu0 0.0
    %2241 = vmatprep.subr.mxu0 0.0
    %2242 = vmatpush1.msra.mxu0 0.0
    %2243 = vmatprep.mubr.f32.mxu0 0.0
    %2244 = vmatmul.mubr.f32.gmra.mrb[0].mxu0 %v2079
    %v2245 = vpop.f32.mrb[0].mxu0
    %v2246 = vadd.f32 0.0, %v2245
    %v2247 = vpop.f32.mrb[0].mxu0
    %v2248 = vadd.f32 0.0, %v2247
    %2249 = vmatprep.mubr.f32.mxu0 0.0
    %2250 = vmatmul.mubr.f32.gmra.mrb[0].mxu0 %v2082
    %v2251 = vpop.f32.mrb[0].mxu0
    %v2252 = vadd.f32 0.0, %v2251
    %v2253 = vpop.f32.mrb[0].mxu0
    %v2254 = vadd.f32 0.0, %v2253
    %2255 = vmatprep.mubr.f32.mxu0 0.0
    %2256 = vmatmul.mubr.f32.gmra.mrb[0].mxu0 %v2085
    %v2257 = vpop.f32.mrb[0].mxu0
    %v2258 = vadd.f32 0.0, %v2257
    %v2259 = vpop.f32.mrb[0].mxu0
    %v2260 = vadd.f32 0.0, %v2259
    %2261 = vmatprep.mubr.f32.mxu0 0.0
    %2262 = vmatmul.mubr.f32.gmra.mrb[0].mxu0 %v2088
    %v2263 = vpop.f32.mrb[0].mxu0
    %v2264 = vadd.f32 0.0, %v2263
    %v2265 = vpop.f32.mrb[0].mxu0
    %v2266 = vadd.f32 0.0, %v2265
    %2267 = vdwg.mxu0
    %2268 = vmatprep.subr.mxu0 %v742
    %2269 = vmatpush1.msra.mxu0 %v741
    %2270 = vmatprep.subr.mxu0 %v758
    %2271 = vmatpush1.msra.mxu0 %v757
    %2272 = vmatprep.subr.mxu0 %v774
    %2273 = vmatpush1.msra.mxu0 %v773
    %2274 = vmatprep.subr.mxu0 %v790
    %2275 = vmatpush1.msra.mxu0 %v789
    %2276 = vmatprep.subr.mxu0 0.0
    %2277 = vmatpush1.msra.mxu0 0.0
    %2278 = vmatprep.subr.mxu0 0.0
    %2279 = vmatpush1.msra.mxu0 0.0
    %2280 = vmatprep.subr.mxu0 0.0
    %2281 = vmatpush1.msra.mxu0 0.0
    %2282 = vmatprep.subr.mxu0 0.0
    %2283 = vmatpush1.msra.mxu0 0.0
    %2284 = vmatprep.subr.mxu0 0.0
    %2285 = vmatpush1.msra.mxu0 0.0
    %2286 = vmatprep.subr.mxu0 0.0
    %2287 = vmatpush1.msra.mxu0 0.0
    %2288 = vmatprep.subr.mxu0 0.0
    %2289 = vmatpush1.msra.mxu0 0.0
    %2290 = vmatprep.subr.mxu0 0.0
    %2291 = vmatpush1.msra.mxu0 0.0
    %2292 = vmatprep.subr.mxu0 0.0
    %2293 = vmatpush1.msra.mxu0 0.0
    %2294 = vmatprep.subr.mxu0 0.0
    %2295 = vmatpush1.msra.mxu0 0.0
    %2296 = vmatprep.subr.mxu0 0.0
    %2297 = vmatpush1.msra.mxu0 0.0
    %2298 = vmatprep.subr.mxu0 0.0
    %2299 = vmatpush1.msra.mxu0 0.0
    %2300 = vmatprep.subr.mxu0 0.0
    %2301 = vmatpush1.msra.mxu0 0.0
    %2302 = vmatprep.subr.mxu0 0.0
    %2303 = vmatpush1.msra.mxu0 0.0
    %2304 = vmatprep.subr.mxu0 0.0
    %2305 = vmatpush1.msra.mxu0 0.0
    %2306 = vmatprep.subr.mxu0 0.0
    %2307 = vmatpush1.msra.mxu0 0.0
    %2308 = vmatprep.subr.mxu0 0.0
    %2309 = vmatpush1.msra.mxu0 0.0
    %2310 = vmatprep.subr.mxu0 0.0
    %2311 = vmatpush1.msra.mxu0 0.0
    %2312 = vmatprep.subr.mxu0 0.0
    %2313 = vmatpush1.msra.mxu0 0.0
    %2314 = vmatprep.subr.mxu0 0.0
    %2315 = vmatpush1.msra.mxu0 0.0
    %2316 = vmatprep.subr.mxu0 0.0
    %2317 = vmatpush1.msra.mxu0 0.0
    %2318 = vmatprep.subr.mxu0 0.0
    %2319 = vmatpush1.msra.mxu0 0.0
    %2320 = vmatprep.subr.mxu0 0.0
    %2321 = vmatpush1.msra.mxu0 0.0
    %2322 = vmatprep.subr.mxu0 0.0
    %2323 = vmatpush1.msra.mxu0 0.0
    %2324 = vmatprep.subr.mxu0 0.0
    %2325 = vmatpush1.msra.mxu0 0.0
    %2326 = vmatprep.subr.mxu0 0.0
    %2327 = vmatpush1.msra.mxu0 0.0
    %2328 = vmatprep.subr.mxu0 0.0
    %2329 = vmatpush1.msra.mxu0 0.0
    %2330 = vmatprep.subr.mxu0 0.0
    %2331 = vmatpush1.msra.mxu0 0.0
    %2332 = vmatprep.mubr.f32.mxu0 0.0
    %2333 = vmatmul.mubr.f32.gmra.mrb[0].mxu0 %v2079
    %v2334 = vpop.f32.mrb[0].mxu0
    %v2335 = vadd.f32 0.0, %v2334
    %v2336 = vpop.f32.mrb[0].mxu0
    %v2337 = vadd.f32 0.0, %v2336
    %2338 = vmatprep.mubr.f32.mxu0 0.0
    %2339 = vmatmul.mubr.f32.gmra.mrb[0].mxu0 %v2082
    %v2340 = vpop.f32.mrb[0].mxu0
    %v2341 = vadd.f32 0.0, %v2340
    %v2342 = vpop.f32.mrb[0].mxu0
    %v2343 = vadd.f32 0.0, %v2342
    %2344 = vmatprep.mubr.f32.mxu0 0.0
    %2345 = vmatmul.mubr.f32.gmra.mrb[0].mxu0 %v2085
    %v2346 = vpop.f32.mrb[0].mxu0
    %v2347 = vadd.f32 0.0, %v2346
    %v2348 = vpop.f32.mrb[0].mxu0
    %v2349 = vadd.f32 0.0, %v2348
    %2350 = vmatprep.mubr.f32.mxu0 0.0
    %2351 = vmatmul.mubr.f32.gmra.mrb[0].mxu0 %v2088
    %v2352 = vpop.f32.mrb[0].mxu0
    %v2353 = vadd.f32 0.0, %v2352
    %v2354 = vpop.f32.mrb[0].mxu0
    %v2355 = vadd.f32 0.0, %v2354
    %2356 = vdwg.mxu0
    %2357 = vmatprep.subr.mxu0 %v744
    %2358 = vmatpush1.msra.mxu0 %v743
    %2359 = vmatprep.subr.mxu0 %v760
    %2360 = vmatpush1.msra.mxu0 %v759
    %2361 = vmatprep.subr.mxu0 %v776
    %2362 = vmatpush1.msra.mxu0 %v775
    %2363 = vmatprep.subr.mxu0 %v792
    %2364 = vmatpush1.msra.mxu0 %v791
    %2365 = vmatprep.subr.mxu0 0.0
    %2366 = vmatpush1.msra.mxu0 0.0
    %2367 = vmatprep.subr.mxu0 0.0
    %2368 = vmatpush1.msra.mxu0 0.0
    %2369 = vmatprep.subr.mxu0 0.0
    %2370 = vmatpush1.msra.mxu0 0.0
    %2371 = vmatprep.subr.mxu0 0.0
    %2372 = vmatpush1.msra.mxu0 0.0
    %2373 = vmatprep.subr.mxu0 0.0
    %2374 = vmatpush1.msra.mxu0 0.0
    %2375 = vmatprep.subr.mxu0 0.0
    %2376 = vmatpush1.msra.mxu0 0.0
    %2377 = vmatprep.subr.mxu0 0.0
    %2378 = vmatpush1.msra.mxu0 0.0
    %2379 = vmatprep.subr.mxu0 0.0
    %2380 = vmatpush1.msra.mxu0 0.0
    %2381 = vmatprep.subr.mxu0 0.0
    %2382 = vmatpush1.msra.mxu0 0.0
    %2383 = vmatprep.subr.mxu0 0.0
    %2384 = vmatpush1.msra.mxu0 0.0
    %2385 = vmatprep.subr.mxu0 0.0
    %2386 = vmatpush1.msra.mxu0 0.0
    %2387 = vmatprep.subr.mxu0 0.0
    %2388 = vmatpush1.msra.mxu0 0.0
    %2389 = vmatprep.subr.mxu0 0.0
    %2390 = vmatpush1.msra.mxu0 0.0
    %2391 = vmatprep.subr.mxu0 0.0
    %2392 = vmatpush1.msra.mxu0 0.0
    %2393 = vmatprep.subr.mxu0 0.0
    %2394 = vmatpush1.msra.mxu0 0.0
    %2395 = vmatprep.subr.mxu0 0.0
    %2396 = vmatpush1.msra.mxu0 0.0
    %2397 = vmatprep.subr.mxu0 0.0
    %2398 = vmatpush1.msra.mxu0 0.0
    %2399 = vmatprep.subr.mxu0 0.0
    %2400 = vmatpush1.msra.mxu0 0.0
    %2401 = vmatprep.subr.mxu0 0.0
    %2402 = vmatpush1.msra.mxu0 0.0
    %2403 = vmatprep.subr.mxu0 0.0
    %2404 = vmatpush1.msra.mxu0 0.0
    %2405 = vmatprep.subr.mxu0 0.0
    %2406 = vmatpush1.msra.mxu0 0.0
    %2407 = vmatprep.subr.mxu0 0.0
    %2408 = vmatpush1.msra.mxu0 0.0
    %2409 = vmatprep.subr.mxu0 0.0
    %2410 = vmatpush1.msra.mxu0 0.0
    %2411 = vmatprep.subr.mxu0 0.0
    %2412 = vmatpush1.msra.mxu0 0.0
    %2413 = vmatprep.subr.mxu0 0.0
    %2414 = vmatpush1.msra.mxu0 0.0
    %2415 = vmatprep.subr.mxu0 0.0
    %2416 = vmatpush1.msra.mxu0 0.0
    %2417 = vmatprep.subr.mxu0 0.0
    %2418 = vmatpush1.msra.mxu0 0.0
    %2419 = vmatprep.subr.mxu0 0.0
    %2420 = vmatpush1.msra.mxu0 0.0
    %2421 = vmatprep.mubr.f32.mxu0 0.0
    %2422 = vmatmul.mubr.f32.gmra.mrb[0].mxu0 %v2079
    %v2423 = vpop.f32.mrb[0].mxu0
    %v2424 = vadd.f32 0.0, %v2423
    %v2425 = vpop.f32.mrb[0].mxu0
    %v2426 = vadd.f32 0.0, %v2425
    %2427 = vmatprep.mubr.f32.mxu0 0.0
    %2428 = vmatmul.mubr.f32.gmra.mrb[0].mxu0 %v2082
    %v2429 = vpop.f32.mrb[0].mxu0
    %v2430 = vadd.f32 0.0, %v2429
    %v2431 = vpop.f32.mrb[0].mxu0
    %v2432 = vadd.f32 0.0, %v2431
    %2433 = vmatprep.mubr.f32.mxu0 0.0
    %2434 = vmatmul.mubr.f32.gmra.mrb[0].mxu0 %v2085
    %v2435 = vpop.f32.mrb[0].mxu0
    %v2436 = vadd.f32 0.0, %v2435
    %v2437 = vpop.f32.mrb[0].mxu0
    %v2438 = vadd.f32 0.0, %v2437
    %2439 = vmatprep.mubr.f32.mxu0 0.0
    %2440 = vmatmul.mubr.f32.gmra.mrb[0].mxu0 %v2088
    %v2441 = vpop.f32.mrb[0].mxu0
    %v2442 = vadd.f32 0.0, %v2441
    %v2443 = vpop.f32.mrb[0].mxu0
    %v2444 = vadd.f32 0.0, %v2443
    %2445 = vdwg.mxu0
    %2446 = vmatprep.subr.mxu0 %v746
    %2447 = vmatpush1.msra.mxu0 %v745
    %2448 = vmatprep.subr.mxu0 %v762
    %2449 = vmatpush1.msra.mxu0 %v761
    %2450 = vmatprep.subr.mxu0 %v778
    %2451 = vmatpush1.msra.mxu0 %v777
    %2452 = vmatprep.subr.mxu0 %v794
    %2453 = vmatpush1.msra.mxu0 %v793
    %2454 = vmatprep.subr.mxu0 0.0
    %2455 = vmatpush1.msra.mxu0 0.0
    %2456 = vmatprep.subr.mxu0 0.0
    %2457 = vmatpush1.msra.mxu0 0.0
    %2458 = vmatprep.subr.mxu0 0.0
    %2459 = vmatpush1.msra.mxu0 0.0
    %2460 = vmatprep.subr.mxu0 0.0
    %2461 = vmatpush1.msra.mxu0 0.0
    %2462 = vmatprep.subr.mxu0 0.0
    %2463 = vmatpush1.msra.mxu0 0.0
    %2464 = vmatprep.subr.mxu0 0.0
    %2465 = vmatpush1.msra.mxu0 0.0
    %2466 = vmatprep.subr.mxu0 0.0
    %2467 = vmatpush1.msra.mxu0 0.0
    %2468 = vmatprep.subr.mxu0 0.0
    %2469 = vmatpush1.msra.mxu0 0.0
    %2470 = vmatprep.subr.mxu0 0.0
    %2471 = vmatpush1.msra.mxu0 0.0
    %2472 = vmatprep.subr.mxu0 0.0
    %2473 = vmatpush1.msra.mxu0 0.0
    %2474 = vmatprep.subr.mxu0 0.0
    %2475 = vmatpush1.msra.mxu0 0.0
    %2476 = vmatprep.subr.mxu0 0.0
    %2477 = vmatpush1.msra.mxu0 0.0
    %2478 = vmatprep.subr.mxu0 0.0
    %2479 = vmatpush1.msra.mxu0 0.0
    %2480 = vmatprep.subr.mxu0 0.0
    %2481 = vmatpush1.msra.mxu0 0.0
    %2482 = vmatprep.subr.mxu0 0.0
    %2483 = vmatpush1.msra.mxu0 0.0
    %2484 = vmatprep.subr.mxu0 0.0
    %2485 = vmatpush1.msra.mxu0 0.0
    %2486 = vmatprep.subr.mxu0 0.0
    %2487 = vmatpush1.msra.mxu0 0.0
    %2488 = vmatprep.subr.mxu0 0.0
    %2489 = vmatpush1.msra.mxu0 0.0
    %2490 = vmatprep.subr.mxu0 0.0
    %2491 = vmatpush1.msra.mxu0 0.0
    %2492 = vmatprep.subr.mxu0 0.0
    %2493 = vmatpush1.msra.mxu0 0.0
    %2494 = vmatprep.subr.mxu0 0.0
    %2495 = vmatpush1.msra.mxu0 0.0
    %2496 = vmatprep.subr.mxu0 0.0
    %2497 = vmatpush1.msra.mxu0 0.0
    %2498 = vmatprep.subr.mxu0 0.0
    %2499 = vmatpush1.msra.mxu0 0.0
    %2500 = vmatprep.subr.mxu0 0.0
    %2501 = vmatpush1.msra.mxu0 0.0
    %2502 = vmatprep.subr.mxu0 0.0
    %2503 = vmatpush1.msra.mxu0 0.0
    %2504 = vmatprep.subr.mxu0 0.0
    %2505 = vmatpush1.msra.mxu0 0.0
    %2506 = vmatprep.subr.mxu0 0.0
    %2507 = vmatpush1.msra.mxu0 0.0
    %2508 = vmatprep.subr.mxu0 0.0
    %2509 = vmatpush1.msra.mxu0 0.0
    %2510 = vmatprep.mubr.f32.mxu0 0.0
    %2511 = vmatmul.mubr.f32.gmra.mrb[0].mxu0 %v2079
    %v2512 = vpop.f32.mrb[0].mxu0
    %v2513 = vadd.f32 0.0, %v2512
    %v2514 = vpop.f32.mrb[0].mxu0
    %v2515 = vadd.f32 0.0, %v2514
    %2516 = vmatprep.mubr.f32.mxu0 0.0
    %2517 = vmatmul.mubr.f32.gmra.mrb[0].mxu0 %v2082
    %v2518 = vpop.f32.mrb[0].mxu0
    %v2519 = vadd.f32 0.0, %v2518
    %v2520 = vpop.f32.mrb[0].mxu0
    %v2521 = vadd.f32 0.0, %v2520
    %2522 = vmatprep.mubr.f32.mxu0 0.0
    %2523 = vmatmul.mubr.f32.gmra.mrb[0].mxu0 %v2085
    %v2524 = vpop.f32.mrb[0].mxu0
    %v2525 = vadd.f32 0.0, %v2524
    %v2526 = vpop.f32.mrb[0].mxu0
    %v2527 = vadd.f32 0.0, %v2526
    %2528 = vmatprep.mubr.f32.mxu0 0.0
    %2529 = vmatmul.mubr.f32.gmra.mrb[0].mxu0 %v2088
    %v2530 = vpop.f32.mrb[0].mxu0
    %v2531 = vadd.f32 0.0, %v2530
    %v2532 = vpop.f32.mrb[0].mxu0
    %v2533 = vadd.f32 0.0, %v2532
    %2534 = vdwg.mxu0
    %2535 = vmatprep.subr.mxu0 %v748
    %2536 = vmatpush1.msra.mxu0 %v747
    %2537 = vmatprep.subr.mxu0 %v764
    %2538 = vmatpush1.msra.mxu0 %v763
    %2539 = vmatprep.subr.mxu0 %v780
    %2540 = vmatpush1.msra.mxu0 %v779
    %2541 = vmatprep.subr.mxu0 %v796
    %2542 = vmatpush1.msra.mxu0 %v795
    %2543 = vmatprep.subr.mxu0 0.0
    %2544 = vmatpush1.msra.mxu0 0.0
    %2545 = vmatprep.subr.mxu0 0.0
    %2546 = vmatpush1.msra.mxu0 0.0
    %2547 = vmatprep.subr.mxu0 0.0
    %2548 = vmatpush1.msra.mxu0 0.0
    %2549 = vmatprep.subr.mxu0 0.0
    %2550 = vmatpush1.msra.mxu0 0.0
    %2551 = vmatprep.subr.mxu0 0.0
    %2552 = vmatpush1.msra.mxu0 0.0
    %2553 = vmatprep.subr.mxu0 0.0
    %2554 = vmatpush1.msra.mxu0 0.0
    %2555 = vmatprep.subr.mxu0 0.0
    %2556 = vmatpush1.msra.mxu0 0.0
    %2557 = vmatprep.subr.mxu0 0.0
    %2558 = vmatpush1.msra.mxu0 0.0
    %2559 = vmatprep.subr.mxu0 0.0
    %2560 = vmatpush1.msra.mxu0 0.0
    %2561 = vmatprep.subr.mxu0 0.0
    %2562 = vmatpush1.msra.mxu0 0.0
    %2563 = vmatprep.subr.mxu0 0.0
    %2564 = vmatpush1.msra.mxu0 0.0
    %2565 = vmatprep.subr.mxu0 0.0
    %2566 = vmatpush1.msra.mxu0 0.0
    %2567 = vmatprep.subr.mxu0 0.0
    %2568 = vmatpush1.msra.mxu0 0.0
    %2569 = vmatprep.subr.mxu0 0.0
    %2570 = vmatpush1.msra.mxu0 0.0
    %2571 = vmatprep.subr.mxu0 0.0
    %2572 = vmatpush1.msra.mxu0 0.0
    %2573 = vmatprep.subr.mxu0 0.0
    %2574 = vmatpush1.msra.mxu0 0.0
    %2575 = vmatprep.subr.mxu0 0.0
    %2576 = vmatpush1.msra.mxu0 0.0
    %2577 = vmatprep.subr.mxu0 0.0
    %2578 = vmatpush1.msra.mxu0 0.0
    %2579 = vmatprep.subr.mxu0 0.0
    %2580 = vmatpush1.msra.mxu0 0.0
    %2581 = vmatprep.subr.mxu0 0.0
    %2582 = vmatpush1.msra.mxu0 0.0
    %2583 = vmatprep.subr.mxu0 0.0
    %2584 = vmatpush1.msra.mxu0 0.0
    %2585 = vmatprep.subr.mxu0 0.0
    %2586 = vmatpush1.msra.mxu0 0.0
    %2587 = vmatprep.subr.mxu0 0.0
    %2588 = vmatpush1.msra.mxu0 0.0
    %2589 = vmatprep.subr.mxu0 0.0
    %2590 = vmatpush1.msra.mxu0 0.0
    %2591 = vmatprep.subr.mxu0 0.0
    %2592 = vmatpush1.msra.mxu0 0.0
    %2593 = vmatprep.subr.mxu0 0.0
    %2594 = vmatpush1.msra.mxu0 0.0
    %2595 = vmatprep.subr.mxu0 0.0
    %2596 = vmatpush1.msra.mxu0 0.0
    %2597 = vmatprep.subr.mxu0 0.0
    %2598 = vmatpush1.msra.mxu0 0.0
    %2599 = vmatprep.mubr.f32.mxu0 0.0
    %2600 = vmatmul.mubr.f32.gmra.mrb[0].mxu0 %v2079
    %v2601 = vpop.f32.mrb[0].mxu0
    %v2602 = vadd.f32 0.0, %v2601
    %v2603 = vpop.f32.mrb[0].mxu0
    %v2604 = vadd.f32 0.0, %v2603
    %2605 = vmatprep.mubr.f32.mxu0 0.0
    %2606 = vmatmul.mubr.f32.gmra.mrb[0].mxu0 %v2082
    %v2607 = vpop.f32.mrb[0].mxu0
    %v2608 = vadd.f32 0.0, %v2607
    %v2609 = vpop.f32.mrb[0].mxu0
    %v2610 = vadd.f32 0.0, %v2609
    %2611 = vmatprep.mubr.f32.mxu0 0.0
    %2612 = vmatmul.mubr.f32.gmra.mrb[0].mxu0 %v2085
    %v2613 = vpop.f32.mrb[0].mxu0
    %v2614 = vadd.f32 0.0, %v2613
    %v2615 = vpop.f32.mrb[0].mxu0
    %v2616 = vadd.f32 0.0, %v2615
    %2617 = vmatprep.mubr.f32.mxu0 0.0
    %2618 = vmatmul.mubr.f32.gmra.mrb[0].mxu0 %v2088
    %v2619 = vpop.f32.mrb[0].mxu0
    %v2620 = vadd.f32 0.0, %v2619
    %v2621 = vpop.f32.mrb[0].mxu0
    %v2622 = vadd.f32 0.0, %v2621
    %2623 = vdwg.mxu0
    %2624 = vmatprep.subr.mxu0 %v750
    %2625 = vmatpush1.msra.mxu0 %v749
    %2626 = vmatprep.subr.mxu0 %v766
    %2627 = vmatpush1.msra.mxu0 %v765
    %2628 = vmatprep.subr.mxu0 %v782
    %2629 = vmatpush1.msra.mxu0 %v781
    %2630 = vmatprep.subr.mxu0 %v798
    %2631 = vmatpush1.msra.mxu0 %v797
    %2632 = vmatprep.subr.mxu0 0.0
    %2633 = vmatpush1.msra.mxu0 0.0
    %2634 = vmatprep.subr.mxu0 0.0
    %2635 = vmatpush1.msra.mxu0 0.0
    %2636 = vmatprep.subr.mxu0 0.0
    %2637 = vmatpush1.msra.mxu0 0.0
    %2638 = vmatprep.subr.mxu0 0.0
    %2639 = vmatpush1.msra.mxu0 0.0
    %2640 = vmatprep.subr.mxu0 0.0
    %2641 = vmatpush1.msra.mxu0 0.0
    %2642 = vmatprep.subr.mxu0 0.0
    %2643 = vmatpush1.msra.mxu0 0.0
    %2644 = vmatprep.subr.mxu0 0.0
    %2645 = vmatpush1.msra.mxu0 0.0
    %2646 = vmatprep.subr.mxu0 0.0
    %2647 = vmatpush1.msra.mxu0 0.0
    %2648 = vmatprep.subr.mxu0 0.0
    %2649 = vmatpush1.msra.mxu0 0.0
    %2650 = vmatprep.subr.mxu0 0.0
    %2651 = vmatpush1.msra.mxu0 0.0
    %2652 = vmatprep.subr.mxu0 0.0
    %2653 = vmatpush1.msra.mxu0 0.0
    %2654 = vmatprep.subr.mxu0 0.0
    %2655 = vmatpush1.msra.mxu0 0.0
    %2656 = vmatprep.subr.mxu0 0.0
    %2657 = vmatpush1.msra.mxu0 0.0
    %2658 = vmatprep.subr.mxu0 0.0
    %2659 = vmatpush1.msra.mxu0 0.0
    %2660 = vmatprep.subr.mxu0 0.0
    %2661 = vmatpush1.msra.mxu0 0.0
    %2662 = vmatprep.subr.mxu0 0.0
    %2663 = vmatpush1.msra.mxu0 0.0
    %2664 = vmatprep.subr.mxu0 0.0
    %2665 = vmatpush1.msra.mxu0 0.0
    %2666 = vmatprep.subr.mxu0 0.0
    %2667 = vmatpush1.msra.mxu0 0.0
    %2668 = vmatprep.subr.mxu0 0.0
    %2669 = vmatpush1.msra.mxu0 0.0
    %2670 = vmatprep.subr.mxu0 0.0
    %2671 = vmatpush1.msra.mxu0 0.0
    %2672 = vmatprep.subr.mxu0 0.0
    %2673 = vmatpush1.msra.mxu0 0.0
    %2674 = vmatprep.subr.mxu0 0.0
    %2675 = vmatpush1.msra.mxu0 0.0
    %2676 = vmatprep.subr.mxu0 0.0
    %2677 = vmatpush1.msra.mxu0 0.0
    %2678 = vmatprep.subr.mxu0 0.0
    %2679 = vmatpush1.msra.mxu0 0.0
    %2680 = vmatprep.subr.mxu0 0.0
    %2681 = vmatpush1.msra.mxu0 0.0
    %2682 = vmatprep.subr.mxu0 0.0
    %2683 = vmatpush1.msra.mxu0 0.0
    %2684 = vmatprep.subr.mxu0 0.0
    %2685 = vmatpush1.msra.mxu0 0.0
    %2686 = vmatprep.subr.mxu0 0.0
    %2687 = vmatpush1.msra.mxu0 0.0
    %2688 = vmatprep.mubr.f32.mxu0 0.0
    %2689 = vmatmul.mubr.f32.gmra.mrb[0].mxu0 %v2079
    %v2690 = vpop.f32.mrb[0].mxu0
    %v2691 = vadd.f32 0.0, %v2690
    %v2692 = vpop.f32.mrb[0].mxu0
    %v2693 = vadd.f32 0.0, %v2692
    %2694 = vmatprep.mubr.f32.mxu0 0.0
    %2695 = vmatmul.mubr.f32.gmra.mrb[0].mxu0 %v2082
    %v2696 = vpop.f32.mrb[0].mxu0
    %v2697 = vadd.f32 0.0, %v2696
    %v2698 = vpop.f32.mrb[0].mxu0
    %v2699 = vadd.f32 0.0, %v2698
    %2700 = vmatprep.mubr.f32.mxu0 0.0
    %2701 = vmatmul.mubr.f32.gmra.mrb[0].mxu0 %v2085
    %v2702 = vpop.f32.mrb[0].mxu0
    %v2703 = vadd.f32 0.0, %v2702
    %v2704 = vpop.f32.mrb[0].mxu0
    %v2705 = vadd.f32 0.0, %v2704
    %2706 = vmatprep.mubr.f32.mxu0 0.0
    %2707 = vmatmul.mubr.f32.gmra.mrb[0].mxu0 %v2088
    %v2708 = vpop.f32.mrb[0].mxu0
    %v2709 = vadd.f32 0.0, %v2708
    %v2710 = vpop.f32.mrb[0].mxu0
    %v2711 = vadd.f32 0.0, %v2710
    %2712 = vdwg.mxu0
    %2713 = vmatprep.subr.mxu0 %v752
    %2714 = vmatpush1.msra.mxu0 %v751
    %2715 = vmatprep.subr.mxu0 %v768
    %2716 = vmatpush1.msra.mxu0 %v767
    %2717 = vmatprep.subr.mxu0 %v784
    %2718 = vmatpush1.msra.mxu0 %v783
    %2719 = vmatprep.subr.mxu0 %v800
    %2720 = vmatpush1.msra.mxu0 %v799
    %2721 = vmatprep.subr.mxu0 0.0
    %2722 = vmatpush1.msra.mxu0 0.0
    %2723 = vmatprep.subr.mxu0 0.0
    %2724 = vmatpush1.msra.mxu0 0.0
    %2725 = vmatprep.subr.mxu0 0.0
    %2726 = vmatpush1.msra.mxu0 0.0
    %2727 = vmatprep.subr.mxu0 0.0
    %2728 = vmatpush1.msra.mxu0 0.0
    %2729 = vmatprep.subr.mxu0 0.0
    %2730 = vmatpush1.msra.mxu0 0.0
    %2731 = vmatprep.subr.mxu0 0.0
    %2732 = vmatpush1.msra.mxu0 0.0
    %2733 = vmatprep.subr.mxu0 0.0
    %2734 = vmatpush1.msra.mxu0 0.0
    %2735 = vmatprep.subr.mxu0 0.0
    %2736 = vmatpush1.msra.mxu0 0.0
    %2737 = vmatprep.subr.mxu0 0.0
    %2738 = vmatpush1.msra.mxu0 0.0
    %2739 = vmatprep.subr.mxu0 0.0
    %2740 = vmatpush1.msra.mxu0 0.0
    %2741 = vmatprep.subr.mxu0 0.0
    %2742 = vmatpush1.msra.mxu0 0.0
    %2743 = vmatprep.subr.mxu0 0.0
    %2744 = vmatpush1.msra.mxu0 0.0
    %2745 = vmatprep.subr.mxu0 0.0
    %2746 = vmatpush1.msra.mxu0 0.0
    %2747 = vmatprep.subr.mxu0 0.0
    %2748 = vmatpush1.msra.mxu0 0.0
    %2749 = vmatprep.subr.mxu0 0.0
    %2750 = vmatpush1.msra.mxu0 0.0
    %2751 = vmatprep.subr.mxu0 0.0
    %2752 = vmatpush1.msra.mxu0 0.0
    %2753 = vmatprep.subr.mxu0 0.0
    %2754 = vmatpush1.msra.mxu0 0.0
    %2755 = vmatprep.subr.mxu0 0.0
    %2756 = vmatpush1.msra.mxu0 0.0
    %2757 = vmatprep.subr.mxu0 0.0
    %2758 = vmatpush1.msra.mxu0 0.0
    %2759 = vmatprep.subr.mxu0 0.0
    %2760 = vmatpush1.msra.mxu0 0.0
    %2761 = vmatprep.subr.mxu0 0.0
    %2762 = vmatpush1.msra.mxu0 0.0
    %2763 = vmatprep.subr.mxu0 0.0
    %2764 = vmatpush1.msra.mxu0 0.0
    %2765 = vmatprep.subr.mxu0 0.0
    %2766 = vmatpush1.msra.mxu0 0.0
    %2767 = vmatprep.subr.mxu0 0.0
    %2768 = vmatpush1.msra.mxu0 0.0
    %2769 = vmatprep.subr.mxu0 0.0
    %2770 = vmatpush1.msra.mxu0 0.0
    %2771 = vmatprep.subr.mxu0 0.0
    %2772 = vmatpush1.msra.mxu0 0.0
    %2773 = vmatprep.subr.mxu0 0.0
    %2774 = vmatpush1.msra.mxu0 0.0
    %2775 = vmatprep.subr.mxu0 0.0
    %2776 = vmatpush1.msra.mxu0 0.0
    %2777 = vmatprep.mubr.f32.mxu0 0.0
    %2778 = vmatmul.mubr.f32.gmra.mrb[0].mxu0 %v2079
    %v2779 = vpop.f32.mrb[0].mxu0
    %v2780 = vadd.f32 0.0, %v2779
    %v2781 = vpop.f32.mrb[0].mxu0
    %v2782 = vadd.f32 0.0, %v2781
    %2783 = vmatprep.mubr.f32.mxu0 0.0
    %2784 = vmatmul.mubr.f32.gmra.mrb[0].mxu0 %v2082
    %v2785 = vpop.f32.mrb[0].mxu0
    %v2786 = vadd.f32 0.0, %v2785
    %v2787 = vpop.f32.mrb[0].mxu0
    %v2788 = vadd.f32 0.0, %v2787
    %2789 = vmatprep.mubr.f32.mxu0 0.0
    %2790 = vmatmul.mubr.f32.gmra.mrb[0].mxu0 %v2085
    %v2791 = vpop.f32.mrb[0].mxu0
    %v2792 = vadd.f32 0.0, %v2791
    %v2793 = vpop.f32.mrb[0].mxu0
    %v2794 = vadd.f32 0.0, %v2793
    %2795 = vmatprep.mubr.f32.mxu0 0.0
    %2796 = vmatmul.mubr.f32.gmra.mrb[0].mxu0 %v2088
    %v2797 = vpop.f32.mrb[0].mxu0
    %v2798 = vadd.f32 0.0, %v2797
    %v2799 = vpop.f32.mrb[0].mxu0
    %v2800 = vadd.f32 0.0, %v2799
    %2801 = vdwg.mxu0
    %vm2802 = vcmask 523264
    %v2804 = vsel %vm2802, %v401, 0
    %v2807 = vsel %vm2802, %v402, 0
    %2809 = vmatprep.subr.mxu0 %v186
    %2810 = vmatpush1.msra.mxu0 %v185
    %2811 = vmatprep.subr.mxu0 %v202
    %2812 = vmatpush1.msra.mxu0 %v201
    %2813 = vmatprep.subr.mxu0 %v218
    %2814 = vmatpush1.msra.mxu0 %v217
    %2815 = vmatprep.subr.mxu0 %v234
    %2816 = vmatpush1.msra.mxu0 %v233
    %2817 = vmatprep.subr.mxu0 %v250
    %2818 = vmatpush1.msra.mxu0 %v249
    %2819 = vmatprep.subr.mxu0 %v266
    %2820 = vmatpush1.msra.mxu0 %v265
    %2821 = vmatprep.subr.mxu0 %v282
    %2822 = vmatpush1.msra.mxu0 %v281
    %2823 = vmatprep.subr.mxu0 %v298
    %2824 = vmatpush1.msra.mxu0 %v297
    %2825 = vmatprep.subr.mxu0 0.0
    %2826 = vmatpush1.msra.mxu0 0.0
    %2827 = vmatprep.subr.mxu0 0.0
    %2828 = vmatpush1.msra.mxu0 0.0
    %2829 = vmatprep.subr.mxu0 0.0
    %2830 = vmatpush1.msra.mxu0 0.0
    %2831 = vmatprep.subr.mxu0 0.0
    %2832 = vmatpush1.msra.mxu0 0.0
    %2833 = vmatprep.subr.mxu0 0.0
    %2834 = vmatpush1.msra.mxu0 0.0
    %2835 = vmatprep.subr.mxu0 0.0
    %2836 = vmatpush1.msra.mxu0 0.0
    %2837 = vmatprep.subr.mxu0 0.0
    %2838 = vmatpush1.msra.mxu0 0.0
    %2839 = vmatprep.subr.mxu0 0.0
    %2840 = vmatpush1.msra.mxu0 0.0
    %2841 = vmatprep.subr.mxu0 0.0
    %2842 = vmatpush1.msra.mxu0 0.0
    %2843 = vmatprep.subr.mxu0 0.0
    %2844 = vmatpush1.msra.mxu0 0.0
    %2845 = vmatprep.subr.mxu0 0.0
    %2846 = vmatpush1.msra.mxu0 0.0
    %2847 = vmatprep.subr.mxu0 0.0
    %2848 = vmatpush1.msra.mxu0 0.0
    %2849 = vmatprep.subr.mxu0 0.0
    %2850 = vmatpush1.msra.mxu0 0.0
    %2851 = vmatprep.subr.mxu0 0.0
    %2852 = vmatpush1.msra.mxu0 0.0
    %2853 = vmatprep.subr.mxu0 0.0
    %2854 = vmatpush1.msra.mxu0 0.0
    %2855 = vmatprep.subr.mxu0 0.0
    %2856 = vmatpush1.msra.mxu0 0.0
    %2857 = vmatprep.subr.mxu0 0.0
    %2858 = vmatpush1.msra.mxu0 0.0
    %2859 = vmatprep.subr.mxu0 0.0
    %2860 = vmatpush1.msra.mxu0 0.0
    %2861 = vmatprep.subr.mxu0 0.0
    %2862 = vmatpush1.msra.mxu0 0.0
    %2863 = vmatprep.subr.mxu0 0.0
    %2864 = vmatpush1.msra.mxu0 0.0
    %2865 = vmatprep.subr.mxu0 0.0
    %2866 = vmatpush1.msra.mxu0 0.0
    %2867 = vmatprep.subr.mxu0 0.0
    %2868 = vmatpush1.msra.mxu0 0.0
    %2869 = vmatprep.subr.mxu0 0.0
    %2870 = vmatpush1.msra.mxu0 0.0
    %2871 = vmatprep.subr.mxu0 0.0
    %2872 = vmatpush1.msra.mxu0 0.0
    %2873 = vmatprep.mubr.f32.mxu0 0.0
    %2874 = vmatmul.mubr.f32.gmra.mrb[0].mxu0 %v2804
    %v2875 = vpop.f32.mrb[0].mxu0
    %v2876 = vadd.f32 0.0, %v2875
    %v2877 = vpop.f32.mrb[0].mxu0
    %v2878 = vadd.f32 0.0, %v2877
    %2879 = vmatprep.mubr.f32.mxu0 0.0
    %2880 = vmatmul.mubr.f32.gmra.mrb[0].mxu0 %v2807
    %v2881 = vpop.f32.mrb[0].mxu0
    %v2882 = vadd.f32 0.0, %v2881
    %v2883 = vpop.f32.mrb[0].mxu0
    %v2884 = vadd.f32 0.0, %v2883
    %2885 = vdwg.mxu0
    %2886 = vmatprep.subr.mxu0 %v188
    %2887 = vmatpush1.msra.mxu0 %v187
    %2888 = vmatprep.subr.mxu0 %v204
    %2889 = vmatpush1.msra.mxu0 %v203
    %2890 = vmatprep.subr.mxu0 %v220
    %2891 = vmatpush1.msra.mxu0 %v219
    %2892 = vmatprep.subr.mxu0 %v236
    %2893 = vmatpush1.msra.mxu0 %v235
    %2894 = vmatprep.subr.mxu0 %v252
    %2895 = vmatpush1.msra.mxu0 %v251
    %2896 = vmatprep.subr.mxu0 %v268
    %2897 = vmatpush1.msra.mxu0 %v267
    %2898 = vmatprep.subr.mxu0 %v284
    %2899 = vmatpush1.msra.mxu0 %v283
    %2900 = vmatprep.subr.mxu0 %v300
    %2901 = vmatpush1.msra.mxu0 %v299
    %2902 = vmatprep.subr.mxu0 0.0
    %2903 = vmatpush1.msra.mxu0 0.0
    %2904 = vmatprep.subr.mxu0 0.0
    %2905 = vmatpush1.msra.mxu0 0.0
    %2906 = vmatprep.subr.mxu0 0.0
    %2907 = vmatpush1.msra.mxu0 0.0
    %2908 = vmatprep.subr.mxu0 0.0
    %2909 = vmatpush1.msra.mxu0 0.0
    %2910 = vmatprep.subr.mxu0 0.0
    %2911 = vmatpush1.msra.mxu0 0.0
    %2912 = vmatprep.subr.mxu0 0.0
    %2913 = vmatpush1.msra.mxu0 0.0
    %2914 = vmatprep.subr.mxu0 0.0
    %2915 = vmatpush1.msra.mxu0 0.0
    %2916 = vmatprep.subr.mxu0 0.0
    %2917 = vmatpush1.msra.mxu0 0.0
    %2918 = vmatprep.subr.mxu0 0.0
    %2919 = vmatpush1.msra.mxu0 0.0
    %2920 = vmatprep.subr.mxu0 0.0
    %2921 = vmatpush1.msra.mxu0 0.0
    %2922 = vmatprep.subr.mxu0 0.0
    %2923 = vmatpush1.msra.mxu0 0.0
    %2924 = vmatprep.subr.mxu0 0.0
    %2925 = vmatpush1.msra.mxu0 0.0
    %2926 = vmatprep.subr.mxu0 0.0
    %2927 = vmatpush1.msra.mxu0 0.0
    %2928 = vmatprep.subr.mxu0 0.0
    %2929 = vmatpush1.msra.mxu0 0.0
    %2930 = vmatprep.subr.mxu0 0.0
    %2931 = vmatpush1.msra.mxu0 0.0
    %2932 = vmatprep.subr.mxu0 0.0
    %2933 = vmatpush1.msra.mxu0 0.0
    %2934 = vmatprep.subr.mxu0 0.0
    %2935 = vmatpush1.msra.mxu0 0.0
    %2936 = vmatprep.subr.mxu0 0.0
    %2937 = vmatpush1.msra.mxu0 0.0
    %2938 = vmatprep.subr.mxu0 0.0
    %2939 = vmatpush1.msra.mxu0 0.0
    %2940 = vmatprep.subr.mxu0 0.0
    %2941 = vmatpush1.msra.mxu0 0.0
    %2942 = vmatprep.subr.mxu0 0.0
    %2943 = vmatpush1.msra.mxu0 0.0
    %2944 = vmatprep.subr.mxu0 0.0
    %2945 = vmatpush1.msra.mxu0 0.0
    %2946 = vmatprep.subr.mxu0 0.0
    %2947 = vmatpush1.msra.mxu0 0.0
    %2948 = vmatprep.subr.mxu0 0.0
    %2949 = vmatpush1.msra.mxu0 0.0
    %2950 = vmatprep.mubr.f32.mxu0 0.0
    %2951 = vmatmul.mubr.f32.gmra.mrb[0].mxu0 %v2804
    %v2952 = vpop.f32.mrb[0].mxu0
    %v2953 = vadd.f32 0.0, %v2952
    %v2954 = vpop.f32.mrb[0].mxu0
    %v2955 = vadd.f32 0.0, %v2954
    %2956 = vmatprep.mubr.f32.mxu0 0.0
    %2957 = vmatmul.mubr.f32.gmra.mrb[0].mxu0 %v2807
    %v2958 = vpop.f32.mrb[0].mxu0
    %v2959 = vadd.f32 0.0, %v2958
    %v2960 = vpop.f32.mrb[0].mxu0
    %v2961 = vadd.f32 0.0, %v2960
    %2962 = vdwg.mxu0
    %2963 = vmatprep.subr.mxu0 %v190
    %2964 = vmatpush1.msra.mxu0 %v189
    %2965 = vmatprep.subr.mxu0 %v206
    %2966 = vmatpush1.msra.mxu0 %v205
    %2967 = vmatprep.subr.mxu0 %v222
    %2968 = vmatpush1.msra.mxu0 %v221
    %2969 = vmatprep.subr.mxu0 %v238
    %2970 = vmatpush1.msra.mxu0 %v237
    %2971 = vmatprep.subr.mxu0 %v254
    %2972 = vmatpush1.msra.mxu0 %v253
    %2973 = vmatprep.subr.mxu0 %v270
    %2974 = vmatpush1.msra.mxu0 %v269
    %2975 = vmatprep.subr.mxu0 %v286
    %2976 = vmatpush1.msra.mxu0 %v285
    %2977 = vmatprep.subr.mxu0 %v302
    %2978 = vmatpush1.msra.mxu0 %v301
    %2979 = vmatprep.subr.mxu0 0.0
    %2980 = vmatpush1.msra.mxu0 0.0
    %2981 = vmatprep.subr.mxu0 0.0
    %2982 = vmatpush1.msra.mxu0 0.0
    %2983 = vmatprep.subr.mxu0 0.0
    %2984 = vmatpush1.msra.mxu0 0.0
    %2985 = vmatprep.subr.mxu0 0.0
    %2986 = vmatpush1.msra.mxu0 0.0
    %2987 = vmatprep.subr.mxu0 0.0
    %2988 = vmatpush1.msra.mxu0 0.0
    %2989 = vmatprep.subr.mxu0 0.0
    %2990 = vmatpush1.msra.mxu0 0.0
    %2991 = vmatprep.subr.mxu0 0.0
    %2992 = vmatpush1.msra.mxu0 0.0
    %2993 = vmatprep.subr.mxu0 0.0
    %2994 = vmatpush1.msra.mxu0 0.0
    %2995 = vmatprep.subr.mxu0 0.0
    %2996 = vmatpush1.msra.mxu0 0.0
    %2997 = vmatprep.subr.mxu0 0.0
    %2998 = vmatpush1.msra.mxu0 0.0
    %2999 = vmatprep.subr.mxu0 0.0
    %3000 = vmatpush1.msra.mxu0 0.0
    %3001 = vmatprep.subr.mxu0 0.0
    %3002 = vmatpush1.msra.mxu0 0.0
    %3003 = vmatprep.subr.mxu0 0.0
    %3004 = vmatpush1.msra.mxu0 0.0
    %3005 = vmatprep.subr.mxu0 0.0
    %3006 = vmatpush1.msra.mxu0 0.0
    %3007 = vmatprep.subr.mxu0 0.0
    %3008 = vmatpush1.msra.mxu0 0.0
    %3009 = vmatprep.subr.mxu0 0.0
    %3010 = vmatpush1.msra.mxu0 0.0
    %3011 = vmatprep.subr.mxu0 0.0
    %3012 = vmatpush1.msra.mxu0 0.0
    %3013 = vmatprep.subr.mxu0 0.0
    %3014 = vmatpush1.msra.mxu0 0.0
    %3015 = vmatprep.subr.mxu0 0.0
    %3016 = vmatpush1.msra.mxu0 0.0
    %3017 = vmatprep.subr.mxu0 0.0
    %3018 = vmatpush1.msra.mxu0 0.0
    %3019 = vmatprep.subr.mxu0 0.0
    %3020 = vmatpush1.msra.mxu0 0.0
    %3021 = vmatprep.subr.mxu0 0.0
    %3022 = vmatpush1.msra.mxu0 0.0
    %3023 = vmatprep.subr.mxu0 0.0
    %3024 = vmatpush1.msra.mxu0 0.0
    %3025 = vmatprep.subr.mxu0 0.0
    %3026 = vmatpush1.msra.mxu0 0.0
    %3027 = vmatprep.mubr.f32.mxu0 0.0
    %3028 = vmatmul.mubr.f32.gmra.mrb[0].mxu0 %v2804
    %v3029 = vpop.f32.mrb[0].mxu0
    %v3030 = vadd.f32 0.0, %v3029
    %v3031 = vpop.f32.mrb[0].mxu0
    %v3032 = vadd.f32 0.0, %v3031
    %3033 = vmatprep.mubr.f32.mxu0 0.0
    %3034 = vmatmul.mubr.f32.gmra.mrb[0].mxu0 %v2807
    %v3035 = vpop.f32.mrb[0].mxu0
    %v3036 = vadd.f32 0.0, %v3035
    %v3037 = vpop.f32.mrb[0].mxu0
    %v3038 = vadd.f32 0.0, %v3037
    %3039 = vdwg.mxu0
    %3040 = vmatprep.subr.mxu0 %v192
    %3041 = vmatpush1.msra.mxu0 %v191
    %3042 = vmatprep.subr.mxu0 %v208
    %3043 = vmatpush1.msra.mxu0 %v207
    %3044 = vmatprep.subr.mxu0 %v224
    %3045 = vmatpush1.msra.mxu0 %v223
    %3046 = vmatprep.subr.mxu0 %v240
    %3047 = vmatpush1.msra.mxu0 %v239
    %3048 = vmatprep.subr.mxu0 %v256
    %3049 = vmatpush1.msra.mxu0 %v255
    %3050 = vmatprep.subr.mxu0 %v272
    %3051 = vmatpush1.msra.mxu0 %v271
    %3052 = vmatprep.subr.mxu0 %v288
    %3053 = vmatpush1.msra.mxu0 %v287
    %3054 = vmatprep.subr.mxu0 %v304
    %3055 = vmatpush1.msra.mxu0 %v303
    %3056 = vmatprep.subr.mxu0 0.0
    %3057 = vmatpush1.msra.mxu0 0.0
    %3058 = vmatprep.subr.mxu0 0.0
    %3059 = vmatpush1.msra.mxu0 0.0
    %3060 = vmatprep.subr.mxu0 0.0
    %3061 = vmatpush1.msra.mxu0 0.0
    %3062 = vmatprep.subr.mxu0 0.0
    %3063 = vmatpush1.msra.mxu0 0.0
    %3064 = vmatprep.subr.mxu0 0.0
    %3065 = vmatpush1.msra.mxu0 0.0
    %3066 = vmatprep.subr.mxu0 0.0
    %3067 = vmatpush1.msra.mxu0 0.0
    %3068 = vmatprep.subr.mxu0 0.0
    %3069 = vmatpush1.msra.mxu0 0.0
    %3070 = vmatprep.subr.mxu0 0.0
    %3071 = vmatpush1.msra.mxu0 0.0
    %3072 = vmatprep.subr.mxu0 0.0
    %3073 = vmatpush1.msra.mxu0 0.0
    %3074 = vmatprep.subr.mxu0 0.0
    %3075 = vmatpush1.msra.mxu0 0.0
    %3076 = vmatprep.subr.mxu0 0.0
    %3077 = vmatpush1.msra.mxu0 0.0
    %3078 = vmatprep.subr.mxu0 0.0
    %3079 = vmatpush1.msra.mxu0 0.0
    %3080 = vmatprep.subr.mxu0 0.0
    %3081 = vmatpush1.msra.mxu0 0.0
    %3082 = vmatprep.subr.mxu0 0.0
    %3083 = vmatpush1.msra.mxu0 0.0
    %3084 = vmatprep.subr.mxu0 0.0
    %3085 = vmatpush1.msra.mxu0 0.0
    %3086 = vmatprep.subr.mxu0 0.0
    %3087 = vmatpush1.msra.mxu0 0.0
    %3088 = vmatprep.subr.mxu0 0.0
    %3089 = vmatpush1.msra.mxu0 0.0
    %3090 = vmatprep.subr.mxu0 0.0
    %3091 = vmatpush1.msra.mxu0 0.0
    %3092 = vmatprep.subr.mxu0 0.0
    %3093 = vmatpush1.msra.mxu0 0.0
    %3094 = vmatprep.subr.mxu0 0.0
    %3095 = vmatpush1.msra.mxu0 0.0
    %3096 = vmatprep.subr.mxu0 0.0
    %3097 = vmatpush1.msra.mxu0 0.0
    %3098 = vmatprep.subr.mxu0 0.0
    %3099 = vmatpush1.msra.mxu0 0.0
    %3100 = vmatprep.subr.mxu0 0.0
    %3101 = vmatpush1.msra.mxu0 0.0
    %3102 = vmatprep.subr.mxu0 0.0
    %3103 = vmatpush1.msra.mxu0 0.0
    %3104 = vmatprep.mubr.f32.mxu0 0.0
    %3105 = vmatmul.mubr.f32.gmra.mrb[0].mxu0 %v2804
    %v3106 = vpop.f32.mrb[0].mxu0
    %v3107 = vadd.f32 0.0, %v3106
    %v3108 = vpop.f32.mrb[0].mxu0
    %v3109 = vadd.f32 0.0, %v3108
    %3110 = vmatprep.mubr.f32.mxu0 0.0
    %3111 = vmatmul.mubr.f32.gmra.mrb[0].mxu0 %v2807
    %v3112 = vpop.f32.mrb[0].mxu0
    %v3113 = vadd.f32 0.0, %v3112
    %v3114 = vpop.f32.mrb[0].mxu0
    %v3115 = vadd.f32 0.0, %v3114
    %3116 = vdwg.mxu0
    %3117 = vmatprep.subr.mxu0 %v194
    %3118 = vmatpush1.msra.mxu0 %v193
    %3119 = vmatprep.subr.mxu0 %v210
    %3120 = vmatpush1.msra.mxu0 %v209
    %3121 = vmatprep.subr.mxu0 %v226
    %3122 = vmatpush1.msra.mxu0 %v225
    %3123 = vmatprep.subr.mxu0 %v242
    %3124 = vmatpush1.msra.mxu0 %v241
    %3125 = vmatprep.subr.mxu0 %v258
    %3126 = vmatpush1.msra.mxu0 %v257
    %3127 = vmatprep.subr.mxu0 %v274
    %3128 = vmatpush1.msra.mxu0 %v273
    %3129 = vmatprep.subr.mxu0 %v290
    %3130 = vmatpush1.msra.mxu0 %v289
    %3131 = vmatprep.subr.mxu0 %v306
    %3132 = vmatpush1.msra.mxu0 %v305
    %3133 = vmatprep.subr.mxu0 0.0
    %3134 = vmatpush1.msra.mxu0 0.0
    %3135 = vmatprep.subr.mxu0 0.0
    %3136 = vmatpush1.msra.mxu0 0.0
    %3137 = vmatprep.subr.mxu0 0.0
    %3138 = vmatpush1.msra.mxu0 0.0
    %3139 = vmatprep.subr.mxu0 0.0
    %3140 = vmatpush1.msra.mxu0 0.0
    %3141 = vmatprep.subr.mxu0 0.0
    %3142 = vmatpush1.msra.mxu0 0.0
    %3143 = vmatprep.subr.mxu0 0.0
    %3144 = vmatpush1.msra.mxu0 0.0
    %3145 = vmatprep.subr.mxu0 0.0
    %3146 = vmatpush1.msra.mxu0 0.0
    %3147 = vmatprep.subr.mxu0 0.0
    %3148 = vmatpush1.msra.mxu0 0.0
    %3149 = vmatprep.subr.mxu0 0.0
    %3150 = vmatpush1.msra.mxu0 0.0
    %3151 = vmatprep.subr.mxu0 0.0
    %3152 = vmatpush1.msra.mxu0 0.0
    %3153 = vmatprep.subr.mxu0 0.0
    %3154 = vmatpush1.msra.mxu0 0.0
    %3155 = vmatprep.subr.mxu0 0.0
    %3156 = vmatpush1.msra.mxu0 0.0
    %3157 = vmatprep.subr.mxu0 0.0
    %3158 = vmatpush1.msra.mxu0 0.0
    %3159 = vmatprep.subr.mxu0 0.0
    %3160 = vmatpush1.msra.mxu0 0.0
    %3161 = vmatprep.subr.mxu0 0.0
    %3162 = vmatpush1.msra.mxu0 0.0
    %3163 = vmatprep.subr.mxu0 0.0
    %3164 = vmatpush1.msra.mxu0 0.0
    %3165 = vmatprep.subr.mxu0 0.0
    %3166 = vmatpush1.msra.mxu0 0.0
    %3167 = vmatprep.subr.mxu0 0.0
    %3168 = vmatpush1.msra.mxu0 0.0
    %3169 = vmatprep.subr.mxu0 0.0
    %3170 = vmatpush1.msra.mxu0 0.0
    %3171 = vmatprep.subr.mxu0 0.0
    %3172 = vmatpush1.msra.mxu0 0.0
    %3173 = vmatprep.subr.mxu0 0.0
    %3174 = vmatpush1.msra.mxu0 0.0
    %3175 = vmatprep.subr.mxu0 0.0
    %3176 = vmatpush1.msra.mxu0 0.0
    %3177 = vmatprep.subr.mxu0 0.0
    %3178 = vmatpush1.msra.mxu0 0.0
    %3179 = vmatprep.subr.mxu0 0.0
    %3180 = vmatpush1.msra.mxu0 0.0
    %3181 = vmatprep.mubr.f32.mxu0 0.0
    %3182 = vmatmul.mubr.f32.gmra.mrb[0].mxu0 %v2804
    %v3183 = vpop.f32.mrb[0].mxu0
    %v3184 = vadd.f32 0.0, %v3183
    %v3185 = vpop.f32.mrb[0].mxu0
    %v3186 = vadd.f32 0.0, %v3185
    %3187 = vmatprep.mubr.f32.mxu0 0.0
    %3188 = vmatmul.mubr.f32.gmra.mrb[0].mxu0 %v2807
    %v3189 = vpop.f32.mrb[0].mxu0
    %v3190 = vadd.f32 0.0, %v3189
    %v3191 = vpop.f32.mrb[0].mxu0
    %v3192 = vadd.f32 0.0, %v3191
    %3193 = vdwg.mxu0
    %3194 = vmatprep.subr.mxu0 %v196
    %3195 = vmatpush1.msra.mxu0 %v195
    %3196 = vmatprep.subr.mxu0 %v212
    %3197 = vmatpush1.msra.mxu0 %v211
    %3198 = vmatprep.subr.mxu0 %v228
    %3199 = vmatpush1.msra.mxu0 %v227
    %3200 = vmatprep.subr.mxu0 %v244
    %3201 = vmatpush1.msra.mxu0 %v243
    %3202 = vmatprep.subr.mxu0 %v260
    %3203 = vmatpush1.msra.mxu0 %v259
    %3204 = vmatprep.subr.mxu0 %v276
    %3205 = vmatpush1.msra.mxu0 %v275
    %3206 = vmatprep.subr.mxu0 %v292
    %3207 = vmatpush1.msra.mxu0 %v291
    %3208 = vmatprep.subr.mxu0 %v308
    %3209 = vmatpush1.msra.mxu0 %v307
    %3210 = vmatprep.subr.mxu0 0.0
    %3211 = vmatpush1.msra.mxu0 0.0
    %3212 = vmatprep.subr.mxu0 0.0
    %3213 = vmatpush1.msra.mxu0 0.0
    %3214 = vmatprep.subr.mxu0 0.0
    %3215 = vmatpush1.msra.mxu0 0.0
    %3216 = vmatprep.subr.mxu0 0.0
    %3217 = vmatpush1.msra.mxu0 0.0
    %3218 = vmatprep.subr.mxu0 0.0
    %3219 = vmatpush1.msra.mxu0 0.0
    %3220 = vmatprep.subr.mxu0 0.0
    %3221 = vmatpush1.msra.mxu0 0.0
    %3222 = vmatprep.subr.mxu0 0.0
    %3223 = vmatpush1.msra.mxu0 0.0
    %3224 = vmatprep.subr.mxu0 0.0
    %3225 = vmatpush1.msra.mxu0 0.0
    %3226 = vmatprep.subr.mxu0 0.0
    %3227 = vmatpush1.msra.mxu0 0.0
    %3228 = vmatprep.subr.mxu0 0.0
    %3229 = vmatpush1.msra.mxu0 0.0
    %3230 = vmatprep.subr.mxu0 0.0
    %3231 = vmatpush1.msra.mxu0 0.0
    %3232 = vmatprep.subr.mxu0 0.0
    %3233 = vmatpush1.msra.mxu0 0.0
    %3234 = vmatprep.subr.mxu0 0.0
    %3235 = vmatpush1.msra.mxu0 0.0
    %3236 = vmatprep.subr.mxu0 0.0
    %3237 = vmatpush1.msra.mxu0 0.0
    %3238 = vmatprep.subr.mxu0 0.0
    %3239 = vmatpush1.msra.mxu0 0.0
    %3240 = vmatprep.subr.mxu0 0.0
    %3241 = vmatpush1.msra.mxu0 0.0
    %3242 = vmatprep.subr.mxu0 0.0
    %3243 = vmatpush1.msra.mxu0 0.0
    %3244 = vmatprep.subr.mxu0 0.0
    %3245 = vmatpush1.msra.mxu0 0.0
    %3246 = vmatprep.subr.mxu0 0.0
    %3247 = vmatpush1.msra.mxu0 0.0
    %3248 = vmatprep.subr.mxu0 0.0
    %3249 = vmatpush1.msra.mxu0 0.0
    %3250 = vmatprep.subr.mxu0 0.0
    %3251 = vmatpush1.msra.mxu0 0.0
    %3252 = vmatprep.subr.mxu0 0.0
    %3253 = vmatpush1.msra.mxu0 0.0
    %3254 = vmatprep.subr.mxu0 0.0
    %3255 = vmatpush1.msra.mxu0 0.0
    %3256 = vmatprep.subr.mxu0 0.0
    %3257 = vmatpush1.msra.mxu0 0.0
    %3258 = vmatprep.mubr.f32.mxu0 0.0
    %3259 = vmatmul.mubr.f32.gmra.mrb[0].mxu0 %v2804
    %v3260 = vpop.f32.mrb[0].mxu0
    %v3261 = vadd.f32 0.0, %v3260
    %v3262 = vpop.f32.mrb[0].mxu0
    %v3263 = vadd.f32 0.0, %v3262
    %3264 = vmatprep.mubr.f32.mxu0 0.0
    %3265 = vmatmul.mubr.f32.gmra.mrb[0].mxu0 %v2807
    %v3266 = vpop.f32.mrb[0].mxu0
    %v3267 = vadd.f32 0.0, %v3266
    %v3268 = vpop.f32.mrb[0].mxu0
    %v3269 = vadd.f32 0.0, %v3268
    %3270 = vdwg.mxu0
    %3271 = vmatprep.subr.mxu0 %v198
    %3272 = vmatpush1.msra.mxu0 %v197
    %3273 = vmatprep.subr.mxu0 %v214
    %3274 = vmatpush1.msra.mxu0 %v213
    %3275 = vmatprep.subr.mxu0 %v230
    %3276 = vmatpush1.msra.mxu0 %v229
    %3277 = vmatprep.subr.mxu0 %v246
    %3278 = vmatpush1.msra.mxu0 %v245
    %3279 = vmatprep.subr.mxu0 %v262
    %3280 = vmatpush1.msra.mxu0 %v261
    %3281 = vmatprep.subr.mxu0 %v278
    %3282 = vmatpush1.msra.mxu0 %v277
    %3283 = vmatprep.subr.mxu0 %v294
    %3284 = vmatpush1.msra.mxu0 %v293
    %3285 = vmatprep.subr.mxu0 %v310
    %3286 = vmatpush1.msra.mxu0 %v309
    %3287 = vmatprep.subr.mxu0 0.0
    %3288 = vmatpush1.msra.mxu0 0.0
    %3289 = vmatprep.subr.mxu0 0.0
    %3290 = vmatpush1.msra.mxu0 0.0
    %3291 = vmatprep.subr.mxu0 0.0
    %3292 = vmatpush1.msra.mxu0 0.0
    %3293 = vmatprep.subr.mxu0 0.0
    %3294 = vmatpush1.msra.mxu0 0.0
    %3295 = vmatprep.subr.mxu0 0.0
    %3296 = vmatpush1.msra.mxu0 0.0
    %3297 = vmatprep.subr.mxu0 0.0
    %3298 = vmatpush1.msra.mxu0 0.0
    %3299 = vmatprep.subr.mxu0 0.0
    %3300 = vmatpush1.msra.mxu0 0.0
    %3301 = vmatprep.subr.mxu0 0.0
    %3302 = vmatpush1.msra.mxu0 0.0
    %3303 = vmatprep.subr.mxu0 0.0
    %3304 = vmatpush1.msra.mxu0 0.0
    %3305 = vmatprep.subr.mxu0 0.0
    %3306 = vmatpush1.msra.mxu0 0.0
    %3307 = vmatprep.subr.mxu0 0.0
    %3308 = vmatpush1.msra.mxu0 0.0
    %3309 = vmatprep.subr.mxu0 0.0
    %3310 = vmatpush1.msra.mxu0 0.0
    %3311 = vmatprep.subr.mxu0 0.0
    %3312 = vmatpush1.msra.mxu0 0.0
    %3313 = vmatprep.subr.mxu0 0.0
    %3314 = vmatpush1.msra.mxu0 0.0
    %3315 = vmatprep.subr.mxu0 0.0
    %3316 = vmatpush1.msra.mxu0 0.0
    %3317 = vmatprep.subr.mxu0 0.0
    %3318 = vmatpush1.msra.mxu0 0.0
    %3319 = vmatprep.subr.mxu0 0.0
    %3320 = vmatpush1.msra.mxu0 0.0
    %3321 = vmatprep.subr.mxu0 0.0
    %3322 = vmatpush1.msra.mxu0 0.0
    %3323 = vmatprep.subr.mxu0 0.0
    %3324 = vmatpush1.msra.mxu0 0.0
    %3325 = vmatprep.subr.mxu0 0.0
    %3326 = vmatpush1.msra.mxu0 0.0
    %3327 = vmatprep.subr.mxu0 0.0
    %3328 = vmatpush1.msra.mxu0 0.0
    %3329 = vmatprep.subr.mxu0 0.0
    %3330 = vmatpush1.msra.mxu0 0.0
    %3331 = vmatprep.subr.mxu0 0.0
    %3332 = vmatpush1.msra.mxu0 0.0
    %3333 = vmatprep.subr.mxu0 0.0
    %3334 = vmatpush1.msra.mxu0 0.0
    %3335 = vmatprep.mubr.f32.mxu0 0.0
    %3336 = vmatmul.mubr.f32.gmra.mrb[0].mxu0 %v2804
    %v3337 = vpop.f32.mrb[0].mxu0
    %v3338 = vadd.f32 0.0, %v3337
    %v3339 = vpop.f32.mrb[0].mxu0
    %v3340 = vadd.f32 0.0, %v3339
    %3341 = vmatprep.mubr.f32.mxu0 0.0
    %3342 = vmatmul.mubr.f32.gmra.mrb[0].mxu0 %v2807
    %v3343 = vpop.f32.mrb[0].mxu0
    %v3344 = vadd.f32 0.0, %v3343
    %v3345 = vpop.f32.mrb[0].mxu0
    %v3346 = vadd.f32 0.0, %v3345
    %3347 = vdwg.mxu0
    %3348 = vmatprep.subr.mxu0 %v200
    %3349 = vmatpush1.msra.mxu0 %v199
    %3350 = vmatprep.subr.mxu0 %v216
    %3351 = vmatpush1.msra.mxu0 %v215
    %3352 = vmatprep.subr.mxu0 %v232
    %3353 = vmatpush1.msra.mxu0 %v231
    %3354 = vmatprep.subr.mxu0 %v248
    %3355 = vmatpush1.msra.mxu0 %v247
    %3356 = vmatprep.subr.mxu0 %v264
    %3357 = vmatpush1.msra.mxu0 %v263
    %3358 = vmatprep.subr.mxu0 %v280
    %3359 = vmatpush1.msra.mxu0 %v279
    %3360 = vmatprep.subr.mxu0 %v296
    %3361 = vmatpush1.msra.mxu0 %v295
    %3362 = vmatprep.subr.mxu0 %v312
    %3363 = vmatpush1.msra.mxu0 %v311
    %3364 = vmatprep.subr.mxu0 0.0
    %3365 = vmatpush1.msra.mxu0 0.0
    %3366 = vmatprep.subr.mxu0 0.0
    %3367 = vmatpush1.msra.mxu0 0.0
    %3368 = vmatprep.subr.mxu0 0.0
    %3369 = vmatpush1.msra.mxu0 0.0
    %3370 = vmatprep.subr.mxu0 0.0
    %3371 = vmatpush1.msra.mxu0 0.0
    %3372 = vmatprep.subr.mxu0 0.0
    %3373 = vmatpush1.msra.mxu0 0.0
    %3374 = vmatprep.subr.mxu0 0.0
    %3375 = vmatpush1.msra.mxu0 0.0
    %3376 = vmatprep.subr.mxu0 0.0
    %3377 = vmatpush1.msra.mxu0 0.0
    %3378 = vmatprep.subr.mxu0 0.0
    %3379 = vmatpush1.msra.mxu0 0.0
    %3380 = vmatprep.subr.mxu0 0.0
    %3381 = vmatpush1.msra.mxu0 0.0
    %3382 = vmatprep.subr.mxu0 0.0
    %3383 = vmatpush1.msra.mxu0 0.0
    %3384 = vmatprep.subr.mxu0 0.0
    %3385 = vmatpush1.msra.mxu0 0.0
    %3386 = vmatprep.subr.mxu0 0.0
    %3387 = vmatpush1.msra.mxu0 0.0
    %3388 = vmatprep.subr.mxu0 0.0
    %3389 = vmatpush1.msra.mxu0 0.0
    %3390 = vmatprep.subr.mxu0 0.0
    %3391 = vmatpush1.msra.mxu0 0.0
    %3392 = vmatprep.subr.mxu0 0.0
    %3393 = vmatpush1.msra.mxu0 0.0
    %3394 = vmatprep.subr.mxu0 0.0
    %3395 = vmatpush1.msra.mxu0 0.0
    %3396 = vmatprep.subr.mxu0 0.0
    %3397 = vmatpush1.msra.mxu0 0.0
    %3398 = vmatprep.subr.mxu0 0.0
    %3399 = vmatpush1.msra.mxu0 0.0
    %3400 = vmatprep.subr.mxu0 0.0
    %3401 = vmatpush1.msra.mxu0 0.0
    %3402 = vmatprep.subr.mxu0 0.0
    %3403 = vmatpush1.msra.mxu0 0.0
    %3404 = vmatprep.subr.mxu0 0.0
    %3405 = vmatpush1.msra.mxu0 0.0
    %3406 = vmatprep.subr.mxu0 0.0
    %3407 = vmatpush1.msra.mxu0 0.0
    %3408 = vmatprep.subr.mxu0 0.0
    %3409 = vmatpush1.msra.mxu0 0.0
    %3410 = vmatprep.subr.mxu0 0.0
    %3411 = vmatpush1.msra.mxu0 0.0
    %3412 = vmatprep.mubr.f32.mxu0 0.0
    %3413 = vmatmul.mubr.f32.gmra.mrb[0].mxu0 %v2804
    %v3414 = vpop.f32.mrb[0].mxu0
    %v3415 = vadd.f32 0.0, %v3414
    %v3416 = vpop.f32.mrb[0].mxu0
    %v3417 = vadd.f32 0.0, %v3416
    %3418 = vmatprep.mubr.f32.mxu0 0.0
    %3419 = vmatmul.mubr.f32.gmra.mrb[0].mxu0 %v2807
    %v3420 = vpop.f32.mrb[0].mxu0
    %v3421 = vadd.f32 0.0, %v3420
    %v3422 = vpop.f32.mrb[0].mxu0
    %v3423 = vadd.f32 0.0, %v3422
    %3424 = vdwg.mxu0
    %vm3425 = vcmask 130048
    %v3427 = vsel %vm3425, %v98, 0
    %v3430 = vsel %vm3425, %v99, 0
    %v3433 = vsel %vm3425, %v100, 0
    %v3436 = vsel %vm3425, %v101, 0
    %3438 = vmatprep.subr.mxu0 %v2878
    %3439 = vmatpush1.msra.mxu0 %v2876
    %3440 = vmatprep.subr.mxu0 %v2884
    %3441 = vmatpush1.msra.mxu0 %v2882
    %3442 = vmatprep.subr.mxu0 0.0
    %3443 = vmatpush1.msra.mxu0 0.0
    %3444 = vmatprep.subr.mxu0 0.0
    %3445 = vmatpush1.msra.mxu0 0.0
    %3446 = vmatprep.subr.mxu0 0.0
    %3447 = vmatpush1.msra.mxu0 0.0
    %3448 = vmatprep.subr.mxu0 0.0
    %3449 = vmatpush1.msra.mxu0 0.0
    %3450 = vmatprep.subr.mxu0 0.0
    %3451 = vmatpush1.msra.mxu0 0.0
    %3452 = vmatprep.subr.mxu0 0.0
    %3453 = vmatpush1.msra.mxu0 0.0
    %3454 = vmatprep.subr.mxu0 0.0
    %3455 = vmatpush1.msra.mxu0 0.0
    %3456 = vmatprep.subr.mxu0 0.0
    %3457 = vmatpush1.msra.mxu0 0.0
    %3458 = vmatprep.subr.mxu0 0.0
    %3459 = vmatpush1.msra.mxu0 0.0
    %3460 = vmatprep.subr.mxu0 0.0
    %3461 = vmatpush1.msra.mxu0 0.0
    %3462 = vmatprep.subr.mxu0 0.0
    %3463 = vmatpush1.msra.mxu0 0.0
    %3464 = vmatprep.subr.mxu0 0.0
    %3465 = vmatpush1.msra.mxu0 0.0
    %3466 = vmatprep.subr.mxu0 0.0
    %3467 = vmatpush1.msra.mxu0 0.0
    %3468 = vmatprep.subr.mxu0 0.0
    %3469 = vmatpush1.msra.mxu0 0.0
    %3470 = vmatprep.subr.mxu0 0.0
    %3471 = vmatpush1.msra.mxu0 0.0
    %3472 = vmatprep.subr.mxu0 0.0
    %3473 = vmatpush1.msra.mxu0 0.0
    %3474 = vmatprep.subr.mxu0 0.0
    %3475 = vmatpush1.msra.mxu0 0.0
    %3476 = vmatprep.subr.mxu0 0.0
    %3477 = vmatpush1.msra.mxu0 0.0
    %3478 = vmatprep.subr.mxu0 0.0
    %3479 = vmatpush1.msra.mxu0 0.0
    %3480 = vmatprep.subr.mxu0 0.0
    %3481 = vmatpush1.msra.mxu0 0.0
    %3482 = vmatprep.subr.mxu0 0.0
    %3483 = vmatpush1.msra.mxu0 0.0
    %3484 = vmatprep.subr.mxu0 0.0
    %3485 = vmatpush1.msra.mxu0 0.0
    %3486 = vmatprep.subr.mxu0 0.0
    %3487 = vmatpush1.msra.mxu0 0.0
    %3488 = vmatprep.subr.mxu0 0.0
    %3489 = vmatpush1.msra.mxu0 0.0
    %3490 = vmatprep.subr.mxu0 0.0
    %3491 = vmatpush1.msra.mxu0 0.0
    %3492 = vmatprep.subr.mxu0 0.0
    %3493 = vmatpush1.msra.mxu0 0.0
    %3494 = vmatprep.subr.mxu0 0.0
    %3495 = vmatpush1.msra.mxu0 0.0
    %3496 = vmatprep.subr.mxu0 0.0
    %3497 = vmatpush1.msra.mxu0 0.0
    %3498 = vmatprep.subr.mxu0 0.0
    %3499 = vmatpush1.msra.mxu0 0.0
    %3500 = vmatprep.subr.mxu0 0.0
    %3501 = vmatpush1.msra.mxu0 0.0
    %3502 = vmatprep.mubr.f32.mxu0 0.0
    %3503 = vmatmul.mubr.f32.gmra.mrb[0].mxu0 %v3427
    %v3504 = vpop.f32.mrb[0].mxu0
    %v3505 = vadd.f32 0.0, %v3504
    %v3506 = vpop.f32.mrb[0].mxu0
    %v3507 = vadd.f32 0.0, %v3506
    %3508 = vmatprep.mubr.f32.mxu0 0.0
    %3509 = vmatmul.mubr.f32.gmra.mrb[0].mxu0 %v3430
    %v3510 = vpop.f32.mrb[0].mxu0
    %v3511 = vadd.f32 0.0, %v3510
    %v3512 = vpop.f32.mrb[0].mxu0
    %v3513 = vadd.f32 0.0, %v3512
    %3514 = vmatprep.mubr.f32.mxu0 0.0
    %3515 = vmatmul.mubr.f32.gmra.mrb[0].mxu0 %v3433
    %v3516 = vpop.f32.mrb[0].mxu0
    %v3517 = vadd.f32 0.0, %v3516
    %v3518 = vpop.f32.mrb[0].mxu0
    %v3519 = vadd.f32 0.0, %v3518
    %3520 = vmatprep.mubr.f32.mxu0 0.0
    %3521 = vmatmul.mubr.f32.gmra.mrb[0].mxu0 %v3436
    %v3522 = vpop.f32.mrb[0].mxu0
    %v3523 = vadd.f32 0.0, %v3522
    %v3524 = vpop.f32.mrb[0].mxu0
    %v3525 = vadd.f32 0.0, %v3524
    %3526 = vdwg.mxu0
    %3527 = vmatprep.subr.mxu0 %v2955
    %3528 = vmatpush1.msra.mxu0 %v2953
    %3529 = vmatprep.subr.mxu0 %v2961
    %3530 = vmatpush1.msra.mxu0 %v2959
    %3531 = vmatprep.subr.mxu0 0.0
    %3532 = vmatpush1.msra.mxu0 0.0
    %3533 = vmatprep.subr.mxu0 0.0
    %3534 = vmatpush1.msra.mxu0 0.0
    %3535 = vmatprep.subr.mxu0 0.0
    %3536 = vmatpush1.msra.mxu0 0.0
    %3537 = vmatprep.subr.mxu0 0.0
    %3538 = vmatpush1.msra.mxu0 0.0
    %3539 = vmatprep.subr.mxu0 0.0
    %3540 = vmatpush1.msra.mxu0 0.0
    %3541 = vmatprep.subr.mxu0 0.0
    %3542 = vmatpush1.msra.mxu0 0.0
    %3543 = vmatprep.subr.mxu0 0.0
    %3544 = vmatpush1.msra.mxu0 0.0
    %3545 = vmatprep.subr.mxu0 0.0
    %3546 = vmatpush1.msra.mxu0 0.0
    %3547 = vmatprep.subr.mxu0 0.0
    %3548 = vmatpush1.msra.mxu0 0.0
    %3549 = vmatprep.subr.mxu0 0.0
    %3550 = vmatpush1.msra.mxu0 0.0
    %3551 = vmatprep.subr.mxu0 0.0
    %3552 = vmatpush1.msra.mxu0 0.0
    %3553 = vmatprep.subr.mxu0 0.0
    %3554 = vmatpush1.msra.mxu0 0.0
    %3555 = vmatprep.subr.mxu0 0.0
    %3556 = vmatpush1.msra.mxu0 0.0
    %3557 = vmatprep.subr.mxu0 0.0
    %3558 = vmatpush1.msra.mxu0 0.0
    %3559 = vmatprep.subr.mxu0 0.0
    %3560 = vmatpush1.msra.mxu0 0.0
    %3561 = vmatprep.subr.mxu0 0.0
    %3562 = vmatpush1.msra.mxu0 0.0
    %3563 = vmatprep.subr.mxu0 0.0
    %3564 = vmatpush1.msra.mxu0 0.0
    %3565 = vmatprep.subr.mxu0 0.0
    %3566 = vmatpush1.msra.mxu0 0.0
    %3567 = vmatprep.subr.mxu0 0.0
    %3568 = vmatpush1.msra.mxu0 0.0
    %3569 = vmatprep.subr.mxu0 0.0
    %3570 = vmatpush1.msra.mxu0 0.0
    %3571 = vmatprep.subr.mxu0 0.0
    %3572 = vmatpush1.msra.mxu0 0.0
    %3573 = vmatprep.subr.mxu0 0.0
    %3574 = vmatpush1.msra.mxu0 0.0
    %3575 = vmatprep.subr.mxu0 0.0
    %3576 = vmatpush1.msra.mxu0 0.0
    %3577 = vmatprep.subr.mxu0 0.0
    %3578 = vmatpush1.msra.mxu0 0.0
    %3579 = vmatprep.subr.mxu0 0.0
    %3580 = vmatpush1.msra.mxu0 0.0
    %3581 = vmatprep.subr.mxu0 0.0
    %3582 = vmatpush1.msra.mxu0 0.0
    %3583 = vmatprep.subr.mxu0 0.0
    %3584 = vmatpush1.msra.mxu0 0.0
    %3585 = vmatprep.subr.mxu0 0.0
    %3586 = vmatpush1.msra.mxu0 0.0
    %3587 = vmatprep.subr.mxu0 0.0
    %3588 = vmatpush1.msra.mxu0 0.0
    %3589 = vmatprep.subr.mxu0 0.0
    %3590 = vmatpush1.msra.mxu0 0.0
    %3591 = vmatprep.mubr.f32.mxu0 0.0
    %3592 = vmatmul.mubr.f32.gmra.mrb[0].mxu0 %v3427
    %v3593 = vpop.f32.mrb[0].mxu0
    %v3594 = vadd.f32 0.0, %v3593
    %v3595 = vpop.f32.mrb[0].mxu0
    %v3596 = vadd.f32 0.0, %v3595
    %3597 = vmatprep.mubr.f32.mxu0 0.0
    %3598 = vmatmul.mubr.f32.gmra.mrb[0].mxu0 %v3430
    %v3599 = vpop.f32.mrb[0].mxu0
    %v3600 = vadd.f32 0.0, %v3599
    %v3601 = vpop.f32.mrb[0].mxu0
    %v3602 = vadd.f32 0.0, %v3601
    %3603 = vmatprep.mubr.f32.mxu0 0.0
    %3604 = vmatmul.mubr.f32.gmra.mrb[0].mxu0 %v3433
    %v3605 = vpop.f32.mrb[0].mxu0
    %v3606 = vadd.f32 0.0, %v3605
    %v3607 = vpop.f32.mrb[0].mxu0
    %v3608 = vadd.f32 0.0, %v3607
    %3609 = vmatprep.mubr.f32.mxu0 0.0
    %3610 = vmatmul.mubr.f32.gmra.mrb[0].mxu0 %v3436
    %v3611 = vpop.f32.mrb[0].mxu0
    %v3612 = vadd.f32 0.0, %v3611
    %v3613 = vpop.f32.mrb[0].mxu0
    %v3614 = vadd.f32 0.0, %v3613
    %3615 = vdwg.mxu0
    %3616 = vmatprep.subr.mxu0 %v3032
    %3617 = vmatpush1.msra.mxu0 %v3030
    %3618 = vmatprep.subr.mxu0 %v3038
    %3619 = vmatpush1.msra.mxu0 %v3036
    %3620 = vmatprep.subr.mxu0 0.0
    %3621 = vmatpush1.msra.mxu0 0.0
    %3622 = vmatprep.subr.mxu0 0.0
    %3623 = vmatpush1.msra.mxu0 0.0
    %3624 = vmatprep.subr.mxu0 0.0
    %3625 = vmatpush1.msra.mxu0 0.0
    %3626 = vmatprep.subr.mxu0 0.0
    %3627 = vmatpush1.msra.mxu0 0.0
    %3628 = vmatprep.subr.mxu0 0.0
    %3629 = vmatpush1.msra.mxu0 0.0
    %3630 = vmatprep.subr.mxu0 0.0
    %3631 = vmatpush1.msra.mxu0 0.0
    %3632 = vmatprep.subr.mxu0 0.0
    %3633 = vmatpush1.msra.mxu0 0.0
    %3634 = vmatprep.subr.mxu0 0.0
    %3635 = vmatpush1.msra.mxu0 0.0
    %3636 = vmatprep.subr.mxu0 0.0
    %3637 = vmatpush1.msra.mxu0 0.0
    %3638 = vmatprep.subr.mxu0 0.0
    %3639 = vmatpush1.msra.mxu0 0.0
    %3640 = vmatprep.subr.mxu0 0.0
    %3641 = vmatpush1.msra.mxu0 0.0
    %3642 = vmatprep.subr.mxu0 0.0
    %3643 = vmatpush1.msra.mxu0 0.0
    %3644 = vmatprep.subr.mxu0 0.0
    %3645 = vmatpush1.msra.mxu0 0.0
    %3646 = vmatprep.subr.mxu0 0.0
    %3647 = vmatpush1.msra.mxu0 0.0
    %3648 = vmatprep.subr.mxu0 0.0
    %3649 = vmatpush1.msra.mxu0 0.0
    %3650 = vmatprep.subr.mxu0 0.0
    %3651 = vmatpush1.msra.mxu0 0.0
    %3652 = vmatprep.subr.mxu0 0.0
    %3653 = vmatpush1.msra.mxu0 0.0
    %3654 = vmatprep.subr.mxu0 0.0
    %3655 = vmatpush1.msra.mxu0 0.0
    %3656 = vmatprep.subr.mxu0 0.0
    %3657 = vmatpush1.msra.mxu0 0.0
    %3658 = vmatprep.subr.mxu0 0.0
    %3659 = vmatpush1.msra.mxu0 0.0
    %3660 = vmatprep.subr.mxu0 0.0
    %3661 = vmatpush1.msra.mxu0 0.0
    %3662 = vmatprep.subr.mxu0 0.0
    %3663 = vmatpush1.msra.mxu0 0.0
    %3664 = vmatprep.subr.mxu0 0.0
    %3665 = vmatpush1.msra.mxu0 0.0
    %3666 = vmatprep.subr.mxu0 0.0
    %3667 = vmatpush1.msra.mxu0 0.0
    %3668 = vmatprep.subr.mxu0 0.0
    %3669 = vmatpush1.msra.mxu0 0.0
    %3670 = vmatprep.subr.mxu0 0.0
    %3671 = vmatpush1.msra.mxu0 0.0
    %3672 = vmatprep.subr.mxu0 0.0
    %3673 = vmatpush1.msra.mxu0 0.0
    %3674 = vmatprep.subr.mxu0 0.0
    %3675 = vmatpush1.msra.mxu0 0.0
    %3676 = vmatprep.subr.mxu0 0.0
    %3677 = vmatpush1.msra.mxu0 0.0
    %3678 = vmatprep.subr.mxu0 0.0
    %3679 = vmatpush1.msra.mxu0 0.0
    %3680 = vmatprep.mubr.f32.mxu0 0.0
    %3681 = vmatmul.mubr.f32.gmra.mrb[0].mxu0 %v3427
    %v3682 = vpop.f32.mrb[0].mxu0
    %v3683 = vadd.f32 0.0, %v3682
    %v3684 = vpop.f32.mrb[0].mxu0
    %v3685 = vadd.f32 0.0, %v3684
    %3686 = vmatprep.mubr.f32.mxu0 0.0
    %3687 = vmatmul.mubr.f32.gmra.mrb[0].mxu0 %v3430
    %v3688 = vpop.f32.mrb[0].mxu0
    %v3689 = vadd.f32 0.0, %v3688
    %v3690 = vpop.f32.mrb[0].mxu0
    %v3691 = vadd.f32 0.0, %v3690
    %3692 = vmatprep.mubr.f32.mxu0 0.0
    %3693 = vmatmul.mubr.f32.gmra.mrb[0].mxu0 %v3433
    %v3694 = vpop.f32.mrb[0].mxu0
    %v3695 = vadd.f32 0.0, %v3694
    %v3696 = vpop.f32.mrb[0].mxu0
    %v3697 = vadd.f32 0.0, %v3696
    %3698 = vmatprep.mubr.f32.mxu0 0.0
    %3699 = vmatmul.mubr.f32.gmra.mrb[0].mxu0 %v3436
    %v3700 = vpop.f32.mrb[0].mxu0
    %v3701 = vadd.f32 0.0, %v3700
    %v3702 = vpop.f32.mrb[0].mxu0
    %v3703 = vadd.f32 0.0, %v3702
    %3704 = vdwg.mxu0
    %3705 = vmatprep.subr.mxu0 %v3109
    %3706 = vmatpush1.msra.mxu0 %v3107
    %3707 = vmatprep.subr.mxu0 %v3115
    %3708 = vmatpush1.msra.mxu0 %v3113
    %3709 = vmatprep.subr.mxu0 0.0
    %3710 = vmatpush1.msra.mxu0 0.0
    %3711 = vmatprep.subr.mxu0 0.0
    %3712 = vmatpush1.msra.mxu0 0.0
    %3713 = vmatprep.subr.mxu0 0.0
    %3714 = vmatpush1.msra.mxu0 0.0
    %3715 = vmatprep.subr.mxu0 0.0
    %3716 = vmatpush1.msra.mxu0 0.0
    %3717 = vmatprep.subr.mxu0 0.0
    %3718 = vmatpush1.msra.mxu0 0.0
    %3719 = vmatprep.subr.mxu0 0.0
    %3720 = vmatpush1.msra.mxu0 0.0
    %3721 = vmatprep.subr.mxu0 0.0
    %3722 = vmatpush1.msra.mxu0 0.0
    %3723 = vmatprep.subr.mxu0 0.0
    %3724 = vmatpush1.msra.mxu0 0.0
    %3725 = vmatprep.subr.mxu0 0.0
    %3726 = vmatpush1.msra.mxu0 0.0
    %3727 = vmatprep.subr.mxu0 0.0
    %3728 = vmatpush1.msra.mxu0 0.0
    %3729 = vmatprep.subr.mxu0 0.0
    %3730 = vmatpush1.msra.mxu0 0.0
    %3731 = vmatprep.subr.mxu0 0.0
    %3732 = vmatpush1.msra.mxu0 0.0
    %3733 = vmatprep.subr.mxu0 0.0
    %3734 = vmatpush1.msra.mxu0 0.0
    %3735 = vmatprep.subr.mxu0 0.0
    %3736 = vmatpush1.msra.mxu0 0.0
    %3737 = vmatprep.subr.mxu0 0.0
    %3738 = vmatpush1.msra.mxu0 0.0
    %3739 = vmatprep.subr.mxu0 0.0
    %3740 = vmatpush1.msra.mxu0 0.0
    %3741 = vmatprep.subr.mxu0 0.0
    %3742 = vmatpush1.msra.mxu0 0.0
    %3743 = vmatprep.subr.mxu0 0.0
    %3744 = vmatpush1.msra.mxu0 0.0
    %3745 = vmatprep.subr.mxu0 0.0
    %3746 = vmatpush1.msra.mxu0 0.0
    %3747 = vmatprep.subr.mxu0 0.0
    %3748 = vmatpush1.msra.mxu0 0.0
    %3749 = vmatprep.subr.mxu0 0.0
    %3750 = vmatpush1.msra.mxu0 0.0
    %3751 = vmatprep.subr.mxu0 0.0
    %3752 = vmatpush1.msra.mxu0 0.0
    %3753 = vmatprep.subr.mxu0 0.0
    %3754 = vmatpush1.msra.mxu0 0.0
    %3755 = vmatprep.subr.mxu0 0.0
    %3756 = vmatpush1.msra.mxu0 0.0
    %3757 = vmatprep.subr.mxu0 0.0
    %3758 = vmatpush1.msra.mxu0 0.0
    %3759 = vmatprep.subr.mxu0 0.0
    %3760 = vmatpush1.msra.mxu0 0.0
    %3761 = vmatprep.subr.mxu0 0.0
    %3762 = vmatpush1.msra.mxu0 0.0
    %3763 = vmatprep.subr.mxu0 0.0
    %3764 = vmatpush1.msra.mxu0 0.0
    %3765 = vmatprep.subr.mxu0 0.0
    %3766 = vmatpush1.msra.mxu0 0.0
    %3767 = vmatprep.subr.mxu0 0.0
    %3768 = vmatpush1.msra.mxu0 0.0
    %3769 = vmatprep.mubr.f32.mxu0 0.0
    %3770 = vmatmul.mubr.f32.gmra.mrb[0].mxu0 %v3427
    %v3771 = vpop.f32.mrb[0].mxu0
    %v3772 = vadd.f32 0.0, %v3771
    %v3773 = vpop.f32.mrb[0].mxu0
    %v3774 = vadd.f32 0.0, %v3773
    %3775 = vmatprep.mubr.f32.mxu0 0.0
    %3776 = vmatmul.mubr.f32.gmra.mrb[0].mxu0 %v3430
    %v3777 = vpop.f32.mrb[0].mxu0
    %v3778 = vadd.f32 0.0, %v3777
    %v3779 = vpop.f32.mrb[0].mxu0
    %v3780 = vadd.f32 0.0, %v3779
    %3781 = vmatprep.mubr.f32.mxu0 0.0
    %3782 = vmatmul.mubr.f32.gmra.mrb[0].mxu0 %v3433
    %v3783 = vpop.f32.mrb[0].mxu0
    %v3784 = vadd.f32 0.0, %v3783
    %v3785 = vpop.f32.mrb[0].mxu0
    %v3786 = vadd.f32 0.0, %v3785
    %3787 = vmatprep.mubr.f32.mxu0 0.0
    %3788 = vmatmul.mubr.f32.gmra.mrb[0].mxu0 %v3436
    %v3789 = vpop.f32.mrb[0].mxu0
    %v3790 = vadd.f32 0.0, %v3789
    %v3791 = vpop.f32.mrb[0].mxu0
    %v3792 = vadd.f32 0.0, %v3791
    %3793 = vdwg.mxu0
    %3794 = vmatprep.subr.mxu0 %v3186
    %3795 = vmatpush1.msra.mxu0 %v3184
    %3796 = vmatprep.subr.mxu0 %v3192
    %3797 = vmatpush1.msra.mxu0 %v3190
    %3798 = vmatprep.subr.mxu0 0.0
    %3799 = vmatpush1.msra.mxu0 0.0
    %3800 = vmatprep.subr.mxu0 0.0
    %3801 = vmatpush1.msra.mxu0 0.0
    %3802 = vmatprep.subr.mxu0 0.0
    %3803 = vmatpush1.msra.mxu0 0.0
    %3804 = vmatprep.subr.mxu0 0.0
    %3805 = vmatpush1.msra.mxu0 0.0
    %3806 = vmatprep.subr.mxu0 0.0
    %3807 = vmatpush1.msra.mxu0 0.0
    %3808 = vmatprep.subr.mxu0 0.0
    %3809 = vmatpush1.msra.mxu0 0.0
    %3810 = vmatprep.subr.mxu0 0.0
    %3811 = vmatpush1.msra.mxu0 0.0
    %3812 = vmatprep.subr.mxu0 0.0
    %3813 = vmatpush1.msra.mxu0 0.0
    %3814 = vmatprep.subr.mxu0 0.0
    %3815 = vmatpush1.msra.mxu0 0.0
    %3816 = vmatprep.subr.mxu0 0.0
    %3817 = vmatpush1.msra.mxu0 0.0
    %3818 = vmatprep.subr.mxu0 0.0
    %3819 = vmatpush1.msra.mxu0 0.0
    %3820 = vmatprep.subr.mxu0 0.0
    %3821 = vmatpush1.msra.mxu0 0.0
    %3822 = vmatprep.subr.mxu0 0.0
    %3823 = vmatpush1.msra.mxu0 0.0
    %3824 = vmatprep.subr.mxu0 0.0
    %3825 = vmatpush1.msra.mxu0 0.0
    %3826 = vmatprep.subr.mxu0 0.0
    %3827 = vmatpush1.msra.mxu0 0.0
    %3828 = vmatprep.subr.mxu0 0.0
    %3829 = vmatpush1.msra.mxu0 0.0
    %3830 = vmatprep.subr.mxu0 0.0
    %3831 = vmatpush1.msra.mxu0 0.0
    %3832 = vmatprep.subr.mxu0 0.0
    %3833 = vmatpush1.msra.mxu0 0.0
    %3834 = vmatprep.subr.mxu0 0.0
    %3835 = vmatpush1.msra.mxu0 0.0
    %3836 = vmatprep.subr.mxu0 0.0
    %3837 = vmatpush1.msra.mxu0 0.0
    %3838 = vmatprep.subr.mxu0 0.0
    %3839 = vmatpush1.msra.mxu0 0.0
    %3840 = vmatprep.subr.mxu0 0.0
    %3841 = vmatpush1.msra.mxu0 0.0
    %3842 = vmatprep.subr.mxu0 0.0
    %3843 = vmatpush1.msra.mxu0 0.0
    %3844 = vmatprep.subr.mxu0 0.0
    %3845 = vmatpush1.msra.mxu0 0.0
    %3846 = vmatprep.subr.mxu0 0.0
    %3847 = vmatpush1.msra.mxu0 0.0
    %3848 = vmatprep.subr.mxu0 0.0
    %3849 = vmatpush1.msra.mxu0 0.0
    %3850 = vmatprep.subr.mxu0 0.0
    %3851 = vmatpush1.msra.mxu0 0.0
    %3852 = vmatprep.subr.mxu0 0.0
    %3853 = vmatpush1.msra.mxu0 0.0
    %3854 = vmatprep.subr.mxu0 0.0
    %3855 = vmatpush1.msra.mxu0 0.0
    %3856 = vmatprep.subr.mxu0 0.0
    %3857 = vmatpush1.msra.mxu0 0.0
    %3858 = vmatprep.mubr.f32.mxu0 0.0
    %3859 = vmatmul.mubr.f32.gmra.mrb[0].mxu0 %v3427
    %v3860 = vpop.f32.mrb[0].mxu0
    %v3861 = vadd.f32 0.0, %v3860
    %v3862 = vpop.f32.mrb[0].mxu0
    %v3863 = vadd.f32 0.0, %v3862
    %3864 = vmatprep.mubr.f32.mxu0 0.0
    %3865 = vmatmul.mubr.f32.gmra.mrb[0].mxu0 %v3430
    %v3866 = vpop.f32.mrb[0].mxu0
    %v3867 = vadd.f32 0.0, %v3866
    %v3868 = vpop.f32.mrb[0].mxu0
    %v3869 = vadd.f32 0.0, %v3868
    %3870 = vmatprep.mubr.f32.mxu0 0.0
    %3871 = vmatmul.mubr.f32.gmra.mrb[0].mxu0 %v3433
    %v3872 = vpop.f32.mrb[0].mxu0
    %v3873 = vadd.f32 0.0, %v3872
    %v3874 = vpop.f32.mrb[0].mxu0
    %v3875 = vadd.f32 0.0, %v3874
    %3876 = vmatprep.mubr.f32.mxu0 0.0
    %3877 = vmatmul.mubr.f32.gmra.mrb[0].mxu0 %v3436
    %v3878 = vpop.f32.mrb[0].mxu0
    %v3879 = vadd.f32 0.0, %v3878
    %v3880 = vpop.f32.mrb[0].mxu0
    %v3881 = vadd.f32 0.0, %v3880
    %3882 = vdwg.mxu0
    %3883 = vmatprep.subr.mxu0 %v3263
    %3884 = vmatpush1.msra.mxu0 %v3261
    %3885 = vmatprep.subr.mxu0 %v3269
    %3886 = vmatpush1.msra.mxu0 %v3267
    %3887 = vmatprep.subr.mxu0 0.0
    %3888 = vmatpush1.msra.mxu0 0.0
    %3889 = vmatprep.subr.mxu0 0.0
    %3890 = vmatpush1.msra.mxu0 0.0
    %3891 = vmatprep.subr.mxu0 0.0
    %3892 = vmatpush1.msra.mxu0 0.0
    %3893 = vmatprep.subr.mxu0 0.0
    %3894 = vmatpush1.msra.mxu0 0.0
    %3895 = vmatprep.subr.mxu0 0.0
    %3896 = vmatpush1.msra.mxu0 0.0
    %3897 = vmatprep.subr.mxu0 0.0
    %3898 = vmatpush1.msra.mxu0 0.0
    %3899 = vmatprep.subr.mxu0 0.0
    %3900 = vmatpush1.msra.mxu0 0.0
    %3901 = vmatprep.subr.mxu0 0.0
    %3902 = vmatpush1.msra.mxu0 0.0
    %3903 = vmatprep.subr.mxu0 0.0
    %3904 = vmatpush1.msra.mxu0 0.0
    %3905 = vmatprep.subr.mxu0 0.0
    %3906 = vmatpush1.msra.mxu0 0.0
    %3907 = vmatprep.subr.mxu0 0.0
    %3908 = vmatpush1.msra.mxu0 0.0
    %3909 = vmatprep.subr.mxu0 0.0
    %3910 = vmatpush1.msra.mxu0 0.0
    %3911 = vmatprep.subr.mxu0 0.0
    %3912 = vmatpush1.msra.mxu0 0.0
    %3913 = vmatprep.subr.mxu0 0.0
    %3914 = vmatpush1.msra.mxu0 0.0
    %3915 = vmatprep.subr.mxu0 0.0
    %3916 = vmatpush1.msra.mxu0 0.0
    %3917 = vmatprep.subr.mxu0 0.0
    %3918 = vmatpush1.msra.mxu0 0.0
    %3919 = vmatprep.subr.mxu0 0.0
    %3920 = vmatpush1.msra.mxu0 0.0
    %3921 = vmatprep.subr.mxu0 0.0
    %3922 = vmatpush1.msra.mxu0 0.0
    %3923 = vmatprep.subr.mxu0 0.0
    %3924 = vmatpush1.msra.mxu0 0.0
    %3925 = vmatprep.subr.mxu0 0.0
    %3926 = vmatpush1.msra.mxu0 0.0
    %3927 = vmatprep.subr.mxu0 0.0
    %3928 = vmatpush1.msra.mxu0 0.0
    %3929 = vmatprep.subr.mxu0 0.0
    %3930 = vmatpush1.msra.mxu0 0.0
    %3931 = vmatprep.subr.mxu0 0.0
    %3932 = vmatpush1.msra.mxu0 0.0
    %3933 = vmatprep.subr.mxu0 0.0
    %3934 = vmatpush1.msra.mxu0 0.0
    %3935 = vmatprep.subr.mxu0 0.0
    %3936 = vmatpush1.msra.mxu0 0.0
    %3937 = vmatprep.subr.mxu0 0.0
    %3938 = vmatpush1.msra.mxu0 0.0
    %3939 = vmatprep.subr.mxu0 0.0
    %3940 = vmatpush1.msra.mxu0 0.0
    %3941 = vmatprep.subr.mxu0 0.0
    %3942 = vmatpush1.msra.mxu0 0.0
    %3943 = vmatprep.subr.mxu0 0.0
    %3944 = vmatpush1.msra.mxu0 0.0
    %3945 = vmatprep.subr.mxu0 0.0
    %3946 = vmatpush1.msra.mxu0 0.0
    %3947 = vmatprep.mubr.f32.mxu0 0.0
    %3948 = vmatmul.mubr.f32.gmra.mrb[0].mxu0 %v3427
    %v3949 = vpop.f32.mrb[0].mxu0
    %v3950 = vadd.f32 0.0, %v3949
    %v3951 = vpop.f32.mrb[0].mxu0
    %v3952 = vadd.f32 0.0, %v3951
    %3953 = vmatprep.mubr.f32.mxu0 0.0
    %3954 = vmatmul.mubr.f32.gmra.mrb[0].mxu0 %v3430
    %v3955 = vpop.f32.mrb[0].mxu0
    %v3956 = vadd.f32 0.0, %v3955
    %v3957 = vpop.f32.mrb[0].mxu0
    %v3958 = vadd.f32 0.0, %v3957
    %3959 = vmatprep.mubr.f32.mxu0 0.0
    %3960 = vmatmul.mubr.f32.gmra.mrb[0].mxu0 %v3433
    %v3961 = vpop.f32.mrb[0].mxu0
    %v3962 = vadd.f32 0.0, %v3961
    %v3963 = vpop.f32.mrb[0].mxu0
    %v3964 = vadd.f32 0.0, %v3963
    %3965 = vmatprep.mubr.f32.mxu0 0.0
    %3966 = vmatmul.mubr.f32.gmra.mrb[0].mxu0 %v3436
    %v3967 = vpop.f32.mrb[0].mxu0
    %v3968 = vadd.f32 0.0, %v3967
    %v3969 = vpop.f32.mrb[0].mxu0
    %v3970 = vadd.f32 0.0, %v3969
    %3971 = vdwg.mxu0
    %3972 = vmatprep.subr.mxu0 %v3340
    %3973 = vmatpush1.msra.mxu0 %v3338
    %3974 = vmatprep.subr.mxu0 %v3346
    %3975 = vmatpush1.msra.mxu0 %v3344
    %3976 = vmatprep.subr.mxu0 0.0
    %3977 = vmatpush1.msra.mxu0 0.0
    %3978 = vmatprep.subr.mxu0 0.0
    %3979 = vmatpush1.msra.mxu0 0.0
    %3980 = vmatprep.subr.mxu0 0.0
    %3981 = vmatpush1.msra.mxu0 0.0
    %3982 = vmatprep.subr.mxu0 0.0
    %3983 = vmatpush1.msra.mxu0 0.0
    %3984 = vmatprep.subr.mxu0 0.0
    %3985 = vmatpush1.msra.mxu0 0.0
    %3986 = vmatprep.subr.mxu0 0.0
    %3987 = vmatpush1.msra.mxu0 0.0
    %3988 = vmatprep.subr.mxu0 0.0
    %3989 = vmatpush1.msra.mxu0 0.0
    %3990 = vmatprep.subr.mxu0 0.0
    %3991 = vmatpush1.msra.mxu0 0.0
    %3992 = vmatprep.subr.mxu0 0.0
    %3993 = vmatpush1.msra.mxu0 0.0
    %3994 = vmatprep.subr.mxu0 0.0
    %3995 = vmatpush1.msra.mxu0 0.0
    %3996 = vmatprep.subr.mxu0 0.0
    %3997 = vmatpush1.msra.mxu0 0.0
    %3998 = vmatprep.subr.mxu0 0.0
    %3999 = vmatpush1.msra.mxu0 0.0
    %4000 = vmatprep.subr.mxu0 0.0
    %4001 = vmatpush1.msra.mxu0 0.0
    %4002 = vmatprep.subr.mxu0 0.0
    %4003 = vmatpush1.msra.mxu0 0.0
    %4004 = vmatprep.subr.mxu0 0.0
    %4005 = vmatpush1.msra.mxu0 0.0
    %4006 = vmatprep.subr.mxu0 0.0
    %4007 = vmatpush1.msra.mxu0 0.0
    %4008 = vmatprep.subr.mxu0 0.0
    %4009 = vmatpush1.msra.mxu0 0.0
    %4010 = vmatprep.subr.mxu0 0.0
    %4011 = vmatpush1.msra.mxu0 0.0
    %4012 = vmatprep.subr.mxu0 0.0
    %4013 = vmatpush1.msra.mxu0 0.0
    %4014 = vmatprep.subr.mxu0 0.0
    %4015 = vmatpush1.msra.mxu0 0.0
    %4016 = vmatprep.subr.mxu0 0.0
    %4017 = vmatpush1.msra.mxu0 0.0
    %4018 = vmatprep.subr.mxu0 0.0
    %4019 = vmatpush1.msra.mxu0 0.0
    %4020 = vmatprep.subr.mxu0 0.0
    %4021 = vmatpush1.msra.mxu0 0.0
    %4022 = vmatprep.subr.mxu0 0.0
    %4023 = vmatpush1.msra.mxu0 0.0
    %4024 = vmatprep.subr.mxu0 0.0
    %4025 = vmatpush1.msra.mxu0 0.0
    %4026 = vmatprep.subr.mxu0 0.0
    %4027 = vmatpush1.msra.mxu0 0.0
    %4028 = vmatprep.subr.mxu0 0.0
    %4029 = vmatpush1.msra.mxu0 0.0
    %4030 = vmatprep.subr.mxu0 0.0
    %4031 = vmatpush1.msra.mxu0 0.0
    %4032 = vmatprep.subr.mxu0 0.0
    %4033 = vmatpush1.msra.mxu0 0.0
    %4034 = vmatprep.subr.mxu0 0.0
    %4035 = vmatpush1.msra.mxu0 0.0
    %4036 = vmatprep.mubr.f32.mxu0 0.0
    %4037 = vmatmul.mubr.f32.gmra.mrb[0].mxu0 %v3427
    %v4038 = vpop.f32.mrb[0].mxu0
    %v4039 = vadd.f32 0.0, %v4038
    %v4040 = vpop.f32.mrb[0].mxu0
    %v4041 = vadd.f32 0.0, %v4040
    %4042 = vmatprep.mubr.f32.mxu0 0.0
    %4043 = vmatmul.mubr.f32.gmra.mrb[0].mxu0 %v3430
    %v4044 = vpop.f32.mrb[0].mxu0
    %v4045 = vadd.f32 0.0, %v4044
    %v4046 = vpop.f32.mrb[0].mxu0
    %v4047 = vadd.f32 0.0, %v4046
    %4048 = vmatprep.mubr.f32.mxu0 0.0
    %4049 = vmatmul.mubr.f32.gmra.mrb[0].mxu0 %v3433
    %v4050 = vpop.f32.mrb[0].mxu0
    %v4051 = vadd.f32 0.0, %v4050
    %v4052 = vpop.f32.mrb[0].mxu0
    %v4053 = vadd.f32 0.0, %v4052
    %4054 = vmatprep.mubr.f32.mxu0 0.0
    %4055 = vmatmul.mubr.f32.gmra.mrb[0].mxu0 %v3436
    %v4056 = vpop.f32.mrb[0].mxu0
    %v4057 = vadd.f32 0.0, %v4056
    %v4058 = vpop.f32.mrb[0].mxu0
    %v4059 = vadd.f32 0.0, %v4058
    %4060 = vdwg.mxu0
    %4061 = vmatprep.subr.mxu0 %v3417
    %4062 = vmatpush1.msra.mxu0 %v3415
    %4063 = vmatprep.subr.mxu0 %v3423
    %4064 = vmatpush1.msra.mxu0 %v3421
    %4065 = vmatprep.subr.mxu0 0.0
    %4066 = vmatpush1.msra.mxu0 0.0
    %4067 = vmatprep.subr.mxu0 0.0
    %4068 = vmatpush1.msra.mxu0 0.0
    %4069 = vmatprep.subr.mxu0 0.0
    %4070 = vmatpush1.msra.mxu0 0.0
    %4071 = vmatprep.subr.mxu0 0.0
    %4072 = vmatpush1.msra.mxu0 0.0
    %4073 = vmatprep.subr.mxu0 0.0
    %4074 = vmatpush1.msra.mxu0 0.0
    %4075 = vmatprep.subr.mxu0 0.0
    %4076 = vmatpush1.msra.mxu0 0.0
    %4077 = vmatprep.subr.mxu0 0.0
    %4078 = vmatpush1.msra.mxu0 0.0
    %4079 = vmatprep.subr.mxu0 0.0
    %4080 = vmatpush1.msra.mxu0 0.0
    %4081 = vmatprep.subr.mxu0 0.0
    %4082 = vmatpush1.msra.mxu0 0.0
    %4083 = vmatprep.subr.mxu0 0.0
    %4084 = vmatpush1.msra.mxu0 0.0
    %4085 = vmatprep.subr.mxu0 0.0
    %4086 = vmatpush1.msra.mxu0 0.0
    %4087 = vmatprep.subr.mxu0 0.0
    %4088 = vmatpush1.msra.mxu0 0.0
    %4089 = vmatprep.subr.mxu0 0.0
    %4090 = vmatpush1.msra.mxu0 0.0
    %4091 = vmatprep.subr.mxu0 0.0
    %4092 = vmatpush1.msra.mxu0 0.0
    %4093 = vmatprep.subr.mxu0 0.0
    %4094 = vmatpush1.msra.mxu0 0.0
    %4095 = vmatprep.subr.mxu0 0.0
    %4096 = vmatpush1.msra.mxu0 0.0
    %4097 = vmatprep.subr.mxu0 0.0
    %4098 = vmatpush1.msra.mxu0 0.0
    %4099 = vmatprep.subr.mxu0 0.0
    %4100 = vmatpush1.msra.mxu0 0.0
    %4101 = vmatprep.subr.mxu0 0.0
    %4102 = vmatpush1.msra.mxu0 0.0
    %4103 = vmatprep.subr.mxu0 0.0
    %4104 = vmatpush1.msra.mxu0 0.0
    %4105 = vmatprep.subr.mxu0 0.0
    %4106 = vmatpush1.msra.mxu0 0.0
    %4107 = vmatprep.subr.mxu0 0.0
    %4108 = vmatpush1.msra.mxu0 0.0
    %4109 = vmatprep.subr.mxu0 0.0
    %4110 = vmatpush1.msra.mxu0 0.0
    %4111 = vmatprep.subr.mxu0 0.0
    %4112 = vmatpush1.msra.mxu0 0.0
    %4113 = vmatprep.subr.mxu0 0.0
    %4114 = vmatpush1.msra.mxu0 0.0
    %4115 = vmatprep.subr.mxu0 0.0
    %4116 = vmatpush1.msra.mxu0 0.0
    %4117 = vmatprep.subr.mxu0 0.0
    %4118 = vmatpush1.msra.mxu0 0.0
    %4119 = vmatprep.subr.mxu0 0.0
    %4120 = vmatpush1.msra.mxu0 0.0
    %4121 = vmatprep.subr.mxu0 0.0
    %4122 = vmatpush1.msra.mxu0 0.0
    %4123 = vmatprep.subr.mxu0 0.0
    %4124 = vmatpush1.msra.mxu0 0.0
    %4125 = vmatprep.mubr.f32.mxu0 0.0
    %4126 = vmatmul.mubr.f32.gmra.mrb[0].mxu0 %v3427
    %v4127 = vpop.f32.mrb[0].mxu0
    %v4128 = vadd.f32 0.0, %v4127
    %v4129 = vpop.f32.mrb[0].mxu0
    %v4130 = vadd.f32 0.0, %v4129
    %4131 = vmatprep.mubr.f32.mxu0 0.0
    %4132 = vmatmul.mubr.f32.gmra.mrb[0].mxu0 %v3430
    %v4133 = vpop.f32.mrb[0].mxu0
    %v4134 = vadd.f32 0.0, %v4133
    %v4135 = vpop.f32.mrb[0].mxu0
    %v4136 = vadd.f32 0.0, %v4135
    %4137 = vmatprep.mubr.f32.mxu0 0.0
    %4138 = vmatmul.mubr.f32.gmra.mrb[0].mxu0 %v3433
    %v4139 = vpop.f32.mrb[0].mxu0
    %v4140 = vadd.f32 0.0, %v4139
    %v4141 = vpop.f32.mrb[0].mxu0
    %v4142 = vadd.f32 0.0, %v4141
    %4143 = vmatprep.mubr.f32.mxu0 0.0
    %4144 = vmatmul.mubr.f32.gmra.mrb[0].mxu0 %v3436
    %v4145 = vpop.f32.mrb[0].mxu0
    %v4146 = vadd.f32 0.0, %v4145
    %v4147 = vpop.f32.mrb[0].mxu0
    %v4148 = vadd.f32 0.0, %v4147
    %4149 = vdwg.mxu0
    %v4150 = vmul.f32 %v2157, %v3505
    %v4151 = vmul.f32 %v2159, %v3507
    %v4152 = vmul.f32 %v2246, %v3594
    %v4153 = vmul.f32 %v2248, %v3596
    %v4154 = vmul.f32 %v2335, %v3683
    %v4155 = vmul.f32 %v2337, %v3685
    %v4156 = vmul.f32 %v2424, %v3772
    %v4157 = vmul.f32 %v2426, %v3774
    %v4158 = vmul.f32 %v2513, %v3861
    %v4159 = vmul.f32 %v2515, %v3863
    %v4160 = vmul.f32 %v2602, %v3950
    %v4161 = vmul.f32 %v2604, %v3952
    %v4162 = vmul.f32 %v2691, %v4039
    %v4163 = vmul.f32 %v2693, %v4041
    %v4164 = vmul.f32 %v2780, %v4128
    %v4165 = vmul.f32 %v2782, %v4130
    %v4166 = vmul.f32 %v2163, %v3511
    %v4167 = vmul.f32 %v2165, %v3513
    %v4168 = vmul.f32 %v2252, %v3600
    %v4169 = vmul.f32 %v2254, %v3602
    %v4170 = vmul.f32 %v2341, %v3689
    %v4171 = vmul.f32 %v2343, %v3691
    %v4172 = vmul.f32 %v2430, %v3778
    %v4173 = vmul.f32 %v2432, %v3780
    %v4174 = vmul.f32 %v2519, %v3867
    %v4175 = vmul.f32 %v2521, %v3869
    %v4176 = vmul.f32 %v2608, %v3956
    %v4177 = vmul.f32 %v2610, %v3958
    %v4178 = vmul.f32 %v2697, %v4045
    %v4179 = vmul.f32 %v2699, %v4047
    %v4180 = vmul.f32 %v2786, %v4134
    %v4181 = vmul.f32 %v2788, %v4136
    %v4182 = vmul.f32 %v2169, %v3517
    %v4183 = vmul.f32 %v2171, %v3519
    %v4184 = vmul.f32 %v2258, %v3606
    %v4185 = vmul.f32 %v2260, %v3608
    %v4186 = vmul.f32 %v2347, %v3695
    %v4187 = vmul.f32 %v2349, %v3697
    %v4188 = vmul.f32 %v2436, %v3784
    %v4189 = vmul.f32 %v2438, %v3786
    %v4190 = vmul.f32 %v2525, %v3873
    %v4191 = vmul.f32 %v2527, %v3875
    %v4192 = vmul.f32 %v2614, %v3962
    %v4193 = vmul.f32 %v2616, %v3964
    %v4194 = vmul.f32 %v2703, %v4051
    %v4195 = vmul.f32 %v2705, %v4053
    %v4196 = vmul.f32 %v2792, %v4140
    %v4197 = vmul.f32 %v2794, %v4142
    %v4198 = vmul.f32 %v2175, %v3523
    %v4199 = vmul.f32 %v2177, %v3525
    %v4200 = vmul.f32 %v2264, %v3612
    %v4201 = vmul.f32 %v2266, %v3614
    %v4202 = vmul.f32 %v2353, %v3701
    %v4203 = vmul.f32 %v2355, %v3703
    %v4204 = vmul.f32 %v2442, %v3790
    %v4205 = vmul.f32 %v2444, %v3792
    %v4206 = vmul.f32 %v2531, %v3879
    %v4207 = vmul.f32 %v2533, %v3881
    %v4208 = vmul.f32 %v2620, %v3968
    %v4209 = vmul.f32 %v2622, %v3970
    %v4210 = vmul.f32 %v2709, %v4057
    %v4211 = vmul.f32 %v2711, %v4059
    %v4212 = vmul.f32 %v2798, %v4146
    %v4213 = vmul.f32 %v2800, %v4148
    %4214 = vmatprep.subr.mxu0 0.0
    %4215 = vmatpush1.msra.mxu0 %v1821
    %4216 = vmatprep.subr.mxu0 0.0
    %4217 = vmatpush1.msra.mxu0 %v1822
    %4218 = vmatprep.subr.mxu0 0.0
    %4219 = vmatpush1.msra.mxu0 %v1823
    %4220 = vmatprep.subr.mxu0 0.0
    %4221 = vmatpush1.msra.mxu0 %v1824
    %4222 = vmatprep.subr.mxu0 0.0
    %4223 = vmatpush1.msra.mxu0 %v1825
    %4224 = vmatprep.subr.mxu0 0.0
    %4225 = vmatpush1.msra.mxu0 %v1826
    %4226 = vmatprep.subr.mxu0 0.0
    %4227 = vmatpush1.msra.mxu0 %v1827
    %4228 = vmatprep.subr.mxu0 0.0
    %4229 = vmatpush1.msra.mxu0 %v1828
    %4230 = vmatprep.subr.mxu0 0.0
    %4231 = vmatpush1.msra.mxu0 %v1829
    %4232 = vmatprep.subr.mxu0 0.0
    %4233 = vmatpush1.msra.mxu0 %v1830
    %4234 = vmatprep.subr.mxu0 0.0
    %4235 = vmatpush1.msra.mxu0 %v1831
    %4236 = vmatprep.subr.mxu0 0.0
    %4237 = vmatpush1.msra.mxu0 %v1832
    %4238 = vmatprep.subr.mxu0 0.0
    %4239 = vmatpush1.msra.mxu0 %v1833
    %4240 = vmatprep.subr.mxu0 0.0
    %4241 = vmatpush1.msra.mxu0 %v1834
    %4242 = vmatprep.subr.mxu0 0.0
    %4243 = vmatpush1.msra.mxu0 %v1835
    %4244 = vmatprep.subr.mxu0 0.0
    %4245 = vmatpush1.msra.mxu0 %v1836
    %4246 = vmatprep.subr.mxu0 0.0
    %4247 = vmatpush1.msra.mxu0 %v1837
    %4248 = vmatprep.subr.mxu0 0.0
    %4249 = vmatpush1.msra.mxu0 %v1838
    %4250 = vmatprep.subr.mxu0 0.0
    %4251 = vmatpush1.msra.mxu0 %v1839
    %4252 = vmatprep.subr.mxu0 0.0
    %4253 = vmatpush1.msra.mxu0 %v1840
    %4254 = vmatprep.subr.mxu0 0.0
    %4255 = vmatpush1.msra.mxu0 %v1841
    %4256 = vmatprep.subr.mxu0 0.0
    %4257 = vmatpush1.msra.mxu0 %v1842
    %4258 = vmatprep.subr.mxu0 0.0
    %4259 = vmatpush1.msra.mxu0 %v1843
    %4260 = vmatprep.subr.mxu0 0.0
    %4261 = vmatpush1.msra.mxu0 %v1844
    %4262 = vmatprep.subr.mxu0 0.0
    %4263 = vmatpush1.msra.mxu0 %v1845
    %4264 = vmatprep.subr.mxu0 0.0
    %4265 = vmatpush1.msra.mxu0 %v1846
    %4266 = vmatprep.subr.mxu0 0.0
    %4267 = vmatpush1.msra.mxu0 %v1847
    %4268 = vmatprep.subr.mxu0 0.0
    %4269 = vmatpush1.msra.mxu0 %v1848
    %4270 = vmatprep.subr.mxu0 0.0
    %4271 = vmatpush1.msra.mxu0 %v1849
    %4272 = vmatprep.subr.mxu0 0.0
    %4273 = vmatpush1.msra.mxu0 %v1850
    %4274 = vmatprep.subr.mxu0 0.0
    %4275 = vmatpush1.msra.mxu0 %v1851
    %4276 = vmatprep.subr.mxu0 0.0
    %4277 = vmatpush1.msra.mxu0 %v1852
    %4278 = vmatprep.mubr.f32.mxu0 %v4151
    %4279 = vmatmul.mubr.f32.gmra.mrb[0].mxu0 %v4150
    %v4280 = vpop.f32.mrb[0].mxu0
    %v4281 = vadd.f32 0.0, %v4280
    %v4282 = vpop.f32.mrb[0].mxu0
    %4283 = vmatprep.mubr.f32.mxu0 %v4167
    %4284 = vmatmul.mubr.f32.gmra.mrb[0].mxu0 %v4166
    %v4285 = vpop.f32.mrb[0].mxu0
    %v4286 = vadd.f32 0.0, %v4285
    %v4287 = vpop.f32.mrb[0].mxu0
    %4288 = vmatprep.mubr.f32.mxu0 %v4183
    %4289 = vmatmul.mubr.f32.gmra.mrb[0].mxu0 %v4182
    %v4290 = vpop.f32.mrb[0].mxu0
    %v4291 = vadd.f32 0.0, %v4290
    %v4292 = vpop.f32.mrb[0].mxu0
    %4293 = vmatprep.mubr.f32.mxu0 %v4199
    %4294 = vmatmul.mubr.f32.gmra.mrb[0].mxu0 %v4198
    %v4295 = vpop.f32.mrb[0].mxu0
    %v4296 = vadd.f32 0.0, %v4295
    %v4297 = vpop.f32.mrb[0].mxu0
    %4298 = vdwg.mxu0
    %4299 = vmatprep.subr.mxu0 0.0
    %4300 = vmatpush1.msra.mxu0 %v1853
    %4301 = vmatprep.subr.mxu0 0.0
    %4302 = vmatpush1.msra.mxu0 %v1854
    %4303 = vmatprep.subr.mxu0 0.0
    %4304 = vmatpush1.msra.mxu0 %v1855
    %4305 = vmatprep.subr.mxu0 0.0
    %4306 = vmatpush1.msra.mxu0 %v1856
    %4307 = vmatprep.subr.mxu0 0.0
    %4308 = vmatpush1.msra.mxu0 %v1857
    %4309 = vmatprep.subr.mxu0 0.0
    %4310 = vmatpush1.msra.mxu0 %v1858
    %4311 = vmatprep.subr.mxu0 0.0
    %4312 = vmatpush1.msra.mxu0 %v1859
    %4313 = vmatprep.subr.mxu0 0.0
    %4314 = vmatpush1.msra.mxu0 %v1860
    %4315 = vmatprep.subr.mxu0 0.0
    %4316 = vmatpush1.msra.mxu0 %v1861
    %4317 = vmatprep.subr.mxu0 0.0
    %4318 = vmatpush1.msra.mxu0 %v1862
    %4319 = vmatprep.subr.mxu0 0.0
    %4320 = vmatpush1.msra.mxu0 %v1863
    %4321 = vmatprep.subr.mxu0 0.0
    %4322 = vmatpush1.msra.mxu0 %v1864
    %4323 = vmatprep.subr.mxu0 0.0
    %4324 = vmatpush1.msra.mxu0 %v1865
    %4325 = vmatprep.subr.mxu0 0.0
    %4326 = vmatpush1.msra.mxu0 %v1866
    %4327 = vmatprep.subr.mxu0 0.0
    %4328 = vmatpush1.msra.mxu0 %v1867
    %4329 = vmatprep.subr.mxu0 0.0
    %4330 = vmatpush1.msra.mxu0 %v1868
    %4331 = vmatprep.subr.mxu0 0.0
    %4332 = vmatpush1.msra.mxu0 %v1869
    %4333 = vmatprep.subr.mxu0 0.0
    %4334 = vmatpush1.msra.mxu0 %v1870
    %4335 = vmatprep.subr.mxu0 0.0
    %4336 = vmatpush1.msra.mxu0 %v1871
    %4337 = vmatprep.subr.mxu0 0.0
    %4338 = vmatpush1.msra.mxu0 %v1872
    %4339 = vmatprep.subr.mxu0 0.0
    %4340 = vmatpush1.msra.mxu0 %v1873
    %4341 = vmatprep.subr.mxu0 0.0
    %4342 = vmatpush1.msra.mxu0 %v1874
    %4343 = vmatprep.subr.mxu0 0.0
    %4344 = vmatpush1.msra.mxu0 %v1875
    %4345 = vmatprep.subr.mxu0 0.0
    %4346 = vmatpush1.msra.mxu0 %v1876
    %4347 = vmatprep.subr.mxu0 0.0
    %4348 = vmatpush1.msra.mxu0 %v1877
    %4349 = vmatprep.subr.mxu0 0.0
    %4350 = vmatpush1.msra.mxu0 %v1878
    %4351 = vmatprep.subr.mxu0 0.0
    %4352 = vmatpush1.msra.mxu0 %v1879
    %4353 = vmatprep.subr.mxu0 0.0
    %4354 = vmatpush1.msra.mxu0 %v1880
    %4355 = vmatprep.subr.mxu0 0.0
    %4356 = vmatpush1.msra.mxu0 %v1881
    %4357 = vmatprep.subr.mxu0 0.0
    %4358 = vmatpush1.msra.mxu0 %v1882
    %4359 = vmatprep.subr.mxu0 0.0
    %4360 = vmatpush1.msra.mxu0 %v1883
    %4361 = vmatprep.subr.mxu0 0.0
    %4362 = vmatpush1.msra.mxu0 %v1884
    %4363 = vmatprep.mubr.f32.mxu0 %v4153
    %4364 = vmatmul.mubr.f32.gmra.mrb[0].mxu0 %v4152
    %v4365 = vpop.f32.mrb[0].mxu0
    %v4366 = vadd.f32 %v4281, %v4365
    %v4367 = vpop.f32.mrb[0].mxu0
    %4368 = vmatprep.mubr.f32.mxu0 %v4169
    %4369 = vmatmul.mubr.f32.gmra.mrb[0].mxu0 %v4168
    %v4370 = vpop.f32.mrb[0].mxu0
    %v4371 = vadd.f32 %v4286, %v4370
    %v4372 = vpop.f32.mrb[0].mxu0
    %4373 = vmatprep.mubr.f32.mxu0 %v4185
    %4374 = vmatmul.mubr.f32.gmra.mrb[0].mxu0 %v4184
    %v4375 = vpop.f32.mrb[0].mxu0
    %v4376 = vadd.f32 %v4291, %v4375
    %v4377 = vpop.f32.mrb[0].mxu0
    %4378 = vmatprep.mubr.f32.mxu0 %v4201
    %4379 = vmatmul.mubr.f32.gmra.mrb[0].mxu0 %v4200
    %v4380 = vpop.f32.mrb[0].mxu0
    %v4381 = vadd.f32 %v4296, %v4380
    %v4382 = vpop.f32.mrb[0].mxu0
    %4383 = vdwg.mxu0
    %4384 = vmatprep.subr.mxu0 0.0
    %4385 = vmatpush1.msra.mxu0 %v1885
    %4386 = vmatprep.subr.mxu0 0.0
    %4387 = vmatpush1.msra.mxu0 %v1886
    %4388 = vmatprep.subr.mxu0 0.0
    %4389 = vmatpush1.msra.mxu0 %v1887
    %4390 = vmatprep.subr.mxu0 0.0
    %4391 = vmatpush1.msra.mxu0 %v1888
    %4392 = vmatprep.subr.mxu0 0.0
    %4393 = vmatpush1.msra.mxu0 %v1889
    %4394 = vmatprep.subr.mxu0 0.0
    %4395 = vmatpush1.msra.mxu0 %v1890
    %4396 = vmatprep.subr.mxu0 0.0
    %4397 = vmatpush1.msra.mxu0 %v1891
    %4398 = vmatprep.subr.mxu0 0.0
    %4399 = vmatpush1.msra.mxu0 %v1892
    %4400 = vmatprep.subr.mxu0 0.0
    %4401 = vmatpush1.msra.mxu0 %v1893
    %4402 = vmatprep.subr.mxu0 0.0
    %4403 = vmatpush1.msra.mxu0 %v1894
    %4404 = vmatprep.subr.mxu0 0.0
    %4405 = vmatpush1.msra.mxu0 %v1895
    %4406 = vmatprep.subr.mxu0 0.0
    %4407 = vmatpush1.msra.mxu0 %v1896
    %4408 = vmatprep.subr.mxu0 0.0
    %4409 = vmatpush1.msra.mxu0 %v1897
    %4410 = vmatprep.subr.mxu0 0.0
    %4411 = vmatpush1.msra.mxu0 %v1898
    %4412 = vmatprep.subr.mxu0 0.0
    %4413 = vmatpush1.msra.mxu0 %v1899
    %4414 = vmatprep.subr.mxu0 0.0
    %4415 = vmatpush1.msra.mxu0 %v1900
    %4416 = vmatprep.subr.mxu0 0.0
    %4417 = vmatpush1.msra.mxu0 %v1901
    %4418 = vmatprep.subr.mxu0 0.0
    %4419 = vmatpush1.msra.mxu0 %v1902
    %4420 = vmatprep.subr.mxu0 0.0
    %4421 = vmatpush1.msra.mxu0 %v1903
    %4422 = vmatprep.subr.mxu0 0.0
    %4423 = vmatpush1.msra.mxu0 %v1904
    %4424 = vmatprep.subr.mxu0 0.0
    %4425 = vmatpush1.msra.mxu0 %v1905
    %4426 = vmatprep.subr.mxu0 0.0
    %4427 = vmatpush1.msra.mxu0 %v1906
    %4428 = vmatprep.subr.mxu0 0.0
    %4429 = vmatpush1.msra.mxu0 %v1907
    %4430 = vmatprep.subr.mxu0 0.0
    %4431 = vmatpush1.msra.mxu0 %v1908
    %4432 = vmatprep.subr.mxu0 0.0
    %4433 = vmatpush1.msra.mxu0 %v1909
    %4434 = vmatprep.subr.mxu0 0.0
    %4435 = vmatpush1.msra.mxu0 %v1910
    %4436 = vmatprep.subr.mxu0 0.0
    %4437 = vmatpush1.msra.mxu0 %v1911
    %4438 = vmatprep.subr.mxu0 0.0
    %4439 = vmatpush1.msra.mxu0 %v1912
    %4440 = vmatprep.subr.mxu0 0.0
    %4441 = vmatpush1.msra.mxu0 %v1913
    %4442 = vmatprep.subr.mxu0 0.0
    %4443 = vmatpush1.msra.mxu0 %v1914
    %4444 = vmatprep.subr.mxu0 0.0
    %4445 = vmatpush1.msra.mxu0 %v1915
    %4446 = vmatprep.subr.mxu0 0.0
    %4447 = vmatpush1.msra.mxu0 %v1916
    %4448 = vmatprep.mubr.f32.mxu0 %v4155
    %4449 = vmatmul.mubr.f32.gmra.mrb[0].mxu0 %v4154
    %v4450 = vpop.f32.mrb[0].mxu0
    %v4451 = vadd.f32 %v4366, %v4450
    %v4452 = vpop.f32.mrb[0].mxu0
    %4453 = vmatprep.mubr.f32.mxu0 %v4171
    %4454 = vmatmul.mubr.f32.gmra.mrb[0].mxu0 %v4170
    %v4455 = vpop.f32.mrb[0].mxu0
    %v4456 = vadd.f32 %v4371, %v4455
    %v4457 = vpop.f32.mrb[0].mxu0
    %4458 = vmatprep.mubr.f32.mxu0 %v4187
    %4459 = vmatmul.mubr.f32.gmra.mrb[0].mxu0 %v4186
    %v4460 = vpop.f32.mrb[0].mxu0
    %v4461 = vadd.f32 %v4376, %v4460
    %v4462 = vpop.f32.mrb[0].mxu0
    %4463 = vmatprep.mubr.f32.mxu0 %v4203
    %4464 = vmatmul.mubr.f32.gmra.mrb[0].mxu0 %v4202
    %v4465 = vpop.f32.mrb[0].mxu0
    %v4466 = vadd.f32 %v4381, %v4465
    %v4467 = vpop.f32.mrb[0].mxu0
    %4468 = vdwg.mxu0
    %4469 = vmatprep.subr.mxu0 0.0
    %4470 = vmatpush1.msra.mxu0 %v1917
    %4471 = vmatprep.subr.mxu0 0.0
    %4472 = vmatpush1.msra.mxu0 %v1918
    %4473 = vmatprep.subr.mxu0 0.0
    %4474 = vmatpush1.msra.mxu0 %v1919
    %4475 = vmatprep.subr.mxu0 0.0
    %4476 = vmatpush1.msra.mxu0 %v1920
    %4477 = vmatprep.subr.mxu0 0.0
    %4478 = vmatpush1.msra.mxu0 %v1921
    %4479 = vmatprep.subr.mxu0 0.0
    %4480 = vmatpush1.msra.mxu0 %v1922
    %4481 = vmatprep.subr.mxu0 0.0
    %4482 = vmatpush1.msra.mxu0 %v1923
    %4483 = vmatprep.subr.mxu0 0.0
    %4484 = vmatpush1.msra.mxu0 %v1924
    %4485 = vmatprep.subr.mxu0 0.0
    %4486 = vmatpush1.msra.mxu0 %v1925
    %4487 = vmatprep.subr.mxu0 0.0
    %4488 = vmatpush1.msra.mxu0 %v1926
    %4489 = vmatprep.subr.mxu0 0.0
    %4490 = vmatpush1.msra.mxu0 %v1927
    %4491 = vmatprep.subr.mxu0 0.0
    %4492 = vmatpush1.msra.mxu0 %v1928
    %4493 = vmatprep.subr.mxu0 0.0
    %4494 = vmatpush1.msra.mxu0 %v1929
    %4495 = vmatprep.subr.mxu0 0.0
    %4496 = vmatpush1.msra.mxu0 %v1930
    %4497 = vmatprep.subr.mxu0 0.0
    %4498 = vmatpush1.msra.mxu0 %v1931
    %4499 = vmatprep.subr.mxu0 0.0
    %4500 = vmatpush1.msra.mxu0 %v1932
    %4501 = vmatprep.subr.mxu0 0.0
    %4502 = vmatpush1.msra.mxu0 %v1933
    %4503 = vmatprep.subr.mxu0 0.0
    %4504 = vmatpush1.msra.mxu0 %v1934
    %4505 = vmatprep.subr.mxu0 0.0
    %4506 = vmatpush1.msra.mxu0 %v1935
    %4507 = vmatprep.subr.mxu0 0.0
    %4508 = vmatpush1.msra.mxu0 %v1936
    %4509 = vmatprep.subr.mxu0 0.0
    %4510 = vmatpush1.msra.mxu0 %v1937
    %4511 = vmatprep.subr.mxu0 0.0
    %4512 = vmatpush1.msra.mxu0 %v1938
    %4513 = vmatprep.subr.mxu0 0.0
    %4514 = vmatpush1.msra.mxu0 %v1939
    %4515 = vmatprep.subr.mxu0 0.0
    %4516 = vmatpush1.msra.mxu0 %v1940
    %4517 = vmatprep.subr.mxu0 0.0
    %4518 = vmatpush1.msra.mxu0 %v1941
    %4519 = vmatprep.subr.mxu0 0.0
    %4520 = vmatpush1.msra.mxu0 %v1942
    %4521 = vmatprep.subr.mxu0 0.0
    %4522 = vmatpush1.msra.mxu0 %v1943
    %4523 = vmatprep.subr.mxu0 0.0
    %4524 = vmatpush1.msra.mxu0 %v1944
    %4525 = vmatprep.subr.mxu0 0.0
    %4526 = vmatpush1.msra.mxu0 %v1945
    %4527 = vmatprep.subr.mxu0 0.0
    %4528 = vmatpush1.msra.mxu0 %v1946
    %4529 = vmatprep.subr.mxu0 0.0
    %4530 = vmatpush1.msra.mxu0 %v1947
    %4531 = vmatprep.subr.mxu0 0.0
    %4532 = vmatpush1.msra.mxu0 %v1948
    %4533 = vmatprep.mubr.f32.mxu0 %v4157
    %4534 = vmatmul.mubr.f32.gmra.mrb[0].mxu0 %v4156
    %v4535 = vpop.f32.mrb[0].mxu0
    %v4536 = vadd.f32 %v4451, %v4535
    %v4537 = vpop.f32.mrb[0].mxu0
    %4538 = vmatprep.mubr.f32.mxu0 %v4173
    %4539 = vmatmul.mubr.f32.gmra.mrb[0].mxu0 %v4172
    %v4540 = vpop.f32.mrb[0].mxu0
    %v4541 = vadd.f32 %v4456, %v4540
    %v4542 = vpop.f32.mrb[0].mxu0
    %4543 = vmatprep.mubr.f32.mxu0 %v4189
    %4544 = vmatmul.mubr.f32.gmra.mrb[0].mxu0 %v4188
    %v4545 = vpop.f32.mrb[0].mxu0
    %v4546 = vadd.f32 %v4461, %v4545
    %v4547 = vpop.f32.mrb[0].mxu0
    %4548 = vmatprep.mubr.f32.mxu0 %v4205
    %4549 = vmatmul.mubr.f32.gmra.mrb[0].mxu0 %v4204
    %v4550 = vpop.f32.mrb[0].mxu0
    %v4551 = vadd.f32 %v4466, %v4550
    %v4552 = vpop.f32.mrb[0].mxu0
    %4553 = vdwg.mxu0
    %4554 = vmatprep.subr.mxu0 0.0
    %4555 = vmatpush1.msra.mxu0 %v1949
    %4556 = vmatprep.subr.mxu0 0.0
    %4557 = vmatpush1.msra.mxu0 %v1950
    %4558 = vmatprep.subr.mxu0 0.0
    %4559 = vmatpush1.msra.mxu0 %v1951
    %4560 = vmatprep.subr.mxu0 0.0
    %4561 = vmatpush1.msra.mxu0 %v1952
    %4562 = vmatprep.subr.mxu0 0.0
    %4563 = vmatpush1.msra.mxu0 %v1953
    %4564 = vmatprep.subr.mxu0 0.0
    %4565 = vmatpush1.msra.mxu0 %v1954
    %4566 = vmatprep.subr.mxu0 0.0
    %4567 = vmatpush1.msra.mxu0 %v1955
    %4568 = vmatprep.subr.mxu0 0.0
    %4569 = vmatpush1.msra.mxu0 %v1956
    %4570 = vmatprep.subr.mxu0 0.0
    %4571 = vmatpush1.msra.mxu0 %v1957
    %4572 = vmatprep.subr.mxu0 0.0
    %4573 = vmatpush1.msra.mxu0 %v1958
    %4574 = vmatprep.subr.mxu0 0.0
    %4575 = vmatpush1.msra.mxu0 %v1959
    %4576 = vmatprep.subr.mxu0 0.0
    %4577 = vmatpush1.msra.mxu0 %v1960
    %4578 = vmatprep.subr.mxu0 0.0
    %4579 = vmatpush1.msra.mxu0 %v1961
    %4580 = vmatprep.subr.mxu0 0.0
    %4581 = vmatpush1.msra.mxu0 %v1962
    %4582 = vmatprep.subr.mxu0 0.0
    %4583 = vmatpush1.msra.mxu0 %v1963
    %4584 = vmatprep.subr.mxu0 0.0
    %4585 = vmatpush1.msra.mxu0 %v1964
    %4586 = vmatprep.subr.mxu0 0.0
    %4587 = vmatpush1.msra.mxu0 %v1965
    %4588 = vmatprep.subr.mxu0 0.0
    %4589 = vmatpush1.msra.mxu0 %v1966
    %4590 = vmatprep.subr.mxu0 0.0
    %4591 = vmatpush1.msra.mxu0 %v1967
    %4592 = vmatprep.subr.mxu0 0.0
    %4593 = vmatpush1.msra.mxu0 %v1968
    %4594 = vmatprep.subr.mxu0 0.0
    %4595 = vmatpush1.msra.mxu0 %v1969
    %4596 = vmatprep.subr.mxu0 0.0
    %4597 = vmatpush1.msra.mxu0 %v1970
    %4598 = vmatprep.subr.mxu0 0.0
    %4599 = vmatpush1.msra.mxu0 %v1971
    %4600 = vmatprep.subr.mxu0 0.0
    %4601 = vmatpush1.msra.mxu0 %v1972
    %4602 = vmatprep.subr.mxu0 0.0
    %4603 = vmatpush1.msra.mxu0 %v1973
    %4604 = vmatprep.subr.mxu0 0.0
    %4605 = vmatpush1.msra.mxu0 %v1974
    %4606 = vmatprep.subr.mxu0 0.0
    %4607 = vmatpush1.msra.mxu0 %v1975
    %4608 = vmatprep.subr.mxu0 0.0
    %4609 = vmatpush1.msra.mxu0 %v1976
    %4610 = vmatprep.subr.mxu0 0.0
    %4611 = vmatpush1.msra.mxu0 %v1977
    %4612 = vmatprep.subr.mxu0 0.0
    %4613 = vmatpush1.msra.mxu0 %v1978
    %4614 = vmatprep.subr.mxu0 0.0
    %4615 = vmatpush1.msra.mxu0 %v1979
    %4616 = vmatprep.subr.mxu0 0.0
    %4617 = vmatpush1.msra.mxu0 %v1980
    %4618 = vmatprep.mubr.f32.mxu0 %v4159
    %4619 = vmatmul.mubr.f32.gmra.mrb[0].mxu0 %v4158
    %v4620 = vpop.f32.mrb[0].mxu0
    %v4621 = vadd.f32 %v4536, %v4620
    %v4622 = vpop.f32.mrb[0].mxu0
    %4623 = vmatprep.mubr.f32.mxu0 %v4175
    %4624 = vmatmul.mubr.f32.gmra.mrb[0].mxu0 %v4174
    %v4625 = vpop.f32.mrb[0].mxu0
    %v4626 = vadd.f32 %v4541, %v4625
    %v4627 = vpop.f32.mrb[0].mxu0
    %4628 = vmatprep.mubr.f32.mxu0 %v4191
    %4629 = vmatmul.mubr.f32.gmra.mrb[0].mxu0 %v4190
    %v4630 = vpop.f32.mrb[0].mxu0
    %v4631 = vadd.f32 %v4546, %v4630
    %v4632 = vpop.f32.mrb[0].mxu0
    %4633 = vmatprep.mubr.f32.mxu0 %v4207
    %4634 = vmatmul.mubr.f32.gmra.mrb[0].mxu0 %v4206
    %v4635 = vpop.f32.mrb[0].mxu0
    %v4636 = vadd.f32 %v4551, %v4635
    %v4637 = vpop.f32.mrb[0].mxu0
    %4638 = vdwg.mxu0
    %4639 = vmatprep.subr.mxu0 0.0
    %4640 = vmatpush1.msra.mxu0 %v1981
    %4641 = vmatprep.subr.mxu0 0.0
    %4642 = vmatpush1.msra.mxu0 %v1982
    %4643 = vmatprep.subr.mxu0 0.0
    %4644 = vmatpush1.msra.mxu0 %v1983
    %4645 = vmatprep.subr.mxu0 0.0
    %4646 = vmatpush1.msra.mxu0 %v1984
    %4647 = vmatprep.subr.mxu0 0.0
    %4648 = vmatpush1.msra.mxu0 %v1985
    %4649 = vmatprep.subr.mxu0 0.0
    %4650 = vmatpush1.msra.mxu0 %v1986
    %4651 = vmatprep.subr.mxu0 0.0
    %4652 = vmatpush1.msra.mxu0 %v1987
    %4653 = vmatprep.subr.mxu0 0.0
    %4654 = vmatpush1.msra.mxu0 %v1988
    %4655 = vmatprep.subr.mxu0 0.0
    %4656 = vmatpush1.msra.mxu0 %v1989
    %4657 = vmatprep.subr.mxu0 0.0
    %4658 = vmatpush1.msra.mxu0 %v1990
    %4659 = vmatprep.subr.mxu0 0.0
    %4660 = vmatpush1.msra.mxu0 %v1991
    %4661 = vmatprep.subr.mxu0 0.0
    %4662 = vmatpush1.msra.mxu0 %v1992
    %4663 = vmatprep.subr.mxu0 0.0
    %4664 = vmatpush1.msra.mxu0 %v1993
    %4665 = vmatprep.subr.mxu0 0.0
    %4666 = vmatpush1.msra.mxu0 %v1994
    %4667 = vmatprep.subr.mxu0 0.0
    %4668 = vmatpush1.msra.mxu0 %v1995
    %4669 = vmatprep.subr.mxu0 0.0
    %4670 = vmatpush1.msra.mxu0 %v1996
    %4671 = vmatprep.subr.mxu0 0.0
    %4672 = vmatpush1.msra.mxu0 %v1997
    %4673 = vmatprep.subr.mxu0 0.0
    %4674 = vmatpush1.msra.mxu0 %v1998
    %4675 = vmatprep.subr.mxu0 0.0
    %4676 = vmatpush1.msra.mxu0 %v1999
    %4677 = vmatprep.subr.mxu0 0.0
    %4678 = vmatpush1.msra.mxu0 %v2000
    %4679 = vmatprep.subr.mxu0 0.0
    %4680 = vmatpush1.msra.mxu0 %v2001
    %4681 = vmatprep.subr.mxu0 0.0
    %4682 = vmatpush1.msra.mxu0 %v2002
    %4683 = vmatprep.subr.mxu0 0.0
    %4684 = vmatpush1.msra.mxu0 %v2003
    %4685 = vmatprep.subr.mxu0 0.0
    %4686 = vmatpush1.msra.mxu0 %v2004
    %4687 = vmatprep.subr.mxu0 0.0
    %4688 = vmatpush1.msra.mxu0 %v2005
    %4689 = vmatprep.subr.mxu0 0.0
    %4690 = vmatpush1.msra.mxu0 %v2006
    %4691 = vmatprep.subr.mxu0 0.0
    %4692 = vmatpush1.msra.mxu0 %v2007
    %4693 = vmatprep.subr.mxu0 0.0
    %4694 = vmatpush1.msra.mxu0 %v2008
    %4695 = vmatprep.subr.mxu0 0.0
    %4696 = vmatpush1.msra.mxu0 %v2009
    %4697 = vmatprep.subr.mxu0 0.0
    %4698 = vmatpush1.msra.mxu0 %v2010
    %4699 = vmatprep.subr.mxu0 0.0
    %4700 = vmatpush1.msra.mxu0 %v2011
    %4701 = vmatprep.subr.mxu0 0.0
    %4702 = vmatpush1.msra.mxu0 %v2012
    %4703 = vmatprep.mubr.f32.mxu0 %v4161
    %4704 = vmatmul.mubr.f32.gmra.mrb[0].mxu0 %v4160
    %v4705 = vpop.f32.mrb[0].mxu0
    %v4706 = vadd.f32 %v4621, %v4705
    %v4707 = vpop.f32.mrb[0].mxu0
    %4708 = vmatprep.mubr.f32.mxu0 %v4177
    %4709 = vmatmul.mubr.f32.gmra.mrb[0].mxu0 %v4176
    %v4710 = vpop.f32.mrb[0].mxu0
    %v4711 = vadd.f32 %v4626, %v4710
    %v4712 = vpop.f32.mrb[0].mxu0
    %4713 = vmatprep.mubr.f32.mxu0 %v4193
    %4714 = vmatmul.mubr.f32.gmra.mrb[0].mxu0 %v4192
    %v4715 = vpop.f32.mrb[0].mxu0
    %v4716 = vadd.f32 %v4631, %v4715
    %v4717 = vpop.f32.mrb[0].mxu0
    %4718 = vmatprep.mubr.f32.mxu0 %v4209
    %4719 = vmatmul.mubr.f32.gmra.mrb[0].mxu0 %v4208
    %v4720 = vpop.f32.mrb[0].mxu0
    %v4721 = vadd.f32 %v4636, %v4720
    %v4722 = vpop.f32.mrb[0].mxu0
    %4723 = vdwg.mxu0
    %4724 = vmatprep.subr.mxu0 0.0
    %4725 = vmatpush1.msra.mxu0 %v2013
    %4726 = vmatprep.subr.mxu0 0.0
    %4727 = vmatpush1.msra.mxu0 %v2014
    %4728 = vmatprep.subr.mxu0 0.0
    %4729 = vmatpush1.msra.mxu0 %v2015
    %4730 = vmatprep.subr.mxu0 0.0
    %4731 = vmatpush1.msra.mxu0 %v2016
    %4732 = vmatprep.subr.mxu0 0.0
    %4733 = vmatpush1.msra.mxu0 %v2017
    %4734 = vmatprep.subr.mxu0 0.0
    %4735 = vmatpush1.msra.mxu0 %v2018
    %4736 = vmatprep.subr.mxu0 0.0
    %4737 = vmatpush1.msra.mxu0 %v2019
    %4738 = vmatprep.subr.mxu0 0.0
    %4739 = vmatpush1.msra.mxu0 %v2020
    %4740 = vmatprep.subr.mxu0 0.0
    %4741 = vmatpush1.msra.mxu0 %v2021
    %4742 = vmatprep.subr.mxu0 0.0
    %4743 = vmatpush1.msra.mxu0 %v2022
    %4744 = vmatprep.subr.mxu0 0.0
    %4745 = vmatpush1.msra.mxu0 %v2023
    %4746 = vmatprep.subr.mxu0 0.0
    %4747 = vmatpush1.msra.mxu0 %v2024
    %4748 = vmatprep.subr.mxu0 0.0
    %4749 = vmatpush1.msra.mxu0 %v2025
    %4750 = vmatprep.subr.mxu0 0.0
    %4751 = vmatpush1.msra.mxu0 %v2026
    %4752 = vmatprep.subr.mxu0 0.0
    %4753 = vmatpush1.msra.mxu0 %v2027
    %4754 = vmatprep.subr.mxu0 0.0
    %4755 = vmatpush1.msra.mxu0 %v2028
    %4756 = vmatprep.subr.mxu0 0.0
    %4757 = vmatpush1.msra.mxu0 %v2029
    %4758 = vmatprep.subr.mxu0 0.0
    %4759 = vmatpush1.msra.mxu0 %v2030
    %4760 = vmatprep.subr.mxu0 0.0
    %4761 = vmatpush1.msra.mxu0 %v2031
    %4762 = vmatprep.subr.mxu0 0.0
    %4763 = vmatpush1.msra.mxu0 %v2032
    %4764 = vmatprep.subr.mxu0 0.0
    %4765 = vmatpush1.msra.mxu0 %v2033
    %4766 = vmatprep.subr.mxu0 0.0
    %4767 = vmatpush1.msra.mxu0 %v2034
    %4768 = vmatprep.subr.mxu0 0.0
    %4769 = vmatpush1.msra.mxu0 %v2035
    %4770 = vmatprep.subr.mxu0 0.0
    %4771 = vmatpush1.msra.mxu0 %v2036
    %4772 = vmatprep.subr.mxu0 0.0
    %4773 = vmatpush1.msra.mxu0 %v2037
    %4774 = vmatprep.subr.mxu0 0.0
    %4775 = vmatpush1.msra.mxu0 %v2038
    %4776 = vmatprep.subr.mxu0 0.0
    %4777 = vmatpush1.msra.mxu0 %v2039
    %4778 = vmatprep.subr.mxu0 0.0
    %4779 = vmatpush1.msra.mxu0 %v2040
    %4780 = vmatprep.subr.mxu0 0.0
    %4781 = vmatpush1.msra.mxu0 %v2041
    %4782 = vmatprep.subr.mxu0 0.0
    %4783 = vmatpush1.msra.mxu0 %v2042
    %4784 = vmatprep.subr.mxu0 0.0
    %4785 = vmatpush1.msra.mxu0 %v2043
    %4786 = vmatprep.subr.mxu0 0.0
    %4787 = vmatpush1.msra.mxu0 %v2044
    %4788 = vmatprep.mubr.f32.mxu0 %v4163
    %4789 = vmatmul.mubr.f32.gmra.mrb[0].mxu0 %v4162
    %v4790 = vpop.f32.mrb[0].mxu0
    %v4791 = vadd.f32 %v4706, %v4790
    %v4792 = vpop.f32.mrb[0].mxu0
    %4793 = vmatprep.mubr.f32.mxu0 %v4179
    %4794 = vmatmul.mubr.f32.gmra.mrb[0].mxu0 %v4178
    %v4795 = vpop.f32.mrb[0].mxu0
    %v4796 = vadd.f32 %v4711, %v4795
    %v4797 = vpop.f32.mrb[0].mxu0
    %4798 = vmatprep.mubr.f32.mxu0 %v4195
    %4799 = vmatmul.mubr.f32.gmra.mrb[0].mxu0 %v4194
    %v4800 = vpop.f32.mrb[0].mxu0
    %v4801 = vadd.f32 %v4716, %v4800
    %v4802 = vpop.f32.mrb[0].mxu0
    %4803 = vmatprep.mubr.f32.mxu0 %v4211
    %4804 = vmatmul.mubr.f32.gmra.mrb[0].mxu0 %v4210
    %v4805 = vpop.f32.mrb[0].mxu0
    %v4806 = vadd.f32 %v4721, %v4805
    %v4807 = vpop.f32.mrb[0].mxu0
    %4808 = vdwg.mxu0
    %4809 = vmatprep.subr.mxu0 0.0
    %4810 = vmatpush1.msra.mxu0 %v2045
    %4811 = vmatprep.subr.mxu0 0.0
    %4812 = vmatpush1.msra.mxu0 %v2046
    %4813 = vmatprep.subr.mxu0 0.0
    %4814 = vmatpush1.msra.mxu0 %v2047
    %4815 = vmatprep.subr.mxu0 0.0
    %4816 = vmatpush1.msra.mxu0 %v2048
    %4817 = vmatprep.subr.mxu0 0.0
    %4818 = vmatpush1.msra.mxu0 %v2049
    %4819 = vmatprep.subr.mxu0 0.0
    %4820 = vmatpush1.msra.mxu0 %v2050
    %4821 = vmatprep.subr.mxu0 0.0
    %4822 = vmatpush1.msra.mxu0 %v2051
    %4823 = vmatprep.subr.mxu0 0.0
    %4824 = vmatpush1.msra.mxu0 %v2052
    %4825 = vmatprep.subr.mxu0 0.0
    %4826 = vmatpush1.msra.mxu0 %v2053
    %4827 = vmatprep.subr.mxu0 0.0
    %4828 = vmatpush1.msra.mxu0 %v2054
    %4829 = vmatprep.subr.mxu0 0.0
    %4830 = vmatpush1.msra.mxu0 %v2055
    %4831 = vmatprep.subr.mxu0 0.0
    %4832 = vmatpush1.msra.mxu0 %v2056
    %4833 = vmatprep.subr.mxu0 0.0
    %4834 = vmatpush1.msra.mxu0 %v2057
    %4835 = vmatprep.subr.mxu0 0.0
    %4836 = vmatpush1.msra.mxu0 %v2058
    %4837 = vmatprep.subr.mxu0 0.0
    %4838 = vmatpush1.msra.mxu0 %v2059
    %4839 = vmatprep.subr.mxu0 0.0
    %4840 = vmatpush1.msra.mxu0 %v2060
    %4841 = vmatprep.subr.mxu0 0.0
    %4842 = vmatpush1.msra.mxu0 %v2061
    %4843 = vmatprep.subr.mxu0 0.0
    %4844 = vmatpush1.msra.mxu0 %v2062
    %4845 = vmatprep.subr.mxu0 0.0
    %4846 = vmatpush1.msra.mxu0 %v2063
    %4847 = vmatprep.subr.mxu0 0.0
    %4848 = vmatpush1.msra.mxu0 %v2064
    %4849 = vmatprep.subr.mxu0 0.0
    %4850 = vmatpush1.msra.mxu0 %v2065
    %4851 = vmatprep.subr.mxu0 0.0
    %4852 = vmatpush1.msra.mxu0 %v2066
    %4853 = vmatprep.subr.mxu0 0.0
    %4854 = vmatpush1.msra.mxu0 %v2067
    %4855 = vmatprep.subr.mxu0 0.0
    %4856 = vmatpush1.msra.mxu0 %v2068
    %4857 = vmatprep.subr.mxu0 0.0
    %4858 = vmatpush1.msra.mxu0 %v2069
    %4859 = vmatprep.subr.mxu0 0.0
    %4860 = vmatpush1.msra.mxu0 %v2070
    %4861 = vmatprep.subr.mxu0 0.0
    %4862 = vmatpush1.msra.mxu0 %v2071
    %4863 = vmatprep.subr.mxu0 0.0
    %4864 = vmatpush1.msra.mxu0 %v2072
    %4865 = vmatprep.subr.mxu0 0.0
    %4866 = vmatpush1.msra.mxu0 %v2073
    %4867 = vmatprep.subr.mxu0 0.0
    %4868 = vmatpush1.msra.mxu0 %v2074
    %4869 = vmatprep.subr.mxu0 0.0
    %4870 = vmatpush1.msra.mxu0 %v2075
    %4871 = vmatprep.subr.mxu0 0.0
    %4872 = vmatpush1.msra.mxu0 %v2076
    %4873 = vmatprep.mubr.f32.mxu0 %v4165
    %4874 = vmatmul.mubr.f32.gmra.mrb[0].mxu0 %v4164
    %v4875 = vpop.f32.mrb[0].mxu0
    %v4876 = vadd.f32 %v4791, %v4875
    %v4877 = vpop.f32.mrb[0].mxu0
    %4878 = vmatprep.mubr.f32.mxu0 %v4181
    %4879 = vmatmul.mubr.f32.gmra.mrb[0].mxu0 %v4180
    %v4880 = vpop.f32.mrb[0].mxu0
    %v4881 = vadd.f32 %v4796, %v4880
    %v4882 = vpop.f32.mrb[0].mxu0
    %4883 = vmatprep.mubr.f32.mxu0 %v4197
    %4884 = vmatmul.mubr.f32.gmra.mrb[0].mxu0 %v4196
    %v4885 = vpop.f32.mrb[0].mxu0
    %v4886 = vadd.f32 %v4801, %v4885
    %v4887 = vpop.f32.mrb[0].mxu0
    %4888 = vmatprep.mubr.f32.mxu0 %v4213
    %4889 = vmatmul.mubr.f32.gmra.mrb[0].mxu0 %v4212
    %v4890 = vpop.f32.mrb[0].mxu0
    %v4891 = vadd.f32 %v4806, %v4890
    %v4892 = vpop.f32.mrb[0].mxu0
    %4893 = vdwg.mxu0
    %4894 = vmatprep.subr.mxu0 0.0
    %4895 = vmatpush1.msra.mxu0 %v106
    %4896 = vmatprep.subr.mxu0 0.0
    %4897 = vmatpush1.msra.mxu0 %v107
    %4898 = vmatprep.subr.mxu0 0.0
    %4899 = vmatpush1.msra.mxu0 %v108
    %4900 = vmatprep.subr.mxu0 0.0
    %4901 = vmatpush1.msra.mxu0 %v109
    %4902 = vmatprep.subr.mxu0 0.0
    %4903 = vmatpush1.msra.mxu0 %v110
    %4904 = vmatprep.subr.mxu0 0.0
    %4905 = vmatpush1.msra.mxu0 %v111
    %4906 = vmatprep.subr.mxu0 0.0
    %4907 = vmatpush1.msra.mxu0 %v112
    %4908 = vmatprep.subr.mxu0 0.0
    %4909 = vmatpush1.msra.mxu0 %v113
    %4910 = vmatprep.subr.mxu0 0.0
    %4911 = vmatpush1.msra.mxu0 0.0
    %4912 = vmatprep.subr.mxu0 0.0
    %4913 = vmatpush1.msra.mxu0 0.0
    %4914 = vmatprep.subr.mxu0 0.0
    %4915 = vmatpush1.msra.mxu0 0.0
    %4916 = vmatprep.subr.mxu0 0.0
    %4917 = vmatpush1.msra.mxu0 0.0
    %4918 = vmatprep.subr.mxu0 0.0
    %4919 = vmatpush1.msra.mxu0 0.0
    %4920 = vmatprep.subr.mxu0 0.0
    %4921 = vmatpush1.msra.mxu0 0.0
    %4922 = vmatprep.subr.mxu0 0.0
    %4923 = vmatpush1.msra.mxu0 0.0
    %4924 = vmatprep.subr.mxu0 0.0
    %4925 = vmatpush1.msra.mxu0 0.0
    %4926 = vmatprep.subr.mxu0 0.0
    %4927 = vmatpush1.msra.mxu0 0.0
    %4928 = vmatprep.subr.mxu0 0.0
    %4929 = vmatpush1.msra.mxu0 0.0
    %4930 = vmatprep.subr.mxu0 0.0
    %4931 = vmatpush1.msra.mxu0 0.0
    %4932 = vmatprep.subr.mxu0 0.0
    %4933 = vmatpush1.msra.mxu0 0.0
    %4934 = vmatprep.subr.mxu0 0.0
    %4935 = vmatpush1.msra.mxu0 0.0
    %4936 = vmatprep.subr.mxu0 0.0
    %4937 = vmatpush1.msra.mxu0 0.0
    %4938 = vmatprep.subr.mxu0 0.0
    %4939 = vmatpush1.msra.mxu0 0.0
    %4940 = vmatprep.subr.mxu0 0.0
    %4941 = vmatpush1.msra.mxu0 0.0
    %4942 = vmatprep.subr.mxu0 0.0
    %4943 = vmatpush1.msra.mxu0 0.0
    %4944 = vmatprep.subr.mxu0 0.0
    %4945 = vmatpush1.msra.mxu0 0.0
    %4946 = vmatprep.subr.mxu0 0.0
    %4947 = vmatpush1.msra.mxu0 0.0
    %4948 = vmatprep.subr.mxu0 0.0
    %4949 = vmatpush1.msra.mxu0 0.0
    %4950 = vmatprep.subr.mxu0 0.0
    %4951 = vmatpush1.msra.mxu0 0.0
    %4952 = vmatprep.subr.mxu0 0.0
    %4953 = vmatpush1.msra.mxu0 0.0
    %4954 = vmatprep.subr.mxu0 0.0
    %4955 = vmatpush1.msra.mxu0 0.0
    %4956 = vmatprep.subr.mxu0 0.0
    %4957 = vmatpush1.msra.mxu0 0.0
    %4958 = vmatprep.mubr.f32.mxu0 0.0
    %4959 = vmatmul.mubr.f32.gmra.mrb[0].mxu0 %v2804
    %v4960 = vpop.f32.mrb[0].mxu0
    %v4961 = vadd.f32 0.0, %v4960
    %v4962 = vpop.f32.mrb[0].mxu0
    %4963 = vmatprep.mubr.f32.mxu0 0.0
    %4964 = vmatmul.mubr.f32.gmra.mrb[0].mxu0 %v2807
    %v4965 = vpop.f32.mrb[0].mxu0
    %v4966 = vadd.f32 0.0, %v4965
    %v4967 = vpop.f32.mrb[0].mxu0
    %4968 = vdwg.mxu0
    %v4970 = vsel %vm3425, %v104, 0
    %v4973 = vsel %vm3425, %v105, 0
    %4975 = vmatprep.subr.mxu0 0.0
    %4976 = vmatpush1.msra.mxu0 %v4961
    %4977 = vmatprep.subr.mxu0 0.0
    %4978 = vmatpush1.msra.mxu0 %v4966
    %4979 = vmatprep.subr.mxu0 0.0
    %4980 = vmatpush1.msra.mxu0 0.0
    %4981 = vmatprep.subr.mxu0 0.0
    %4982 = vmatpush1.msra.mxu0 0.0
    %4983 = vmatprep.subr.mxu0 0.0
    %4984 = vmatpush1.msra.mxu0 0.0
    %4985 = vmatprep.subr.mxu0 0.0
    %4986 = vmatpush1.msra.mxu0 0.0
    %4987 = vmatprep.subr.mxu0 0.0
    %4988 = vmatpush1.msra.mxu0 0.0
    %4989 = vmatprep.subr.mxu0 0.0
    %4990 = vmatpush1.msra.mxu0 0.0
    %4991 = vmatprep.subr.mxu0 0.0
    %4992 = vmatpush1.msra.mxu0 0.0
    %4993 = vmatprep.subr.mxu0 0.0
    %4994 = vmatpush1.msra.mxu0 0.0
    %4995 = vmatprep.subr.mxu0 0.0
    %4996 = vmatpush1.msra.mxu0 0.0
    %4997 = vmatprep.subr.mxu0 0.0
    %4998 = vmatpush1.msra.mxu0 0.0
    %4999 = vmatprep.subr.mxu0 0.0
    %5000 = vmatpush1.msra.mxu0 0.0
    %5001 = vmatprep.subr.mxu0 0.0
    %5002 = vmatpush1.msra.mxu0 0.0
    %5003 = vmatprep.subr.mxu0 0.0
    %5004 = vmatpush1.msra.mxu0 0.0
    %5005 = vmatprep.subr.mxu0 0.0
    %5006 = vmatpush1.msra.mxu0 0.0
    %5007 = vmatprep.subr.mxu0 0.0
    %5008 = vmatpush1.msra.mxu0 0.0
    %5009 = vmatprep.subr.mxu0 0.0
    %5010 = vmatpush1.msra.mxu0 0.0
    %5011 = vmatprep.subr.mxu0 0.0
    %5012 = vmatpush1.msra.mxu0 0.0
    %5013 = vmatprep.subr.mxu0 0.0
    %5014 = vmatpush1.msra.mxu0 0.0
    %5015 = vmatprep.subr.mxu0 0.0
    %5016 = vmatpush1.msra.mxu0 0.0
    %5017 = vmatprep.subr.mxu0 0.0
    %5018 = vmatpush1.msra.mxu0 0.0
    %5019 = vmatprep.subr.mxu0 0.0
    %5020 = vmatpush1.msra.mxu0 0.0
    %5021 = vmatprep.subr.mxu0 0.0
    %5022 = vmatpush1.msra.mxu0 0.0
    %5023 = vmatprep.subr.mxu0 0.0
    %5024 = vmatpush1.msra.mxu0 0.0
    %5025 = vmatprep.subr.mxu0 0.0
    %5026 = vmatpush1.msra.mxu0 0.0
    %5027 = vmatprep.subr.mxu0 0.0
    %5028 = vmatpush1.msra.mxu0 0.0
    %5029 = vmatprep.subr.mxu0 0.0
    %5030 = vmatpush1.msra.mxu0 0.0
    %5031 = vmatprep.subr.mxu0 0.0
    %5032 = vmatpush1.msra.mxu0 0.0
    %5033 = vmatprep.subr.mxu0 0.0
    %5034 = vmatpush1.msra.mxu0 0.0
    %5035 = vmatprep.subr.mxu0 0.0
    %5036 = vmatpush1.msra.mxu0 0.0
    %5037 = vmatprep.subr.mxu0 0.0
    %5038 = vmatpush1.msra.mxu0 0.0
    %5039 = vmatprep.mubr.f32.mxu0 0.0
    %5040 = vmatmul.mubr.f32.gmra.mrb[0].mxu0 %v4970
    %v5041 = vpop.f32.mrb[0].mxu0
    %v5042 = vadd.f32 0.0, %v5041
    %v5043 = vpop.f32.mrb[0].mxu0
    %5044 = vmatprep.mubr.f32.mxu0 0.0
    %5045 = vmatmul.mubr.f32.gmra.mrb[0].mxu0 %v4973
    %v5046 = vpop.f32.mrb[0].mxu0
    %v5047 = vadd.f32 0.0, %v5046
    %v5048 = vpop.f32.mrb[0].mxu0
    %5049 = vdwg.mxu0
    %v5051 = vsel %vm2077, %v102, 0
    %v5054 = vsel %vm2077, %v103, 0
    %5056 = vmatprep.subr.mxu0 0.0
    %5057 = vmatpush1.msra.mxu0 %v4876
    %5058 = vmatprep.subr.mxu0 0.0
    %5059 = vmatpush1.msra.mxu0 %v4881
    %5060 = vmatprep.subr.mxu0 0.0
    %5061 = vmatpush1.msra.mxu0 %v4886
    %5062 = vmatprep.subr.mxu0 0.0
    %5063 = vmatpush1.msra.mxu0 %v4891
    %5064 = vmatprep.subr.mxu0 0.0
    %5065 = vmatpush1.msra.mxu0 0.0
    %5066 = vmatprep.subr.mxu0 0.0
    %5067 = vmatpush1.msra.mxu0 0.0
    %5068 = vmatprep.subr.mxu0 0.0
    %5069 = vmatpush1.msra.mxu0 0.0
    %5070 = vmatprep.subr.mxu0 0.0
    %5071 = vmatpush1.msra.mxu0 0.0
    %5072 = vmatprep.subr.mxu0 0.0
    %5073 = vmatpush1.msra.mxu0 0.0
    %5074 = vmatprep.subr.mxu0 0.0
    %5075 = vmatpush1.msra.mxu0 0.0
    %5076 = vmatprep.subr.mxu0 0.0
    %5077 = vmatpush1.msra.mxu0 0.0
    %5078 = vmatprep.subr.mxu0 0.0
    %5079 = vmatpush1.msra.mxu0 0.0
    %5080 = vmatprep.subr.mxu0 0.0
    %5081 = vmatpush1.msra.mxu0 0.0
    %5082 = vmatprep.subr.mxu0 0.0
    %5083 = vmatpush1.msra.mxu0 0.0
    %5084 = vmatprep.subr.mxu0 0.0
    %5085 = vmatpush1.msra.mxu0 0.0
    %5086 = vmatprep.subr.mxu0 0.0
    %5087 = vmatpush1.msra.mxu0 0.0
    %5088 = vmatprep.subr.mxu0 0.0
    %5089 = vmatpush1.msra.mxu0 0.0
    %5090 = vmatprep.subr.mxu0 0.0
    %5091 = vmatpush1.msra.mxu0 0.0
    %5092 = vmatprep.subr.mxu0 0.0
    %5093 = vmatpush1.msra.mxu0 0.0
    %5094 = vmatprep.subr.mxu0 0.0
    %5095 = vmatpush1.msra.mxu0 0.0
    %5096 = vmatprep.subr.mxu0 0.0
    %5097 = vmatpush1.msra.mxu0 0.0
    %5098 = vmatprep.subr.mxu0 0.0
    %5099 = vmatpush1.msra.mxu0 0.0
    %5100 = vmatprep.subr.mxu0 0.0
    %5101 = vmatpush1.msra.mxu0 0.0
    %5102 = vmatprep.subr.mxu0 0.0
    %5103 = vmatpush1.msra.mxu0 0.0
    %5104 = vmatprep.subr.mxu0 0.0
    %5105 = vmatpush1.msra.mxu0 0.0
    %5106 = vmatprep.subr.mxu0 0.0
    %5107 = vmatpush1.msra.mxu0 0.0
    %5108 = vmatprep.subr.mxu0 0.0
    %5109 = vmatpush1.msra.mxu0 0.0
    %5110 = vmatprep.subr.mxu0 0.0
    %5111 = vmatpush1.msra.mxu0 0.0
    %5112 = vmatprep.subr.mxu0 0.0
    %5113 = vmatpush1.msra.mxu0 0.0
    %5114 = vmatprep.subr.mxu0 0.0
    %5115 = vmatpush1.msra.mxu0 0.0
    %5116 = vmatprep.subr.mxu0 0.0
    %5117 = vmatpush1.msra.mxu0 0.0
    %5118 = vmatprep.subr.mxu0 0.0
    %5119 = vmatpush1.msra.mxu0 0.0
    %5120 = vmatprep.mubr.f32.mxu0 0.0
    %5121 = vmatmul.mubr.f32.gmra.mrb[0].mxu0 %v5051
    %v5122 = vpop.f32.mrb[0].mxu0
    %v5123 = vadd.f32 %v5042, %v5122
    %v5124 = vpop.f32.mrb[0].mxu0
    %5125 = vmatprep.mubr.f32.mxu0 0.0
    %5126 = vmatmul.mubr.f32.gmra.mrb[0].mxu0 %v5054
    %v5127 = vpop.f32.mrb[0].mxu0
    %v5128 = vadd.f32 %v5047, %v5127
    %v5129 = vpop.f32.mrb[0].mxu0
    %5130 = vdwg.mxu0
    %5131 = vmatprep.subr.mxu0 0.0
    %5132 = vmatpush1.msra.mxu0 %v115
    %5133 = vmatprep.subr.mxu0 0.0
    %5134 = vmatpush1.msra.mxu0 %v116
    %5135 = vmatprep.subr.mxu0 0.0
    %5136 = vmatpush1.msra.mxu0 %v117
    %5137 = vmatprep.subr.mxu0 0.0
    %5138 = vmatpush1.msra.mxu0 %v118
    %5139 = vmatprep.subr.mxu0 0.0
    %5140 = vmatpush1.msra.mxu0 %v119
    %5141 = vmatprep.subr.mxu0 0.0
    %5142 = vmatpush1.msra.mxu0 %v120
    %5143 = vmatprep.subr.mxu0 0.0
    %5144 = vmatpush1.msra.mxu0 %v121
    %5145 = vmatprep.subr.mxu0 0.0
    %5146 = vmatpush1.msra.mxu0 %v122
    %5147 = vmatprep.subr.mxu0 0.0
    %5148 = vmatpush1.msra.mxu0 0.0
    %5149 = vmatprep.subr.mxu0 0.0
    %5150 = vmatpush1.msra.mxu0 0.0
    %5151 = vmatprep.subr.mxu0 0.0
    %5152 = vmatpush1.msra.mxu0 0.0
    %5153 = vmatprep.subr.mxu0 0.0
    %5154 = vmatpush1.msra.mxu0 0.0
    %5155 = vmatprep.subr.mxu0 0.0
    %5156 = vmatpush1.msra.mxu0 0.0
    %5157 = vmatprep.subr.mxu0 0.0
    %5158 = vmatpush1.msra.mxu0 0.0
    %5159 = vmatprep.subr.mxu0 0.0
    %5160 = vmatpush1.msra.mxu0 0.0
    %5161 = vmatprep.subr.mxu0 0.0
    %5162 = vmatpush1.msra.mxu0 0.0
    %5163 = vmatprep.subr.mxu0 0.0
    %5164 = vmatpush1.msra.mxu0 0.0
    %5165 = vmatprep.subr.mxu0 0.0
    %5166 = vmatpush1.msra.mxu0 0.0
    %5167 = vmatprep.subr.mxu0 0.0
    %5168 = vmatpush1.msra.mxu0 0.0
    %5169 = vmatprep.subr.mxu0 0.0
    %5170 = vmatpush1.msra.mxu0 0.0
    %5171 = vmatprep.subr.mxu0 0.0
    %5172 = vmatpush1.msra.mxu0 0.0
    %5173 = vmatprep.subr.mxu0 0.0
    %5174 = vmatpush1.msra.mxu0 0.0
    %5175 = vmatprep.subr.mxu0 0.0
    %5176 = vmatpush1.msra.mxu0 0.0
    %5177 = vmatprep.subr.mxu0 0.0
    %5178 = vmatpush1.msra.mxu0 0.0
    %5179 = vmatprep.subr.mxu0 0.0
    %5180 = vmatpush1.msra.mxu0 0.0
    %5181 = vmatprep.subr.mxu0 0.0
    %5182 = vmatpush1.msra.mxu0 0.0
    %5183 = vmatprep.subr.mxu0 0.0
    %5184 = vmatpush1.msra.mxu0 0.0
    %5185 = vmatprep.subr.mxu0 0.0
    %5186 = vmatpush1.msra.mxu0 0.0
    %5187 = vmatprep.subr.mxu0 0.0
    %5188 = vmatpush1.msra.mxu0 0.0
    %5189 = vmatprep.subr.mxu0 0.0
    %5190 = vmatpush1.msra.mxu0 0.0
    %5191 = vmatprep.subr.mxu0 0.0
    %5192 = vmatpush1.msra.mxu0 0.0
    %5193 = vmatprep.subr.mxu0 0.0
    %5194 = vmatpush1.msra.mxu0 0.0
    %5195 = vmatprep.mubr.f32.mxu0 0.0
    %5196 = vmatmul.mubr.f32.gmra.mrb[0].mxu0 %v2804
    %v5197 = vpop.f32.mrb[0].mxu0
    %v5198 = vadd.f32 0.0, %v5197
    %v5199 = vpop.f32.mrb[0].mxu0
    %5200 = vmatprep.mubr.f32.mxu0 0.0
    %5201 = vmatmul.mubr.f32.gmra.mrb[0].mxu0 %v2807
    %v5202 = vpop.f32.mrb[0].mxu0
    %v5203 = vadd.f32 0.0, %v5202
    %v5204 = vpop.f32.mrb[0].mxu0
    %5205 = vdwg.mxu0
    %v5206 = vadd.f32 %v5123, %v5198
    %v5207 = vadd.f32 %v5128, %v5203
    %v5208 = vadd.f32 %v5206, %v73
    %v5209 = vadd.f32 %v5207, %v73
    %v5210 = vmax.f32 %v5208, 0.0
    %v5211 = vmax.f32 %v5209, 0.0
    %v5213 = vsel %vm2802, %v5210, 0
    %v5216 = vsel %vm2802, %v5211, 0
    %5218 = vmatprep.subr.mxu0 0.0
    %5219 = vmatpush1.msra.mxu0 %v132
    %5220 = vmatprep.subr.mxu0 0.0
    %5221 = vmatpush1.msra.mxu0 %v133
    %5222 = vmatprep.subr.mxu0 0.0
    %5223 = vmatpush1.msra.mxu0 %v134
    %5224 = vmatprep.subr.mxu0 0.0
    %5225 = vmatpush1.msra.mxu0 %v135
    %5226 = vmatprep.subr.mxu0 0.0
    %5227 = vmatpush1.msra.mxu0 %v136
    %5228 = vmatprep.subr.mxu0 0.0
    %5229 = vmatpush1.msra.mxu0 %v137
    %5230 = vmatprep.subr.mxu0 0.0
    %5231 = vmatpush1.msra.mxu0 %v138
    %5232 = vmatprep.subr.mxu0 0.0
    %5233 = vmatpush1.msra.mxu0 %v139
    %5234 = vmatprep.subr.mxu0 0.0
    %5235 = vmatpush1.msra.mxu0 0.0
    %5236 = vmatprep.subr.mxu0 0.0
    %5237 = vmatpush1.msra.mxu0 0.0
    %5238 = vmatprep.subr.mxu0 0.0
    %5239 = vmatpush1.msra.mxu0 0.0
    %5240 = vmatprep.subr.mxu0 0.0
    %5241 = vmatpush1.msra.mxu0 0.0
    %5242 = vmatprep.subr.mxu0 0.0
    %5243 = vmatpush1.msra.mxu0 0.0
    %5244 = vmatprep.subr.mxu0 0.0
    %5245 = vmatpush1.msra.mxu0 0.0
    %5246 = vmatprep.subr.mxu0 0.0
    %5247 = vmatpush1.msra.mxu0 0.0
    %5248 = vmatprep.subr.mxu0 0.0
    %5249 = vmatpush1.msra.mxu0 0.0
    %5250 = vmatprep.subr.mxu0 0.0
    %5251 = vmatpush1.msra.mxu0 0.0
    %5252 = vmatprep.subr.mxu0 0.0
    %5253 = vmatpush1.msra.mxu0 0.0
    %5254 = vmatprep.subr.mxu0 0.0
    %5255 = vmatpush1.msra.mxu0 0.0
    %5256 = vmatprep.subr.mxu0 0.0
    %5257 = vmatpush1.msra.mxu0 0.0
    %5258 = vmatprep.subr.mxu0 0.0
    %5259 = vmatpush1.msra.mxu0 0.0
    %5260 = vmatprep.subr.mxu0 0.0
    %5261 = vmatpush1.msra.mxu0 0.0
    %5262 = vmatprep.subr.mxu0 0.0
    %5263 = vmatpush1.msra.mxu0 0.0
    %5264 = vmatprep.subr.mxu0 0.0
    %5265 = vmatpush1.msra.mxu0 0.0
    %5266 = vmatprep.subr.mxu0 0.0
    %5267 = vmatpush1.msra.mxu0 0.0
    %5268 = vmatprep.subr.mxu0 0.0
    %5269 = vmatpush1.msra.mxu0 0.0
    %5270 = vmatprep.subr.mxu0 0.0
    %5271 = vmatpush1.msra.mxu0 0.0
    %5272 = vmatprep.subr.mxu0 0.0
    %5273 = vmatpush1.msra.mxu0 0.0
    %5274 = vmatprep.subr.mxu0 0.0
    %5275 = vmatpush1.msra.mxu0 0.0
    %5276 = vmatprep.subr.mxu0 0.0
    %5277 = vmatpush1.msra.mxu0 0.0
    %5278 = vmatprep.subr.mxu0 0.0
    %5279 = vmatpush1.msra.mxu0 0.0
    %5280 = vmatprep.subr.mxu0 0.0
    %5281 = vmatpush1.msra.mxu0 0.0
    %5282 = vmatprep.mubr.f32.mxu0 0.0
    %5283 = vmatmul.mubr.f32.gmra.mrb[0].mxu0 %v5213
    %v5284 = vpop.f32.mrb[0].mxu0
    %v5285 = vadd.f32 %v77, %v5284
    %v5286 = vpop.f32.mrb[0].mxu0
    %5287 = vmatprep.mubr.f32.mxu0 0.0
    %5288 = vmatmul.mubr.f32.gmra.mrb[0].mxu0 %v5216
    %v5289 = vpop.f32.mrb[0].mxu0
    %v5290 = vadd.f32 %v77, %v5289
    %v5291 = vpop.f32.mrb[0].mxu0
    %5292 = vdwg.mxu0
    %5293 = vmatprep.subr.mxu0 0.0
    %5294 = vmatpush1.msra.mxu0 %v159
    %5295 = vmatprep.subr.mxu0 0.0
    %5296 = vmatpush1.msra.mxu0 %v160
    %5297 = vmatprep.subr.mxu0 0.0
    %5298 = vmatpush1.msra.mxu0 %v161
    %5299 = vmatprep.subr.mxu0 0.0
    %5300 = vmatpush1.msra.mxu0 %v162
    %5301 = vmatprep.subr.mxu0 0.0
    %5302 = vmatpush1.msra.mxu0 %v163
    %5303 = vmatprep.subr.mxu0 0.0
    %5304 = vmatpush1.msra.mxu0 %v164
    %5305 = vmatprep.subr.mxu0 0.0
    %5306 = vmatpush1.msra.mxu0 %v165
    %5307 = vmatprep.subr.mxu0 0.0
    %5308 = vmatpush1.msra.mxu0 %v166
    %5309 = vmatprep.subr.mxu0 0.0
    %5310 = vmatpush1.msra.mxu0 0.0
    %5311 = vmatprep.subr.mxu0 0.0
    %5312 = vmatpush1.msra.mxu0 0.0
    %5313 = vmatprep.subr.mxu0 0.0
    %5314 = vmatpush1.msra.mxu0 0.0
    %5315 = vmatprep.subr.mxu0 0.0
    %5316 = vmatpush1.msra.mxu0 0.0
    %5317 = vmatprep.subr.mxu0 0.0
    %5318 = vmatpush1.msra.mxu0 0.0
    %5319 = vmatprep.subr.mxu0 0.0
    %5320 = vmatpush1.msra.mxu0 0.0
    %5321 = vmatprep.subr.mxu0 0.0
    %5322 = vmatpush1.msra.mxu0 0.0
    %5323 = vmatprep.subr.mxu0 0.0
    %5324 = vmatpush1.msra.mxu0 0.0
    %5325 = vmatprep.subr.mxu0 0.0
    %5326 = vmatpush1.msra.mxu0 0.0
    %5327 = vmatprep.subr.mxu0 0.0
    %5328 = vmatpush1.msra.mxu0 0.0
    %5329 = vmatprep.subr.mxu0 0.0
    %5330 = vmatpush1.msra.mxu0 0.0
    %5331 = vmatprep.subr.mxu0 0.0
    %5332 = vmatpush1.msra.mxu0 0.0
    %5333 = vmatprep.subr.mxu0 0.0
    %5334 = vmatpush1.msra.mxu0 0.0
    %5335 = vmatprep.subr.mxu0 0.0
    %5336 = vmatpush1.msra.mxu0 0.0
    %5337 = vmatprep.subr.mxu0 0.0
    %5338 = vmatpush1.msra.mxu0 0.0
    %5339 = vmatprep.subr.mxu0 0.0
    %5340 = vmatpush1.msra.mxu0 0.0
    %5341 = vmatprep.subr.mxu0 0.0
    %5342 = vmatpush1.msra.mxu0 0.0
    %5343 = vmatprep.subr.mxu0 0.0
    %5344 = vmatpush1.msra.mxu0 0.0
    %5345 = vmatprep.subr.mxu0 0.0
    %5346 = vmatpush1.msra.mxu0 0.0
    %5347 = vmatprep.subr.mxu0 0.0
    %5348 = vmatpush1.msra.mxu0 0.0
    %5349 = vmatprep.subr.mxu0 0.0
    %5350 = vmatpush1.msra.mxu0 0.0
    %5351 = vmatprep.subr.mxu0 0.0
    %5352 = vmatpush1.msra.mxu0 0.0
    %5353 = vmatprep.subr.mxu0 0.0
    %5354 = vmatpush1.msra.mxu0 0.0
    %5355 = vmatprep.subr.mxu0 0.0
    %5356 = vmatpush1.msra.mxu0 0.0
    %5357 = vmatprep.mubr.f32.mxu0 0.0
    %5358 = vmatmul.mubr.f32.gmra.mrb[0].mxu0 %v2804
    %v5359 = vpop.f32.mrb[0].mxu0
    %v5360 = vadd.f32 0.0, %v5359
    %v5361 = vpop.f32.mrb[0].mxu0
    %5362 = vmatprep.mubr.f32.mxu0 0.0
    %5363 = vmatmul.mubr.f32.gmra.mrb[0].mxu0 %v2807
    %v5364 = vpop.f32.mrb[0].mxu0
    %v5365 = vadd.f32 0.0, %v5364
    %v5366 = vpop.f32.mrb[0].mxu0
    %5367 = vdwg.mxu0
    %v5368 = vadd.f32 %v5285, %v5360
    %v5369 = vadd.f32 %v5290, %v5365
    %v5370 = vadd.f32 %v5368, %v89
    %v5371 = vadd.f32 %v5369, %v89
    %v5372 = vxor.u32 %v5370, 2147483648
    %v5373 = vxor.u32 %v5371, 2147483648
    %v5374 = vmul.f32 %v5372, 1.442695
    %v5375 = vpow.pop %v5374
    %v5376 = vmul.f32 %v5373, 1.442695
    %v5377 = vpow.pop %v5376
    %v5378 = vadd.f32 %v5375, 1.0
    %v5379 = vadd.f32 %v5377, 1.0
    %v5380 = vrcp.pop %v5378
    %v5381 = vmul.f32 1.0, %v5380
    %v5382 = vrcp.pop %v5379
    %v5383 = vmul.f32 1.0, %v5382
    %5384 = vmatprep.subr.mxu0 0.0
    %5385 = vmatpush1.msra.mxu0 %v141
    %5386 = vmatprep.subr.mxu0 0.0
    %5387 = vmatpush1.msra.mxu0 %v142
    %5388 = vmatprep.subr.mxu0 0.0
    %5389 = vmatpush1.msra.mxu0 %v143
    %5390 = vmatprep.subr.mxu0 0.0
    %5391 = vmatpush1.msra.mxu0 %v144
    %5392 = vmatprep.subr.mxu0 0.0
    %5393 = vmatpush1.msra.mxu0 %v145
    %5394 = vmatprep.subr.mxu0 0.0
    %5395 = vmatpush1.msra.mxu0 %v146
    %5396 = vmatprep.subr.mxu0 0.0
    %5397 = vmatpush1.msra.mxu0 %v147
    %5398 = vmatprep.subr.mxu0 0.0
    %5399 = vmatpush1.msra.mxu0 %v148
    %5400 = vmatprep.subr.mxu0 0.0
    %5401 = vmatpush1.msra.mxu0 0.0
    %5402 = vmatprep.subr.mxu0 0.0
    %5403 = vmatpush1.msra.mxu0 0.0
    %5404 = vmatprep.subr.mxu0 0.0
    %5405 = vmatpush1.msra.mxu0 0.0
    %5406 = vmatprep.subr.mxu0 0.0
    %5407 = vmatpush1.msra.mxu0 0.0
    %5408 = vmatprep.subr.mxu0 0.0
    %5409 = vmatpush1.msra.mxu0 0.0
    %5410 = vmatprep.subr.mxu0 0.0
    %5411 = vmatpush1.msra.mxu0 0.0
    %5412 = vmatprep.subr.mxu0 0.0
    %5413 = vmatpush1.msra.mxu0 0.0
    %5414 = vmatprep.subr.mxu0 0.0
    %5415 = vmatpush1.msra.mxu0 0.0
    %5416 = vmatprep.subr.mxu0 0.0
    %5417 = vmatpush1.msra.mxu0 0.0
    %5418 = vmatprep.subr.mxu0 0.0
    %5419 = vmatpush1.msra.mxu0 0.0
    %5420 = vmatprep.subr.mxu0 0.0
    %5421 = vmatpush1.msra.mxu0 0.0
    %5422 = vmatprep.subr.mxu0 0.0
    %5423 = vmatpush1.msra.mxu0 0.0
    %5424 = vmatprep.subr.mxu0 0.0
    %5425 = vmatpush1.msra.mxu0 0.0
    %5426 = vmatprep.subr.mxu0 0.0
    %5427 = vmatpush1.msra.mxu0 0.0
    %5428 = vmatprep.subr.mxu0 0.0
    %5429 = vmatpush1.msra.mxu0 0.0
    %5430 = vmatprep.subr.mxu0 0.0
    %5431 = vmatpush1.msra.mxu0 0.0
    %5432 = vmatprep.subr.mxu0 0.0
    %5433 = vmatpush1.msra.mxu0 0.0
    %5434 = vmatprep.subr.mxu0 0.0
    %5435 = vmatpush1.msra.mxu0 0.0
    %5436 = vmatprep.subr.mxu0 0.0
    %5437 = vmatpush1.msra.mxu0 0.0
    %5438 = vmatprep.subr.mxu0 0.0
    %5439 = vmatpush1.msra.mxu0 0.0
    %5440 = vmatprep.subr.mxu0 0.0
    %5441 = vmatpush1.msra.mxu0 0.0
    %5442 = vmatprep.subr.mxu0 0.0
    %5443 = vmatpush1.msra.mxu0 0.0
    %5444 = vmatprep.subr.mxu0 0.0
    %5445 = vmatpush1.msra.mxu0 0.0
    %5446 = vmatprep.subr.mxu0 0.0
    %5447 = vmatpush1.msra.mxu0 0.0
    %5448 = vmatprep.mubr.f32.mxu0 0.0
    %5449 = vmatmul.mubr.f32.gmra.mrb[0].mxu0 %v5213
    %v5450 = vpop.f32.mrb[0].mxu0
    %v5451 = vadd.f32 %v81, %v5450
    %v5452 = vpop.f32.mrb[0].mxu0
    %5453 = vmatprep.mubr.f32.mxu0 0.0
    %5454 = vmatmul.mubr.f32.gmra.mrb[0].mxu0 %v5216
    %v5455 = vpop.f32.mrb[0].mxu0
    %v5456 = vadd.f32 %v81, %v5455
    %v5457 = vpop.f32.mrb[0].mxu0
    %5458 = vdwg.mxu0
    %5459 = vmatprep.subr.mxu0 0.0
    %5460 = vmatpush1.msra.mxu0 %v168
    %5461 = vmatprep.subr.mxu0 0.0
    %5462 = vmatpush1.msra.mxu0 %v169
    %5463 = vmatprep.subr.mxu0 0.0
    %5464 = vmatpush1.msra.mxu0 %v170
    %5465 = vmatprep.subr.mxu0 0.0
    %5466 = vmatpush1.msra.mxu0 %v171
    %5467 = vmatprep.subr.mxu0 0.0
    %5468 = vmatpush1.msra.mxu0 %v172
    %5469 = vmatprep.subr.mxu0 0.0
    %5470 = vmatpush1.msra.mxu0 %v173
    %5471 = vmatprep.subr.mxu0 0.0
    %5472 = vmatpush1.msra.mxu0 %v174
    %5473 = vmatprep.subr.mxu0 0.0
    %5474 = vmatpush1.msra.mxu0 %v175
    %5475 = vmatprep.subr.mxu0 0.0
    %5476 = vmatpush1.msra.mxu0 0.0
    %5477 = vmatprep.subr.mxu0 0.0
    %5478 = vmatpush1.msra.mxu0 0.0
    %5479 = vmatprep.subr.mxu0 0.0
    %5480 = vmatpush1.msra.mxu0 0.0
    %5481 = vmatprep.subr.mxu0 0.0
    %5482 = vmatpush1.msra.mxu0 0.0
    %5483 = vmatprep.subr.mxu0 0.0
    %5484 = vmatpush1.msra.mxu0 0.0
    %5485 = vmatprep.subr.mxu0 0.0
    %5486 = vmatpush1.msra.mxu0 0.0
    %5487 = vmatprep.subr.mxu0 0.0
    %5488 = vmatpush1.msra.mxu0 0.0
    %5489 = vmatprep.subr.mxu0 0.0
    %5490 = vmatpush1.msra.mxu0 0.0
    %5491 = vmatprep.subr.mxu0 0.0
    %5492 = vmatpush1.msra.mxu0 0.0
    %5493 = vmatprep.subr.mxu0 0.0
    %5494 = vmatpush1.msra.mxu0 0.0
    %5495 = vmatprep.subr.mxu0 0.0
    %5496 = vmatpush1.msra.mxu0 0.0
    %5497 = vmatprep.subr.mxu0 0.0
    %5498 = vmatpush1.msra.mxu0 0.0
    %5499 = vmatprep.subr.mxu0 0.0
    %5500 = vmatpush1.msra.mxu0 0.0
    %5501 = vmatprep.subr.mxu0 0.0
    %5502 = vmatpush1.msra.mxu0 0.0
    %5503 = vmatprep.subr.mxu0 0.0
    %5504 = vmatpush1.msra.mxu0 0.0
    %5505 = vmatprep.subr.mxu0 0.0
    %5506 = vmatpush1.msra.mxu0 0.0
    %5507 = vmatprep.subr.mxu0 0.0
    %5508 = vmatpush1.msra.mxu0 0.0
    %5509 = vmatprep.subr.mxu0 0.0
    %5510 = vmatpush1.msra.mxu0 0.0
    %5511 = vmatprep.subr.mxu0 0.0
    %5512 = vmatpush1.msra.mxu0 0.0
    %5513 = vmatprep.subr.mxu0 0.0
    %5514 = vmatpush1.msra.mxu0 0.0
    %5515 = vmatprep.subr.mxu0 0.0
    %5516 = vmatpush1.msra.mxu0 0.0
    %5517 = vmatprep.subr.mxu0 0.0
    %5518 = vmatpush1.msra.mxu0 0.0
    %5519 = vmatprep.subr.mxu0 0.0
    %5520 = vmatpush1.msra.mxu0 0.0
    %5521 = vmatprep.subr.mxu0 0.0
    %5522 = vmatpush1.msra.mxu0 0.0
    %5523 = vmatprep.mubr.f32.mxu0 0.0
    %5524 = vmatmul.mubr.f32.gmra.mrb[0].mxu0 %v2804
    %v5525 = vpop.f32.mrb[0].mxu0
    %v5526 = vadd.f32 0.0, %v5525
    %v5527 = vpop.f32.mrb[0].mxu0
    %5528 = vmatprep.mubr.f32.mxu0 0.0
    %5529 = vmatmul.mubr.f32.gmra.mrb[0].mxu0 %v2807
    %v5530 = vpop.f32.mrb[0].mxu0
    %v5531 = vadd.f32 0.0, %v5530
    %v5532 = vpop.f32.mrb[0].mxu0
    %5533 = vdwg.mxu0
    %v5534 = vadd.f32 %v5451, %v5526
    %v5535 = vadd.f32 %v5456, %v5531
    %v5536 = vadd.f32 %v5534, %v93
    %v5537 = vadd.f32 %v5535, %v93
    %v5538 = vxor.u32 %v5536, 2147483648
    %v5539 = vxor.u32 %v5537, 2147483648
    %v5540 = vmul.f32 %v5538, 1.442695
    %v5541 = vpow.pop %v5540
    %v5542 = vmul.f32 %v5539, 1.442695
    %v5543 = vpow.pop %v5542
    %v5544 = vadd.f32 %v5541, 1.0
    %v5545 = vadd.f32 %v5543, 1.0
    %v5546 = vrcp.pop %v5544
    %v5547 = vmul.f32 1.0, %v5546
    %v5548 = vrcp.pop %v5545
    %v5549 = vmul.f32 1.0, %v5548
    %5550 = vmatprep.subr.mxu0 0.0
    %5551 = vmatpush1.msra.mxu0 %v150
    %5552 = vmatprep.subr.mxu0 0.0
    %5553 = vmatpush1.msra.mxu0 %v151
    %5554 = vmatprep.subr.mxu0 0.0
    %5555 = vmatpush1.msra.mxu0 %v152
    %5556 = vmatprep.subr.mxu0 0.0
    %5557 = vmatpush1.msra.mxu0 %v153
    %5558 = vmatprep.subr.mxu0 0.0
    %5559 = vmatpush1.msra.mxu0 %v154
    %5560 = vmatprep.subr.mxu0 0.0
    %5561 = vmatpush1.msra.mxu0 %v155
    %5562 = vmatprep.subr.mxu0 0.0
    %5563 = vmatpush1.msra.mxu0 %v156
    %5564 = vmatprep.subr.mxu0 0.0
    %5565 = vmatpush1.msra.mxu0 %v157
    %5566 = vmatprep.subr.mxu0 0.0
    %5567 = vmatpush1.msra.mxu0 0.0
    %5568 = vmatprep.subr.mxu0 0.0
    %5569 = vmatpush1.msra.mxu0 0.0
    %5570 = vmatprep.subr.mxu0 0.0
    %5571 = vmatpush1.msra.mxu0 0.0
    %5572 = vmatprep.subr.mxu0 0.0
    %5573 = vmatpush1.msra.mxu0 0.0
    %5574 = vmatprep.subr.mxu0 0.0
    %5575 = vmatpush1.msra.mxu0 0.0
    %5576 = vmatprep.subr.mxu0 0.0
    %5577 = vmatpush1.msra.mxu0 0.0
    %5578 = vmatprep.subr.mxu0 0.0
    %5579 = vmatpush1.msra.mxu0 0.0
    %5580 = vmatprep.subr.mxu0 0.0
    %5581 = vmatpush1.msra.mxu0 0.0
    %5582 = vmatprep.subr.mxu0 0.0
    %5583 = vmatpush1.msra.mxu0 0.0
    %5584 = vmatprep.subr.mxu0 0.0
    %5585 = vmatpush1.msra.mxu0 0.0
    %5586 = vmatprep.subr.mxu0 0.0
    %5587 = vmatpush1.msra.mxu0 0.0
    %5588 = vmatprep.subr.mxu0 0.0
    %5589 = vmatpush1.msra.mxu0 0.0
    %5590 = vmatprep.subr.mxu0 0.0
    %5591 = vmatpush1.msra.mxu0 0.0
    %5592 = vmatprep.subr.mxu0 0.0
    %5593 = vmatpush1.msra.mxu0 0.0
    %5594 = vmatprep.subr.mxu0 0.0
    %5595 = vmatpush1.msra.mxu0 0.0
    %5596 = vmatprep.subr.mxu0 0.0
    %5597 = vmatpush1.msra.mxu0 0.0
    %5598 = vmatprep.subr.mxu0 0.0
    %5599 = vmatpush1.msra.mxu0 0.0
    %5600 = vmatprep.subr.mxu0 0.0
    %5601 = vmatpush1.msra.mxu0 0.0
    %5602 = vmatprep.subr.mxu0 0.0
    %5603 = vmatpush1.msra.mxu0 0.0
    %5604 = vmatprep.subr.mxu0 0.0
    %5605 = vmatpush1.msra.mxu0 0.0
    %5606 = vmatprep.subr.mxu0 0.0
    %5607 = vmatpush1.msra.mxu0 0.0
    %5608 = vmatprep.subr.mxu0 0.0
    %5609 = vmatpush1.msra.mxu0 0.0
    %5610 = vmatprep.subr.mxu0 0.0
    %5611 = vmatpush1.msra.mxu0 0.0
    %5612 = vmatprep.subr.mxu0 0.0
    %5613 = vmatpush1.msra.mxu0 0.0
    %5614 = vmatprep.mubr.f32.mxu0 0.0
    %5615 = vmatmul.mubr.f32.gmra.mrb[0].mxu0 %v5213
    %v5616 = vpop.f32.mrb[0].mxu0
    %v5617 = vadd.f32 %v85, %v5616
    %v5618 = vpop.f32.mrb[0].mxu0
    %5619 = vmatprep.mubr.f32.mxu0 0.0
    %5620 = vmatmul.mubr.f32.gmra.mrb[0].mxu0 %v5216
    %v5621 = vpop.f32.mrb[0].mxu0
    %v5622 = vadd.f32 %v85, %v5621
    %v5623 = vpop.f32.mrb[0].mxu0
    %5624 = vdwg.mxu0
    %5625 = vmatprep.subr.mxu0 0.0
    %5626 = vmatpush1.msra.mxu0 %v177
    %5627 = vmatprep.subr.mxu0 0.0
    %5628 = vmatpush1.msra.mxu0 %v178
    %5629 = vmatprep.subr.mxu0 0.0
    %5630 = vmatpush1.msra.mxu0 %v179
    %5631 = vmatprep.subr.mxu0 0.0
    %5632 = vmatpush1.msra.mxu0 %v180
    %5633 = vmatprep.subr.mxu0 0.0
    %5634 = vmatpush1.msra.mxu0 %v181
    %5635 = vmatprep.subr.mxu0 0.0
    %5636 = vmatpush1.msra.mxu0 %v182
    %5637 = vmatprep.subr.mxu0 0.0
    %5638 = vmatpush1.msra.mxu0 %v183
    %5639 = vmatprep.subr.mxu0 0.0
    %5640 = vmatpush1.msra.mxu0 %v184
    %5641 = vmatprep.subr.mxu0 0.0
    %5642 = vmatpush1.msra.mxu0 0.0
    %5643 = vmatprep.subr.mxu0 0.0
    %5644 = vmatpush1.msra.mxu0 0.0
    %5645 = vmatprep.subr.mxu0 0.0
    %5646 = vmatpush1.msra.mxu0 0.0
    %5647 = vmatprep.subr.mxu0 0.0
    %5648 = vmatpush1.msra.mxu0 0.0
    %5649 = vmatprep.subr.mxu0 0.0
    %5650 = vmatpush1.msra.mxu0 0.0
    %5651 = vmatprep.subr.mxu0 0.0
    %5652 = vmatpush1.msra.mxu0 0.0
    %5653 = vmatprep.subr.mxu0 0.0
    %5654 = vmatpush1.msra.mxu0 0.0
    %5655 = vmatprep.subr.mxu0 0.0
    %5656 = vmatpush1.msra.mxu0 0.0
    %5657 = vmatprep.subr.mxu0 0.0
    %5658 = vmatpush1.msra.mxu0 0.0
    %5659 = vmatprep.subr.mxu0 0.0
    %5660 = vmatpush1.msra.mxu0 0.0
    %5661 = vmatprep.subr.mxu0 0.0
    %5662 = vmatpush1.msra.mxu0 0.0
    %5663 = vmatprep.subr.mxu0 0.0
    %5664 = vmatpush1.msra.mxu0 0.0
    %5665 = vmatprep.subr.mxu0 0.0
    %5666 = vmatpush1.msra.mxu0 0.0
    %5667 = vmatprep.subr.mxu0 0.0
    %5668 = vmatpush1.msra.mxu0 0.0
    %5669 = vmatprep.subr.mxu0 0.0
    %5670 = vmatpush1.msra.mxu0 0.0
    %5671 = vmatprep.subr.mxu0 0.0
    %5672 = vmatpush1.msra.mxu0 0.0
    %5673 = vmatprep.subr.mxu0 0.0
    %5674 = vmatpush1.msra.mxu0 0.0
    %5675 = vmatprep.subr.mxu0 0.0
    %5676 = vmatpush1.msra.mxu0 0.0
    %5677 = vmatprep.subr.mxu0 0.0
    %5678 = vmatpush1.msra.mxu0 0.0
    %5679 = vmatprep.subr.mxu0 0.0
    %5680 = vmatpush1.msra.mxu0 0.0
    %5681 = vmatprep.subr.mxu0 0.0
    %5682 = vmatpush1.msra.mxu0 0.0
    %5683 = vmatprep.subr.mxu0 0.0
    %5684 = vmatpush1.msra.mxu0 0.0
    %5685 = vmatprep.subr.mxu0 0.0
    %5686 = vmatpush1.msra.mxu0 0.0
    %5687 = vmatprep.subr.mxu0 0.0
    %5688 = vmatpush1.msra.mxu0 0.0
    %5689 = vmatprep.mubr.f32.mxu0 0.0
    %5690 = vmatmul.mubr.f32.gmra.mrb[0].mxu0 %v2804
    %v5691 = vpop.f32.mrb[0].mxu0
    %v5692 = vadd.f32 %v97, %v5691
    %v5693 = vpop.f32.mrb[0].mxu0
    %5694 = vmatprep.mubr.f32.mxu0 0.0
    %5695 = vmatmul.mubr.f32.gmra.mrb[0].mxu0 %v2807
    %v5696 = vpop.f32.mrb[0].mxu0
    %v5697 = vadd.f32 %v97, %v5696
    %v5698 = vpop.f32.mrb[0].mxu0
    %5699 = vdwg.mxu0
    %v5700 = vmul.f32 %v5381, %v5692
    %v5701 = vmul.f32 %v5383, %v5697
    %v5702 = vadd.f32 %v5617, %v5700
    %v5703 = vadd.f32 %v5622, %v5701
    %v5704 = vtanh.pop %v5702
    %v5705 = vtanh.pop %v5703
    %v5706 = vsub.f32 1.0, %v5547
    %v5707 = vsub.f32 1.0, %v5549
    %v5708 = vmul.f32 %v5706, %v5704
    %v5709 = vmul.f32 %v5707, %v5705
    %v5710 = vmul.f32 %v5547, %v401
    %v5711 = vmul.f32 %v5549, %v402
    %v5712 = vadd.f32 %v5708, %v5710
    %v5713 = vadd.f32 %v5709, %v5711
    %v5715 = vsel %vm2802, %v5712, 0
    %v5718 = vsel %vm2802, %v5713, 0
    %5720 = vmatprep.subr.mxu0 %v186
    %5721 = vmatpush1.msra.mxu0 %v185
    %5722 = vmatprep.subr.mxu0 %v202
    %5723 = vmatpush1.msra.mxu0 %v201
    %5724 = vmatprep.subr.mxu0 %v218
    %5725 = vmatpush1.msra.mxu0 %v217
    %5726 = vmatprep.subr.mxu0 %v234
    %5727 = vmatpush1.msra.mxu0 %v233
    %5728 = vmatprep.subr.mxu0 %v250
    %5729 = vmatpush1.msra.mxu0 %v249
    %5730 = vmatprep.subr.mxu0 %v266
    %5731 = vmatpush1.msra.mxu0 %v265
    %5732 = vmatprep.subr.mxu0 %v282
    %5733 = vmatpush1.msra.mxu0 %v281
    %5734 = vmatprep.subr.mxu0 %v298
    %5735 = vmatpush1.msra.mxu0 %v297
    %5736 = vmatprep.subr.mxu0 0.0
    %5737 = vmatpush1.msra.mxu0 0.0
    %5738 = vmatprep.subr.mxu0 0.0
    %5739 = vmatpush1.msra.mxu0 0.0
    %5740 = vmatprep.subr.mxu0 0.0
    %5741 = vmatpush1.msra.mxu0 0.0
    %5742 = vmatprep.subr.mxu0 0.0
    %5743 = vmatpush1.msra.mxu0 0.0
    %5744 = vmatprep.subr.mxu0 0.0
    %5745 = vmatpush1.msra.mxu0 0.0
    %5746 = vmatprep.subr.mxu0 0.0
    %5747 = vmatpush1.msra.mxu0 0.0
    %5748 = vmatprep.subr.mxu0 0.0
    %5749 = vmatpush1.msra.mxu0 0.0
    %5750 = vmatprep.subr.mxu0 0.0
    %5751 = vmatpush1.msra.mxu0 0.0
    %5752 = vmatprep.subr.mxu0 0.0
    %5753 = vmatpush1.msra.mxu0 0.0
    %5754 = vmatprep.subr.mxu0 0.0
    %5755 = vmatpush1.msra.mxu0 0.0
    %5756 = vmatprep.subr.mxu0 0.0
    %5757 = vmatpush1.msra.mxu0 0.0
    %5758 = vmatprep.subr.mxu0 0.0
    %5759 = vmatpush1.msra.mxu0 0.0
    %5760 = vmatprep.subr.mxu0 0.0
    %5761 = vmatpush1.msra.mxu0 0.0
    %5762 = vmatprep.subr.mxu0 0.0
    %5763 = vmatpush1.msra.mxu0 0.0
    %5764 = vmatprep.subr.mxu0 0.0
    %5765 = vmatpush1.msra.mxu0 0.0
    %5766 = vmatprep.subr.mxu0 0.0
    %5767 = vmatpush1.msra.mxu0 0.0
    %5768 = vmatprep.subr.mxu0 0.0
    %5769 = vmatpush1.msra.mxu0 0.0
    %5770 = vmatprep.subr.mxu0 0.0
    %5771 = vmatpush1.msra.mxu0 0.0
    %5772 = vmatprep.subr.mxu0 0.0
    %5773 = vmatpush1.msra.mxu0 0.0
    %5774 = vmatprep.subr.mxu0 0.0
    %5775 = vmatpush1.msra.mxu0 0.0
    %5776 = vmatprep.subr.mxu0 0.0
    %5777 = vmatpush1.msra.mxu0 0.0
    %5778 = vmatprep.subr.mxu0 0.0
    %5779 = vmatpush1.msra.mxu0 0.0
    %5780 = vmatprep.subr.mxu0 0.0
    %5781 = vmatpush1.msra.mxu0 0.0
    %5782 = vmatprep.subr.mxu0 0.0
    %5783 = vmatpush1.msra.mxu0 0.0
    %5784 = vmatprep.mubr.f32.mxu0 0.0
    %5785 = vmatmul.mubr.f32.gmra.mrb[0].mxu0 %v5715
    %v5786 = vpop.f32.mrb[0].mxu0
    %v5787 = vadd.f32 0.0, %v5786
    %v5788 = vpop.f32.mrb[0].mxu0
    %v5789 = vadd.f32 0.0, %v5788
    %5790 = vmatprep.mubr.f32.mxu0 0.0
    %5791 = vmatmul.mubr.f32.gmra.mrb[0].mxu0 %v5718
    %v5792 = vpop.f32.mrb[0].mxu0
    %v5793 = vadd.f32 0.0, %v5792
    %v5794 = vpop.f32.mrb[0].mxu0
    %v5795 = vadd.f32 0.0, %v5794
    %5796 = vdwg.mxu0
    %5797 = vmatprep.subr.mxu0 %v188
    %5798 = vmatpush1.msra.mxu0 %v187
    %5799 = vmatprep.subr.mxu0 %v204
    %5800 = vmatpush1.msra.mxu0 %v203
    %5801 = vmatprep.subr.mxu0 %v220
    %5802 = vmatpush1.msra.mxu0 %v219
    %5803 = vmatprep.subr.mxu0 %v236
    %5804 = vmatpush1.msra.mxu0 %v235
    %5805 = vmatprep.subr.mxu0 %v252
    %5806 = vmatpush1.msra.mxu0 %v251
    %5807 = vmatprep.subr.mxu0 %v268
    %5808 = vmatpush1.msra.mxu0 %v267
    %5809 = vmatprep.subr.mxu0 %v284
    %5810 = vmatpush1.msra.mxu0 %v283
    %5811 = vmatprep.subr.mxu0 %v300
    %5812 = vmatpush1.msra.mxu0 %v299
    %5813 = vmatprep.subr.mxu0 0.0
    %5814 = vmatpush1.msra.mxu0 0.0
    %5815 = vmatprep.subr.mxu0 0.0
    %5816 = vmatpush1.msra.mxu0 0.0
    %5817 = vmatprep.subr.mxu0 0.0
    %5818 = vmatpush1.msra.mxu0 0.0
    %5819 = vmatprep.subr.mxu0 0.0
    %5820 = vmatpush1.msra.mxu0 0.0
    %5821 = vmatprep.subr.mxu0 0.0
    %5822 = vmatpush1.msra.mxu0 0.0
    %5823 = vmatprep.subr.mxu0 0.0
    %5824 = vmatpush1.msra.mxu0 0.0
    %5825 = vmatprep.subr.mxu0 0.0
    %5826 = vmatpush1.msra.mxu0 0.0
    %5827 = vmatprep.subr.mxu0 0.0
    %5828 = vmatpush1.msra.mxu0 0.0
    %5829 = vmatprep.subr.mxu0 0.0
    %5830 = vmatpush1.msra.mxu0 0.0
    %5831 = vmatprep.subr.mxu0 0.0
    %5832 = vmatpush1.msra.mxu0 0.0
    %5833 = vmatprep.subr.mxu0 0.0
    %5834 = vmatpush1.msra.mxu0 0.0
    %5835 = vmatprep.subr.mxu0 0.0
    %5836 = vmatpush1.msra.mxu0 0.0
    %5837 = vmatprep.subr.mxu0 0.0
    %5838 = vmatpush1.msra.mxu0 0.0
    %5839 = vmatprep.subr.mxu0 0.0
    %5840 = vmatpush1.msra.mxu0 0.0
    %5841 = vmatprep.subr.mxu0 0.0
    %5842 = vmatpush1.msra.mxu0 0.0
    %5843 = vmatprep.subr.mxu0 0.0
    %5844 = vmatpush1.msra.mxu0 0.0
    %5845 = vmatprep.subr.mxu0 0.0
    %5846 = vmatpush1.msra.mxu0 0.0
    %5847 = vmatprep.subr.mxu0 0.0
    %5848 = vmatpush1.msra.mxu0 0.0
    %5849 = vmatprep.subr.mxu0 0.0
    %5850 = vmatpush1.msra.mxu0 0.0
    %5851 = vmatprep.subr.mxu0 0.0
    %5852 = vmatpush1.msra.mxu0 0.0
    %5853 = vmatprep.subr.mxu0 0.0
    %5854 = vmatpush1.msra.mxu0 0.0
    %5855 = vmatprep.subr.mxu0 0.0
    %5856 = vmatpush1.msra.mxu0 0.0
    %5857 = vmatprep.subr.mxu0 0.0
    %5858 = vmatpush1.msra.mxu0 0.0
    %5859 = vmatprep.subr.mxu0 0.0
    %5860 = vmatpush1.msra.mxu0 0.0
    %5861 = vmatprep.mubr.f32.mxu0 0.0
    %5862 = vmatmul.mubr.f32.gmra.mrb[0].mxu0 %v5715
    %v5863 = vpop.f32.mrb[0].mxu0
    %v5864 = vadd.f32 0.0, %v5863
    %v5865 = vpop.f32.mrb[0].mxu0
    %v5866 = vadd.f32 0.0, %v5865
    %5867 = vmatprep.mubr.f32.mxu0 0.0
    %5868 = vmatmul.mubr.f32.gmra.mrb[0].mxu0 %v5718
    %v5869 = vpop.f32.mrb[0].mxu0
    %v5870 = vadd.f32 0.0, %v5869
    %v5871 = vpop.f32.mrb[0].mxu0
    %v5872 = vadd.f32 0.0, %v5871
    %5873 = vdwg.mxu0
    %5874 = vmatprep.subr.mxu0 %v190
    %5875 = vmatpush1.msra.mxu0 %v189
    %5876 = vmatprep.subr.mxu0 %v206
    %5877 = vmatpush1.msra.mxu0 %v205
    %5878 = vmatprep.subr.mxu0 %v222
    %5879 = vmatpush1.msra.mxu0 %v221
    %5880 = vmatprep.subr.mxu0 %v238
    %5881 = vmatpush1.msra.mxu0 %v237
    %5882 = vmatprep.subr.mxu0 %v254
    %5883 = vmatpush1.msra.mxu0 %v253
    %5884 = vmatprep.subr.mxu0 %v270
    %5885 = vmatpush1.msra.mxu0 %v269
    %5886 = vmatprep.subr.mxu0 %v286
    %5887 = vmatpush1.msra.mxu0 %v285
    %5888 = vmatprep.subr.mxu0 %v302
    %5889 = vmatpush1.msra.mxu0 %v301
    %5890 = vmatprep.subr.mxu0 0.0
    %5891 = vmatpush1.msra.mxu0 0.0
    %5892 = vmatprep.subr.mxu0 0.0
    %5893 = vmatpush1.msra.mxu0 0.0
    %5894 = vmatprep.subr.mxu0 0.0
    %5895 = vmatpush1.msra.mxu0 0.0
    %5896 = vmatprep.subr.mxu0 0.0
    %5897 = vmatpush1.msra.mxu0 0.0
    %5898 = vmatprep.subr.mxu0 0.0
    %5899 = vmatpush1.msra.mxu0 0.0
    %5900 = vmatprep.subr.mxu0 0.0
    %5901 = vmatpush1.msra.mxu0 0.0
    %5902 = vmatprep.subr.mxu0 0.0
    %5903 = vmatpush1.msra.mxu0 0.0
    %5904 = vmatprep.subr.mxu0 0.0
    %5905 = vmatpush1.msra.mxu0 0.0
    %5906 = vmatprep.subr.mxu0 0.0
    %5907 = vmatpush1.msra.mxu0 0.0
    %5908 = vmatprep.subr.mxu0 0.0
    %5909 = vmatpush1.msra.mxu0 0.0
    %5910 = vmatprep.subr.mxu0 0.0
    %5911 = vmatpush1.msra.mxu0 0.0
    %5912 = vmatprep.subr.mxu0 0.0
    %5913 = vmatpush1.msra.mxu0 0.0
    %5914 = vmatprep.subr.mxu0 0.0
    %5915 = vmatpush1.msra.mxu0 0.0
    %5916 = vmatprep.subr.mxu0 0.0
    %5917 = vmatpush1.msra.mxu0 0.0
    %5918 = vmatprep.subr.mxu0 0.0
    %5919 = vmatpush1.msra.mxu0 0.0
    %5920 = vmatprep.subr.mxu0 0.0
    %5921 = vmatpush1.msra.mxu0 0.0
    %5922 = vmatprep.subr.mxu0 0.0
    %5923 = vmatpush1.msra.mxu0 0.0
    %5924 = vmatprep.subr.mxu0 0.0
    %5925 = vmatpush1.msra.mxu0 0.0
    %5926 = vmatprep.subr.mxu0 0.0
    %5927 = vmatpush1.msra.mxu0 0.0
    %5928 = vmatprep.subr.mxu0 0.0
    %5929 = vmatpush1.msra.mxu0 0.0
    %5930 = vmatprep.subr.mxu0 0.0
    %5931 = vmatpush1.msra.mxu0 0.0
    %5932 = vmatprep.subr.mxu0 0.0
    %5933 = vmatpush1.msra.mxu0 0.0
    %5934 = vmatprep.subr.mxu0 0.0
    %5935 = vmatpush1.msra.mxu0 0.0
    %5936 = vmatprep.subr.mxu0 0.0
    %5937 = vmatpush1.msra.mxu0 0.0
    %5938 = vmatprep.mubr.f32.mxu0 0.0
    %5939 = vmatmul.mubr.f32.gmra.mrb[0].mxu0 %v5715
    %v5940 = vpop.f32.mrb[0].mxu0
    %v5941 = vadd.f32 0.0, %v5940
    %v5942 = vpop.f32.mrb[0].mxu0
    %v5943 = vadd.f32 0.0, %v5942
    %5944 = vmatprep.mubr.f32.mxu0 0.0
    %5945 = vmatmul.mubr.f32.gmra.mrb[0].mxu0 %v5718
    %v5946 = vpop.f32.mrb[0].mxu0
    %v5947 = vadd.f32 0.0, %v5946
    %v5948 = vpop.f32.mrb[0].mxu0
    %v5949 = vadd.f32 0.0, %v5948
    %5950 = vdwg.mxu0
    %5951 = vmatprep.subr.mxu0 %v192
    %5952 = vmatpush1.msra.mxu0 %v191
    %5953 = vmatprep.subr.mxu0 %v208
    %5954 = vmatpush1.msra.mxu0 %v207
    %5955 = vmatprep.subr.mxu0 %v224
    %5956 = vmatpush1.msra.mxu0 %v223
    %5957 = vmatprep.subr.mxu0 %v240
    %5958 = vmatpush1.msra.mxu0 %v239
    %5959 = vmatprep.subr.mxu0 %v256
    %5960 = vmatpush1.msra.mxu0 %v255
    %5961 = vmatprep.subr.mxu0 %v272
    %5962 = vmatpush1.msra.mxu0 %v271
    %5963 = vmatprep.subr.mxu0 %v288
    %5964 = vmatpush1.msra.mxu0 %v287
    %5965 = vmatprep.subr.mxu0 %v304
    %5966 = vmatpush1.msra.mxu0 %v303
    %5967 = vmatprep.subr.mxu0 0.0
    %5968 = vmatpush1.msra.mxu0 0.0
    %5969 = vmatprep.subr.mxu0 0.0
    %5970 = vmatpush1.msra.mxu0 0.0
    %5971 = vmatprep.subr.mxu0 0.0
    %5972 = vmatpush1.msra.mxu0 0.0
    %5973 = vmatprep.subr.mxu0 0.0
    %5974 = vmatpush1.msra.mxu0 0.0
    %5975 = vmatprep.subr.mxu0 0.0
    %5976 = vmatpush1.msra.mxu0 0.0
    %5977 = vmatprep.subr.mxu0 0.0
    %5978 = vmatpush1.msra.mxu0 0.0
    %5979 = vmatprep.subr.mxu0 0.0
    %5980 = vmatpush1.msra.mxu0 0.0
    %5981 = vmatprep.subr.mxu0 0.0
    %5982 = vmatpush1.msra.mxu0 0.0
    %5983 = vmatprep.subr.mxu0 0.0
    %5984 = vmatpush1.msra.mxu0 0.0
    %5985 = vmatprep.subr.mxu0 0.0
    %5986 = vmatpush1.msra.mxu0 0.0
    %5987 = vmatprep.subr.mxu0 0.0
    %5988 = vmatpush1.msra.mxu0 0.0
    %5989 = vmatprep.subr.mxu0 0.0
    %5990 = vmatpush1.msra.mxu0 0.0
    %5991 = vmatprep.subr.mxu0 0.0
    %5992 = vmatpush1.msra.mxu0 0.0
    %5993 = vmatprep.subr.mxu0 0.0
    %5994 = vmatpush1.msra.mxu0 0.0
    %5995 = vmatprep.subr.mxu0 0.0
    %5996 = vmatpush1.msra.mxu0 0.0
    %5997 = vmatprep.subr.mxu0 0.0
    %5998 = vmatpush1.msra.mxu0 0.0
    %5999 = vmatprep.subr.mxu0 0.0
    %6000 = vmatpush1.msra.mxu0 0.0
    %6001 = vmatprep.subr.mxu0 0.0
    %6002 = vmatpush1.msra.mxu0 0.0
    %6003 = vmatprep.subr.mxu0 0.0
    %6004 = vmatpush1.msra.mxu0 0.0
    %6005 = vmatprep.subr.mxu0 0.0
    %6006 = vmatpush1.msra.mxu0 0.0
    %6007 = vmatprep.subr.mxu0 0.0
    %6008 = vmatpush1.msra.mxu0 0.0
    %6009 = vmatprep.subr.mxu0 0.0
    %6010 = vmatpush1.msra.mxu0 0.0
    %6011 = vmatprep.subr.mxu0 0.0
    %6012 = vmatpush1.msra.mxu0 0.0
    %6013 = vmatprep.subr.mxu0 0.0
    %6014 = vmatpush1.msra.mxu0 0.0
    %6015 = vmatprep.mubr.f32.mxu0 0.0
    %6016 = vmatmul.mubr.f32.gmra.mrb[0].mxu0 %v5715
    %v6017 = vpop.f32.mrb[0].mxu0
    %v6018 = vadd.f32 0.0, %v6017
    %v6019 = vpop.f32.mrb[0].mxu0
    %v6020 = vadd.f32 0.0, %v6019
    %6021 = vmatprep.mubr.f32.mxu0 0.0
    %6022 = vmatmul.mubr.f32.gmra.mrb[0].mxu0 %v5718
    %v6023 = vpop.f32.mrb[0].mxu0
    %v6024 = vadd.f32 0.0, %v6023
    %v6025 = vpop.f32.mrb[0].mxu0
    %v6026 = vadd.f32 0.0, %v6025
    %6027 = vdwg.mxu0
    %6028 = vmatprep.subr.mxu0 %v194
    %6029 = vmatpush1.msra.mxu0 %v193
    %6030 = vmatprep.subr.mxu0 %v210
    %6031 = vmatpush1.msra.mxu0 %v209
    %6032 = vmatprep.subr.mxu0 %v226
    %6033 = vmatpush1.msra.mxu0 %v225
    %6034 = vmatprep.subr.mxu0 %v242
    %6035 = vmatpush1.msra.mxu0 %v241
    %6036 = vmatprep.subr.mxu0 %v258
    %6037 = vmatpush1.msra.mxu0 %v257
    %6038 = vmatprep.subr.mxu0 %v274
    %6039 = vmatpush1.msra.mxu0 %v273
    %6040 = vmatprep.subr.mxu0 %v290
    %6041 = vmatpush1.msra.mxu0 %v289
    %6042 = vmatprep.subr.mxu0 %v306
    %6043 = vmatpush1.msra.mxu0 %v305
    %6044 = vmatprep.subr.mxu0 0.0
    %6045 = vmatpush1.msra.mxu0 0.0
    %6046 = vmatprep.subr.mxu0 0.0
    %6047 = vmatpush1.msra.mxu0 0.0
    %6048 = vmatprep.subr.mxu0 0.0
    %6049 = vmatpush1.msra.mxu0 0.0
    %6050 = vmatprep.subr.mxu0 0.0
    %6051 = vmatpush1.msra.mxu0 0.0
    %6052 = vmatprep.subr.mxu0 0.0
    %6053 = vmatpush1.msra.mxu0 0.0
    %6054 = vmatprep.subr.mxu0 0.0
    %6055 = vmatpush1.msra.mxu0 0.0
    %6056 = vmatprep.subr.mxu0 0.0
    %6057 = vmatpush1.msra.mxu0 0.0
    %6058 = vmatprep.subr.mxu0 0.0
    %6059 = vmatpush1.msra.mxu0 0.0
    %6060 = vmatprep.subr.mxu0 0.0
    %6061 = vmatpush1.msra.mxu0 0.0
    %6062 = vmatprep.subr.mxu0 0.0
    %6063 = vmatpush1.msra.mxu0 0.0
    %6064 = vmatprep.subr.mxu0 0.0
    %6065 = vmatpush1.msra.mxu0 0.0
    %6066 = vmatprep.subr.mxu0 0.0
    %6067 = vmatpush1.msra.mxu0 0.0
    %6068 = vmatprep.subr.mxu0 0.0
    %6069 = vmatpush1.msra.mxu0 0.0
    %6070 = vmatprep.subr.mxu0 0.0
    %6071 = vmatpush1.msra.mxu0 0.0
    %6072 = vmatprep.subr.mxu0 0.0
    %6073 = vmatpush1.msra.mxu0 0.0
    %6074 = vmatprep.subr.mxu0 0.0
    %6075 = vmatpush1.msra.mxu0 0.0
    %6076 = vmatprep.subr.mxu0 0.0
    %6077 = vmatpush1.msra.mxu0 0.0
    %6078 = vmatprep.subr.mxu0 0.0
    %6079 = vmatpush1.msra.mxu0 0.0
    %6080 = vmatprep.subr.mxu0 0.0
    %6081 = vmatpush1.msra.mxu0 0.0
    %6082 = vmatprep.subr.mxu0 0.0
    %6083 = vmatpush1.msra.mxu0 0.0
    %6084 = vmatprep.subr.mxu0 0.0
    %6085 = vmatpush1.msra.mxu0 0.0
    %6086 = vmatprep.subr.mxu0 0.0
    %6087 = vmatpush1.msra.mxu0 0.0
    %6088 = vmatprep.subr.mxu0 0.0
    %6089 = vmatpush1.msra.mxu0 0.0
    %6090 = vmatprep.subr.mxu0 0.0
    %6091 = vmatpush1.msra.mxu0 0.0
    %6092 = vmatprep.mubr.f32.mxu0 0.0
    %6093 = vmatmul.mubr.f32.gmra.mrb[0].mxu0 %v5715
    %v6094 = vpop.f32.mrb[0].mxu0
    %v6095 = vadd.f32 0.0, %v6094
    %v6096 = vpop.f32.mrb[0].mxu0
    %v6097 = vadd.f32 0.0, %v6096
    %6098 = vmatprep.mubr.f32.mxu0 0.0
    %6099 = vmatmul.mubr.f32.gmra.mrb[0].mxu0 %v5718
    %v6100 = vpop.f32.mrb[0].mxu0
    %v6101 = vadd.f32 0.0, %v6100
    %v6102 = vpop.f32.mrb[0].mxu0
    %v6103 = vadd.f32 0.0, %v6102
    %6104 = vdwg.mxu0
    %6105 = vmatprep.subr.mxu0 %v196
    %6106 = vmatpush1.msra.mxu0 %v195
    %6107 = vmatprep.subr.mxu0 %v212
    %6108 = vmatpush1.msra.mxu0 %v211
    %6109 = vmatprep.subr.mxu0 %v228
    %6110 = vmatpush1.msra.mxu0 %v227
    %6111 = vmatprep.subr.mxu0 %v244
    %6112 = vmatpush1.msra.mxu0 %v243
    %6113 = vmatprep.subr.mxu0 %v260
    %6114 = vmatpush1.msra.mxu0 %v259
    %6115 = vmatprep.subr.mxu0 %v276
    %6116 = vmatpush1.msra.mxu0 %v275
    %6117 = vmatprep.subr.mxu0 %v292
    %6118 = vmatpush1.msra.mxu0 %v291
    %6119 = vmatprep.subr.mxu0 %v308
    %6120 = vmatpush1.msra.mxu0 %v307
    %6121 = vmatprep.subr.mxu0 0.0
    %6122 = vmatpush1.msra.mxu0 0.0
    %6123 = vmatprep.subr.mxu0 0.0
    %6124 = vmatpush1.msra.mxu0 0.0
    %6125 = vmatprep.subr.mxu0 0.0
    %6126 = vmatpush1.msra.mxu0 0.0
    %6127 = vmatprep.subr.mxu0 0.0
    %6128 = vmatpush1.msra.mxu0 0.0
    %6129 = vmatprep.subr.mxu0 0.0
    %6130 = vmatpush1.msra.mxu0 0.0
    %6131 = vmatprep.subr.mxu0 0.0
    %6132 = vmatpush1.msra.mxu0 0.0
    %6133 = vmatprep.subr.mxu0 0.0
    %6134 = vmatpush1.msra.mxu0 0.0
    %6135 = vmatprep.subr.mxu0 0.0
    %6136 = vmatpush1.msra.mxu0 0.0
    %6137 = vmatprep.subr.mxu0 0.0
    %6138 = vmatpush1.msra.mxu0 0.0
    %6139 = vmatprep.subr.mxu0 0.0
    %6140 = vmatpush1.msra.mxu0 0.0
    %6141 = vmatprep.subr.mxu0 0.0
    %6142 = vmatpush1.msra.mxu0 0.0
    %6143 = vmatprep.subr.mxu0 0.0
    %6144 = vmatpush1.msra.mxu0 0.0
    %6145 = vmatprep.subr.mxu0 0.0
    %6146 = vmatpush1.msra.mxu0 0.0
    %6147 = vmatprep.subr.mxu0 0.0
    %6148 = vmatpush1.msra.mxu0 0.0
    %6149 = vmatprep.subr.mxu0 0.0
    %6150 = vmatpush1.msra.mxu0 0.0
    %6151 = vmatprep.subr.mxu0 0.0
    %6152 = vmatpush1.msra.mxu0 0.0
    %6153 = vmatprep.subr.mxu0 0.0
    %6154 = vmatpush1.msra.mxu0 0.0
    %6155 = vmatprep.subr.mxu0 0.0
    %6156 = vmatpush1.msra.mxu0 0.0
    %6157 = vmatprep.subr.mxu0 0.0
    %6158 = vmatpush1.msra.mxu0 0.0
    %6159 = vmatprep.subr.mxu0 0.0
    %6160 = vmatpush1.msra.mxu0 0.0
    %6161 = vmatprep.subr.mxu0 0.0
    %6162 = vmatpush1.msra.mxu0 0.0
    %6163 = vmatprep.subr.mxu0 0.0
    %6164 = vmatpush1.msra.mxu0 0.0
    %6165 = vmatprep.subr.mxu0 0.0
    %6166 = vmatpush1.msra.mxu0 0.0
    %6167 = vmatprep.subr.mxu0 0.0
    %6168 = vmatpush1.msra.mxu0 0.0
    %6169 = vmatprep.mubr.f32.mxu0 0.0
    %6170 = vmatmul.mubr.f32.gmra.mrb[0].mxu0 %v5715
    %v6171 = vpop.f32.mrb[0].mxu0
    %v6172 = vadd.f32 0.0, %v6171
    %v6173 = vpop.f32.mrb[0].mxu0
    %v6174 = vadd.f32 0.0, %v6173
    %6175 = vmatprep.mubr.f32.mxu0 0.0
    %6176 = vmatmul.mubr.f32.gmra.mrb[0].mxu0 %v5718
    %v6177 = vpop.f32.mrb[0].mxu0
    %v6178 = vadd.f32 0.0, %v6177
    %v6179 = vpop.f32.mrb[0].mxu0
    %v6180 = vadd.f32 0.0, %v6179
    %6181 = vdwg.mxu0
    %6182 = vmatprep.subr.mxu0 %v198
    %6183 = vmatpush1.msra.mxu0 %v197
    %6184 = vmatprep.subr.mxu0 %v214
    %6185 = vmatpush1.msra.mxu0 %v213
    %6186 = vmatprep.subr.mxu0 %v230
    %6187 = vmatpush1.msra.mxu0 %v229
    %6188 = vmatprep.subr.mxu0 %v246
    %6189 = vmatpush1.msra.mxu0 %v245
    %6190 = vmatprep.subr.mxu0 %v262
    %6191 = vmatpush1.msra.mxu0 %v261
    %6192 = vmatprep.subr.mxu0 %v278
    %6193 = vmatpush1.msra.mxu0 %v277
    %6194 = vmatprep.subr.mxu0 %v294
    %6195 = vmatpush1.msra.mxu0 %v293
    %6196 = vmatprep.subr.mxu0 %v310
    %6197 = vmatpush1.msra.mxu0 %v309
    %6198 = vmatprep.subr.mxu0 0.0
    %6199 = vmatpush1.msra.mxu0 0.0
    %6200 = vmatprep.subr.mxu0 0.0
    %6201 = vmatpush1.msra.mxu0 0.0
    %6202 = vmatprep.subr.mxu0 0.0
    %6203 = vmatpush1.msra.mxu0 0.0
    %6204 = vmatprep.subr.mxu0 0.0
    %6205 = vmatpush1.msra.mxu0 0.0
    %6206 = vmatprep.subr.mxu0 0.0
    %6207 = vmatpush1.msra.mxu0 0.0
    %6208 = vmatprep.subr.mxu0 0.0
    %6209 = vmatpush1.msra.mxu0 0.0
    %6210 = vmatprep.subr.mxu0 0.0
    %6211 = vmatpush1.msra.mxu0 0.0
    %6212 = vmatprep.subr.mxu0 0.0
    %6213 = vmatpush1.msra.mxu0 0.0
    %6214 = vmatprep.subr.mxu0 0.0
    %6215 = vmatpush1.msra.mxu0 0.0
    %6216 = vmatprep.subr.mxu0 0.0
    %6217 = vmatpush1.msra.mxu0 0.0
    %6218 = vmatprep.subr.mxu0 0.0
    %6219 = vmatpush1.msra.mxu0 0.0
    %6220 = vmatprep.subr.mxu0 0.0
    %6221 = vmatpush1.msra.mxu0 0.0
    %6222 = vmatprep.subr.mxu0 0.0
    %6223 = vmatpush1.msra.mxu0 0.0
    %6224 = vmatprep.subr.mxu0 0.0
    %6225 = vmatpush1.msra.mxu0 0.0
    %6226 = vmatprep.subr.mxu0 0.0
    %6227 = vmatpush1.msra.mxu0 0.0
    %6228 = vmatprep.subr.mxu0 0.0
    %6229 = vmatpush1.msra.mxu0 0.0
    %6230 = vmatprep.subr.mxu0 0.0
    %6231 = vmatpush1.msra.mxu0 0.0
    %6232 = vmatprep.subr.mxu0 0.0
    %6233 = vmatpush1.msra.mxu0 0.0
    %6234 = vmatprep.subr.mxu0 0.0
    %6235 = vmatpush1.msra.mxu0 0.0
    %6236 = vmatprep.subr.mxu0 0.0
    %6237 = vmatpush1.msra.mxu0 0.0
    %6238 = vmatprep.subr.mxu0 0.0
    %6239 = vmatpush1.msra.mxu0 0.0
    %6240 = vmatprep.subr.mxu0 0.0
    %6241 = vmatpush1.msra.mxu0 0.0
    %6242 = vmatprep.subr.mxu0 0.0
    %6243 = vmatpush1.msra.mxu0 0.0
    %6244 = vmatprep.subr.mxu0 0.0
    %6245 = vmatpush1.msra.mxu0 0.0
    %6246 = vmatprep.mubr.f32.mxu0 0.0
    %6247 = vmatmul.mubr.f32.gmra.mrb[0].mxu0 %v5715
    %v6248 = vpop.f32.mrb[0].mxu0
    %v6249 = vadd.f32 0.0, %v6248
    %v6250 = vpop.f32.mrb[0].mxu0
    %v6251 = vadd.f32 0.0, %v6250
    %6252 = vmatprep.mubr.f32.mxu0 0.0
    %6253 = vmatmul.mubr.f32.gmra.mrb[0].mxu0 %v5718
    %v6254 = vpop.f32.mrb[0].mxu0
    %v6255 = vadd.f32 0.0, %v6254
    %v6256 = vpop.f32.mrb[0].mxu0
    %v6257 = vadd.f32 0.0, %v6256
    %6258 = vdwg.mxu0
    %6259 = vmatprep.subr.mxu0 %v200
    %6260 = vmatpush1.msra.mxu0 %v199
    %6261 = vmatprep.subr.mxu0 %v216
    %6262 = vmatpush1.msra.mxu0 %v215
    %6263 = vmatprep.subr.mxu0 %v232
    %6264 = vmatpush1.msra.mxu0 %v231
    %6265 = vmatprep.subr.mxu0 %v248
    %6266 = vmatpush1.msra.mxu0 %v247
    %6267 = vmatprep.subr.mxu0 %v264
    %6268 = vmatpush1.msra.mxu0 %v263
    %6269 = vmatprep.subr.mxu0 %v280
    %6270 = vmatpush1.msra.mxu0 %v279
    %6271 = vmatprep.subr.mxu0 %v296
    %6272 = vmatpush1.msra.mxu0 %v295
    %6273 = vmatprep.subr.mxu0 %v312
    %6274 = vmatpush1.msra.mxu0 %v311
    %6275 = vmatprep.subr.mxu0 0.0
    %6276 = vmatpush1.msra.mxu0 0.0
    %6277 = vmatprep.subr.mxu0 0.0
    %6278 = vmatpush1.msra.mxu0 0.0
    %6279 = vmatprep.subr.mxu0 0.0
    %6280 = vmatpush1.msra.mxu0 0.0
    %6281 = vmatprep.subr.mxu0 0.0
    %6282 = vmatpush1.msra.mxu0 0.0
    %6283 = vmatprep.subr.mxu0 0.0
    %6284 = vmatpush1.msra.mxu0 0.0
    %6285 = vmatprep.subr.mxu0 0.0
    %6286 = vmatpush1.msra.mxu0 0.0
    %6287 = vmatprep.subr.mxu0 0.0
    %6288 = vmatpush1.msra.mxu0 0.0
    %6289 = vmatprep.subr.mxu0 0.0
    %6290 = vmatpush1.msra.mxu0 0.0
    %6291 = vmatprep.subr.mxu0 0.0
    %6292 = vmatpush1.msra.mxu0 0.0
    %6293 = vmatprep.subr.mxu0 0.0
    %6294 = vmatpush1.msra.mxu0 0.0
    %6295 = vmatprep.subr.mxu0 0.0
    %6296 = vmatpush1.msra.mxu0 0.0
    %6297 = vmatprep.subr.mxu0 0.0
    %6298 = vmatpush1.msra.mxu0 0.0
    %6299 = vmatprep.subr.mxu0 0.0
    %6300 = vmatpush1.msra.mxu0 0.0
    %6301 = vmatprep.subr.mxu0 0.0
    %6302 = vmatpush1.msra.mxu0 0.0
    %6303 = vmatprep.subr.mxu0 0.0
    %6304 = vmatpush1.msra.mxu0 0.0
    %6305 = vmatprep.subr.mxu0 0.0
    %6306 = vmatpush1.msra.mxu0 0.0
    %6307 = vmatprep.subr.mxu0 0.0
    %6308 = vmatpush1.msra.mxu0 0.0
    %6309 = vmatprep.subr.mxu0 0.0
    %6310 = vmatpush1.msra.mxu0 0.0
    %6311 = vmatprep.subr.mxu0 0.0
    %6312 = vmatpush1.msra.mxu0 0.0
    %6313 = vmatprep.subr.mxu0 0.0
    %6314 = vmatpush1.msra.mxu0 0.0
    %6315 = vmatprep.subr.mxu0 0.0
    %6316 = vmatpush1.msra.mxu0 0.0
    %6317 = vmatprep.subr.mxu0 0.0
    %6318 = vmatpush1.msra.mxu0 0.0
    %6319 = vmatprep.subr.mxu0 0.0
    %6320 = vmatpush1.msra.mxu0 0.0
    %6321 = vmatprep.subr.mxu0 0.0
    %6322 = vmatpush1.msra.mxu0 0.0
    %6323 = vmatprep.mubr.f32.mxu0 0.0
    %6324 = vmatmul.mubr.f32.gmra.mrb[0].mxu0 %v5715
    %v6325 = vpop.f32.mrb[0].mxu0
    %v6326 = vadd.f32 0.0, %v6325
    %v6327 = vpop.f32.mrb[0].mxu0
    %v6328 = vadd.f32 0.0, %v6327
    %6329 = vmatprep.mubr.f32.mxu0 0.0
    %6330 = vmatmul.mubr.f32.gmra.mrb[0].mxu0 %v5718
    %v6331 = vpop.f32.mrb[0].mxu0
    %v6332 = vadd.f32 0.0, %v6331
    %v6333 = vpop.f32.mrb[0].mxu0
    %v6334 = vadd.f32 0.0, %v6333
    %6335 = vdwg.mxu0
    %6336 = vmatprep.subr.mxu0 %v5789
    %6337 = vmatpush1.msra.mxu0 %v5787
    %6338 = vmatprep.subr.mxu0 %v5795
    %6339 = vmatpush1.msra.mxu0 %v5793
    %6340 = vmatprep.subr.mxu0 0.0
    %6341 = vmatpush1.msra.mxu0 0.0
    %6342 = vmatprep.subr.mxu0 0.0
    %6343 = vmatpush1.msra.mxu0 0.0
    %6344 = vmatprep.subr.mxu0 0.0
    %6345 = vmatpush1.msra.mxu0 0.0
    %6346 = vmatprep.subr.mxu0 0.0
    %6347 = vmatpush1.msra.mxu0 0.0
    %6348 = vmatprep.subr.mxu0 0.0
    %6349 = vmatpush1.msra.mxu0 0.0
    %6350 = vmatprep.subr.mxu0 0.0
    %6351 = vmatpush1.msra.mxu0 0.0
    %6352 = vmatprep.subr.mxu0 0.0
    %6353 = vmatpush1.msra.mxu0 0.0
    %6354 = vmatprep.subr.mxu0 0.0
    %6355 = vmatpush1.msra.mxu0 0.0
    %6356 = vmatprep.subr.mxu0 0.0
    %6357 = vmatpush1.msra.mxu0 0.0
    %6358 = vmatprep.subr.mxu0 0.0
    %6359 = vmatpush1.msra.mxu0 0.0
    %6360 = vmatprep.subr.mxu0 0.0
    %6361 = vmatpush1.msra.mxu0 0.0
    %6362 = vmatprep.subr.mxu0 0.0
    %6363 = vmatpush1.msra.mxu0 0.0
    %6364 = vmatprep.subr.mxu0 0.0
    %6365 = vmatpush1.msra.mxu0 0.0
    %6366 = vmatprep.subr.mxu0 0.0
    %6367 = vmatpush1.msra.mxu0 0.0
    %6368 = vmatprep.subr.mxu0 0.0
    %6369 = vmatpush1.msra.mxu0 0.0
    %6370 = vmatprep.subr.mxu0 0.0
    %6371 = vmatpush1.msra.mxu0 0.0
    %6372 = vmatprep.subr.mxu0 0.0
    %6373 = vmatpush1.msra.mxu0 0.0
    %6374 = vmatprep.subr.mxu0 0.0
    %6375 = vmatpush1.msra.mxu0 0.0
    %6376 = vmatprep.subr.mxu0 0.0
    %6377 = vmatpush1.msra.mxu0 0.0
    %6378 = vmatprep.subr.mxu0 0.0
    %6379 = vmatpush1.msra.mxu0 0.0
    %6380 = vmatprep.subr.mxu0 0.0
    %6381 = vmatpush1.msra.mxu0 0.0
    %6382 = vmatprep.subr.mxu0 0.0
    %6383 = vmatpush1.msra.mxu0 0.0
    %6384 = vmatprep.subr.mxu0 0.0
    %6385 = vmatpush1.msra.mxu0 0.0
    %6386 = vmatprep.subr.mxu0 0.0
    %6387 = vmatpush1.msra.mxu0 0.0
    %6388 = vmatprep.subr.mxu0 0.0
    %6389 = vmatpush1.msra.mxu0 0.0
    %6390 = vmatprep.subr.mxu0 0.0
    %6391 = vmatpush1.msra.mxu0 0.0
    %6392 = vmatprep.subr.mxu0 0.0
    %6393 = vmatpush1.msra.mxu0 0.0
    %6394 = vmatprep.subr.mxu0 0.0
    %6395 = vmatpush1.msra.mxu0 0.0
    %6396 = vmatprep.subr.mxu0 0.0
    %6397 = vmatpush1.msra.mxu0 0.0
    %6398 = vmatprep.subr.mxu0 0.0
    %6399 = vmatpush1.msra.mxu0 0.0
    %6400 = vmatprep.mubr.f32.mxu0 0.0
    %6401 = vmatmul.mubr.f32.gmra.mrb[0].mxu0 %v3427
    %v6402 = vpop.f32.mrb[0].mxu0
    %v6403 = vadd.f32 0.0, %v6402
    %v6404 = vpop.f32.mrb[0].mxu0
    %v6405 = vadd.f32 0.0, %v6404
    %6406 = vmatprep.mubr.f32.mxu0 0.0
    %6407 = vmatmul.mubr.f32.gmra.mrb[0].mxu0 %v3430
    %v6408 = vpop.f32.mrb[0].mxu0
    %v6409 = vadd.f32 0.0, %v6408
    %v6410 = vpop.f32.mrb[0].mxu0
    %v6411 = vadd.f32 0.0, %v6410
    %6412 = vmatprep.mubr.f32.mxu0 0.0
    %6413 = vmatmul.mubr.f32.gmra.mrb[0].mxu0 %v3433
    %v6414 = vpop.f32.mrb[0].mxu0
    %v6415 = vadd.f32 0.0, %v6414
    %v6416 = vpop.f32.mrb[0].mxu0
    %v6417 = vadd.f32 0.0, %v6416
    %6418 = vmatprep.mubr.f32.mxu0 0.0
    %6419 = vmatmul.mubr.f32.gmra.mrb[0].mxu0 %v3436
    %v6420 = vpop.f32.mrb[0].mxu0
    %v6421 = vadd.f32 0.0, %v6420
    %v6422 = vpop.f32.mrb[0].mxu0
    %v6423 = vadd.f32 0.0, %v6422
    %6424 = vdwg.mxu0
    %6425 = vmatprep.subr.mxu0 %v5866
    %6426 = vmatpush1.msra.mxu0 %v5864
    %6427 = vmatprep.subr.mxu0 %v5872
    %6428 = vmatpush1.msra.mxu0 %v5870
    %6429 = vmatprep.subr.mxu0 0.0
    %6430 = vmatpush1.msra.mxu0 0.0
    %6431 = vmatprep.subr.mxu0 0.0
    %6432 = vmatpush1.msra.mxu0 0.0
    %6433 = vmatprep.subr.mxu0 0.0
    %6434 = vmatpush1.msra.mxu0 0.0
    %6435 = vmatprep.subr.mxu0 0.0
    %6436 = vmatpush1.msra.mxu0 0.0
    %6437 = vmatprep.subr.mxu0 0.0
    %6438 = vmatpush1.msra.mxu0 0.0
    %6439 = vmatprep.subr.mxu0 0.0
    %6440 = vmatpush1.msra.mxu0 0.0
    %6441 = vmatprep.subr.mxu0 0.0
    %6442 = vmatpush1.msra.mxu0 0.0
    %6443 = vmatprep.subr.mxu0 0.0
    %6444 = vmatpush1.msra.mxu0 0.0
    %6445 = vmatprep.subr.mxu0 0.0
    %6446 = vmatpush1.msra.mxu0 0.0
    %6447 = vmatprep.subr.mxu0 0.0
    %6448 = vmatpush1.msra.mxu0 0.0
    %6449 = vmatprep.subr.mxu0 0.0
    %6450 = vmatpush1.msra.mxu0 0.0
    %6451 = vmatprep.subr.mxu0 0.0
    %6452 = vmatpush1.msra.mxu0 0.0
    %6453 = vmatprep.subr.mxu0 0.0
    %6454 = vmatpush1.msra.mxu0 0.0
    %6455 = vmatprep.subr.mxu0 0.0
    %6456 = vmatpush1.msra.mxu0 0.0
    %6457 = vmatprep.subr.mxu0 0.0
    %6458 = vmatpush1.msra.mxu0 0.0
    %6459 = vmatprep.subr.mxu0 0.0
    %6460 = vmatpush1.msra.mxu0 0.0
    %6461 = vmatprep.subr.mxu0 0.0
    %6462 = vmatpush1.msra.mxu0 0.0
    %6463 = vmatprep.subr.mxu0 0.0
    %6464 = vmatpush1.msra.mxu0 0.0
    %6465 = vmatprep.subr.mxu0 0.0
    %6466 = vmatpush1.msra.mxu0 0.0
    %6467 = vmatprep.subr.mxu0 0.0
    %6468 = vmatpush1.msra.mxu0 0.0
    %6469 = vmatprep.subr.mxu0 0.0
    %6470 = vmatpush1.msra.mxu0 0.0
    %6471 = vmatprep.subr.mxu0 0.0
    %6472 = vmatpush1.msra.mxu0 0.0
    %6473 = vmatprep.subr.mxu0 0.0
    %6474 = vmatpush1.msra.mxu0 0.0
    %6475 = vmatprep.subr.mxu0 0.0
    %6476 = vmatpush1.msra.mxu0 0.0
    %6477 = vmatprep.subr.mxu0 0.0
    %6478 = vmatpush1.msra.mxu0 0.0
    %6479 = vmatprep.subr.mxu0 0.0
    %6480 = vmatpush1.msra.mxu0 0.0
    %6481 = vmatprep.subr.mxu0 0.0
    %6482 = vmatpush1.msra.mxu0 0.0
    %6483 = vmatprep.subr.mxu0 0.0
    %6484 = vmatpush1.msra.mxu0 0.0
    %6485 = vmatprep.subr.mxu0 0.0
    %6486 = vmatpush1.msra.mxu0 0.0
    %6487 = vmatprep.subr.mxu0 0.0
    %6488 = vmatpush1.msra.mxu0 0.0
    %6489 = vmatprep.mubr.f32.mxu0 0.0
    %6490 = vmatmul.mubr.f32.gmra.mrb[0].mxu0 %v3427
    %v6491 = vpop.f32.mrb[0].mxu0
    %v6492 = vadd.f32 0.0, %v6491
    %v6493 = vpop.f32.mrb[0].mxu0
    %v6494 = vadd.f32 0.0, %v6493
    %6495 = vmatprep.mubr.f32.mxu0 0.0
    %6496 = vmatmul.mubr.f32.gmra.mrb[0].mxu0 %v3430
    %v6497 = vpop.f32.mrb[0].mxu0
    %v6498 = vadd.f32 0.0, %v6497
    %v6499 = vpop.f32.mrb[0].mxu0
    %v6500 = vadd.f32 0.0, %v6499
    %6501 = vmatprep.mubr.f32.mxu0 0.0
    %6502 = vmatmul.mubr.f32.gmra.mrb[0].mxu0 %v3433
    %v6503 = vpop.f32.mrb[0].mxu0
    %v6504 = vadd.f32 0.0, %v6503
    %v6505 = vpop.f32.mrb[0].mxu0
    %v6506 = vadd.f32 0.0, %v6505
    %6507 = vmatprep.mubr.f32.mxu0 0.0
    %6508 = vmatmul.mubr.f32.gmra.mrb[0].mxu0 %v3436
    %v6509 = vpop.f32.mrb[0].mxu0
    %v6510 = vadd.f32 0.0, %v6509
    %v6511 = vpop.f32.mrb[0].mxu0
    %v6512 = vadd.f32 0.0, %v6511
    %6513 = vdwg.mxu0
    %6514 = vmatprep.subr.mxu0 %v5943
    %6515 = vmatpush1.msra.mxu0 %v5941
    %6516 = vmatprep.subr.mxu0 %v5949
    %6517 = vmatpush1.msra.mxu0 %v5947
    %6518 = vmatprep.subr.mxu0 0.0
    %6519 = vmatpush1.msra.mxu0 0.0
    %6520 = vmatprep.subr.mxu0 0.0
    %6521 = vmatpush1.msra.mxu0 0.0
    %6522 = vmatprep.subr.mxu0 0.0
    %6523 = vmatpush1.msra.mxu0 0.0
    %6524 = vmatprep.subr.mxu0 0.0
    %6525 = vmatpush1.msra.mxu0 0.0
    %6526 = vmatprep.subr.mxu0 0.0
    %6527 = vmatpush1.msra.mxu0 0.0
    %6528 = vmatprep.subr.mxu0 0.0
    %6529 = vmatpush1.msra.mxu0 0.0
    %6530 = vmatprep.subr.mxu0 0.0
    %6531 = vmatpush1.msra.mxu0 0.0
    %6532 = vmatprep.subr.mxu0 0.0
    %6533 = vmatpush1.msra.mxu0 0.0
    %6534 = vmatprep.subr.mxu0 0.0
    %6535 = vmatpush1.msra.mxu0 0.0
    %6536 = vmatprep.subr.mxu0 0.0
    %6537 = vmatpush1.msra.mxu0 0.0
    %6538 = vmatprep.subr.mxu0 0.0
    %6539 = vmatpush1.msra.mxu0 0.0
    %6540 = vmatprep.subr.mxu0 0.0
    %6541 = vmatpush1.msra.mxu0 0.0
    %6542 = vmatprep.subr.mxu0 0.0
    %6543 = vmatpush1.msra.mxu0 0.0
    %6544 = vmatprep.subr.mxu0 0.0
    %6545 = vmatpush1.msra.mxu0 0.0
    %6546 = vmatprep.subr.mxu0 0.0
    %6547 = vmatpush1.msra.mxu0 0.0
    %6548 = vmatprep.subr.mxu0 0.0
    %6549 = vmatpush1.msra.mxu0 0.0
    %6550 = vmatprep.subr.mxu0 0.0
    %6551 = vmatpush1.msra.mxu0 0.0
    %6552 = vmatprep.subr.mxu0 0.0
    %6553 = vmatpush1.msra.mxu0 0.0
    %6554 = vmatprep.subr.mxu0 0.0
    %6555 = vmatpush1.msra.mxu0 0.0
    %6556 = vmatprep.subr.mxu0 0.0
    %6557 = vmatpush1.msra.mxu0 0.0
    %6558 = vmatprep.subr.mxu0 0.0
    %6559 = vmatpush1.msra.mxu0 0.0
    %6560 = vmatprep.subr.mxu0 0.0
    %6561 = vmatpush1.msra.mxu0 0.0
    %6562 = vmatprep.subr.mxu0 0.0
    %6563 = vmatpush1.msra.mxu0 0.0
    %6564 = vmatprep.subr.mxu0 0.0
    %6565 = vmatpush1.msra.mxu0 0.0
    %6566 = vmatprep.subr.mxu0 0.0
    %6567 = vmatpush1.msra.mxu0 0.0
    %6568 = vmatprep.subr.mxu0 0.0
    %6569 = vmatpush1.msra.mxu0 0.0
    %6570 = vmatprep.subr.mxu0 0.0
    %6571 = vmatpush1.msra.mxu0 0.0
    %6572 = vmatprep.subr.mxu0 0.0
    %6573 = vmatpush1.msra.mxu0 0.0
    %6574 = vmatprep.subr.mxu0 0.0
    %6575 = vmatpush1.msra.mxu0 0.0
    %6576 = vmatprep.subr.mxu0 0.0
    %6577 = vmatpush1.msra.mxu0 0.0
    %6578 = vmatprep.mubr.f32.mxu0 0.0
    %6579 = vmatmul.mubr.f32.gmra.mrb[0].mxu0 %v3427
    %v6580 = vpop.f32.mrb[0].mxu0
    %v6581 = vadd.f32 0.0, %v6580
    %v6582 = vpop.f32.mrb[0].mxu0
    %v6583 = vadd.f32 0.0, %v6582
    %6584 = vmatprep.mubr.f32.mxu0 0.0
    %6585 = vmatmul.mubr.f32.gmra.mrb[0].mxu0 %v3430
    %v6586 = vpop.f32.mrb[0].mxu0
    %v6587 = vadd.f32 0.0, %v6586
    %v6588 = vpop.f32.mrb[0].mxu0
    %v6589 = vadd.f32 0.0, %v6588
    %6590 = vmatprep.mubr.f32.mxu0 0.0
    %6591 = vmatmul.mubr.f32.gmra.mrb[0].mxu0 %v3433
    %v6592 = vpop.f32.mrb[0].mxu0
    %v6593 = vadd.f32 0.0, %v6592
    %v6594 = vpop.f32.mrb[0].mxu0
    %v6595 = vadd.f32 0.0, %v6594
    %6596 = vmatprep.mubr.f32.mxu0 0.0
    %6597 = vmatmul.mubr.f32.gmra.mrb[0].mxu0 %v3436
    %v6598 = vpop.f32.mrb[0].mxu0
    %v6599 = vadd.f32 0.0, %v6598
    %v6600 = vpop.f32.mrb[0].mxu0
    %v6601 = vadd.f32 0.0, %v6600
    %6602 = vdwg.mxu0
    %6603 = vmatprep.subr.mxu0 %v6020
    %6604 = vmatpush1.msra.mxu0 %v6018
    %6605 = vmatprep.subr.mxu0 %v6026
    %6606 = vmatpush1.msra.mxu0 %v6024
    %6607 = vmatprep.subr.mxu0 0.0
    %6608 = vmatpush1.msra.mxu0 0.0
    %6609 = vmatprep.subr.mxu0 0.0
    %6610 = vmatpush1.msra.mxu0 0.0
    %6611 = vmatprep.subr.mxu0 0.0
    %6612 = vmatpush1.msra.mxu0 0.0
    %6613 = vmatprep.subr.mxu0 0.0
    %6614 = vmatpush1.msra.mxu0 0.0
    %6615 = vmatprep.subr.mxu0 0.0
    %6616 = vmatpush1.msra.mxu0 0.0
    %6617 = vmatprep.subr.mxu0 0.0
    %6618 = vmatpush1.msra.mxu0 0.0
    %6619 = vmatprep.subr.mxu0 0.0
    %6620 = vmatpush1.msra.mxu0 0.0
    %6621 = vmatprep.subr.mxu0 0.0
    %6622 = vmatpush1.msra.mxu0 0.0
    %6623 = vmatprep.subr.mxu0 0.0
    %6624 = vmatpush1.msra.mxu0 0.0
    %6625 = vmatprep.subr.mxu0 0.0
    %6626 = vmatpush1.msra.mxu0 0.0
    %6627 = vmatprep.subr.mxu0 0.0
    %6628 = vmatpush1.msra.mxu0 0.0
    %6629 = vmatprep.subr.mxu0 0.0
    %6630 = vmatpush1.msra.mxu0 0.0
    %6631 = vmatprep.subr.mxu0 0.0
    %6632 = vmatpush1.msra.mxu0 0.0
    %6633 = vmatprep.subr.mxu0 0.0
    %6634 = vmatpush1.msra.mxu0 0.0
    %6635 = vmatprep.subr.mxu0 0.0
    %6636 = vmatpush1.msra.mxu0 0.0
    %6637 = vmatprep.subr.mxu0 0.0
    %6638 = vmatpush1.msra.mxu0 0.0
    %6639 = vmatprep.subr.mxu0 0.0
    %6640 = vmatpush1.msra.mxu0 0.0
    %6641 = vmatprep.subr.mxu0 0.0
    %6642 = vmatpush1.msra.mxu0 0.0
    %6643 = vmatprep.subr.mxu0 0.0
    %6644 = vmatpush1.msra.mxu0 0.0
    %6645 = vmatprep.subr.mxu0 0.0
    %6646 = vmatpush1.msra.mxu0 0.0
    %6647 = vmatprep.subr.mxu0 0.0
    %6648 = vmatpush1.msra.mxu0 0.0
    %6649 = vmatprep.subr.mxu0 0.0
    %6650 = vmatpush1.msra.mxu0 0.0
    %6651 = vmatprep.subr.mxu0 0.0
    %6652 = vmatpush1.msra.mxu0 0.0
    %6653 = vmatprep.subr.mxu0 0.0
    %6654 = vmatpush1.msra.mxu0 0.0
    %6655 = vmatprep.subr.mxu0 0.0
    %6656 = vmatpush1.msra.mxu0 0.0
    %6657 = vmatprep.subr.mxu0 0.0
    %6658 = vmatpush1.msra.mxu0 0.0
    %6659 = vmatprep.subr.mxu0 0.0
    %6660 = vmatpush1.msra.mxu0 0.0
    %6661 = vmatprep.subr.mxu0 0.0
    %6662 = vmatpush1.msra.mxu0 0.0
    %6663 = vmatprep.subr.mxu0 0.0
    %6664 = vmatpush1.msra.mxu0 0.0
    %6665 = vmatprep.subr.mxu0 0.0
    %6666 = vmatpush1.msra.mxu0 0.0
    %6667 = vmatprep.mubr.f32.mxu0 0.0
    %6668 = vmatmul.mubr.f32.gmra.mrb[0].mxu0 %v3427
    %v6669 = vpop.f32.mrb[0].mxu0
    %v6670 = vadd.f32 0.0, %v6669
    %v6671 = vpop.f32.mrb[0].mxu0
    %v6672 = vadd.f32 0.0, %v6671
    %6673 = vmatprep.mubr.f32.mxu0 0.0
    %6674 = vmatmul.mubr.f32.gmra.mrb[0].mxu0 %v3430
    %v6675 = vpop.f32.mrb[0].mxu0
    %v6676 = vadd.f32 0.0, %v6675
    %v6677 = vpop.f32.mrb[0].mxu0
    %v6678 = vadd.f32 0.0, %v6677
    %6679 = vmatprep.mubr.f32.mxu0 0.0
    %6680 = vmatmul.mubr.f32.gmra.mrb[0].mxu0 %v3433
    %v6681 = vpop.f32.mrb[0].mxu0
    %v6682 = vadd.f32 0.0, %v6681
    %v6683 = vpop.f32.mrb[0].mxu0
    %v6684 = vadd.f32 0.0, %v6683
    %6685 = vmatprep.mubr.f32.mxu0 0.0
    %6686 = vmatmul.mubr.f32.gmra.mrb[0].mxu0 %v3436
    %v6687 = vpop.f32.mrb[0].mxu0
    %v6688 = vadd.f32 0.0, %v6687
    %v6689 = vpop.f32.mrb[0].mxu0
    %v6690 = vadd.f32 0.0, %v6689
    %6691 = vdwg.mxu0
    %6692 = vmatprep.subr.mxu0 %v6097
    %6693 = vmatpush1.msra.mxu0 %v6095
    %6694 = vmatprep.subr.mxu0 %v6103
    %6695 = vmatpush1.msra.mxu0 %v6101
    %6696 = vmatprep.subr.mxu0 0.0
    %6697 = vmatpush1.msra.mxu0 0.0
    %6698 = vmatprep.subr.mxu0 0.0
    %6699 = vmatpush1.msra.mxu0 0.0
    %6700 = vmatprep.subr.mxu0 0.0
    %6701 = vmatpush1.msra.mxu0 0.0
    %6702 = vmatprep.subr.mxu0 0.0
    %6703 = vmatpush1.msra.mxu0 0.0
    %6704 = vmatprep.subr.mxu0 0.0
    %6705 = vmatpush1.msra.mxu0 0.0
    %6706 = vmatprep.subr.mxu0 0.0
    %6707 = vmatpush1.msra.mxu0 0.0
    %6708 = vmatprep.subr.mxu0 0.0
    %6709 = vmatpush1.msra.mxu0 0.0
    %6710 = vmatprep.subr.mxu0 0.0
    %6711 = vmatpush1.msra.mxu0 0.0
    %6712 = vmatprep.subr.mxu0 0.0
    %6713 = vmatpush1.msra.mxu0 0.0
    %6714 = vmatprep.subr.mxu0 0.0
    %6715 = vmatpush1.msra.mxu0 0.0
    %6716 = vmatprep.subr.mxu0 0.0
    %6717 = vmatpush1.msra.mxu0 0.0
    %6718 = vmatprep.subr.mxu0 0.0
    %6719 = vmatpush1.msra.mxu0 0.0
    %6720 = vmatprep.subr.mxu0 0.0
    %6721 = vmatpush1.msra.mxu0 0.0
    %6722 = vmatprep.subr.mxu0 0.0
    %6723 = vmatpush1.msra.mxu0 0.0
    %6724 = vmatprep.subr.mxu0 0.0
    %6725 = vmatpush1.msra.mxu0 0.0
    %6726 = vmatprep.subr.mxu0 0.0
    %6727 = vmatpush1.msra.mxu0 0.0
    %6728 = vmatprep.subr.mxu0 0.0
    %6729 = vmatpush1.msra.mxu0 0.0
    %6730 = vmatprep.subr.mxu0 0.0
    %6731 = vmatpush1.msra.mxu0 0.0
    %6732 = vmatprep.subr.mxu0 0.0
    %6733 = vmatpush1.msra.mxu0 0.0
    %6734 = vmatprep.subr.mxu0 0.0
    %6735 = vmatpush1.msra.mxu0 0.0
    %6736 = vmatprep.subr.mxu0 0.0
    %6737 = vmatpush1.msra.mxu0 0.0
    %6738 = vmatprep.subr.mxu0 0.0
    %6739 = vmatpush1.msra.mxu0 0.0
    %6740 = vmatprep.subr.mxu0 0.0
    %6741 = vmatpush1.msra.mxu0 0.0
    %6742 = vmatprep.subr.mxu0 0.0
    %6743 = vmatpush1.msra.mxu0 0.0
    %6744 = vmatprep.subr.mxu0 0.0
    %6745 = vmatpush1.msra.mxu0 0.0
    %6746 = vmatprep.subr.mxu0 0.0
    %6747 = vmatpush1.msra.mxu0 0.0
    %6748 = vmatprep.subr.mxu0 0.0
    %6749 = vmatpush1.msra.mxu0 0.0
    %6750 = vmatprep.subr.mxu0 0.0
    %6751 = vmatpush1.msra.mxu0 0.0
    %6752 = vmatprep.subr.mxu0 0.0
    %6753 = vmatpush1.msra.mxu0 0.0
    %6754 = vmatprep.subr.mxu0 0.0
    %6755 = vmatpush1.msra.mxu0 0.0
    %6756 = vmatprep.mubr.f32.mxu0 0.0
    %6757 = vmatmul.mubr.f32.gmra.mrb[0].mxu0 %v3427
    %v6758 = vpop.f32.mrb[0].mxu0
    %v6759 = vadd.f32 0.0, %v6758
    %v6760 = vpop.f32.mrb[0].mxu0
    %v6761 = vadd.f32 0.0, %v6760
    %6762 = vmatprep.mubr.f32.mxu0 0.0
    %6763 = vmatmul.mubr.f32.gmra.mrb[0].mxu0 %v3430
    %v6764 = vpop.f32.mrb[0].mxu0
    %v6765 = vadd.f32 0.0, %v6764
    %v6766 = vpop.f32.mrb[0].mxu0
    %v6767 = vadd.f32 0.0, %v6766
    %6768 = vmatprep.mubr.f32.mxu0 0.0
    %6769 = vmatmul.mubr.f32.gmra.mrb[0].mxu0 %v3433
    %v6770 = vpop.f32.mrb[0].mxu0
    %v6771 = vadd.f32 0.0, %v6770
    %v6772 = vpop.f32.mrb[0].mxu0
    %v6773 = vadd.f32 0.0, %v6772
    %6774 = vmatprep.mubr.f32.mxu0 0.0
    %6775 = vmatmul.mubr.f32.gmra.mrb[0].mxu0 %v3436
    %v6776 = vpop.f32.mrb[0].mxu0
    %v6777 = vadd.f32 0.0, %v6776
    %v6778 = vpop.f32.mrb[0].mxu0
    %v6779 = vadd.f32 0.0, %v6778
    %6780 = vdwg.mxu0
    %6781 = vmatprep.subr.mxu0 %v6174
    %6782 = vmatpush1.msra.mxu0 %v6172
    %6783 = vmatprep.subr.mxu0 %v6180
    %6784 = vmatpush1.msra.mxu0 %v6178
    %6785 = vmatprep.subr.mxu0 0.0
    %6786 = vmatpush1.msra.mxu0 0.0
    %6787 = vmatprep.subr.mxu0 0.0
    %6788 = vmatpush1.msra.mxu0 0.0
    %6789 = vmatprep.subr.mxu0 0.0
    %6790 = vmatpush1.msra.mxu0 0.0
    %6791 = vmatprep.subr.mxu0 0.0
    %6792 = vmatpush1.msra.mxu0 0.0
    %6793 = vmatprep.subr.mxu0 0.0
    %6794 = vmatpush1.msra.mxu0 0.0
    %6795 = vmatprep.subr.mxu0 0.0
    %6796 = vmatpush1.msra.mxu0 0.0
    %6797 = vmatprep.subr.mxu0 0.0
    %6798 = vmatpush1.msra.mxu0 0.0
    %6799 = vmatprep.subr.mxu0 0.0
    %6800 = vmatpush1.msra.mxu0 0.0
    %6801 = vmatprep.subr.mxu0 0.0
    %6802 = vmatpush1.msra.mxu0 0.0
    %6803 = vmatprep.subr.mxu0 0.0
    %6804 = vmatpush1.msra.mxu0 0.0
    %6805 = vmatprep.subr.mxu0 0.0
    %6806 = vmatpush1.msra.mxu0 0.0
    %6807 = vmatprep.subr.mxu0 0.0
    %6808 = vmatpush1.msra.mxu0 0.0
    %6809 = vmatprep.subr.mxu0 0.0
    %6810 = vmatpush1.msra.mxu0 0.0
    %6811 = vmatprep.subr.mxu0 0.0
    %6812 = vmatpush1.msra.mxu0 0.0
    %6813 = vmatprep.subr.mxu0 0.0
    %6814 = vmatpush1.msra.mxu0 0.0
    %6815 = vmatprep.subr.mxu0 0.0
    %6816 = vmatpush1.msra.mxu0 0.0
    %6817 = vmatprep.subr.mxu0 0.0
    %6818 = vmatpush1.msra.mxu0 0.0
    %6819 = vmatprep.subr.mxu0 0.0
    %6820 = vmatpush1.msra.mxu0 0.0
    %6821 = vmatprep.subr.mxu0 0.0
    %6822 = vmatpush1.msra.mxu0 0.0
    %6823 = vmatprep.subr.mxu0 0.0
    %6824 = vmatpush1.msra.mxu0 0.0
    %6825 = vmatprep.subr.mxu0 0.0
    %6826 = vmatpush1.msra.mxu0 0.0
    %6827 = vmatprep.subr.mxu0 0.0
    %6828 = vmatpush1.msra.mxu0 0.0
    %6829 = vmatprep.subr.mxu0 0.0
    %6830 = vmatpush1.msra.mxu0 0.0
    %6831 = vmatprep.subr.mxu0 0.0
    %6832 = vmatpush1.msra.mxu0 0.0
    %6833 = vmatprep.subr.mxu0 0.0
    %6834 = vmatpush1.msra.mxu0 0.0
    %6835 = vmatprep.subr.mxu0 0.0
    %6836 = vmatpush1.msra.mxu0 0.0
    %6837 = vmatprep.subr.mxu0 0.0
    %6838 = vmatpush1.msra.mxu0 0.0
    %6839 = vmatprep.subr.mxu0 0.0
    %6840 = vmatpush1.msra.mxu0 0.0
    %6841 = vmatprep.subr.mxu0 0.0
    %6842 = vmatpush1.msra.mxu0 0.0
    %6843 = vmatprep.subr.mxu0 0.0
    %6844 = vmatpush1.msra.mxu0 0.0
    %6845 = vmatprep.mubr.f32.mxu0 0.0
    %6846 = vmatmul.mubr.f32.gmra.mrb[0].mxu0 %v3427
    %v6847 = vpop.f32.mrb[0].mxu0
    %v6848 = vadd.f32 0.0, %v6847
    %v6849 = vpop.f32.mrb[0].mxu0
    %v6850 = vadd.f32 0.0, %v6849
    %6851 = vmatprep.mubr.f32.mxu0 0.0
    %6852 = vmatmul.mubr.f32.gmra.mrb[0].mxu0 %v3430
    %v6853 = vpop.f32.mrb[0].mxu0
    %v6854 = vadd.f32 0.0, %v6853
    %v6855 = vpop.f32.mrb[0].mxu0
    %v6856 = vadd.f32 0.0, %v6855
    %6857 = vmatprep.mubr.f32.mxu0 0.0
    %6858 = vmatmul.mubr.f32.gmra.mrb[0].mxu0 %v3433
    %v6859 = vpop.f32.mrb[0].mxu0
    %v6860 = vadd.f32 0.0, %v6859
    %v6861 = vpop.f32.mrb[0].mxu0
    %v6862 = vadd.f32 0.0, %v6861
    %6863 = vmatprep.mubr.f32.mxu0 0.0
    %6864 = vmatmul.mubr.f32.gmra.mrb[0].mxu0 %v3436
    %v6865 = vpop.f32.mrb[0].mxu0
    %v6866 = vadd.f32 0.0, %v6865
    %v6867 = vpop.f32.mrb[0].mxu0
    %v6868 = vadd.f32 0.0, %v6867
    %6869 = vdwg.mxu0
    %6870 = vmatprep.subr.mxu0 %v6251
    %6871 = vmatpush1.msra.mxu0 %v6249
    %6872 = vmatprep.subr.mxu0 %v6257
    %6873 = vmatpush1.msra.mxu0 %v6255
    %6874 = vmatprep.subr.mxu0 0.0
    %6875 = vmatpush1.msra.mxu0 0.0
    %6876 = vmatprep.subr.mxu0 0.0
    %6877 = vmatpush1.msra.mxu0 0.0
    %6878 = vmatprep.subr.mxu0 0.0
    %6879 = vmatpush1.msra.mxu0 0.0
    %6880 = vmatprep.subr.mxu0 0.0
    %6881 = vmatpush1.msra.mxu0 0.0
    %6882 = vmatprep.subr.mxu0 0.0
    %6883 = vmatpush1.msra.mxu0 0.0
    %6884 = vmatprep.subr.mxu0 0.0
    %6885 = vmatpush1.msra.mxu0 0.0
    %6886 = vmatprep.subr.mxu0 0.0
    %6887 = vmatpush1.msra.mxu0 0.0
    %6888 = vmatprep.subr.mxu0 0.0
    %6889 = vmatpush1.msra.mxu0 0.0
    %6890 = vmatprep.subr.mxu0 0.0
    %6891 = vmatpush1.msra.mxu0 0.0
    %6892 = vmatprep.subr.mxu0 0.0
    %6893 = vmatpush1.msra.mxu0 0.0
    %6894 = vmatprep.subr.mxu0 0.0
    %6895 = vmatpush1.msra.mxu0 0.0
    %6896 = vmatprep.subr.mxu0 0.0
    %6897 = vmatpush1.msra.mxu0 0.0
    %6898 = vmatprep.subr.mxu0 0.0
    %6899 = vmatpush1.msra.mxu0 0.0
    %6900 = vmatprep.subr.mxu0 0.0
    %6901 = vmatpush1.msra.mxu0 0.0
    %6902 = vmatprep.subr.mxu0 0.0
    %6903 = vmatpush1.msra.mxu0 0.0
    %6904 = vmatprep.subr.mxu0 0.0
    %6905 = vmatpush1.msra.mxu0 0.0
    %6906 = vmatprep.subr.mxu0 0.0
    %6907 = vmatpush1.msra.mxu0 0.0
    %6908 = vmatprep.subr.mxu0 0.0
    %6909 = vmatpush1.msra.mxu0 0.0
    %6910 = vmatprep.subr.mxu0 0.0
    %6911 = vmatpush1.msra.mxu0 0.0
    %6912 = vmatprep.subr.mxu0 0.0
    %6913 = vmatpush1.msra.mxu0 0.0
    %6914 = vmatprep.subr.mxu0 0.0
    %6915 = vmatpush1.msra.mxu0 0.0
    %6916 = vmatprep.subr.mxu0 0.0
    %6917 = vmatpush1.msra.mxu0 0.0
    %6918 = vmatprep.subr.mxu0 0.0
    %6919 = vmatpush1.msra.mxu0 0.0
    %6920 = vmatprep.subr.mxu0 0.0
    %6921 = vmatpush1.msra.mxu0 0.0
    %6922 = vmatprep.subr.mxu0 0.0
    %6923 = vmatpush1.msra.mxu0 0.0
    %6924 = vmatprep.subr.mxu0 0.0
    %6925 = vmatpush1.msra.mxu0 0.0
    %6926 = vmatprep.subr.mxu0 0.0
    %6927 = vmatpush1.msra.mxu0 0.0
    %6928 = vmatprep.subr.mxu0 0.0
    %6929 = vmatpush1.msra.mxu0 0.0
    %6930 = vmatprep.subr.mxu0 0.0
    %6931 = vmatpush1.msra.mxu0 0.0
    %6932 = vmatprep.subr.mxu0 0.0
    %6933 = vmatpush1.msra.mxu0 0.0
    %6934 = vmatprep.mubr.f32.mxu0 0.0
    %6935 = vmatmul.mubr.f32.gmra.mrb[0].mxu0 %v3427
    %v6936 = vpop.f32.mrb[0].mxu0
    %v6937 = vadd.f32 0.0, %v6936
    %v6938 = vpop.f32.mrb[0].mxu0
    %v6939 = vadd.f32 0.0, %v6938
    %6940 = vmatprep.mubr.f32.mxu0 0.0
    %6941 = vmatmul.mubr.f32.gmra.mrb[0].mxu0 %v3430
    %v6942 = vpop.f32.mrb[0].mxu0
    %v6943 = vadd.f32 0.0, %v6942
    %v6944 = vpop.f32.mrb[0].mxu0
    %v6945 = vadd.f32 0.0, %v6944
    %6946 = vmatprep.mubr.f32.mxu0 0.0
    %6947 = vmatmul.mubr.f32.gmra.mrb[0].mxu0 %v3433
    %v6948 = vpop.f32.mrb[0].mxu0
    %v6949 = vadd.f32 0.0, %v6948
    %v6950 = vpop.f32.mrb[0].mxu0
    %v6951 = vadd.f32 0.0, %v6950
    %6952 = vmatprep.mubr.f32.mxu0 0.0
    %6953 = vmatmul.mubr.f32.gmra.mrb[0].mxu0 %v3436
    %v6954 = vpop.f32.mrb[0].mxu0
    %v6955 = vadd.f32 0.0, %v6954
    %v6956 = vpop.f32.mrb[0].mxu0
    %v6957 = vadd.f32 0.0, %v6956
    %6958 = vdwg.mxu0
    %6959 = vmatprep.subr.mxu0 %v6328
    %6960 = vmatpush1.msra.mxu0 %v6326
    %6961 = vmatprep.subr.mxu0 %v6334
    %6962 = vmatpush1.msra.mxu0 %v6332
    %6963 = vmatprep.subr.mxu0 0.0
    %6964 = vmatpush1.msra.mxu0 0.0
    %6965 = vmatprep.subr.mxu0 0.0
    %6966 = vmatpush1.msra.mxu0 0.0
    %6967 = vmatprep.subr.mxu0 0.0
    %6968 = vmatpush1.msra.mxu0 0.0
    %6969 = vmatprep.subr.mxu0 0.0
    %6970 = vmatpush1.msra.mxu0 0.0
    %6971 = vmatprep.subr.mxu0 0.0
    %6972 = vmatpush1.msra.mxu0 0.0
    %6973 = vmatprep.subr.mxu0 0.0
    %6974 = vmatpush1.msra.mxu0 0.0
    %6975 = vmatprep.subr.mxu0 0.0
    %6976 = vmatpush1.msra.mxu0 0.0
    %6977 = vmatprep.subr.mxu0 0.0
    %6978 = vmatpush1.msra.mxu0 0.0
    %6979 = vmatprep.subr.mxu0 0.0
    %6980 = vmatpush1.msra.mxu0 0.0
    %6981 = vmatprep.subr.mxu0 0.0
    %6982 = vmatpush1.msra.mxu0 0.0
    %6983 = vmatprep.subr.mxu0 0.0
    %6984 = vmatpush1.msra.mxu0 0.0
    %6985 = vmatprep.subr.mxu0 0.0
    %6986 = vmatpush1.msra.mxu0 0.0
    %6987 = vmatprep.subr.mxu0 0.0
    %6988 = vmatpush1.msra.mxu0 0.0
    %6989 = vmatprep.subr.mxu0 0.0
    %6990 = vmatpush1.msra.mxu0 0.0
    %6991 = vmatprep.subr.mxu0 0.0
    %6992 = vmatpush1.msra.mxu0 0.0
    %6993 = vmatprep.subr.mxu0 0.0
    %6994 = vmatpush1.msra.mxu0 0.0
    %6995 = vmatprep.subr.mxu0 0.0
    %6996 = vmatpush1.msra.mxu0 0.0
    %6997 = vmatprep.subr.mxu0 0.0
    %6998 = vmatpush1.msra.mxu0 0.0
    %6999 = vmatprep.subr.mxu0 0.0
    %7000 = vmatpush1.msra.mxu0 0.0
    %7001 = vmatprep.subr.mxu0 0.0
    %7002 = vmatpush1.msra.mxu0 0.0
    %7003 = vmatprep.subr.mxu0 0.0
    %7004 = vmatpush1.msra.mxu0 0.0
    %7005 = vmatprep.subr.mxu0 0.0
    %7006 = vmatpush1.msra.mxu0 0.0
    %7007 = vmatprep.subr.mxu0 0.0
    %7008 = vmatpush1.msra.mxu0 0.0
    %7009 = vmatprep.subr.mxu0 0.0
    %7010 = vmatpush1.msra.mxu0 0.0
    %7011 = vmatprep.subr.mxu0 0.0
    %7012 = vmatpush1.msra.mxu0 0.0
    %7013 = vmatprep.subr.mxu0 0.0
    %7014 = vmatpush1.msra.mxu0 0.0
    %7015 = vmatprep.subr.mxu0 0.0
    %7016 = vmatpush1.msra.mxu0 0.0
    %7017 = vmatprep.subr.mxu0 0.0
    %7018 = vmatpush1.msra.mxu0 0.0
    %7019 = vmatprep.subr.mxu0 0.0
    %7020 = vmatpush1.msra.mxu0 0.0
    %7021 = vmatprep.subr.mxu0 0.0
    %7022 = vmatpush1.msra.mxu0 0.0
    %7023 = vmatprep.mubr.f32.mxu0 0.0
    %7024 = vmatmul.mubr.f32.gmra.mrb[0].mxu0 %v3427
    %v7025 = vpop.f32.mrb[0].mxu0
    %v7026 = vadd.f32 0.0, %v7025
    %v7027 = vpop.f32.mrb[0].mxu0
    %v7028 = vadd.f32 0.0, %v7027
    %7029 = vmatprep.mubr.f32.mxu0 0.0
    %7030 = vmatmul.mubr.f32.gmra.mrb[0].mxu0 %v3430
    %v7031 = vpop.f32.mrb[0].mxu0
    %v7032 = vadd.f32 0.0, %v7031
    %v7033 = vpop.f32.mrb[0].mxu0
    %v7034 = vadd.f32 0.0, %v7033
    %7035 = vmatprep.mubr.f32.mxu0 0.0
    %7036 = vmatmul.mubr.f32.gmra.mrb[0].mxu0 %v3433
    %v7037 = vpop.f32.mrb[0].mxu0
    %v7038 = vadd.f32 0.0, %v7037
    %v7039 = vpop.f32.mrb[0].mxu0
    %v7040 = vadd.f32 0.0, %v7039
    %7041 = vmatprep.mubr.f32.mxu0 0.0
    %7042 = vmatmul.mubr.f32.gmra.mrb[0].mxu0 %v3436
    %v7043 = vpop.f32.mrb[0].mxu0
    %v7044 = vadd.f32 0.0, %v7043
    %v7045 = vpop.f32.mrb[0].mxu0
    %v7046 = vadd.f32 0.0, %v7045
    %7047 = vdwg.mxu0
    %v7048 = vmul.f32 %v2157, %v6403
    %v7049 = vmul.f32 %v2159, %v6405
    %v7050 = vmul.f32 %v2246, %v6492
    %v7051 = vmul.f32 %v2248, %v6494
    %v7052 = vmul.f32 %v2335, %v6581
    %v7053 = vmul.f32 %v2337, %v6583
    %v7054 = vmul.f32 %v2424, %v6670
    %v7055 = vmul.f32 %v2426, %v6672
    %v7056 = vmul.f32 %v2513, %v6759
    %v7057 = vmul.f32 %v2515, %v6761
    %v7058 = vmul.f32 %v2602, %v6848
    %v7059 = vmul.f32 %v2604, %v6850
    %v7060 = vmul.f32 %v2691, %v6937
    %v7061 = vmul.f32 %v2693, %v6939
    %v7062 = vmul.f32 %v2780, %v7026
    %v7063 = vmul.f32 %v2782, %v7028
    %v7064 = vmul.f32 %v2163, %v6409
    %v7065 = vmul.f32 %v2165, %v6411
    %v7066 = vmul.f32 %v2252, %v6498
    %v7067 = vmul.f32 %v2254, %v6500
    %v7068 = vmul.f32 %v2341, %v6587
    %v7069 = vmul.f32 %v2343, %v6589
    %v7070 = vmul.f32 %v2430, %v6676
    %v7071 = vmul.f32 %v2432, %v6678
    %v7072 = vmul.f32 %v2519, %v6765
    %v7073 = vmul.f32 %v2521, %v6767
    %v7074 = vmul.f32 %v2608, %v6854
    %v7075 = vmul.f32 %v2610, %v6856
    %v7076 = vmul.f32 %v2697, %v6943
    %v7077 = vmul.f32 %v2699, %v6945
    %v7078 = vmul.f32 %v2786, %v7032
    %v7079 = vmul.f32 %v2788, %v7034
    %v7080 = vmul.f32 %v2169, %v6415
    %v7081 = vmul.f32 %v2171, %v6417
    %v7082 = vmul.f32 %v2258, %v6504
    %v7083 = vmul.f32 %v2260, %v6506
    %v7084 = vmul.f32 %v2347, %v6593
    %v7085 = vmul.f32 %v2349, %v6595
    %v7086 = vmul.f32 %v2436, %v6682
    %v7087 = vmul.f32 %v2438, %v6684
    %v7088 = vmul.f32 %v2525, %v6771
    %v7089 = vmul.f32 %v2527, %v6773
    %v7090 = vmul.f32 %v2614, %v6860
    %v7091 = vmul.f32 %v2616, %v6862
    %v7092 = vmul.f32 %v2703, %v6949
    %v7093 = vmul.f32 %v2705, %v6951
    %v7094 = vmul.f32 %v2792, %v7038
    %v7095 = vmul.f32 %v2794, %v7040
    %v7096 = vmul.f32 %v2175, %v6421
    %v7097 = vmul.f32 %v2177, %v6423
    %v7098 = vmul.f32 %v2264, %v6510
    %v7099 = vmul.f32 %v2266, %v6512
    %v7100 = vmul.f32 %v2353, %v6599
    %v7101 = vmul.f32 %v2355, %v6601
    %v7102 = vmul.f32 %v2442, %v6688
    %v7103 = vmul.f32 %v2444, %v6690
    %v7104 = vmul.f32 %v2531, %v6777
    %v7105 = vmul.f32 %v2533, %v6779
    %v7106 = vmul.f32 %v2620, %v6866
    %v7107 = vmul.f32 %v2622, %v6868
    %v7108 = vmul.f32 %v2709, %v6955
    %v7109 = vmul.f32 %v2711, %v6957
    %v7110 = vmul.f32 %v2798, %v7044
    %v7111 = vmul.f32 %v2800, %v7046
    %7112 = vmatprep.subr.mxu0 0.0
    %7113 = vmatpush1.msra.mxu0 %v1821
    %7114 = vmatprep.subr.mxu0 0.0
    %7115 = vmatpush1.msra.mxu0 %v1822
    %7116 = vmatprep.subr.mxu0 0.0
    %7117 = vmatpush1.msra.mxu0 %v1823
    %7118 = vmatprep.subr.mxu0 0.0
    %7119 = vmatpush1.msra.mxu0 %v1824
    %7120 = vmatprep.subr.mxu0 0.0
    %7121 = vmatpush1.msra.mxu0 %v1825
    %7122 = vmatprep.subr.mxu0 0.0
    %7123 = vmatpush1.msra.mxu0 %v1826
    %7124 = vmatprep.subr.mxu0 0.0
    %7125 = vmatpush1.msra.mxu0 %v1827
    %7126 = vmatprep.subr.mxu0 0.0
    %7127 = vmatpush1.msra.mxu0 %v1828
    %7128 = vmatprep.subr.mxu0 0.0
    %7129 = vmatpush1.msra.mxu0 %v1829
    %7130 = vmatprep.subr.mxu0 0.0
    %7131 = vmatpush1.msra.mxu0 %v1830
    %7132 = vmatprep.subr.mxu0 0.0
    %7133 = vmatpush1.msra.mxu0 %v1831
    %7134 = vmatprep.subr.mxu0 0.0
    %7135 = vmatpush1.msra.mxu0 %v1832
    %7136 = vmatprep.subr.mxu0 0.0
    %7137 = vmatpush1.msra.mxu0 %v1833
    %7138 = vmatprep.subr.mxu0 0.0
    %7139 = vmatpush1.msra.mxu0 %v1834
    %7140 = vmatprep.subr.mxu0 0.0
    %7141 = vmatpush1.msra.mxu0 %v1835
    %7142 = vmatprep.subr.mxu0 0.0
    %7143 = vmatpush1.msra.mxu0 %v1836
    %7144 = vmatprep.subr.mxu0 0.0
    %7145 = vmatpush1.msra.mxu0 %v1837
    %7146 = vmatprep.subr.mxu0 0.0
    %7147 = vmatpush1.msra.mxu0 %v1838
    %7148 = vmatprep.subr.mxu0 0.0
    %7149 = vmatpush1.msra.mxu0 %v1839
    %7150 = vmatprep.subr.mxu0 0.0
    %7151 = vmatpush1.msra.mxu0 %v1840
    %7152 = vmatprep.subr.mxu0 0.0
    %7153 = vmatpush1.msra.mxu0 %v1841
    %7154 = vmatprep.subr.mxu0 0.0
    %7155 = vmatpush1.msra.mxu0 %v1842
    %7156 = vmatprep.subr.mxu0 0.0
    %7157 = vmatpush1.msra.mxu0 %v1843
    %7158 = vmatprep.subr.mxu0 0.0
    %7159 = vmatpush1.msra.mxu0 %v1844
    %7160 = vmatprep.subr.mxu0 0.0
    %7161 = vmatpush1.msra.mxu0 %v1845
    %7162 = vmatprep.subr.mxu0 0.0
    %7163 = vmatpush1.msra.mxu0 %v1846
    %7164 = vmatprep.subr.mxu0 0.0
    %7165 = vmatpush1.msra.mxu0 %v1847
    %7166 = vmatprep.subr.mxu0 0.0
    %7167 = vmatpush1.msra.mxu0 %v1848
    %7168 = vmatprep.subr.mxu0 0.0
    %7169 = vmatpush1.msra.mxu0 %v1849
    %7170 = vmatprep.subr.mxu0 0.0
    %7171 = vmatpush1.msra.mxu0 %v1850
    %7172 = vmatprep.subr.mxu0 0.0
    %7173 = vmatpush1.msra.mxu0 %v1851
    %7174 = vmatprep.subr.mxu0 0.0
    %7175 = vmatpush1.msra.mxu0 %v1852
    %7176 = vmatprep.mubr.f32.mxu0 %v7049
    %7177 = vmatmul.mubr.f32.gmra.mrb[0].mxu0 %v7048
    %v7178 = vpop.f32.mrb[0].mxu0
    %v7179 = vadd.f32 0.0, %v7178
    %v7180 = vpop.f32.mrb[0].mxu0
    %7181 = vmatprep.mubr.f32.mxu0 %v7065
    %7182 = vmatmul.mubr.f32.gmra.mrb[0].mxu0 %v7064
    %v7183 = vpop.f32.mrb[0].mxu0
    %v7184 = vadd.f32 0.0, %v7183
    %v7185 = vpop.f32.mrb[0].mxu0
    %7186 = vmatprep.mubr.f32.mxu0 %v7081
    %7187 = vmatmul.mubr.f32.gmra.mrb[0].mxu0 %v7080
    %v7188 = vpop.f32.mrb[0].mxu0
    %v7189 = vadd.f32 0.0, %v7188
    %v7190 = vpop.f32.mrb[0].mxu0
    %7191 = vmatprep.mubr.f32.mxu0 %v7097
    %7192 = vmatmul.mubr.f32.gmra.mrb[0].mxu0 %v7096
    %v7193 = vpop.f32.mrb[0].mxu0
    %v7194 = vadd.f32 0.0, %v7193
    %v7195 = vpop.f32.mrb[0].mxu0
    %7196 = vdwg.mxu0
    %7197 = vmatprep.subr.mxu0 0.0
    %7198 = vmatpush1.msra.mxu0 %v1853
    %7199 = vmatprep.subr.mxu0 0.0
    %7200 = vmatpush1.msra.mxu0 %v1854
    %7201 = vmatprep.subr.mxu0 0.0
    %7202 = vmatpush1.msra.mxu0 %v1855
    %7203 = vmatprep.subr.mxu0 0.0
    %7204 = vmatpush1.msra.mxu0 %v1856
    %7205 = vmatprep.subr.mxu0 0.0
    %7206 = vmatpush1.msra.mxu0 %v1857
    %7207 = vmatprep.subr.mxu0 0.0
    %7208 = vmatpush1.msra.mxu0 %v1858
    %7209 = vmatprep.subr.mxu0 0.0
    %7210 = vmatpush1.msra.mxu0 %v1859
    %7211 = vmatprep.subr.mxu0 0.0
    %7212 = vmatpush1.msra.mxu0 %v1860
    %7213 = vmatprep.subr.mxu0 0.0
    %7214 = vmatpush1.msra.mxu0 %v1861
    %7215 = vmatprep.subr.mxu0 0.0
    %7216 = vmatpush1.msra.mxu0 %v1862
    %7217 = vmatprep.subr.mxu0 0.0
    %7218 = vmatpush1.msra.mxu0 %v1863
    %7219 = vmatprep.subr.mxu0 0.0
    %7220 = vmatpush1.msra.mxu0 %v1864
    %7221 = vmatprep.subr.mxu0 0.0
    %7222 = vmatpush1.msra.mxu0 %v1865
    %7223 = vmatprep.subr.mxu0 0.0
    %7224 = vmatpush1.msra.mxu0 %v1866
    %7225 = vmatprep.subr.mxu0 0.0
    %7226 = vmatpush1.msra.mxu0 %v1867
    %7227 = vmatprep.subr.mxu0 0.0
    %7228 = vmatpush1.msra.mxu0 %v1868
    %7229 = vmatprep.subr.mxu0 0.0
    %7230 = vmatpush1.msra.mxu0 %v1869
    %7231 = vmatprep.subr.mxu0 0.0
    %7232 = vmatpush1.msra.mxu0 %v1870
    %7233 = vmatprep.subr.mxu0 0.0
    %7234 = vmatpush1.msra.mxu0 %v1871
    %7235 = vmatprep.subr.mxu0 0.0
    %7236 = vmatpush1.msra.mxu0 %v1872
    %7237 = vmatprep.subr.mxu0 0.0
    %7238 = vmatpush1.msra.mxu0 %v1873
    %7239 = vmatprep.subr.mxu0 0.0
    %7240 = vmatpush1.msra.mxu0 %v1874
    %7241 = vmatprep.subr.mxu0 0.0
    %7242 = vmatpush1.msra.mxu0 %v1875
    %7243 = vmatprep.subr.mxu0 0.0
    %7244 = vmatpush1.msra.mxu0 %v1876
    %7245 = vmatprep.subr.mxu0 0.0
    %7246 = vmatpush1.msra.mxu0 %v1877
    %7247 = vmatprep.subr.mxu0 0.0
    %7248 = vmatpush1.msra.mxu0 %v1878
    %7249 = vmatprep.subr.mxu0 0.0
    %7250 = vmatpush1.msra.mxu0 %v1879
    %7251 = vmatprep.subr.mxu0 0.0
    %7252 = vmatpush1.msra.mxu0 %v1880
    %7253 = vmatprep.subr.mxu0 0.0
    %7254 = vmatpush1.msra.mxu0 %v1881
    %7255 = vmatprep.subr.mxu0 0.0
    %7256 = vmatpush1.msra.mxu0 %v1882
    %7257 = vmatprep.subr.mxu0 0.0
    %7258 = vmatpush1.msra.mxu0 %v1883
    %7259 = vmatprep.subr.mxu0 0.0
    %7260 = vmatpush1.msra.mxu0 %v1884
    %7261 = vmatprep.mubr.f32.mxu0 %v7051
    %7262 = vmatmul.mubr.f32.gmra.mrb[0].mxu0 %v7050
    %v7263 = vpop.f32.mrb[0].mxu0
    %v7264 = vadd.f32 %v7179, %v7263
    %v7265 = vpop.f32.mrb[0].mxu0
    %7266 = vmatprep.mubr.f32.mxu0 %v7067
    %7267 = vmatmul.mubr.f32.gmra.mrb[0].mxu0 %v7066
    %v7268 = vpop.f32.mrb[0].mxu0
    %v7269 = vadd.f32 %v7184, %v7268
    %v7270 = vpop.f32.mrb[0].mxu0
    %7271 = vmatprep.mubr.f32.mxu0 %v7083
    %7272 = vmatmul.mubr.f32.gmra.mrb[0].mxu0 %v7082
    %v7273 = vpop.f32.mrb[0].mxu0
    %v7274 = vadd.f32 %v7189, %v7273
    %v7275 = vpop.f32.mrb[0].mxu0
    %7276 = vmatprep.mubr.f32.mxu0 %v7099
    %7277 = vmatmul.mubr.f32.gmra.mrb[0].mxu0 %v7098
    %v7278 = vpop.f32.mrb[0].mxu0
    %v7279 = vadd.f32 %v7194, %v7278
    %v7280 = vpop.f32.mrb[0].mxu0
    %7281 = vdwg.mxu0
    %7282 = vmatprep.subr.mxu0 0.0
    %7283 = vmatpush1.msra.mxu0 %v1885
    %7284 = vmatprep.subr.mxu0 0.0
    %7285 = vmatpush1.msra.mxu0 %v1886
    %7286 = vmatprep.subr.mxu0 0.0
    %7287 = vmatpush1.msra.mxu0 %v1887
    %7288 = vmatprep.subr.mxu0 0.0
    %7289 = vmatpush1.msra.mxu0 %v1888
    %7290 = vmatprep.subr.mxu0 0.0
    %7291 = vmatpush1.msra.mxu0 %v1889
    %7292 = vmatprep.subr.mxu0 0.0
    %7293 = vmatpush1.msra.mxu0 %v1890
    %7294 = vmatprep.subr.mxu0 0.0
    %7295 = vmatpush1.msra.mxu0 %v1891
    %7296 = vmatprep.subr.mxu0 0.0
    %7297 = vmatpush1.msra.mxu0 %v1892
    %7298 = vmatprep.subr.mxu0 0.0
    %7299 = vmatpush1.msra.mxu0 %v1893
    %7300 = vmatprep.subr.mxu0 0.0
    %7301 = vmatpush1.msra.mxu0 %v1894
    %7302 = vmatprep.subr.mxu0 0.0
    %7303 = vmatpush1.msra.mxu0 %v1895
    %7304 = vmatprep.subr.mxu0 0.0
    %7305 = vmatpush1.msra.mxu0 %v1896
    %7306 = vmatprep.subr.mxu0 0.0
    %7307 = vmatpush1.msra.mxu0 %v1897
    %7308 = vmatprep.subr.mxu0 0.0
    %7309 = vmatpush1.msra.mxu0 %v1898
    %7310 = vmatprep.subr.mxu0 0.0
    %7311 = vmatpush1.msra.mxu0 %v1899
    %7312 = vmatprep.subr.mxu0 0.0
    %7313 = vmatpush1.msra.mxu0 %v1900
    %7314 = vmatprep.subr.mxu0 0.0
    %7315 = vmatpush1.msra.mxu0 %v1901
    %7316 = vmatprep.subr.mxu0 0.0
    %7317 = vmatpush1.msra.mxu0 %v1902
    %7318 = vmatprep.subr.mxu0 0.0
    %7319 = vmatpush1.msra.mxu0 %v1903
    %7320 = vmatprep.subr.mxu0 0.0
    %7321 = vmatpush1.msra.mxu0 %v1904
    %7322 = vmatprep.subr.mxu0 0.0
    %7323 = vmatpush1.msra.mxu0 %v1905
    %7324 = vmatprep.subr.mxu0 0.0
    %7325 = vmatpush1.msra.mxu0 %v1906
    %7326 = vmatprep.subr.mxu0 0.0
    %7327 = vmatpush1.msra.mxu0 %v1907
    %7328 = vmatprep.subr.mxu0 0.0
    %7329 = vmatpush1.msra.mxu0 %v1908
    %7330 = vmatprep.subr.mxu0 0.0
    %7331 = vmatpush1.msra.mxu0 %v1909
    %7332 = vmatprep.subr.mxu0 0.0
    %7333 = vmatpush1.msra.mxu0 %v1910
    %7334 = vmatprep.subr.mxu0 0.0
    %7335 = vmatpush1.msra.mxu0 %v1911
    %7336 = vmatprep.subr.mxu0 0.0
    %7337 = vmatpush1.msra.mxu0 %v1912
    %7338 = vmatprep.subr.mxu0 0.0
    %7339 = vmatpush1.msra.mxu0 %v1913
    %7340 = vmatprep.subr.mxu0 0.0
    %7341 = vmatpush1.msra.mxu0 %v1914
    %7342 = vmatprep.subr.mxu0 0.0
    %7343 = vmatpush1.msra.mxu0 %v1915
    %7344 = vmatprep.subr.mxu0 0.0
    %7345 = vmatpush1.msra.mxu0 %v1916
    %7346 = vmatprep.mubr.f32.mxu0 %v7053
    %7347 = vmatmul.mubr.f32.gmra.mrb[0].mxu0 %v7052
    %v7348 = vpop.f32.mrb[0].mxu0
    %v7349 = vadd.f32 %v7264, %v7348
    %v7350 = vpop.f32.mrb[0].mxu0
    %7351 = vmatprep.mubr.f32.mxu0 %v7069
    %7352 = vmatmul.mubr.f32.gmra.mrb[0].mxu0 %v7068
    %v7353 = vpop.f32.mrb[0].mxu0
    %v7354 = vadd.f32 %v7269, %v7353
    %v7355 = vpop.f32.mrb[0].mxu0
    %7356 = vmatprep.mubr.f32.mxu0 %v7085
    %7357 = vmatmul.mubr.f32.gmra.mrb[0].mxu0 %v7084
    %v7358 = vpop.f32.mrb[0].mxu0
    %v7359 = vadd.f32 %v7274, %v7358
    %v7360 = vpop.f32.mrb[0].mxu0
    %7361 = vmatprep.mubr.f32.mxu0 %v7101
    %7362 = vmatmul.mubr.f32.gmra.mrb[0].mxu0 %v7100
    %v7363 = vpop.f32.mrb[0].mxu0
    %v7364 = vadd.f32 %v7279, %v7363
    %v7365 = vpop.f32.mrb[0].mxu0
    %7366 = vdwg.mxu0
    %7367 = vmatprep.subr.mxu0 0.0
    %7368 = vmatpush1.msra.mxu0 %v1917
    %7369 = vmatprep.subr.mxu0 0.0
    %7370 = vmatpush1.msra.mxu0 %v1918
    %7371 = vmatprep.subr.mxu0 0.0
    %7372 = vmatpush1.msra.mxu0 %v1919
    %7373 = vmatprep.subr.mxu0 0.0
    %7374 = vmatpush1.msra.mxu0 %v1920
    %7375 = vmatprep.subr.mxu0 0.0
    %7376 = vmatpush1.msra.mxu0 %v1921
    %7377 = vmatprep.subr.mxu0 0.0
    %7378 = vmatpush1.msra.mxu0 %v1922
    %7379 = vmatprep.subr.mxu0 0.0
    %7380 = vmatpush1.msra.mxu0 %v1923
    %7381 = vmatprep.subr.mxu0 0.0
    %7382 = vmatpush1.msra.mxu0 %v1924
    %7383 = vmatprep.subr.mxu0 0.0
    %7384 = vmatpush1.msra.mxu0 %v1925
    %7385 = vmatprep.subr.mxu0 0.0
    %7386 = vmatpush1.msra.mxu0 %v1926
    %7387 = vmatprep.subr.mxu0 0.0
    %7388 = vmatpush1.msra.mxu0 %v1927
    %7389 = vmatprep.subr.mxu0 0.0
    %7390 = vmatpush1.msra.mxu0 %v1928
    %7391 = vmatprep.subr.mxu0 0.0
    %7392 = vmatpush1.msra.mxu0 %v1929
    %7393 = vmatprep.subr.mxu0 0.0
    %7394 = vmatpush1.msra.mxu0 %v1930
    %7395 = vmatprep.subr.mxu0 0.0
    %7396 = vmatpush1.msra.mxu0 %v1931
    %7397 = vmatprep.subr.mxu0 0.0
    %7398 = vmatpush1.msra.mxu0 %v1932
    %7399 = vmatprep.subr.mxu0 0.0
    %7400 = vmatpush1.msra.mxu0 %v1933
    %7401 = vmatprep.subr.mxu0 0.0
    %7402 = vmatpush1.msra.mxu0 %v1934
    %7403 = vmatprep.subr.mxu0 0.0
    %7404 = vmatpush1.msra.mxu0 %v1935
    %7405 = vmatprep.subr.mxu0 0.0
    %7406 = vmatpush1.msra.mxu0 %v1936
    %7407 = vmatprep.subr.mxu0 0.0
    %7408 = vmatpush1.msra.mxu0 %v1937
    %7409 = vmatprep.subr.mxu0 0.0
    %7410 = vmatpush1.msra.mxu0 %v1938
    %7411 = vmatprep.subr.mxu0 0.0
    %7412 = vmatpush1.msra.mxu0 %v1939
    %7413 = vmatprep.subr.mxu0 0.0
    %7414 = vmatpush1.msra.mxu0 %v1940
    %7415 = vmatprep.subr.mxu0 0.0
    %7416 = vmatpush1.msra.mxu0 %v1941
    %7417 = vmatprep.subr.mxu0 0.0
    %7418 = vmatpush1.msra.mxu0 %v1942
    %7419 = vmatprep.subr.mxu0 0.0
    %7420 = vmatpush1.msra.mxu0 %v1943
    %7421 = vmatprep.subr.mxu0 0.0
    %7422 = vmatpush1.msra.mxu0 %v1944
    %7423 = vmatprep.subr.mxu0 0.0
    %7424 = vmatpush1.msra.mxu0 %v1945
    %7425 = vmatprep.subr.mxu0 0.0
    %7426 = vmatpush1.msra.mxu0 %v1946
    %7427 = vmatprep.subr.mxu0 0.0
    %7428 = vmatpush1.msra.mxu0 %v1947
    %7429 = vmatprep.subr.mxu0 0.0
    %7430 = vmatpush1.msra.mxu0 %v1948
    %7431 = vmatprep.mubr.f32.mxu0 %v7055
    %7432 = vmatmul.mubr.f32.gmra.mrb[0].mxu0 %v7054
    %v7433 = vpop.f32.mrb[0].mxu0
    %v7434 = vadd.f32 %v7349, %v7433
    %v7435 = vpop.f32.mrb[0].mxu0
    %7436 = vmatprep.mubr.f32.mxu0 %v7071
    %7437 = vmatmul.mubr.f32.gmra.mrb[0].mxu0 %v7070
    %v7438 = vpop.f32.mrb[0].mxu0
    %v7439 = vadd.f32 %v7354, %v7438
    %v7440 = vpop.f32.mrb[0].mxu0
    %7441 = vmatprep.mubr.f32.mxu0 %v7087
    %7442 = vmatmul.mubr.f32.gmra.mrb[0].mxu0 %v7086
    %v7443 = vpop.f32.mrb[0].mxu0
    %v7444 = vadd.f32 %v7359, %v7443
    %v7445 = vpop.f32.mrb[0].mxu0
    %7446 = vmatprep.mubr.f32.mxu0 %v7103
    %7447 = vmatmul.mubr.f32.gmra.mrb[0].mxu0 %v7102
    %v7448 = vpop.f32.mrb[0].mxu0
    %v7449 = vadd.f32 %v7364, %v7448
    %v7450 = vpop.f32.mrb[0].mxu0
    %7451 = vdwg.mxu0
    %7452 = vmatprep.subr.mxu0 0.0
    %7453 = vmatpush1.msra.mxu0 %v1949
    %7454 = vmatprep.subr.mxu0 0.0
    %7455 = vmatpush1.msra.mxu0 %v1950
    %7456 = vmatprep.subr.mxu0 0.0
    %7457 = vmatpush1.msra.mxu0 %v1951
    %7458 = vmatprep.subr.mxu0 0.0
    %7459 = vmatpush1.msra.mxu0 %v1952
    %7460 = vmatprep.subr.mxu0 0.0
    %7461 = vmatpush1.msra.mxu0 %v1953
    %7462 = vmatprep.subr.mxu0 0.0
    %7463 = vmatpush1.msra.mxu0 %v1954
    %7464 = vmatprep.subr.mxu0 0.0
    %7465 = vmatpush1.msra.mxu0 %v1955
    %7466 = vmatprep.subr.mxu0 0.0
    %7467 = vmatpush1.msra.mxu0 %v1956
    %7468 = vmatprep.subr.mxu0 0.0
    %7469 = vmatpush1.msra.mxu0 %v1957
    %7470 = vmatprep.subr.mxu0 0.0
    %7471 = vmatpush1.msra.mxu0 %v1958
    %7472 = vmatprep.subr.mxu0 0.0
    %7473 = vmatpush1.msra.mxu0 %v1959
    %7474 = vmatprep.subr.mxu0 0.0
    %7475 = vmatpush1.msra.mxu0 %v1960
    %7476 = vmatprep.subr.mxu0 0.0
    %7477 = vmatpush1.msra.mxu0 %v1961
    %7478 = vmatprep.subr.mxu0 0.0
    %7479 = vmatpush1.msra.mxu0 %v1962
    %7480 = vmatprep.subr.mxu0 0.0
    %7481 = vmatpush1.msra.mxu0 %v1963
    %7482 = vmatprep.subr.mxu0 0.0
    %7483 = vmatpush1.msra.mxu0 %v1964
    %7484 = vmatprep.subr.mxu0 0.0
    %7485 = vmatpush1.msra.mxu0 %v1965
    %7486 = vmatprep.subr.mxu0 0.0
    %7487 = vmatpush1.msra.mxu0 %v1966
    %7488 = vmatprep.subr.mxu0 0.0
    %7489 = vmatpush1.msra.mxu0 %v1967
    %7490 = vmatprep.subr.mxu0 0.0
    %7491 = vmatpush1.msra.mxu0 %v1968
    %7492 = vmatprep.subr.mxu0 0.0
    %7493 = vmatpush1.msra.mxu0 %v1969
    %7494 = vmatprep.subr.mxu0 0.0
    %7495 = vmatpush1.msra.mxu0 %v1970
    %7496 = vmatprep.subr.mxu0 0.0
    %7497 = vmatpush1.msra.mxu0 %v1971
    %7498 = vmatprep.subr.mxu0 0.0
    %7499 = vmatpush1.msra.mxu0 %v1972
    %7500 = vmatprep.subr.mxu0 0.0
    %7501 = vmatpush1.msra.mxu0 %v1973
    %7502 = vmatprep.subr.mxu0 0.0
    %7503 = vmatpush1.msra.mxu0 %v1974
    %7504 = vmatprep.subr.mxu0 0.0
    %7505 = vmatpush1.msra.mxu0 %v1975
    %7506 = vmatprep.subr.mxu0 0.0
    %7507 = vmatpush1.msra.mxu0 %v1976
    %7508 = vmatprep.subr.mxu0 0.0
    %7509 = vmatpush1.msra.mxu0 %v1977
    %7510 = vmatprep.subr.mxu0 0.0
    %7511 = vmatpush1.msra.mxu0 %v1978
    %7512 = vmatprep.subr.mxu0 0.0
    %7513 = vmatpush1.msra.mxu0 %v1979
    %7514 = vmatprep.subr.mxu0 0.0
    %7515 = vmatpush1.msra.mxu0 %v1980
    %7516 = vmatprep.mubr.f32.mxu0 %v7057
    %7517 = vmatmul.mubr.f32.gmra.mrb[0].mxu0 %v7056
    %v7518 = vpop.f32.mrb[0].mxu0
    %v7519 = vadd.f32 %v7434, %v7518
    %v7520 = vpop.f32.mrb[0].mxu0
    %7521 = vmatprep.mubr.f32.mxu0 %v7073
    %7522 = vmatmul.mubr.f32.gmra.mrb[0].mxu0 %v7072
    %v7523 = vpop.f32.mrb[0].mxu0
    %v7524 = vadd.f32 %v7439, %v7523
    %v7525 = vpop.f32.mrb[0].mxu0
    %7526 = vmatprep.mubr.f32.mxu0 %v7089
    %7527 = vmatmul.mubr.f32.gmra.mrb[0].mxu0 %v7088
    %v7528 = vpop.f32.mrb[0].mxu0
    %v7529 = vadd.f32 %v7444, %v7528
    %v7530 = vpop.f32.mrb[0].mxu0
    %7531 = vmatprep.mubr.f32.mxu0 %v7105
    %7532 = vmatmul.mubr.f32.gmra.mrb[0].mxu0 %v7104
    %v7533 = vpop.f32.mrb[0].mxu0
    %v7534 = vadd.f32 %v7449, %v7533
    %v7535 = vpop.f32.mrb[0].mxu0
    %7536 = vdwg.mxu0
    %7537 = vmatprep.subr.mxu0 0.0
    %7538 = vmatpush1.msra.mxu0 %v1981
    %7539 = vmatprep.subr.mxu0 0.0
    %7540 = vmatpush1.msra.mxu0 %v1982
    %7541 = vmatprep.subr.mxu0 0.0
    %7542 = vmatpush1.msra.mxu0 %v1983
    %7543 = vmatprep.subr.mxu0 0.0
    %7544 = vmatpush1.msra.mxu0 %v1984
    %7545 = vmatprep.subr.mxu0 0.0
    %7546 = vmatpush1.msra.mxu0 %v1985
    %7547 = vmatprep.subr.mxu0 0.0
    %7548 = vmatpush1.msra.mxu0 %v1986
    %7549 = vmatprep.subr.mxu0 0.0
    %7550 = vmatpush1.msra.mxu0 %v1987
    %7551 = vmatprep.subr.mxu0 0.0
    %7552 = vmatpush1.msra.mxu0 %v1988
    %7553 = vmatprep.subr.mxu0 0.0
    %7554 = vmatpush1.msra.mxu0 %v1989
    %7555 = vmatprep.subr.mxu0 0.0
    %7556 = vmatpush1.msra.mxu0 %v1990
    %7557 = vmatprep.subr.mxu0 0.0
    %7558 = vmatpush1.msra.mxu0 %v1991
    %7559 = vmatprep.subr.mxu0 0.0
    %7560 = vmatpush1.msra.mxu0 %v1992
    %7561 = vmatprep.subr.mxu0 0.0
    %7562 = vmatpush1.msra.mxu0 %v1993
    %7563 = vmatprep.subr.mxu0 0.0
    %7564 = vmatpush1.msra.mxu0 %v1994
    %7565 = vmatprep.subr.mxu0 0.0
    %7566 = vmatpush1.msra.mxu0 %v1995
    %7567 = vmatprep.subr.mxu0 0.0
    %7568 = vmatpush1.msra.mxu0 %v1996
    %7569 = vmatprep.subr.mxu0 0.0
    %7570 = vmatpush1.msra.mxu0 %v1997
    %7571 = vmatprep.subr.mxu0 0.0
    %7572 = vmatpush1.msra.mxu0 %v1998
    %7573 = vmatprep.subr.mxu0 0.0
    %7574 = vmatpush1.msra.mxu0 %v1999
    %7575 = vmatprep.subr.mxu0 0.0
    %7576 = vmatpush1.msra.mxu0 %v2000
    %7577 = vmatprep.subr.mxu0 0.0
    %7578 = vmatpush1.msra.mxu0 %v2001
    %7579 = vmatprep.subr.mxu0 0.0
    %7580 = vmatpush1.msra.mxu0 %v2002
    %7581 = vmatprep.subr.mxu0 0.0
    %7582 = vmatpush1.msra.mxu0 %v2003
    %7583 = vmatprep.subr.mxu0 0.0
    %7584 = vmatpush1.msra.mxu0 %v2004
    %7585 = vmatprep.subr.mxu0 0.0
    %7586 = vmatpush1.msra.mxu0 %v2005
    %7587 = vmatprep.subr.mxu0 0.0
    %7588 = vmatpush1.msra.mxu0 %v2006
    %7589 = vmatprep.subr.mxu0 0.0
    %7590 = vmatpush1.msra.mxu0 %v2007
    %7591 = vmatprep.subr.mxu0 0.0
    %7592 = vmatpush1.msra.mxu0 %v2008
    %7593 = vmatprep.subr.mxu0 0.0
    %7594 = vmatpush1.msra.mxu0 %v2009
    %7595 = vmatprep.subr.mxu0 0.0
    %7596 = vmatpush1.msra.mxu0 %v2010
    %7597 = vmatprep.subr.mxu0 0.0
    %7598 = vmatpush1.msra.mxu0 %v2011
    %7599 = vmatprep.subr.mxu0 0.0
    %7600 = vmatpush1.msra.mxu0 %v2012
    %7601 = vmatprep.mubr.f32.mxu0 %v7059
    %7602 = vmatmul.mubr.f32.gmra.mrb[0].mxu0 %v7058
    %v7603 = vpop.f32.mrb[0].mxu0
    %v7604 = vadd.f32 %v7519, %v7603
    %v7605 = vpop.f32.mrb[0].mxu0
    %7606 = vmatprep.mubr.f32.mxu0 %v7075
    %7607 = vmatmul.mubr.f32.gmra.mrb[0].mxu0 %v7074
    %v7608 = vpop.f32.mrb[0].mxu0
    %v7609 = vadd.f32 %v7524, %v7608
    %v7610 = vpop.f32.mrb[0].mxu0
    %7611 = vmatprep.mubr.f32.mxu0 %v7091
    %7612 = vmatmul.mubr.f32.gmra.mrb[0].mxu0 %v7090
    %v7613 = vpop.f32.mrb[0].mxu0
    %v7614 = vadd.f32 %v7529, %v7613
    %v7615 = vpop.f32.mrb[0].mxu0
    %7616 = vmatprep.mubr.f32.mxu0 %v7107
    %7617 = vmatmul.mubr.f32.gmra.mrb[0].mxu0 %v7106
    %v7618 = vpop.f32.mrb[0].mxu0
    %v7619 = vadd.f32 %v7534, %v7618
    %v7620 = vpop.f32.mrb[0].mxu0
    %7621 = vdwg.mxu0
    %7622 = vmatprep.subr.mxu0 0.0
    %7623 = vmatpush1.msra.mxu0 %v2013
    %7624 = vmatprep.subr.mxu0 0.0
    %7625 = vmatpush1.msra.mxu0 %v2014
    %7626 = vmatprep.subr.mxu0 0.0
    %7627 = vmatpush1.msra.mxu0 %v2015
    %7628 = vmatprep.subr.mxu0 0.0
    %7629 = vmatpush1.msra.mxu0 %v2016
    %7630 = vmatprep.subr.mxu0 0.0
    %7631 = vmatpush1.msra.mxu0 %v2017
    %7632 = vmatprep.subr.mxu0 0.0
    %7633 = vmatpush1.msra.mxu0 %v2018
    %7634 = vmatprep.subr.mxu0 0.0
    %7635 = vmatpush1.msra.mxu0 %v2019
    %7636 = vmatprep.subr.mxu0 0.0
    %7637 = vmatpush1.msra.mxu0 %v2020
    %7638 = vmatprep.subr.mxu0 0.0
    %7639 = vmatpush1.msra.mxu0 %v2021
    %7640 = vmatprep.subr.mxu0 0.0
    %7641 = vmatpush1.msra.mxu0 %v2022
    %7642 = vmatprep.subr.mxu0 0.0
    %7643 = vmatpush1.msra.mxu0 %v2023
    %7644 = vmatprep.subr.mxu0 0.0
    %7645 = vmatpush1.msra.mxu0 %v2024
    %7646 = vmatprep.subr.mxu0 0.0
    %7647 = vmatpush1.msra.mxu0 %v2025
    %7648 = vmatprep.subr.mxu0 0.0
    %7649 = vmatpush1.msra.mxu0 %v2026
    %7650 = vmatprep.subr.mxu0 0.0
    %7651 = vmatpush1.msra.mxu0 %v2027
    %7652 = vmatprep.subr.mxu0 0.0
    %7653 = vmatpush1.msra.mxu0 %v2028
    %7654 = vmatprep.subr.mxu0 0.0
    %7655 = vmatpush1.msra.mxu0 %v2029
    %7656 = vmatprep.subr.mxu0 0.0
    %7657 = vmatpush1.msra.mxu0 %v2030
    %7658 = vmatprep.subr.mxu0 0.0
    %7659 = vmatpush1.msra.mxu0 %v2031
    %7660 = vmatprep.subr.mxu0 0.0
    %7661 = vmatpush1.msra.mxu0 %v2032
    %7662 = vmatprep.subr.mxu0 0.0
    %7663 = vmatpush1.msra.mxu0 %v2033
    %7664 = vmatprep.subr.mxu0 0.0
    %7665 = vmatpush1.msra.mxu0 %v2034
    %7666 = vmatprep.subr.mxu0 0.0
    %7667 = vmatpush1.msra.mxu0 %v2035
    %7668 = vmatprep.subr.mxu0 0.0
    %7669 = vmatpush1.msra.mxu0 %v2036
    %7670 = vmatprep.subr.mxu0 0.0
    %7671 = vmatpush1.msra.mxu0 %v2037
    %7672 = vmatprep.subr.mxu0 0.0
    %7673 = vmatpush1.msra.mxu0 %v2038
    %7674 = vmatprep.subr.mxu0 0.0
    %7675 = vmatpush1.msra.mxu0 %v2039
    %7676 = vmatprep.subr.mxu0 0.0
    %7677 = vmatpush1.msra.mxu0 %v2040
    %7678 = vmatprep.subr.mxu0 0.0
    %7679 = vmatpush1.msra.mxu0 %v2041
    %7680 = vmatprep.subr.mxu0 0.0
    %7681 = vmatpush1.msra.mxu0 %v2042
    %7682 = vmatprep.subr.mxu0 0.0
    %7683 = vmatpush1.msra.mxu0 %v2043
    %7684 = vmatprep.subr.mxu0 0.0
    %7685 = vmatpush1.msra.mxu0 %v2044
    %7686 = vmatprep.mubr.f32.mxu0 %v7061
    %7687 = vmatmul.mubr.f32.gmra.mrb[0].mxu0 %v7060
    %v7688 = vpop.f32.mrb[0].mxu0
    %v7689 = vadd.f32 %v7604, %v7688
    %v7690 = vpop.f32.mrb[0].mxu0
    %7691 = vmatprep.mubr.f32.mxu0 %v7077
    %7692 = vmatmul.mubr.f32.gmra.mrb[0].mxu0 %v7076
    %v7693 = vpop.f32.mrb[0].mxu0
    %v7694 = vadd.f32 %v7609, %v7693
    %v7695 = vpop.f32.mrb[0].mxu0
    %7696 = vmatprep.mubr.f32.mxu0 %v7093
    %7697 = vmatmul.mubr.f32.gmra.mrb[0].mxu0 %v7092
    %v7698 = vpop.f32.mrb[0].mxu0
    %v7699 = vadd.f32 %v7614, %v7698
    %v7700 = vpop.f32.mrb[0].mxu0
    %7701 = vmatprep.mubr.f32.mxu0 %v7109
    %7702 = vmatmul.mubr.f32.gmra.mrb[0].mxu0 %v7108
    %v7703 = vpop.f32.mrb[0].mxu0
    %v7704 = vadd.f32 %v7619, %v7703
    %v7705 = vpop.f32.mrb[0].mxu0
    %7706 = vdwg.mxu0
    %7707 = vmatprep.subr.mxu0 0.0
    %7708 = vmatpush1.msra.mxu0 %v2045
    %7709 = vmatprep.subr.mxu0 0.0
    %7710 = vmatpush1.msra.mxu0 %v2046
    %7711 = vmatprep.subr.mxu0 0.0
    %7712 = vmatpush1.msra.mxu0 %v2047
    %7713 = vmatprep.subr.mxu0 0.0
    %7714 = vmatpush1.msra.mxu0 %v2048
    %7715 = vmatprep.subr.mxu0 0.0
    %7716 = vmatpush1.msra.mxu0 %v2049
    %7717 = vmatprep.subr.mxu0 0.0
    %7718 = vmatpush1.msra.mxu0 %v2050
    %7719 = vmatprep.subr.mxu0 0.0
    %7720 = vmatpush1.msra.mxu0 %v2051
    %7721 = vmatprep.subr.mxu0 0.0
    %7722 = vmatpush1.msra.mxu0 %v2052
    %7723 = vmatprep.subr.mxu0 0.0
    %7724 = vmatpush1.msra.mxu0 %v2053
    %7725 = vmatprep.subr.mxu0 0.0
    %7726 = vmatpush1.msra.mxu0 %v2054
    %7727 = vmatprep.subr.mxu0 0.0
    %7728 = vmatpush1.msra.mxu0 %v2055
    %7729 = vmatprep.subr.mxu0 0.0
    %7730 = vmatpush1.msra.mxu0 %v2056
    %7731 = vmatprep.subr.mxu0 0.0
    %7732 = vmatpush1.msra.mxu0 %v2057
    %7733 = vmatprep.subr.mxu0 0.0
    %7734 = vmatpush1.msra.mxu0 %v2058
    %7735 = vmatprep.subr.mxu0 0.0
    %7736 = vmatpush1.msra.mxu0 %v2059
    %7737 = vmatprep.subr.mxu0 0.0
    %7738 = vmatpush1.msra.mxu0 %v2060
    %7739 = vmatprep.subr.mxu0 0.0
    %7740 = vmatpush1.msra.mxu0 %v2061
    %7741 = vmatprep.subr.mxu0 0.0
    %7742 = vmatpush1.msra.mxu0 %v2062
    %7743 = vmatprep.subr.mxu0 0.0
    %7744 = vmatpush1.msra.mxu0 %v2063
    %7745 = vmatprep.subr.mxu0 0.0
    %7746 = vmatpush1.msra.mxu0 %v2064
    %7747 = vmatprep.subr.mxu0 0.0
    %7748 = vmatpush1.msra.mxu0 %v2065
    %7749 = vmatprep.subr.mxu0 0.0
    %7750 = vmatpush1.msra.mxu0 %v2066
    %7751 = vmatprep.subr.mxu0 0.0
    %7752 = vmatpush1.msra.mxu0 %v2067
    %7753 = vmatprep.subr.mxu0 0.0
    %7754 = vmatpush1.msra.mxu0 %v2068
    %7755 = vmatprep.subr.mxu0 0.0
    %7756 = vmatpush1.msra.mxu0 %v2069
    %7757 = vmatprep.subr.mxu0 0.0
    %7758 = vmatpush1.msra.mxu0 %v2070
    %7759 = vmatprep.subr.mxu0 0.0
    %7760 = vmatpush1.msra.mxu0 %v2071
    %7761 = vmatprep.subr.mxu0 0.0
    %7762 = vmatpush1.msra.mxu0 %v2072
    %7763 = vmatprep.subr.mxu0 0.0
    %7764 = vmatpush1.msra.mxu0 %v2073
    %7765 = vmatprep.subr.mxu0 0.0
    %7766 = vmatpush1.msra.mxu0 %v2074
    %7767 = vmatprep.subr.mxu0 0.0
    %7768 = vmatpush1.msra.mxu0 %v2075
    %7769 = vmatprep.subr.mxu0 0.0
    %7770 = vmatpush1.msra.mxu0 %v2076
    %7771 = vmatprep.mubr.f32.mxu0 %v7063
    %7772 = vmatmul.mubr.f32.gmra.mrb[0].mxu0 %v7062
    %v7773 = vpop.f32.mrb[0].mxu0
    %v7774 = vadd.f32 %v7689, %v7773
    %v7775 = vpop.f32.mrb[0].mxu0
    %7776 = vmatprep.mubr.f32.mxu0 %v7079
    %7777 = vmatmul.mubr.f32.gmra.mrb[0].mxu0 %v7078
    %v7778 = vpop.f32.mrb[0].mxu0
    %v7779 = vadd.f32 %v7694, %v7778
    %v7780 = vpop.f32.mrb[0].mxu0
    %7781 = vmatprep.mubr.f32.mxu0 %v7095
    %7782 = vmatmul.mubr.f32.gmra.mrb[0].mxu0 %v7094
    %v7783 = vpop.f32.mrb[0].mxu0
    %v7784 = vadd.f32 %v7699, %v7783
    %v7785 = vpop.f32.mrb[0].mxu0
    %7786 = vmatprep.mubr.f32.mxu0 %v7111
    %7787 = vmatmul.mubr.f32.gmra.mrb[0].mxu0 %v7110
    %v7788 = vpop.f32.mrb[0].mxu0
    %v7789 = vadd.f32 %v7704, %v7788
    %v7790 = vpop.f32.mrb[0].mxu0
    %7791 = vdwg.mxu0
    %7792 = vmatprep.subr.mxu0 0.0
    %7793 = vmatpush1.msra.mxu0 %v106
    %7794 = vmatprep.subr.mxu0 0.0
    %7795 = vmatpush1.msra.mxu0 %v107
    %7796 = vmatprep.subr.mxu0 0.0
    %7797 = vmatpush1.msra.mxu0 %v108
    %7798 = vmatprep.subr.mxu0 0.0
    %7799 = vmatpush1.msra.mxu0 %v109
    %7800 = vmatprep.subr.mxu0 0.0
    %7801 = vmatpush1.msra.mxu0 %v110
    %7802 = vmatprep.subr.mxu0 0.0
    %7803 = vmatpush1.msra.mxu0 %v111
    %7804 = vmatprep.subr.mxu0 0.0
    %7805 = vmatpush1.msra.mxu0 %v112
    %7806 = vmatprep.subr.mxu0 0.0
    %7807 = vmatpush1.msra.mxu0 %v113
    %7808 = vmatprep.subr.mxu0 0.0
    %7809 = vmatpush1.msra.mxu0 0.0
    %7810 = vmatprep.subr.mxu0 0.0
    %7811 = vmatpush1.msra.mxu0 0.0
    %7812 = vmatprep.subr.mxu0 0.0
    %7813 = vmatpush1.msra.mxu0 0.0
    %7814 = vmatprep.subr.mxu0 0.0
    %7815 = vmatpush1.msra.mxu0 0.0
    %7816 = vmatprep.subr.mxu0 0.0
    %7817 = vmatpush1.msra.mxu0 0.0
    %7818 = vmatprep.subr.mxu0 0.0
    %7819 = vmatpush1.msra.mxu0 0.0
    %7820 = vmatprep.subr.mxu0 0.0
    %7821 = vmatpush1.msra.mxu0 0.0
    %7822 = vmatprep.subr.mxu0 0.0
    %7823 = vmatpush1.msra.mxu0 0.0
    %7824 = vmatprep.subr.mxu0 0.0
    %7825 = vmatpush1.msra.mxu0 0.0
    %7826 = vmatprep.subr.mxu0 0.0
    %7827 = vmatpush1.msra.mxu0 0.0
    %7828 = vmatprep.subr.mxu0 0.0
    %7829 = vmatpush1.msra.mxu0 0.0
    %7830 = vmatprep.subr.mxu0 0.0
    %7831 = vmatpush1.msra.mxu0 0.0
    %7832 = vmatprep.subr.mxu0 0.0
    %7833 = vmatpush1.msra.mxu0 0.0
    %7834 = vmatprep.subr.mxu0 0.0
    %7835 = vmatpush1.msra.mxu0 0.0
    %7836 = vmatprep.subr.mxu0 0.0
    %7837 = vmatpush1.msra.mxu0 0.0
    %7838 = vmatprep.subr.mxu0 0.0
    %7839 = vmatpush1.msra.mxu0 0.0
    %7840 = vmatprep.subr.mxu0 0.0
    %7841 = vmatpush1.msra.mxu0 0.0
    %7842 = vmatprep.subr.mxu0 0.0
    %7843 = vmatpush1.msra.mxu0 0.0
    %7844 = vmatprep.subr.mxu0 0.0
    %7845 = vmatpush1.msra.mxu0 0.0
    %7846 = vmatprep.subr.mxu0 0.0
    %7847 = vmatpush1.msra.mxu0 0.0
    %7848 = vmatprep.subr.mxu0 0.0
    %7849 = vmatpush1.msra.mxu0 0.0
    %7850 = vmatprep.subr.mxu0 0.0
    %7851 = vmatpush1.msra.mxu0 0.0
    %7852 = vmatprep.subr.mxu0 0.0
    %7853 = vmatpush1.msra.mxu0 0.0
    %7854 = vmatprep.subr.mxu0 0.0
    %7855 = vmatpush1.msra.mxu0 0.0
    %7856 = vmatprep.mubr.f32.mxu0 0.0
    %7857 = vmatmul.mubr.f32.gmra.mrb[0].mxu0 %v5715
    %v7858 = vpop.f32.mrb[0].mxu0
    %v7859 = vadd.f32 0.0, %v7858
    %v7860 = vpop.f32.mrb[0].mxu0
    %7861 = vmatprep.mubr.f32.mxu0 0.0
    %7862 = vmatmul.mubr.f32.gmra.mrb[0].mxu0 %v5718
    %v7863 = vpop.f32.mrb[0].mxu0
    %v7864 = vadd.f32 0.0, %v7863
    %v7865 = vpop.f32.mrb[0].mxu0
    %7866 = vdwg.mxu0
    %7867 = vmatprep.subr.mxu0 0.0
    %7868 = vmatpush1.msra.mxu0 %v7859
    %7869 = vmatprep.subr.mxu0 0.0
    %7870 = vmatpush1.msra.mxu0 %v7864
    %7871 = vmatprep.subr.mxu0 0.0
    %7872 = vmatpush1.msra.mxu0 0.0
    %7873 = vmatprep.subr.mxu0 0.0
    %7874 = vmatpush1.msra.mxu0 0.0
    %7875 = vmatprep.subr.mxu0 0.0
    %7876 = vmatpush1.msra.mxu0 0.0
    %7877 = vmatprep.subr.mxu0 0.0
    %7878 = vmatpush1.msra.mxu0 0.0
    %7879 = vmatprep.subr.mxu0 0.0
    %7880 = vmatpush1.msra.mxu0 0.0
    %7881 = vmatprep.subr.mxu0 0.0
    %7882 = vmatpush1.msra.mxu0 0.0
    %7883 = vmatprep.subr.mxu0 0.0
    %7884 = vmatpush1.msra.mxu0 0.0
    %7885 = vmatprep.subr.mxu0 0.0
    %7886 = vmatpush1.msra.mxu0 0.0
    %7887 = vmatprep.subr.mxu0 0.0
    %7888 = vmatpush1.msra.mxu0 0.0
    %7889 = vmatprep.subr.mxu0 0.0
    %7890 = vmatpush1.msra.mxu0 0.0
    %7891 = vmatprep.subr.mxu0 0.0
    %7892 = vmatpush1.msra.mxu0 0.0
    %7893 = vmatprep.subr.mxu0 0.0
    %7894 = vmatpush1.msra.mxu0 0.0
    %7895 = vmatprep.subr.mxu0 0.0
    %7896 = vmatpush1.msra.mxu0 0.0
    %7897 = vmatprep.subr.mxu0 0.0
    %7898 = vmatpush1.msra.mxu0 0.0
    %7899 = vmatprep.subr.mxu0 0.0
    %7900 = vmatpush1.msra.mxu0 0.0
    %7901 = vmatprep.subr.mxu0 0.0
    %7902 = vmatpush1.msra.mxu0 0.0
    %7903 = vmatprep.subr.mxu0 0.0
    %7904 = vmatpush1.msra.mxu0 0.0
    %7905 = vmatprep.subr.mxu0 0.0
    %7906 = vmatpush1.msra.mxu0 0.0
    %7907 = vmatprep.subr.mxu0 0.0
    %7908 = vmatpush1.msra.mxu0 0.0
    %7909 = vmatprep.subr.mxu0 0.0
    %7910 = vmatpush1.msra.mxu0 0.0
    %7911 = vmatprep.subr.mxu0 0.0
    %7912 = vmatpush1.msra.mxu0 0.0
    %7913 = vmatprep.subr.mxu0 0.0
    %7914 = vmatpush1.msra.mxu0 0.0
    %7915 = vmatprep.subr.mxu0 0.0
    %7916 = vmatpush1.msra.mxu0 0.0
    %7917 = vmatprep.subr.mxu0 0.0
    %7918 = vmatpush1.msra.mxu0 0.0
    %7919 = vmatprep.subr.mxu0 0.0
    %7920 = vmatpush1.msra.mxu0 0.0
    %7921 = vmatprep.subr.mxu0 0.0
    %7922 = vmatpush1.msra.mxu0 0.0
    %7923 = vmatprep.subr.mxu0 0.0
    %7924 = vmatpush1.msra.mxu0 0.0
    %7925 = vmatprep.subr.mxu0 0.0
    %7926 = vmatpush1.msra.mxu0 0.0
    %7927 = vmatprep.subr.mxu0 0.0
    %7928 = vmatpush1.msra.mxu0 0.0
    %7929 = vmatprep.subr.mxu0 0.0
    %7930 = vmatpush1.msra.mxu0 0.0
    %7931 = vmatprep.mubr.f32.mxu0 0.0
    %7932 = vmatmul.mubr.f32.gmra.mrb[0].mxu0 %v4970
    %v7933 = vpop.f32.mrb[0].mxu0
    %v7934 = vadd.f32 0.0, %v7933
    %v7935 = vpop.f32.mrb[0].mxu0
    %7936 = vmatprep.mubr.f32.mxu0 0.0
    %7937 = vmatmul.mubr.f32.gmra.mrb[0].mxu0 %v4973
    %v7938 = vpop.f32.mrb[0].mxu0
    %v7939 = vadd.f32 0.0, %v7938
    %v7940 = vpop.f32.mrb[0].mxu0
    %7941 = vdwg.mxu0
    %7942 = vmatprep.subr.mxu0 0.0
    %7943 = vmatpush1.msra.mxu0 %v7774
    %7944 = vmatprep.subr.mxu0 0.0
    %7945 = vmatpush1.msra.mxu0 %v7779
    %7946 = vmatprep.subr.mxu0 0.0
    %7947 = vmatpush1.msra.mxu0 %v7784
    %7948 = vmatprep.subr.mxu0 0.0
    %7949 = vmatpush1.msra.mxu0 %v7789
    %7950 = vmatprep.subr.mxu0 0.0
    %7951 = vmatpush1.msra.mxu0 0.0
    %7952 = vmatprep.subr.mxu0 0.0
    %7953 = vmatpush1.msra.mxu0 0.0
    %7954 = vmatprep.subr.mxu0 0.0
    %7955 = vmatpush1.msra.mxu0 0.0
    %7956 = vmatprep.subr.mxu0 0.0
    %7957 = vmatpush1.msra.mxu0 0.0
    %7958 = vmatprep.subr.mxu0 0.0
    %7959 = vmatpush1.msra.mxu0 0.0
    %7960 = vmatprep.subr.mxu0 0.0
    %7961 = vmatpush1.msra.mxu0 0.0
    %7962 = vmatprep.subr.mxu0 0.0
    %7963 = vmatpush1.msra.mxu0 0.0
    %7964 = vmatprep.subr.mxu0 0.0
    %7965 = vmatpush1.msra.mxu0 0.0
    %7966 = vmatprep.subr.mxu0 0.0
    %7967 = vmatpush1.msra.mxu0 0.0
    %7968 = vmatprep.subr.mxu0 0.0
    %7969 = vmatpush1.msra.mxu0 0.0
    %7970 = vmatprep.subr.mxu0 0.0
    %7971 = vmatpush1.msra.mxu0 0.0
    %7972 = vmatprep.subr.mxu0 0.0
    %7973 = vmatpush1.msra.mxu0 0.0
    %7974 = vmatprep.subr.mxu0 0.0
    %7975 = vmatpush1.msra.mxu0 0.0
    %7976 = vmatprep.subr.mxu0 0.0
    %7977 = vmatpush1.msra.mxu0 0.0
    %7978 = vmatprep.subr.mxu0 0.0
    %7979 = vmatpush1.msra.mxu0 0.0
    %7980 = vmatprep.subr.mxu0 0.0
    %7981 = vmatpush1.msra.mxu0 0.0
    %7982 = vmatprep.subr.mxu0 0.0
    %7983 = vmatpush1.msra.mxu0 0.0
    %7984 = vmatprep.subr.mxu0 0.0
    %7985 = vmatpush1.msra.mxu0 0.0
    %7986 = vmatprep.subr.mxu0 0.0
    %7987 = vmatpush1.msra.mxu0 0.0
    %7988 = vmatprep.subr.mxu0 0.0
    %7989 = vmatpush1.msra.mxu0 0.0
    %7990 = vmatprep.subr.mxu0 0.0
    %7991 = vmatpush1.msra.mxu0 0.0
    %7992 = vmatprep.subr.mxu0 0.0
    %7993 = vmatpush1.msra.mxu0 0.0
    %7994 = vmatprep.subr.mxu0 0.0
    %7995 = vmatpush1.msra.mxu0 0.0
    %7996 = vmatprep.subr.mxu0 0.0
    %7997 = vmatpush1.msra.mxu0 0.0
    %7998 = vmatprep.subr.mxu0 0.0
    %7999 = vmatpush1.msra.mxu0 0.0
    %8000 = vmatprep.subr.mxu0 0.0
    %8001 = vmatpush1.msra.mxu0 0.0
    %8002 = vmatprep.subr.mxu0 0.0
    %8003 = vmatpush1.msra.mxu0 0.0
    %8004 = vmatprep.subr.mxu0 0.0
    %8005 = vmatpush1.msra.mxu0 0.0
    %8006 = vmatprep.mubr.f32.mxu0 0.0
    %8007 = vmatmul.mubr.f32.gmra.mrb[0].mxu0 %v5051
    %v8008 = vpop.f32.mrb[0].mxu0
    %v8009 = vadd.f32 %v7934, %v8008
    %v8010 = vpop.f32.mrb[0].mxu0
    %8011 = vmatprep.mubr.f32.mxu0 0.0
    %8012 = vmatmul.mubr.f32.gmra.mrb[0].mxu0 %v5054
    %v8013 = vpop.f32.mrb[0].mxu0
    %v8014 = vadd.f32 %v7939, %v8013
    %v8015 = vpop.f32.mrb[0].mxu0
    %8016 = vdwg.mxu0
    %8017 = vmatprep.subr.mxu0 0.0
    %8018 = vmatpush1.msra.mxu0 %v115
    %8019 = vmatprep.subr.mxu0 0.0
    %8020 = vmatpush1.msra.mxu0 %v116
    %8021 = vmatprep.subr.mxu0 0.0
    %8022 = vmatpush1.msra.mxu0 %v117
    %8023 = vmatprep.subr.mxu0 0.0
    %8024 = vmatpush1.msra.mxu0 %v118
    %8025 = vmatprep.subr.mxu0 0.0
    %8026 = vmatpush1.msra.mxu0 %v119
    %8027 = vmatprep.subr.mxu0 0.0
    %8028 = vmatpush1.msra.mxu0 %v120
    %8029 = vmatprep.subr.mxu0 0.0
    %8030 = vmatpush1.msra.mxu0 %v121
    %8031 = vmatprep.subr.mxu0 0.0
    %8032 = vmatpush1.msra.mxu0 %v122
    %8033 = vmatprep.subr.mxu0 0.0
    %8034 = vmatpush1.msra.mxu0 0.0
    %8035 = vmatprep.subr.mxu0 0.0
    %8036 = vmatpush1.msra.mxu0 0.0
    %8037 = vmatprep.subr.mxu0 0.0
    %8038 = vmatpush1.msra.mxu0 0.0
    %8039 = vmatprep.subr.mxu0 0.0
    %8040 = vmatpush1.msra.mxu0 0.0
    %8041 = vmatprep.subr.mxu0 0.0
    %8042 = vmatpush1.msra.mxu0 0.0
    %8043 = vmatprep.subr.mxu0 0.0
    %8044 = vmatpush1.msra.mxu0 0.0
    %8045 = vmatprep.subr.mxu0 0.0
    %8046 = vmatpush1.msra.mxu0 0.0
    %8047 = vmatprep.subr.mxu0 0.0
    %8048 = vmatpush1.msra.mxu0 0.0
    %8049 = vmatprep.subr.mxu0 0.0
    %8050 = vmatpush1.msra.mxu0 0.0
    %8051 = vmatprep.subr.mxu0 0.0
    %8052 = vmatpush1.msra.mxu0 0.0
    %8053 = vmatprep.subr.mxu0 0.0
    %8054 = vmatpush1.msra.mxu0 0.0
    %8055 = vmatprep.subr.mxu0 0.0
    %8056 = vmatpush1.msra.mxu0 0.0
    %8057 = vmatprep.subr.mxu0 0.0
    %8058 = vmatpush1.msra.mxu0 0.0
    %8059 = vmatprep.subr.mxu0 0.0
    %8060 = vmatpush1.msra.mxu0 0.0
    %8061 = vmatprep.subr.mxu0 0.0
    %8062 = vmatpush1.msra.mxu0 0.0
    %8063 = vmatprep.subr.mxu0 0.0
    %8064 = vmatpush1.msra.mxu0 0.0
    %8065 = vmatprep.subr.mxu0 0.0
    %8066 = vmatpush1.msra.mxu0 0.0
    %8067 = vmatprep.subr.mxu0 0.0
    %8068 = vmatpush1.msra.mxu0 0.0
    %8069 = vmatprep.subr.mxu0 0.0
    %8070 = vmatpush1.msra.mxu0 0.0
    %8071 = vmatprep.subr.mxu0 0.0
    %8072 = vmatpush1.msra.mxu0 0.0
    %8073 = vmatprep.subr.mxu0 0.0
    %8074 = vmatpush1.msra.mxu0 0.0
    %8075 = vmatprep.subr.mxu0 0.0
    %8076 = vmatpush1.msra.mxu0 0.0
    %8077 = vmatprep.subr.mxu0 0.0
    %8078 = vmatpush1.msra.mxu0 0.0
    %8079 = vmatprep.subr.mxu0 0.0
    %8080 = vmatpush1.msra.mxu0 0.0
    %8081 = vmatprep.mubr.f32.mxu0 0.0
    %8082 = vmatmul.mubr.f32.gmra.mrb[0].mxu0 %v5715
    %v8083 = vpop.f32.mrb[0].mxu0
    %v8084 = vadd.f32 0.0, %v8083
    %v8085 = vpop.f32.mrb[0].mxu0
    %8086 = vmatprep.mubr.f32.mxu0 0.0
    %8087 = vmatmul.mubr.f32.gmra.mrb[0].mxu0 %v5718
    %v8088 = vpop.f32.mrb[0].mxu0
    %v8089 = vadd.f32 0.0, %v8088
    %v8090 = vpop.f32.mrb[0].mxu0
    %8091 = vdwg.mxu0
    %v8092 = vadd.f32 %v8009, %v8084
    %v8093 = vadd.f32 %v8014, %v8089
    %v8094 = vadd.f32 %v8092, %v73
    %v8095 = vadd.f32 %v8093, %v73
    %v8096 = vmax.f32 %v8094, 0.0
    %v8097 = vmax.f32 %v8095, 0.0
    %v8099 = vsel %vm2802, %v8096, 0
    %v8102 = vsel %vm2802, %v8097, 0
    %8104 = vmatprep.subr.mxu0 0.0
    %8105 = vmatpush1.msra.mxu0 %v132
    %8106 = vmatprep.subr.mxu0 0.0
    %8107 = vmatpush1.msra.mxu0 %v133
    %8108 = vmatprep.subr.mxu0 0.0
    %8109 = vmatpush1.msra.mxu0 %v134
    %8110 = vmatprep.subr.mxu0 0.0
    %8111 = vmatpush1.msra.mxu0 %v135
    %8112 = vmatprep.subr.mxu0 0.0
    %8113 = vmatpush1.msra.mxu0 %v136
    %8114 = vmatprep.subr.mxu0 0.0
    %8115 = vmatpush1.msra.mxu0 %v137
    %8116 = vmatprep.subr.mxu0 0.0
    %8117 = vmatpush1.msra.mxu0 %v138
    %8118 = vmatprep.subr.mxu0 0.0
    %8119 = vmatpush1.msra.mxu0 %v139
    %8120 = vmatprep.subr.mxu0 0.0
    %8121 = vmatpush1.msra.mxu0 0.0
    %8122 = vmatprep.subr.mxu0 0.0
    %8123 = vmatpush1.msra.mxu0 0.0
    %8124 = vmatprep.subr.mxu0 0.0
    %8125 = vmatpush1.msra.mxu0 0.0
    %8126 = vmatprep.subr.mxu0 0.0
    %8127 = vmatpush1.msra.mxu0 0.0
    %8128 = vmatprep.subr.mxu0 0.0
    %8129 = vmatpush1.msra.mxu0 0.0
    %8130 = vmatprep.subr.mxu0 0.0
    %8131 = vmatpush1.msra.mxu0 0.0
    %8132 = vmatprep.subr.mxu0 0.0
    %8133 = vmatpush1.msra.mxu0 0.0
    %8134 = vmatprep.subr.mxu0 0.0
    %8135 = vmatpush1.msra.mxu0 0.0
    %8136 = vmatprep.subr.mxu0 0.0
    %8137 = vmatpush1.msra.mxu0 0.0
    %8138 = vmatprep.subr.mxu0 0.0
    %8139 = vmatpush1.msra.mxu0 0.0
    %8140 = vmatprep.subr.mxu0 0.0
    %8141 = vmatpush1.msra.mxu0 0.0
    %8142 = vmatprep.subr.mxu0 0.0
    %8143 = vmatpush1.msra.mxu0 0.0
    %8144 = vmatprep.subr.mxu0 0.0
    %8145 = vmatpush1.msra.mxu0 0.0
    %8146 = vmatprep.subr.mxu0 0.0
    %8147 = vmatpush1.msra.mxu0 0.0
    %8148 = vmatprep.subr.mxu0 0.0
    %8149 = vmatpush1.msra.mxu0 0.0
    %8150 = vmatprep.subr.mxu0 0.0
    %8151 = vmatpush1.msra.mxu0 0.0
    %8152 = vmatprep.subr.mxu0 0.0
    %8153 = vmatpush1.msra.mxu0 0.0
    %8154 = vmatprep.subr.mxu0 0.0
    %8155 = vmatpush1.msra.mxu0 0.0
    %8156 = vmatprep.subr.mxu0 0.0
    %8157 = vmatpush1.msra.mxu0 0.0
    %8158 = vmatprep.subr.mxu0 0.0
    %8159 = vmatpush1.msra.mxu0 0.0
    %8160 = vmatprep.subr.mxu0 0.0
    %8161 = vmatpush1.msra.mxu0 0.0
    %8162 = vmatprep.subr.mxu0 0.0
    %8163 = vmatpush1.msra.mxu0 0.0
    %8164 = vmatprep.subr.mxu0 0.0
    %8165 = vmatpush1.msra.mxu0 0.0
    %8166 = vmatprep.subr.mxu0 0.0
    %8167 = vmatpush1.msra.mxu0 0.0
    %8168 = vmatprep.mubr.f32.mxu0 0.0
    %8169 = vmatmul.mubr.f32.gmra.mrb[0].mxu0 %v8099
    %v8170 = vpop.f32.mrb[0].mxu0
    %v8171 = vadd.f32 %v77, %v8170
    %v8172 = vpop.f32.mrb[0].mxu0
    %8173 = vmatprep.mubr.f32.mxu0 0.0
    %8174 = vmatmul.mubr.f32.gmra.mrb[0].mxu0 %v8102
    %v8175 = vpop.f32.mrb[0].mxu0
    %v8176 = vadd.f32 %v77, %v8175
    %v8177 = vpop.f32.mrb[0].mxu0
    %8178 = vdwg.mxu0
    %8179 = vmatprep.subr.mxu0 0.0
    %8180 = vmatpush1.msra.mxu0 %v159
    %8181 = vmatprep.subr.mxu0 0.0
    %8182 = vmatpush1.msra.mxu0 %v160
    %8183 = vmatprep.subr.mxu0 0.0
    %8184 = vmatpush1.msra.mxu0 %v161
    %8185 = vmatprep.subr.mxu0 0.0
    %8186 = vmatpush1.msra.mxu0 %v162
    %8187 = vmatprep.subr.mxu0 0.0
    %8188 = vmatpush1.msra.mxu0 %v163
    %8189 = vmatprep.subr.mxu0 0.0
    %8190 = vmatpush1.msra.mxu0 %v164
    %8191 = vmatprep.subr.mxu0 0.0
    %8192 = vmatpush1.msra.mxu0 %v165
    %8193 = vmatprep.subr.mxu0 0.0
    %8194 = vmatpush1.msra.mxu0 %v166
    %8195 = vmatprep.subr.mxu0 0.0
    %8196 = vmatpush1.msra.mxu0 0.0
    %8197 = vmatprep.subr.mxu0 0.0
    %8198 = vmatpush1.msra.mxu0 0.0
    %8199 = vmatprep.subr.mxu0 0.0
    %8200 = vmatpush1.msra.mxu0 0.0
    %8201 = vmatprep.subr.mxu0 0.0
    %8202 = vmatpush1.msra.mxu0 0.0
    %8203 = vmatprep.subr.mxu0 0.0
    %8204 = vmatpush1.msra.mxu0 0.0
    %8205 = vmatprep.subr.mxu0 0.0
    %8206 = vmatpush1.msra.mxu0 0.0
    %8207 = vmatprep.subr.mxu0 0.0
    %8208 = vmatpush1.msra.mxu0 0.0
    %8209 = vmatprep.subr.mxu0 0.0
    %8210 = vmatpush1.msra.mxu0 0.0
    %8211 = vmatprep.subr.mxu0 0.0
    %8212 = vmatpush1.msra.mxu0 0.0
    %8213 = vmatprep.subr.mxu0 0.0
    %8214 = vmatpush1.msra.mxu0 0.0
    %8215 = vmatprep.subr.mxu0 0.0
    %8216 = vmatpush1.msra.mxu0 0.0
    %8217 = vmatprep.subr.mxu0 0.0
    %8218 = vmatpush1.msra.mxu0 0.0
    %8219 = vmatprep.subr.mxu0 0.0
    %8220 = vmatpush1.msra.mxu0 0.0
    %8221 = vmatprep.subr.mxu0 0.0
    %8222 = vmatpush1.msra.mxu0 0.0
    %8223 = vmatprep.subr.mxu0 0.0
    %8224 = vmatpush1.msra.mxu0 0.0
    %8225 = vmatprep.subr.mxu0 0.0
    %8226 = vmatpush1.msra.mxu0 0.0
    %8227 = vmatprep.subr.mxu0 0.0
    %8228 = vmatpush1.msra.mxu0 0.0
    %8229 = vmatprep.subr.mxu0 0.0
    %8230 = vmatpush1.msra.mxu0 0.0
    %8231 = vmatprep.subr.mxu0 0.0
    %8232 = vmatpush1.msra.mxu0 0.0
    %8233 = vmatprep.subr.mxu0 0.0
    %8234 = vmatpush1.msra.mxu0 0.0
    %8235 = vmatprep.subr.mxu0 0.0
    %8236 = vmatpush1.msra.mxu0 0.0
    %8237 = vmatprep.subr.mxu0 0.0
    %8238 = vmatpush1.msra.mxu0 0.0
    %8239 = vmatprep.subr.mxu0 0.0
    %8240 = vmatpush1.msra.mxu0 0.0
    %8241 = vmatprep.subr.mxu0 0.0
    %8242 = vmatpush1.msra.mxu0 0.0
    %8243 = vmatprep.mubr.f32.mxu0 0.0
    %8244 = vmatmul.mubr.f32.gmra.mrb[0].mxu0 %v5715
    %v8245 = vpop.f32.mrb[0].mxu0
    %v8246 = vadd.f32 0.0, %v8245
    %v8247 = vpop.f32.mrb[0].mxu0
    %8248 = vmatprep.mubr.f32.mxu0 0.0
    %8249 = vmatmul.mubr.f32.gmra.mrb[0].mxu0 %v5718
    %v8250 = vpop.f32.mrb[0].mxu0
    %v8251 = vadd.f32 0.0, %v8250
    %v8252 = vpop.f32.mrb[0].mxu0
    %8253 = vdwg.mxu0
    %v8254 = vadd.f32 %v8171, %v8246
    %v8255 = vadd.f32 %v8176, %v8251
    %v8256 = vadd.f32 %v8254, %v89
    %v8257 = vadd.f32 %v8255, %v89
    %v8258 = vxor.u32 %v8256, 2147483648
    %v8259 = vxor.u32 %v8257, 2147483648
    %v8260 = vmul.f32 %v8258, 1.442695
    %v8261 = vpow.pop %v8260
    %v8262 = vmul.f32 %v8259, 1.442695
    %v8263 = vpow.pop %v8262
    %v8264 = vadd.f32 %v8261, 1.0
    %v8265 = vadd.f32 %v8263, 1.0
    %v8266 = vrcp.pop %v8264
    %v8267 = vmul.f32 1.0, %v8266
    %v8268 = vrcp.pop %v8265
    %v8269 = vmul.f32 1.0, %v8268
    %8270 = vmatprep.subr.mxu0 0.0
    %8271 = vmatpush1.msra.mxu0 %v141
    %8272 = vmatprep.subr.mxu0 0.0
    %8273 = vmatpush1.msra.mxu0 %v142
    %8274 = vmatprep.subr.mxu0 0.0
    %8275 = vmatpush1.msra.mxu0 %v143
    %8276 = vmatprep.subr.mxu0 0.0
    %8277 = vmatpush1.msra.mxu0 %v144
    %8278 = vmatprep.subr.mxu0 0.0
    %8279 = vmatpush1.msra.mxu0 %v145
    %8280 = vmatprep.subr.mxu0 0.0
    %8281 = vmatpush1.msra.mxu0 %v146
    %8282 = vmatprep.subr.mxu0 0.0
    %8283 = vmatpush1.msra.mxu0 %v147
    %8284 = vmatprep.subr.mxu0 0.0
    %8285 = vmatpush1.msra.mxu0 %v148
    %8286 = vmatprep.subr.mxu0 0.0
    %8287 = vmatpush1.msra.mxu0 0.0
    %8288 = vmatprep.subr.mxu0 0.0
    %8289 = vmatpush1.msra.mxu0 0.0
    %8290 = vmatprep.subr.mxu0 0.0
    %8291 = vmatpush1.msra.mxu0 0.0
    %8292 = vmatprep.subr.mxu0 0.0
    %8293 = vmatpush1.msra.mxu0 0.0
    %8294 = vmatprep.subr.mxu0 0.0
    %8295 = vmatpush1.msra.mxu0 0.0
    %8296 = vmatprep.subr.mxu0 0.0
    %8297 = vmatpush1.msra.mxu0 0.0
    %8298 = vmatprep.subr.mxu0 0.0
    %8299 = vmatpush1.msra.mxu0 0.0
    %8300 = vmatprep.subr.mxu0 0.0
    %8301 = vmatpush1.msra.mxu0 0.0
    %8302 = vmatprep.subr.mxu0 0.0
    %8303 = vmatpush1.msra.mxu0 0.0
    %8304 = vmatprep.subr.mxu0 0.0
    %8305 = vmatpush1.msra.mxu0 0.0
    %8306 = vmatprep.subr.mxu0 0.0
    %8307 = vmatpush1.msra.mxu0 0.0
    %8308 = vmatprep.subr.mxu0 0.0
    %8309 = vmatpush1.msra.mxu0 0.0
    %8310 = vmatprep.subr.mxu0 0.0
    %8311 = vmatpush1.msra.mxu0 0.0
    %8312 = vmatprep.subr.mxu0 0.0
    %8313 = vmatpush1.msra.mxu0 0.0
    %8314 = vmatprep.subr.mxu0 0.0
    %8315 = vmatpush1.msra.mxu0 0.0
    %8316 = vmatprep.subr.mxu0 0.0
    %8317 = vmatpush1.msra.mxu0 0.0
    %8318 = vmatprep.subr.mxu0 0.0
    %8319 = vmatpush1.msra.mxu0 0.0
    %8320 = vmatprep.subr.mxu0 0.0
    %8321 = vmatpush1.msra.mxu0 0.0
    %8322 = vmatprep.subr.mxu0 0.0
    %8323 = vmatpush1.msra.mxu0 0.0
    %8324 = vmatprep.subr.mxu0 0.0
    %8325 = vmatpush1.msra.mxu0 0.0
    %8326 = vmatprep.subr.mxu0 0.0
    %8327 = vmatpush1.msra.mxu0 0.0
    %8328 = vmatprep.subr.mxu0 0.0
    %8329 = vmatpush1.msra.mxu0 0.0
    %8330 = vmatprep.subr.mxu0 0.0
    %8331 = vmatpush1.msra.mxu0 0.0
    %8332 = vmatprep.subr.mxu0 0.0
    %8333 = vmatpush1.msra.mxu0 0.0
    %8334 = vmatprep.mubr.f32.mxu0 0.0
    %8335 = vmatmul.mubr.f32.gmra.mrb[0].mxu0 %v8099
    %v8336 = vpop.f32.mrb[0].mxu0
    %v8337 = vadd.f32 %v81, %v8336
    %v8338 = vpop.f32.mrb[0].mxu0
    %8339 = vmatprep.mubr.f32.mxu0 0.0
    %8340 = vmatmul.mubr.f32.gmra.mrb[0].mxu0 %v8102
    %v8341 = vpop.f32.mrb[0].mxu0
    %v8342 = vadd.f32 %v81, %v8341
    %v8343 = vpop.f32.mrb[0].mxu0
    %8344 = vdwg.mxu0
    %8345 = vmatprep.subr.mxu0 0.0
    %8346 = vmatpush1.msra.mxu0 %v168
    %8347 = vmatprep.subr.mxu0 0.0
    %8348 = vmatpush1.msra.mxu0 %v169
    %8349 = vmatprep.subr.mxu0 0.0
    %8350 = vmatpush1.msra.mxu0 %v170
    %8351 = vmatprep.subr.mxu0 0.0
    %8352 = vmatpush1.msra.mxu0 %v171
    %8353 = vmatprep.subr.mxu0 0.0
    %8354 = vmatpush1.msra.mxu0 %v172
    %8355 = vmatprep.subr.mxu0 0.0
    %8356 = vmatpush1.msra.mxu0 %v173
    %8357 = vmatprep.subr.mxu0 0.0
    %8358 = vmatpush1.msra.mxu0 %v174
    %8359 = vmatprep.subr.mxu0 0.0
    %8360 = vmatpush1.msra.mxu0 %v175
    %8361 = vmatprep.subr.mxu0 0.0
    %8362 = vmatpush1.msra.mxu0 0.0
    %8363 = vmatprep.subr.mxu0 0.0
    %8364 = vmatpush1.msra.mxu0 0.0
    %8365 = vmatprep.subr.mxu0 0.0
    %8366 = vmatpush1.msra.mxu0 0.0
    %8367 = vmatprep.subr.mxu0 0.0
    %8368 = vmatpush1.msra.mxu0 0.0
    %8369 = vmatprep.subr.mxu0 0.0
    %8370 = vmatpush1.msra.mxu0 0.0
    %8371 = vmatprep.subr.mxu0 0.0
    %8372 = vmatpush1.msra.mxu0 0.0
    %8373 = vmatprep.subr.mxu0 0.0
    %8374 = vmatpush1.msra.mxu0 0.0
    %8375 = vmatprep.subr.mxu0 0.0
    %8376 = vmatpush1.msra.mxu0 0.0
    %8377 = vmatprep.subr.mxu0 0.0
    %8378 = vmatpush1.msra.mxu0 0.0
    %8379 = vmatprep.subr.mxu0 0.0
    %8380 = vmatpush1.msra.mxu0 0.0
    %8381 = vmatprep.subr.mxu0 0.0
    %8382 = vmatpush1.msra.mxu0 0.0
    %8383 = vmatprep.subr.mxu0 0.0
    %8384 = vmatpush1.msra.mxu0 0.0
    %8385 = vmatprep.subr.mxu0 0.0
    %8386 = vmatpush1.msra.mxu0 0.0
    %8387 = vmatprep.subr.mxu0 0.0
    %8388 = vmatpush1.msra.mxu0 0.0
    %8389 = vmatprep.subr.mxu0 0.0
    %8390 = vmatpush1.msra.mxu0 0.0
    %8391 = vmatprep.subr.mxu0 0.0
    %8392 = vmatpush1.msra.mxu0 0.0
    %8393 = vmatprep.subr.mxu0 0.0
    %8394 = vmatpush1.msra.mxu0 0.0
    %8395 = vmatprep.subr.mxu0 0.0
    %8396 = vmatpush1.msra.mxu0 0.0
    %8397 = vmatprep.subr.mxu0 0.0
    %8398 = vmatpush1.msra.mxu0 0.0
    %8399 = vmatprep.subr.mxu0 0.0
    %8400 = vmatpush1.msra.mxu0 0.0
    %8401 = vmatprep.subr.mxu0 0.0
    %8402 = vmatpush1.msra.mxu0 0.0
    %8403 = vmatprep.subr.mxu0 0.0
    %8404 = vmatpush1.msra.mxu0 0.0
    %8405 = vmatprep.subr.mxu0 0.0
    %8406 = vmatpush1.msra.mxu0 0.0
    %8407 = vmatprep.subr.mxu0 0.0
    %8408 = vmatpush1.msra.mxu0 0.0
    %8409 = vmatprep.mubr.f32.mxu0 0.0
    %8410 = vmatmul.mubr.f32.gmra.mrb[0].mxu0 %v5715
    %v8411 = vpop.f32.mrb[0].mxu0
    %v8412 = vadd.f32 0.0, %v8411
    %v8413 = vpop.f32.mrb[0].mxu0
    %8414 = vmatprep.mubr.f32.mxu0 0.0
    %8415 = vmatmul.mubr.f32.gmra.mrb[0].mxu0 %v5718
    %v8416 = vpop.f32.mrb[0].mxu0
    %v8417 = vadd.f32 0.0, %v8416
    %v8418 = vpop.f32.mrb[0].mxu0
    %8419 = vdwg.mxu0
    %v8420 = vadd.f32 %v8337, %v8412
    %v8421 = vadd.f32 %v8342, %v8417
    %v8422 = vadd.f32 %v8420, %v93
    %v8423 = vadd.f32 %v8421, %v93
    %v8424 = vxor.u32 %v8422, 2147483648
    %v8425 = vxor.u32 %v8423, 2147483648
    %v8426 = vmul.f32 %v8424, 1.442695
    %v8427 = vpow.pop %v8426
    %v8428 = vmul.f32 %v8425, 1.442695
    %v8429 = vpow.pop %v8428
    %v8430 = vadd.f32 %v8427, 1.0
    %v8431 = vadd.f32 %v8429, 1.0
    %v8432 = vrcp.pop %v8430
    %v8433 = vmul.f32 1.0, %v8432
    %v8434 = vrcp.pop %v8431
    %v8435 = vmul.f32 1.0, %v8434
    %8436 = vmatprep.subr.mxu0 0.0
    %8437 = vmatpush1.msra.mxu0 %v150
    %8438 = vmatprep.subr.mxu0 0.0
    %8439 = vmatpush1.msra.mxu0 %v151
    %8440 = vmatprep.subr.mxu0 0.0
    %8441 = vmatpush1.msra.mxu0 %v152
    %8442 = vmatprep.subr.mxu0 0.0
    %8443 = vmatpush1.msra.mxu0 %v153
    %8444 = vmatprep.subr.mxu0 0.0
    %8445 = vmatpush1.msra.mxu0 %v154
    %8446 = vmatprep.subr.mxu0 0.0
    %8447 = vmatpush1.msra.mxu0 %v155
    %8448 = vmatprep.subr.mxu0 0.0
    %8449 = vmatpush1.msra.mxu0 %v156
    %8450 = vmatprep.subr.mxu0 0.0
    %8451 = vmatpush1.msra.mxu0 %v157
    %8452 = vmatprep.subr.mxu0 0.0
    %8453 = vmatpush1.msra.mxu0 0.0
    %8454 = vmatprep.subr.mxu0 0.0
    %8455 = vmatpush1.msra.mxu0 0.0
    %8456 = vmatprep.subr.mxu0 0.0
    %8457 = vmatpush1.msra.mxu0 0.0
    %8458 = vmatprep.subr.mxu0 0.0
    %8459 = vmatpush1.msra.mxu0 0.0
    %8460 = vmatprep.subr.mxu0 0.0
    %8461 = vmatpush1.msra.mxu0 0.0
    %8462 = vmatprep.subr.mxu0 0.0
    %8463 = vmatpush1.msra.mxu0 0.0
    %8464 = vmatprep.subr.mxu0 0.0
    %8465 = vmatpush1.msra.mxu0 0.0
    %8466 = vmatprep.subr.mxu0 0.0
    %8467 = vmatpush1.msra.mxu0 0.0
    %8468 = vmatprep.subr.mxu0 0.0
    %8469 = vmatpush1.msra.mxu0 0.0
    %8470 = vmatprep.subr.mxu0 0.0
    %8471 = vmatpush1.msra.mxu0 0.0
    %8472 = vmatprep.subr.mxu0 0.0
    %8473 = vmatpush1.msra.mxu0 0.0
    %8474 = vmatprep.subr.mxu0 0.0
    %8475 = vmatpush1.msra.mxu0 0.0
    %8476 = vmatprep.subr.mxu0 0.0
    %8477 = vmatpush1.msra.mxu0 0.0
    %8478 = vmatprep.subr.mxu0 0.0
    %8479 = vmatpush1.msra.mxu0 0.0
    %8480 = vmatprep.subr.mxu0 0.0
    %8481 = vmatpush1.msra.mxu0 0.0
    %8482 = vmatprep.subr.mxu0 0.0
    %8483 = vmatpush1.msra.mxu0 0.0
    %8484 = vmatprep.subr.mxu0 0.0
    %8485 = vmatpush1.msra.mxu0 0.0
    %8486 = vmatprep.subr.mxu0 0.0
    %8487 = vmatpush1.msra.mxu0 0.0
    %8488 = vmatprep.subr.mxu0 0.0
    %8489 = vmatpush1.msra.mxu0 0.0
    %8490 = vmatprep.subr.mxu0 0.0
    %8491 = vmatpush1.msra.mxu0 0.0
    %8492 = vmatprep.subr.mxu0 0.0
    %8493 = vmatpush1.msra.mxu0 0.0
    %8494 = vmatprep.subr.mxu0 0.0
    %8495 = vmatpush1.msra.mxu0 0.0
    %8496 = vmatprep.subr.mxu0 0.0
    %8497 = vmatpush1.msra.mxu0 0.0
    %8498 = vmatprep.subr.mxu0 0.0
    %8499 = vmatpush1.msra.mxu0 0.0
    %8500 = vmatprep.mubr.f32.mxu0 0.0
    %8501 = vmatmul.mubr.f32.gmra.mrb[0].mxu0 %v8099
    %v8502 = vpop.f32.mrb[0].mxu0
    %v8503 = vadd.f32 %v85, %v8502
    %v8504 = vpop.f32.mrb[0].mxu0
    %8505 = vmatprep.mubr.f32.mxu0 0.0
    %8506 = vmatmul.mubr.f32.gmra.mrb[0].mxu0 %v8102
    %v8507 = vpop.f32.mrb[0].mxu0
    %v8508 = vadd.f32 %v85, %v8507
    %v8509 = vpop.f32.mrb[0].mxu0
    %8510 = vdwg.mxu0
    %8511 = vmatprep.subr.mxu0 0.0
    %8512 = vmatpush1.msra.mxu0 %v177
    %8513 = vmatprep.subr.mxu0 0.0
    %8514 = vmatpush1.msra.mxu0 %v178
    %8515 = vmatprep.subr.mxu0 0.0
    %8516 = vmatpush1.msra.mxu0 %v179
    %8517 = vmatprep.subr.mxu0 0.0
    %8518 = vmatpush1.msra.mxu0 %v180
    %8519 = vmatprep.subr.mxu0 0.0
    %8520 = vmatpush1.msra.mxu0 %v181
    %8521 = vmatprep.subr.mxu0 0.0
    %8522 = vmatpush1.msra.mxu0 %v182
    %8523 = vmatprep.subr.mxu0 0.0
    %8524 = vmatpush1.msra.mxu0 %v183
    %8525 = vmatprep.subr.mxu0 0.0
    %8526 = vmatpush1.msra.mxu0 %v184
    %8527 = vmatprep.subr.mxu0 0.0
    %8528 = vmatpush1.msra.mxu0 0.0
    %8529 = vmatprep.subr.mxu0 0.0
    %8530 = vmatpush1.msra.mxu0 0.0
    %8531 = vmatprep.subr.mxu0 0.0
    %8532 = vmatpush1.msra.mxu0 0.0
    %8533 = vmatprep.subr.mxu0 0.0
    %8534 = vmatpush1.msra.mxu0 0.0
    %8535 = vmatprep.subr.mxu0 0.0
    %8536 = vmatpush1.msra.mxu0 0.0
    %8537 = vmatprep.subr.mxu0 0.0
    %8538 = vmatpush1.msra.mxu0 0.0
    %8539 = vmatprep.subr.mxu0 0.0
    %8540 = vmatpush1.msra.mxu0 0.0
    %8541 = vmatprep.subr.mxu0 0.0
    %8542 = vmatpush1.msra.mxu0 0.0
    %8543 = vmatprep.subr.mxu0 0.0
    %8544 = vmatpush1.msra.mxu0 0.0
    %8545 = vmatprep.subr.mxu0 0.0
    %8546 = vmatpush1.msra.mxu0 0.0
    %8547 = vmatprep.subr.mxu0 0.0
    %8548 = vmatpush1.msra.mxu0 0.0
    %8549 = vmatprep.subr.mxu0 0.0
    %8550 = vmatpush1.msra.mxu0 0.0
    %8551 = vmatprep.subr.mxu0 0.0
    %8552 = vmatpush1.msra.mxu0 0.0
    %8553 = vmatprep.subr.mxu0 0.0
    %8554 = vmatpush1.msra.mxu0 0.0
    %8555 = vmatprep.subr.mxu0 0.0
    %8556 = vmatpush1.msra.mxu0 0.0
    %8557 = vmatprep.subr.mxu0 0.0
    %8558 = vmatpush1.msra.mxu0 0.0
    %8559 = vmatprep.subr.mxu0 0.0
    %8560 = vmatpush1.msra.mxu0 0.0
    %8561 = vmatprep.subr.mxu0 0.0
    %8562 = vmatpush1.msra.mxu0 0.0
    %8563 = vmatprep.subr.mxu0 0.0
    %8564 = vmatpush1.msra.mxu0 0.0
    %8565 = vmatprep.subr.mxu0 0.0
    %8566 = vmatpush1.msra.mxu0 0.0
    %8567 = vmatprep.subr.mxu0 0.0
    %8568 = vmatpush1.msra.mxu0 0.0
    %8569 = vmatprep.subr.mxu0 0.0
    %8570 = vmatpush1.msra.mxu0 0.0
    %8571 = vmatprep.subr.mxu0 0.0
    %8572 = vmatpush1.msra.mxu0 0.0
    %8573 = vmatprep.subr.mxu0 0.0
    %8574 = vmatpush1.msra.mxu0 0.0
    %8575 = vmatprep.mubr.f32.mxu0 0.0
    %8576 = vmatmul.mubr.f32.gmra.mrb[0].mxu0 %v5715
    %v8577 = vpop.f32.mrb[0].mxu0
    %v8578 = vadd.f32 %v97, %v8577
    %v8579 = vpop.f32.mrb[0].mxu0
    %8580 = vmatprep.mubr.f32.mxu0 0.0
    %8581 = vmatmul.mubr.f32.gmra.mrb[0].mxu0 %v5718
    %v8582 = vpop.f32.mrb[0].mxu0
    %v8583 = vadd.f32 %v97, %v8582
    %v8584 = vpop.f32.mrb[0].mxu0
    %8585 = vdwg.mxu0
    %v8586 = vmul.f32 %v8267, %v8578
    %v8587 = vmul.f32 %v8269, %v8583
    %v8588 = vadd.f32 %v8503, %v8586
    %v8589 = vadd.f32 %v8508, %v8587
    %v8590 = vtanh.pop %v8588
    %v8591 = vtanh.pop %v8589
    %v8592 = vsub.f32 1.0, %v8433
    %v8593 = vsub.f32 1.0, %v8435
    %v8594 = vmul.f32 %v8592, %v8590
    %v8595 = vmul.f32 %v8593, %v8591
    %v8596 = vmul.f32 %v8433, %v5712
    %v8597 = vmul.f32 %v8435, %v5713
    %v8598 = vadd.f32 %v8594, %v8596
    %v8599 = vadd.f32 %v8595, %v8597
    %v8601 = vsel %vm2802, %v8598, 0
    %v8604 = vsel %vm2802, %v8599, 0
    %8606 = vmatprep.subr.mxu0 %v186
    %8607 = vmatpush1.msra.mxu0 %v185
    %8608 = vmatprep.subr.mxu0 %v202
    %8609 = vmatpush1.msra.mxu0 %v201
    %8610 = vmatprep.subr.mxu0 %v218
    %8611 = vmatpush1.msra.mxu0 %v217
    %8612 = vmatprep.subr.mxu0 %v234
    %8613 = vmatpush1.msra.mxu0 %v233
    %8614 = vmatprep.subr.mxu0 %v250
    %8615 = vmatpush1.msra.mxu0 %v249
    %8616 = vmatprep.subr.mxu0 %v266
    %8617 = vmatpush1.msra.mxu0 %v265
    %8618 = vmatprep.subr.mxu0 %v282
    %8619 = vmatpush1.msra.mxu0 %v281
    %8620 = vmatprep.subr.mxu0 %v298
    %8621 = vmatpush1.msra.mxu0 %v297
    %8622 = vmatprep.subr.mxu0 0.0
    %8623 = vmatpush1.msra.mxu0 0.0
    %8624 = vmatprep.subr.mxu0 0.0
    %8625 = vmatpush1.msra.mxu0 0.0
    %8626 = vmatprep.subr.mxu0 0.0
    %8627 = vmatpush1.msra.mxu0 0.0
    %8628 = vmatprep.subr.mxu0 0.0
    %8629 = vmatpush1.msra.mxu0 0.0
    %8630 = vmatprep.subr.mxu0 0.0
    %8631 = vmatpush1.msra.mxu0 0.0
    %8632 = vmatprep.subr.mxu0 0.0
    %8633 = vmatpush1.msra.mxu0 0.0
    %8634 = vmatprep.subr.mxu0 0.0
    %8635 = vmatpush1.msra.mxu0 0.0
    %8636 = vmatprep.subr.mxu0 0.0
    %8637 = vmatpush1.msra.mxu0 0.0
    %8638 = vmatprep.subr.mxu0 0.0
    %8639 = vmatpush1.msra.mxu0 0.0
    %8640 = vmatprep.subr.mxu0 0.0
    %8641 = vmatpush1.msra.mxu0 0.0
    %8642 = vmatprep.subr.mxu0 0.0
    %8643 = vmatpush1.msra.mxu0 0.0
    %8644 = vmatprep.subr.mxu0 0.0
    %8645 = vmatpush1.msra.mxu0 0.0
    %8646 = vmatprep.subr.mxu0 0.0
    %8647 = vmatpush1.msra.mxu0 0.0
    %8648 = vmatprep.subr.mxu0 0.0
    %8649 = vmatpush1.msra.mxu0 0.0
    %8650 = vmatprep.subr.mxu0 0.0
    %8651 = vmatpush1.msra.mxu0 0.0
    %8652 = vmatprep.subr.mxu0 0.0
    %8653 = vmatpush1.msra.mxu0 0.0
    %8654 = vmatprep.subr.mxu0 0.0
    %8655 = vmatpush1.msra.mxu0 0.0
    %8656 = vmatprep.subr.mxu0 0.0
    %8657 = vmatpush1.msra.mxu0 0.0
    %8658 = vmatprep.subr.mxu0 0.0
    %8659 = vmatpush1.msra.mxu0 0.0
    %8660 = vmatprep.subr.mxu0 0.0
    %8661 = vmatpush1.msra.mxu0 0.0
    %8662 = vmatprep.subr.mxu0 0.0
    %8663 = vmatpush1.msra.mxu0 0.0
    %8664 = vmatprep.subr.mxu0 0.0
    %8665 = vmatpush1.msra.mxu0 0.0
    %8666 = vmatprep.subr.mxu0 0.0
    %8667 = vmatpush1.msra.mxu0 0.0
    %8668 = vmatprep.subr.mxu0 0.0
    %8669 = vmatpush1.msra.mxu0 0.0
    %8670 = vmatprep.mubr.f32.mxu0 0.0
    %8671 = vmatmul.mubr.f32.gmra.mrb[0].mxu0 %v8601
    %v8672 = vpop.f32.mrb[0].mxu0
    %v8673 = vadd.f32 0.0, %v8672
    %v8674 = vpop.f32.mrb[0].mxu0
    %v8675 = vadd.f32 0.0, %v8674
    %8676 = vmatprep.mubr.f32.mxu0 0.0
    %8677 = vmatmul.mubr.f32.gmra.mrb[0].mxu0 %v8604
    %v8678 = vpop.f32.mrb[0].mxu0
    %v8679 = vadd.f32 0.0, %v8678
    %v8680 = vpop.f32.mrb[0].mxu0
    %v8681 = vadd.f32 0.0, %v8680
    %8682 = vdwg.mxu0
    %8683 = vmatprep.subr.mxu0 %v188
    %8684 = vmatpush1.msra.mxu0 %v187
    %8685 = vmatprep.subr.mxu0 %v204
    %8686 = vmatpush1.msra.mxu0 %v203
    %8687 = vmatprep.subr.mxu0 %v220
    %8688 = vmatpush1.msra.mxu0 %v219
    %8689 = vmatprep.subr.mxu0 %v236
    %8690 = vmatpush1.msra.mxu0 %v235
    %8691 = vmatprep.subr.mxu0 %v252
    %8692 = vmatpush1.msra.mxu0 %v251
    %8693 = vmatprep.subr.mxu0 %v268
    %8694 = vmatpush1.msra.mxu0 %v267
    %8695 = vmatprep.subr.mxu0 %v284
    %8696 = vmatpush1.msra.mxu0 %v283
    %8697 = vmatprep.subr.mxu0 %v300
    %8698 = vmatpush1.msra.mxu0 %v299
    %8699 = vmatprep.subr.mxu0 0.0
    %8700 = vmatpush1.msra.mxu0 0.0
    %8701 = vmatprep.subr.mxu0 0.0
    %8702 = vmatpush1.msra.mxu0 0.0
    %8703 = vmatprep.subr.mxu0 0.0
    %8704 = vmatpush1.msra.mxu0 0.0
    %8705 = vmatprep.subr.mxu0 0.0
    %8706 = vmatpush1.msra.mxu0 0.0
    %8707 = vmatprep.subr.mxu0 0.0
    %8708 = vmatpush1.msra.mxu0 0.0
    %8709 = vmatprep.subr.mxu0 0.0
    %8710 = vmatpush1.msra.mxu0 0.0
    %8711 = vmatprep.subr.mxu0 0.0
    %8712 = vmatpush1.msra.mxu0 0.0
    %8713 = vmatprep.subr.mxu0 0.0
    %8714 = vmatpush1.msra.mxu0 0.0
    %8715 = vmatprep.subr.mxu0 0.0
    %8716 = vmatpush1.msra.mxu0 0.0
    %8717 = vmatprep.subr.mxu0 0.0
    %8718 = vmatpush1.msra.mxu0 0.0
    %8719 = vmatprep.subr.mxu0 0.0
    %8720 = vmatpush1.msra.mxu0 0.0
    %8721 = vmatprep.subr.mxu0 0.0
    %8722 = vmatpush1.msra.mxu0 0.0
    %8723 = vmatprep.subr.mxu0 0.0
    %8724 = vmatpush1.msra.mxu0 0.0
    %8725 = vmatprep.subr.mxu0 0.0
    %8726 = vmatpush1.msra.mxu0 0.0
    %8727 = vmatprep.subr.mxu0 0.0
    %8728 = vmatpush1.msra.mxu0 0.0
    %8729 = vmatprep.subr.mxu0 0.0
    %8730 = vmatpush1.msra.mxu0 0.0
    %8731 = vmatprep.subr.mxu0 0.0
    %8732 = vmatpush1.msra.mxu0 0.0
    %8733 = vmatprep.subr.mxu0 0.0
    %8734 = vmatpush1.msra.mxu0 0.0
    %8735 = vmatprep.subr.mxu0 0.0
    %8736 = vmatpush1.msra.mxu0 0.0
    %8737 = vmatprep.subr.mxu0 0.0
    %8738 = vmatpush1.msra.mxu0 0.0
    %8739 = vmatprep.subr.mxu0 0.0
    %8740 = vmatpush1.msra.mxu0 0.0
    %8741 = vmatprep.subr.mxu0 0.0
    %8742 = vmatpush1.msra.mxu0 0.0
    %8743 = vmatprep.subr.mxu0 0.0
    %8744 = vmatpush1.msra.mxu0 0.0
    %8745 = vmatprep.subr.mxu0 0.0
    %8746 = vmatpush1.msra.mxu0 0.0
    %8747 = vmatprep.mubr.f32.mxu0 0.0
    %8748 = vmatmul.mubr.f32.gmra.mrb[0].mxu0 %v8601
    %v8749 = vpop.f32.mrb[0].mxu0
    %v8750 = vadd.f32 0.0, %v8749
    %v8751 = vpop.f32.mrb[0].mxu0
    %v8752 = vadd.f32 0.0, %v8751
    %8753 = vmatprep.mubr.f32.mxu0 0.0
    %8754 = vmatmul.mubr.f32.gmra.mrb[0].mxu0 %v8604
    %v8755 = vpop.f32.mrb[0].mxu0
    %v8756 = vadd.f32 0.0, %v8755
    %v8757 = vpop.f32.mrb[0].mxu0
    %v8758 = vadd.f32 0.0, %v8757
    %8759 = vdwg.mxu0
    %8760 = vmatprep.subr.mxu0 %v190
    %8761 = vmatpush1.msra.mxu0 %v189
    %8762 = vmatprep.subr.mxu0 %v206
    %8763 = vmatpush1.msra.mxu0 %v205
    %8764 = vmatprep.subr.mxu0 %v222
    %8765 = vmatpush1.msra.mxu0 %v221
    %8766 = vmatprep.subr.mxu0 %v238
    %8767 = vmatpush1.msra.mxu0 %v237
    %8768 = vmatprep.subr.mxu0 %v254
    %8769 = vmatpush1.msra.mxu0 %v253
    %8770 = vmatprep.subr.mxu0 %v270
    %8771 = vmatpush1.msra.mxu0 %v269
    %8772 = vmatprep.subr.mxu0 %v286
    %8773 = vmatpush1.msra.mxu0 %v285
    %8774 = vmatprep.subr.mxu0 %v302
    %8775 = vmatpush1.msra.mxu0 %v301
    %8776 = vmatprep.subr.mxu0 0.0
    %8777 = vmatpush1.msra.mxu0 0.0
    %8778 = vmatprep.subr.mxu0 0.0
    %8779 = vmatpush1.msra.mxu0 0.0
    %8780 = vmatprep.subr.mxu0 0.0
    %8781 = vmatpush1.msra.mxu0 0.0
    %8782 = vmatprep.subr.mxu0 0.0
    %8783 = vmatpush1.msra.mxu0 0.0
    %8784 = vmatprep.subr.mxu0 0.0
    %8785 = vmatpush1.msra.mxu0 0.0
    %8786 = vmatprep.subr.mxu0 0.0
    %8787 = vmatpush1.msra.mxu0 0.0
    %8788 = vmatprep.subr.mxu0 0.0
    %8789 = vmatpush1.msra.mxu0 0.0
    %8790 = vmatprep.subr.mxu0 0.0
    %8791 = vmatpush1.msra.mxu0 0.0
    %8792 = vmatprep.subr.mxu0 0.0
    %8793 = vmatpush1.msra.mxu0 0.0
    %8794 = vmatprep.subr.mxu0 0.0
    %8795 = vmatpush1.msra.mxu0 0.0
    %8796 = vmatprep.subr.mxu0 0.0
    %8797 = vmatpush1.msra.mxu0 0.0
    %8798 = vmatprep.subr.mxu0 0.0
    %8799 = vmatpush1.msra.mxu0 0.0
    %8800 = vmatprep.subr.mxu0 0.0
    %8801 = vmatpush1.msra.mxu0 0.0
    %8802 = vmatprep.subr.mxu0 0.0
    %8803 = vmatpush1.msra.mxu0 0.0
    %8804 = vmatprep.subr.mxu0 0.0
    %8805 = vmatpush1.msra.mxu0 0.0
    %8806 = vmatprep.subr.mxu0 0.0
    %8807 = vmatpush1.msra.mxu0 0.0
    %8808 = vmatprep.subr.mxu0 0.0
    %8809 = vmatpush1.msra.mxu0 0.0
    %8810 = vmatprep.subr.mxu0 0.0
    %8811 = vmatpush1.msra.mxu0 0.0
    %8812 = vmatprep.subr.mxu0 0.0
    %8813 = vmatpush1.msra.mxu0 0.0
    %8814 = vmatprep.subr.mxu0 0.0
    %8815 = vmatpush1.msra.mxu0 0.0
    %8816 = vmatprep.subr.mxu0 0.0
    %8817 = vmatpush1.msra.mxu0 0.0
    %8818 = vmatprep.subr.mxu0 0.0
    %8819 = vmatpush1.msra.mxu0 0.0
    %8820 = vmatprep.subr.mxu0 0.0
    %8821 = vmatpush1.msra.mxu0 0.0
    %8822 = vmatprep.subr.mxu0 0.0
    %8823 = vmatpush1.msra.mxu0 0.0
    %8824 = vmatprep.mubr.f32.mxu0 0.0
    %8825 = vmatmul.mubr.f32.gmra.mrb[0].mxu0 %v8601
    %v8826 = vpop.f32.mrb[0].mxu0
    %v8827 = vadd.f32 0.0, %v8826
    %v8828 = vpop.f32.mrb[0].mxu0
    %v8829 = vadd.f32 0.0, %v8828
    %8830 = vmatprep.mubr.f32.mxu0 0.0
    %8831 = vmatmul.mubr.f32.gmra.mrb[0].mxu0 %v8604
    %v8832 = vpop.f32.mrb[0].mxu0
    %v8833 = vadd.f32 0.0, %v8832
    %v8834 = vpop.f32.mrb[0].mxu0
    %v8835 = vadd.f32 0.0, %v8834
    %8836 = vdwg.mxu0
    %8837 = vmatprep.subr.mxu0 %v192
    %8838 = vmatpush1.msra.mxu0 %v191
    %8839 = vmatprep.subr.mxu0 %v208
    %8840 = vmatpush1.msra.mxu0 %v207
    %8841 = vmatprep.subr.mxu0 %v224
    %8842 = vmatpush1.msra.mxu0 %v223
    %8843 = vmatprep.subr.mxu0 %v240
    %8844 = vmatpush1.msra.mxu0 %v239
    %8845 = vmatprep.subr.mxu0 %v256
    %8846 = vmatpush1.msra.mxu0 %v255
    %8847 = vmatprep.subr.mxu0 %v272
    %8848 = vmatpush1.msra.mxu0 %v271
    %8849 = vmatprep.subr.mxu0 %v288
    %8850 = vmatpush1.msra.mxu0 %v287
    %8851 = vmatprep.subr.mxu0 %v304
    %8852 = vmatpush1.msra.mxu0 %v303
    %8853 = vmatprep.subr.mxu0 0.0
    %8854 = vmatpush1.msra.mxu0 0.0
    %8855 = vmatprep.subr.mxu0 0.0
    %8856 = vmatpush1.msra.mxu0 0.0
    %8857 = vmatprep.subr.mxu0 0.0
    %8858 = vmatpush1.msra.mxu0 0.0
    %8859 = vmatprep.subr.mxu0 0.0
    %8860 = vmatpush1.msra.mxu0 0.0
    %8861 = vmatprep.subr.mxu0 0.0
    %8862 = vmatpush1.msra.mxu0 0.0
    %8863 = vmatprep.subr.mxu0 0.0
    %8864 = vmatpush1.msra.mxu0 0.0
    %8865 = vmatprep.subr.mxu0 0.0
    %8866 = vmatpush1.msra.mxu0 0.0
    %8867 = vmatprep.subr.mxu0 0.0
    %8868 = vmatpush1.msra.mxu0 0.0
    %8869 = vmatprep.subr.mxu0 0.0
    %8870 = vmatpush1.msra.mxu0 0.0
    %8871 = vmatprep.subr.mxu0 0.0
    %8872 = vmatpush1.msra.mxu0 0.0
    %8873 = vmatprep.subr.mxu0 0.0
    %8874 = vmatpush1.msra.mxu0 0.0
    %8875 = vmatprep.subr.mxu0 0.0
    %8876 = vmatpush1.msra.mxu0 0.0
    %8877 = vmatprep.subr.mxu0 0.0
    %8878 = vmatpush1.msra.mxu0 0.0
    %8879 = vmatprep.subr.mxu0 0.0
    %8880 = vmatpush1.msra.mxu0 0.0
    %8881 = vmatprep.subr.mxu0 0.0
    %8882 = vmatpush1.msra.mxu0 0.0
    %8883 = vmatprep.subr.mxu0 0.0
    %8884 = vmatpush1.msra.mxu0 0.0
    %8885 = vmatprep.subr.mxu0 0.0
    %8886 = vmatpush1.msra.mxu0 0.0
    %8887 = vmatprep.subr.mxu0 0.0
    %8888 = vmatpush1.msra.mxu0 0.0
    %8889 = vmatprep.subr.mxu0 0.0
    %8890 = vmatpush1.msra.mxu0 0.0
    %8891 = vmatprep.subr.mxu0 0.0
    %8892 = vmatpush1.msra.mxu0 0.0
    %8893 = vmatprep.subr.mxu0 0.0
    %8894 = vmatpush1.msra.mxu0 0.0
    %8895 = vmatprep.subr.mxu0 0.0
    %8896 = vmatpush1.msra.mxu0 0.0
    %8897 = vmatprep.subr.mxu0 0.0
    %8898 = vmatpush1.msra.mxu0 0.0
    %8899 = vmatprep.subr.mxu0 0.0
    %8900 = vmatpush1.msra.mxu0 0.0
    %8901 = vmatprep.mubr.f32.mxu0 0.0
    %8902 = vmatmul.mubr.f32.gmra.mrb[0].mxu0 %v8601
    %v8903 = vpop.f32.mrb[0].mxu0
    %v8904 = vadd.f32 0.0, %v8903
    %v8905 = vpop.f32.mrb[0].mxu0
    %v8906 = vadd.f32 0.0, %v8905
    %8907 = vmatprep.mubr.f32.mxu0 0.0
    %8908 = vmatmul.mubr.f32.gmra.mrb[0].mxu0 %v8604
    %v8909 = vpop.f32.mrb[0].mxu0
    %v8910 = vadd.f32 0.0, %v8909
    %v8911 = vpop.f32.mrb[0].mxu0
    %v8912 = vadd.f32 0.0, %v8911
    %8913 = vdwg.mxu0
    %8914 = vmatprep.subr.mxu0 %v194
    %8915 = vmatpush1.msra.mxu0 %v193
    %8916 = vmatprep.subr.mxu0 %v210
    %8917 = vmatpush1.msra.mxu0 %v209
    %8918 = vmatprep.subr.mxu0 %v226
    %8919 = vmatpush1.msra.mxu0 %v225
    %8920 = vmatprep.subr.mxu0 %v242
    %8921 = vmatpush1.msra.mxu0 %v241
    %8922 = vmatprep.subr.mxu0 %v258
    %8923 = vmatpush1.msra.mxu0 %v257
    %8924 = vmatprep.subr.mxu0 %v274
    %8925 = vmatpush1.msra.mxu0 %v273
    %8926 = vmatprep.subr.mxu0 %v290
    %8927 = vmatpush1.msra.mxu0 %v289
    %8928 = vmatprep.subr.mxu0 %v306
    %8929 = vmatpush1.msra.mxu0 %v305
    %8930 = vmatprep.subr.mxu0 0.0
    %8931 = vmatpush1.msra.mxu0 0.0
    %8932 = vmatprep.subr.mxu0 0.0
    %8933 = vmatpush1.msra.mxu0 0.0
    %8934 = vmatprep.subr.mxu0 0.0
    %8935 = vmatpush1.msra.mxu0 0.0
    %8936 = vmatprep.subr.mxu0 0.0
    %8937 = vmatpush1.msra.mxu0 0.0
    %8938 = vmatprep.subr.mxu0 0.0
    %8939 = vmatpush1.msra.mxu0 0.0
    %8940 = vmatprep.subr.mxu0 0.0
    %8941 = vmatpush1.msra.mxu0 0.0
    %8942 = vmatprep.subr.mxu0 0.0
    %8943 = vmatpush1.msra.mxu0 0.0
    %8944 = vmatprep.subr.mxu0 0.0
    %8945 = vmatpush1.msra.mxu0 0.0
    %8946 = vmatprep.subr.mxu0 0.0
    %8947 = vmatpush1.msra.mxu0 0.0
    %8948 = vmatprep.subr.mxu0 0.0
    %8949 = vmatpush1.msra.mxu0 0.0
    %8950 = vmatprep.subr.mxu0 0.0
    %8951 = vmatpush1.msra.mxu0 0.0
    %8952 = vmatprep.subr.mxu0 0.0
    %8953 = vmatpush1.msra.mxu0 0.0
    %8954 = vmatprep.subr.mxu0 0.0
    %8955 = vmatpush1.msra.mxu0 0.0
    %8956 = vmatprep.subr.mxu0 0.0
    %8957 = vmatpush1.msra.mxu0 0.0
    %8958 = vmatprep.subr.mxu0 0.0
    %8959 = vmatpush1.msra.mxu0 0.0
    %8960 = vmatprep.subr.mxu0 0.0
    %8961 = vmatpush1.msra.mxu0 0.0
    %8962 = vmatprep.subr.mxu0 0.0
    %8963 = vmatpush1.msra.mxu0 0.0
    %8964 = vmatprep.subr.mxu0 0.0
    %8965 = vmatpush1.msra.mxu0 0.0
    %8966 = vmatprep.subr.mxu0 0.0
    %8967 = vmatpush1.msra.mxu0 0.0
    %8968 = vmatprep.subr.mxu0 0.0
    %8969 = vmatpush1.msra.mxu0 0.0
    %8970 = vmatprep.subr.mxu0 0.0
    %8971 = vmatpush1.msra.mxu0 0.0
    %8972 = vmatprep.subr.mxu0 0.0
    %8973 = vmatpush1.msra.mxu0 0.0
    %8974 = vmatprep.subr.mxu0 0.0
    %8975 = vmatpush1.msra.mxu0 0.0
    %8976 = vmatprep.subr.mxu0 0.0
    %8977 = vmatpush1.msra.mxu0 0.0
    %8978 = vmatprep.mubr.f32.mxu0 0.0
    %8979 = vmatmul.mubr.f32.gmra.mrb[0].mxu0 %v8601
    %v8980 = vpop.f32.mrb[0].mxu0
    %v8981 = vadd.f32 0.0, %v8980
    %v8982 = vpop.f32.mrb[0].mxu0
    %v8983 = vadd.f32 0.0, %v8982
    %8984 = vmatprep.mubr.f32.mxu0 0.0
    %8985 = vmatmul.mubr.f32.gmra.mrb[0].mxu0 %v8604
    %v8986 = vpop.f32.mrb[0].mxu0
    %v8987 = vadd.f32 0.0, %v8986
    %v8988 = vpop.f32.mrb[0].mxu0
    %v8989 = vadd.f32 0.0, %v8988
    %8990 = vdwg.mxu0
    %8991 = vmatprep.subr.mxu0 %v196
    %8992 = vmatpush1.msra.mxu0 %v195
    %8993 = vmatprep.subr.mxu0 %v212
    %8994 = vmatpush1.msra.mxu0 %v211
    %8995 = vmatprep.subr.mxu0 %v228
    %8996 = vmatpush1.msra.mxu0 %v227
    %8997 = vmatprep.subr.mxu0 %v244
    %8998 = vmatpush1.msra.mxu0 %v243
    %8999 = vmatprep.subr.mxu0 %v260
    %9000 = vmatpush1.msra.mxu0 %v259
    %9001 = vmatprep.subr.mxu0 %v276
    %9002 = vmatpush1.msra.mxu0 %v275
    %9003 = vmatprep.subr.mxu0 %v292
    %9004 = vmatpush1.msra.mxu0 %v291
    %9005 = vmatprep.subr.mxu0 %v308
    %9006 = vmatpush1.msra.mxu0 %v307
    %9007 = vmatprep.subr.mxu0 0.0
    %9008 = vmatpush1.msra.mxu0 0.0
    %9009 = vmatprep.subr.mxu0 0.0
    %9010 = vmatpush1.msra.mxu0 0.0
    %9011 = vmatprep.subr.mxu0 0.0
    %9012 = vmatpush1.msra.mxu0 0.0
    %9013 = vmatprep.subr.mxu0 0.0
    %9014 = vmatpush1.msra.mxu0 0.0
    %9015 = vmatprep.subr.mxu0 0.0
    %9016 = vmatpush1.msra.mxu0 0.0
    %9017 = vmatprep.subr.mxu0 0.0
    %9018 = vmatpush1.msra.mxu0 0.0
    %9019 = vmatprep.subr.mxu0 0.0
    %9020 = vmatpush1.msra.mxu0 0.0
    %9021 = vmatprep.subr.mxu0 0.0
    %9022 = vmatpush1.msra.mxu0 0.0
    %9023 = vmatprep.subr.mxu0 0.0
    %9024 = vmatpush1.msra.mxu0 0.0
    %9025 = vmatprep.subr.mxu0 0.0
    %9026 = vmatpush1.msra.mxu0 0.0
    %9027 = vmatprep.subr.mxu0 0.0
    %9028 = vmatpush1.msra.mxu0 0.0
    %9029 = vmatprep.subr.mxu0 0.0
    %9030 = vmatpush1.msra.mxu0 0.0
    %9031 = vmatprep.subr.mxu0 0.0
    %9032 = vmatpush1.msra.mxu0 0.0
    %9033 = vmatprep.subr.mxu0 0.0
    %9034 = vmatpush1.msra.mxu0 0.0
    %9035 = vmatprep.subr.mxu0 0.0
    %9036 = vmatpush1.msra.mxu0 0.0
    %9037 = vmatprep.subr.mxu0 0.0
    %9038 = vmatpush1.msra.mxu0 0.0
    %9039 = vmatprep.subr.mxu0 0.0
    %9040 = vmatpush1.msra.mxu0 0.0
    %9041 = vmatprep.subr.mxu0 0.0
    %9042 = vmatpush1.msra.mxu0 0.0
    %9043 = vmatprep.subr.mxu0 0.0
    %9044 = vmatpush1.msra.mxu0 0.0
    %9045 = vmatprep.subr.mxu0 0.0
    %9046 = vmatpush1.msra.mxu0 0.0
    %9047 = vmatprep.subr.mxu0 0.0
    %9048 = vmatpush1.msra.mxu0 0.0
    %9049 = vmatprep.subr.mxu0 0.0
    %9050 = vmatpush1.msra.mxu0 0.0
    %9051 = vmatprep.subr.mxu0 0.0
    %9052 = vmatpush1.msra.mxu0 0.0
    %9053 = vmatprep.subr.mxu0 0.0
    %9054 = vmatpush1.msra.mxu0 0.0
    %9055 = vmatprep.mubr.f32.mxu0 0.0
    %9056 = vmatmul.mubr.f32.gmra.mrb[0].mxu0 %v8601
    %v9057 = vpop.f32.mrb[0].mxu0
    %v9058 = vadd.f32 0.0, %v9057
    %v9059 = vpop.f32.mrb[0].mxu0
    %v9060 = vadd.f32 0.0, %v9059
    %9061 = vmatprep.mubr.f32.mxu0 0.0
    %9062 = vmatmul.mubr.f32.gmra.mrb[0].mxu0 %v8604
    %v9063 = vpop.f32.mrb[0].mxu0
    %v9064 = vadd.f32 0.0, %v9063
    %v9065 = vpop.f32.mrb[0].mxu0
    %v9066 = vadd.f32 0.0, %v9065
    %9067 = vdwg.mxu0
    %9068 = vmatprep.subr.mxu0 %v198
    %9069 = vmatpush1.msra.mxu0 %v197
    %9070 = vmatprep.subr.mxu0 %v214
    %9071 = vmatpush1.msra.mxu0 %v213
    %9072 = vmatprep.subr.mxu0 %v230
    %9073 = vmatpush1.msra.mxu0 %v229
    %9074 = vmatprep.subr.mxu0 %v246
    %9075 = vmatpush1.msra.mxu0 %v245
    %9076 = vmatprep.subr.mxu0 %v262
    %9077 = vmatpush1.msra.mxu0 %v261
    %9078 = vmatprep.subr.mxu0 %v278
    %9079 = vmatpush1.msra.mxu0 %v277
    %9080 = vmatprep.subr.mxu0 %v294
    %9081 = vmatpush1.msra.mxu0 %v293
    %9082 = vmatprep.subr.mxu0 %v310
    %9083 = vmatpush1.msra.mxu0 %v309
    %9084 = vmatprep.subr.mxu0 0.0
    %9085 = vmatpush1.msra.mxu0 0.0
    %9086 = vmatprep.subr.mxu0 0.0
    %9087 = vmatpush1.msra.mxu0 0.0
    %9088 = vmatprep.subr.mxu0 0.0
    %9089 = vmatpush1.msra.mxu0 0.0
    %9090 = vmatprep.subr.mxu0 0.0
    %9091 = vmatpush1.msra.mxu0 0.0
    %9092 = vmatprep.subr.mxu0 0.0
    %9093 = vmatpush1.msra.mxu0 0.0
    %9094 = vmatprep.subr.mxu0 0.0
    %9095 = vmatpush1.msra.mxu0 0.0
    %9096 = vmatprep.subr.mxu0 0.0
    %9097 = vmatpush1.msra.mxu0 0.0
    %9098 = vmatprep.subr.mxu0 0.0
    %9099 = vmatpush1.msra.mxu0 0.0
    %9100 = vmatprep.subr.mxu0 0.0
    %9101 = vmatpush1.msra.mxu0 0.0
    %9102 = vmatprep.subr.mxu0 0.0
    %9103 = vmatpush1.msra.mxu0 0.0
    %9104 = vmatprep.subr.mxu0 0.0
    %9105 = vmatpush1.msra.mxu0 0.0
    %9106 = vmatprep.subr.mxu0 0.0
    %9107 = vmatpush1.msra.mxu0 0.0
    %9108 = vmatprep.subr.mxu0 0.0
    %9109 = vmatpush1.msra.mxu0 0.0
    %9110 = vmatprep.subr.mxu0 0.0
    %9111 = vmatpush1.msra.mxu0 0.0
    %9112 = vmatprep.subr.mxu0 0.0
    %9113 = vmatpush1.msra.mxu0 0.0
    %9114 = vmatprep.subr.mxu0 0.0
    %9115 = vmatpush1.msra.mxu0 0.0
    %9116 = vmatprep.subr.mxu0 0.0
    %9117 = vmatpush1.msra.mxu0 0.0
    %9118 = vmatprep.subr.mxu0 0.0
    %9119 = vmatpush1.msra.mxu0 0.0
    %9120 = vmatprep.subr.mxu0 0.0
    %9121 = vmatpush1.msra.mxu0 0.0
    %9122 = vmatprep.subr.mxu0 0.0
    %9123 = vmatpush1.msra.mxu0 0.0
    %9124 = vmatprep.subr.mxu0 0.0
    %9125 = vmatpush1.msra.mxu0 0.0
    %9126 = vmatprep.subr.mxu0 0.0
    %9127 = vmatpush1.msra.mxu0 0.0
    %9128 = vmatprep.subr.mxu0 0.0
    %9129 = vmatpush1.msra.mxu0 0.0
    %9130 = vmatprep.subr.mxu0 0.0
    %9131 = vmatpush1.msra.mxu0 0.0
    %9132 = vmatprep.mubr.f32.mxu0 0.0
    %9133 = vmatmul.mubr.f32.gmra.mrb[0].mxu0 %v8601
    %v9134 = vpop.f32.mrb[0].mxu0
    %v9135 = vadd.f32 0.0, %v9134
    %v9136 = vpop.f32.mrb[0].mxu0
    %v9137 = vadd.f32 0.0, %v9136
    %9138 = vmatprep.mubr.f32.mxu0 0.0
    %9139 = vmatmul.mubr.f32.gmra.mrb[0].mxu0 %v8604
    %v9140 = vpop.f32.mrb[0].mxu0
    %v9141 = vadd.f32 0.0, %v9140
    %v9142 = vpop.f32.mrb[0].mxu0
    %v9143 = vadd.f32 0.0, %v9142
    %9144 = vdwg.mxu0
    %9145 = vmatprep.subr.mxu0 %v200
    %9146 = vmatpush1.msra.mxu0 %v199
    %9147 = vmatprep.subr.mxu0 %v216
    %9148 = vmatpush1.msra.mxu0 %v215
    %9149 = vmatprep.subr.mxu0 %v232
    %9150 = vmatpush1.msra.mxu0 %v231
    %9151 = vmatprep.subr.mxu0 %v248
    %9152 = vmatpush1.msra.mxu0 %v247
    %9153 = vmatprep.subr.mxu0 %v264
    %9154 = vmatpush1.msra.mxu0 %v263
    %9155 = vmatprep.subr.mxu0 %v280
    %9156 = vmatpush1.msra.mxu0 %v279
    %9157 = vmatprep.subr.mxu0 %v296
    %9158 = vmatpush1.msra.mxu0 %v295
    %9159 = vmatprep.subr.mxu0 %v312
    %9160 = vmatpush1.msra.mxu0 %v311
    %9161 = vmatprep.subr.mxu0 0.0
    %9162 = vmatpush1.msra.mxu0 0.0
    %9163 = vmatprep.subr.mxu0 0.0
    %9164 = vmatpush1.msra.mxu0 0.0
    %9165 = vmatprep.subr.mxu0 0.0
    %9166 = vmatpush1.msra.mxu0 0.0
    %9167 = vmatprep.subr.mxu0 0.0
    %9168 = vmatpush1.msra.mxu0 0.0
    %9169 = vmatprep.subr.mxu0 0.0
    %9170 = vmatpush1.msra.mxu0 0.0
    %9171 = vmatprep.subr.mxu0 0.0
    %9172 = vmatpush1.msra.mxu0 0.0
    %9173 = vmatprep.subr.mxu0 0.0
    %9174 = vmatpush1.msra.mxu0 0.0
    %9175 = vmatprep.subr.mxu0 0.0
    %9176 = vmatpush1.msra.mxu0 0.0
    %9177 = vmatprep.subr.mxu0 0.0
    %9178 = vmatpush1.msra.mxu0 0.0
    %9179 = vmatprep.subr.mxu0 0.0
    %9180 = vmatpush1.msra.mxu0 0.0
    %9181 = vmatprep.subr.mxu0 0.0
    %9182 = vmatpush1.msra.mxu0 0.0
    %9183 = vmatprep.subr.mxu0 0.0
    %9184 = vmatpush1.msra.mxu0 0.0
    %9185 = vmatprep.subr.mxu0 0.0
    %9186 = vmatpush1.msra.mxu0 0.0
    %9187 = vmatprep.subr.mxu0 0.0
    %9188 = vmatpush1.msra.mxu0 0.0
    %9189 = vmatprep.subr.mxu0 0.0
    %9190 = vmatpush1.msra.mxu0 0.0
    %9191 = vmatprep.subr.mxu0 0.0
    %9192 = vmatpush1.msra.mxu0 0.0
    %9193 = vmatprep.subr.mxu0 0.0
    %9194 = vmatpush1.msra.mxu0 0.0
    %9195 = vmatprep.subr.mxu0 0.0
    %9196 = vmatpush1.msra.mxu0 0.0
    %9197 = vmatprep.subr.mxu0 0.0
    %9198 = vmatpush1.msra.mxu0 0.0
    %9199 = vmatprep.subr.mxu0 0.0
    %9200 = vmatpush1.msra.mxu0 0.0
    %9201 = vmatprep.subr.mxu0 0.0
    %9202 = vmatpush1.msra.mxu0 0.0
    %9203 = vmatprep.subr.mxu0 0.0
    %9204 = vmatpush1.msra.mxu0 0.0
    %9205 = vmatprep.subr.mxu0 0.0
    %9206 = vmatpush1.msra.mxu0 0.0
    %9207 = vmatprep.subr.mxu0 0.0
    %9208 = vmatpush1.msra.mxu0 0.0
    %9209 = vmatprep.mubr.f32.mxu0 0.0
    %9210 = vmatmul.mubr.f32.gmra.mrb[0].mxu0 %v8601
    %v9211 = vpop.f32.mrb[0].mxu0
    %v9212 = vadd.f32 0.0, %v9211
    %v9213 = vpop.f32.mrb[0].mxu0
    %v9214 = vadd.f32 0.0, %v9213
    %9215 = vmatprep.mubr.f32.mxu0 0.0
    %9216 = vmatmul.mubr.f32.gmra.mrb[0].mxu0 %v8604
    %v9217 = vpop.f32.mrb[0].mxu0
    %v9218 = vadd.f32 0.0, %v9217
    %v9219 = vpop.f32.mrb[0].mxu0
    %v9220 = vadd.f32 0.0, %v9219
    %9221 = vdwg.mxu0
    %9222 = vmatprep.subr.mxu0 %v8675
    %9223 = vmatpush1.msra.mxu0 %v8673
    %9224 = vmatprep.subr.mxu0 %v8681
    %9225 = vmatpush1.msra.mxu0 %v8679
    %9226 = vmatprep.subr.mxu0 0.0
    %9227 = vmatpush1.msra.mxu0 0.0
    %9228 = vmatprep.subr.mxu0 0.0
    %9229 = vmatpush1.msra.mxu0 0.0
    %9230 = vmatprep.subr.mxu0 0.0
    %9231 = vmatpush1.msra.mxu0 0.0
    %9232 = vmatprep.subr.mxu0 0.0
    %9233 = vmatpush1.msra.mxu0 0.0
    %9234 = vmatprep.subr.mxu0 0.0
    %9235 = vmatpush1.msra.mxu0 0.0
    %9236 = vmatprep.subr.mxu0 0.0
    %9237 = vmatpush1.msra.mxu0 0.0
    %9238 = vmatprep.subr.mxu0 0.0
    %9239 = vmatpush1.msra.mxu0 0.0
    %9240 = vmatprep.subr.mxu0 0.0
    %9241 = vmatpush1.msra.mxu0 0.0
    %9242 = vmatprep.subr.mxu0 0.0
    %9243 = vmatpush1.msra.mxu0 0.0
    %9244 = vmatprep.subr.mxu0 0.0
    %9245 = vmatpush1.msra.mxu0 0.0
    %9246 = vmatprep.subr.mxu0 0.0
    %9247 = vmatpush1.msra.mxu0 0.0
    %9248 = vmatprep.subr.mxu0 0.0
    %9249 = vmatpush1.msra.mxu0 0.0
    %9250 = vmatprep.subr.mxu0 0.0
    %9251 = vmatpush1.msra.mxu0 0.0
    %9252 = vmatprep.subr.mxu0 0.0
    %9253 = vmatpush1.msra.mxu0 0.0
    %9254 = vmatprep.subr.mxu0 0.0
    %9255 = vmatpush1.msra.mxu0 0.0
    %9256 = vmatprep.subr.mxu0 0.0
    %9257 = vmatpush1.msra.mxu0 0.0
    %9258 = vmatprep.subr.mxu0 0.0
    %9259 = vmatpush1.msra.mxu0 0.0
    %9260 = vmatprep.subr.mxu0 0.0
    %9261 = vmatpush1.msra.mxu0 0.0
    %9262 = vmatprep.subr.mxu0 0.0
    %9263 = vmatpush1.msra.mxu0 0.0
    %9264 = vmatprep.subr.mxu0 0.0
    %9265 = vmatpush1.msra.mxu0 0.0
    %9266 = vmatprep.subr.mxu0 0.0
    %9267 = vmatpush1.msra.mxu0 0.0
    %9268 = vmatprep.subr.mxu0 0.0
    %9269 = vmatpush1.msra.mxu0 0.0
    %9270 = vmatprep.subr.mxu0 0.0
    %9271 = vmatpush1.msra.mxu0 0.0
    %9272 = vmatprep.subr.mxu0 0.0
    %9273 = vmatpush1.msra.mxu0 0.0
    %9274 = vmatprep.subr.mxu0 0.0
    %9275 = vmatpush1.msra.mxu0 0.0
    %9276 = vmatprep.subr.mxu0 0.0
    %9277 = vmatpush1.msra.mxu0 0.0
    %9278 = vmatprep.subr.mxu0 0.0
    %9279 = vmatpush1.msra.mxu0 0.0
    %9280 = vmatprep.subr.mxu0 0.0
    %9281 = vmatpush1.msra.mxu0 0.0
    %9282 = vmatprep.subr.mxu0 0.0
    %9283 = vmatpush1.msra.mxu0 0.0
    %9284 = vmatprep.subr.mxu0 0.0
    %9285 = vmatpush1.msra.mxu0 0.0
    %9286 = vmatprep.mubr.f32.mxu0 0.0
    %9287 = vmatmul.mubr.f32.gmra.mrb[0].mxu0 %v3427
    %v9288 = vpop.f32.mrb[0].mxu0
    %v9289 = vadd.f32 0.0, %v9288
    %v9290 = vpop.f32.mrb[0].mxu0
    %v9291 = vadd.f32 0.0, %v9290
    %9292 = vmatprep.mubr.f32.mxu0 0.0
    %9293 = vmatmul.mubr.f32.gmra.mrb[0].mxu0 %v3430
    %v9294 = vpop.f32.mrb[0].mxu0
    %v9295 = vadd.f32 0.0, %v9294
    %v9296 = vpop.f32.mrb[0].mxu0
    %v9297 = vadd.f32 0.0, %v9296
    %9298 = vmatprep.mubr.f32.mxu0 0.0
    %9299 = vmatmul.mubr.f32.gmra.mrb[0].mxu0 %v3433
    %v9300 = vpop.f32.mrb[0].mxu0
    %v9301 = vadd.f32 0.0, %v9300
    %v9302 = vpop.f32.mrb[0].mxu0
    %v9303 = vadd.f32 0.0, %v9302
    %9304 = vmatprep.mubr.f32.mxu0 0.0
    %9305 = vmatmul.mubr.f32.gmra.mrb[0].mxu0 %v3436
    %v9306 = vpop.f32.mrb[0].mxu0
    %v9307 = vadd.f32 0.0, %v9306
    %v9308 = vpop.f32.mrb[0].mxu0
    %v9309 = vadd.f32 0.0, %v9308
    %9310 = vdwg.mxu0
    %9311 = vmatprep.subr.mxu0 %v8752
    %9312 = vmatpush1.msra.mxu0 %v8750
    %9313 = vmatprep.subr.mxu0 %v8758
    %9314 = vmatpush1.msra.mxu0 %v8756
    %9315 = vmatprep.subr.mxu0 0.0
    %9316 = vmatpush1.msra.mxu0 0.0
    %9317 = vmatprep.subr.mxu0 0.0
    %9318 = vmatpush1.msra.mxu0 0.0
    %9319 = vmatprep.subr.mxu0 0.0
    %9320 = vmatpush1.msra.mxu0 0.0
    %9321 = vmatprep.subr.mxu0 0.0
    %9322 = vmatpush1.msra.mxu0 0.0
    %9323 = vmatprep.subr.mxu0 0.0
    %9324 = vmatpush1.msra.mxu0 0.0
    %9325 = vmatprep.subr.mxu0 0.0
    %9326 = vmatpush1.msra.mxu0 0.0
    %9327 = vmatprep.subr.mxu0 0.0
    %9328 = vmatpush1.msra.mxu0 0.0
    %9329 = vmatprep.subr.mxu0 0.0
    %9330 = vmatpush1.msra.mxu0 0.0
    %9331 = vmatprep.subr.mxu0 0.0
    %9332 = vmatpush1.msra.mxu0 0.0
    %9333 = vmatprep.subr.mxu0 0.0
    %9334 = vmatpush1.msra.mxu0 0.0
    %9335 = vmatprep.subr.mxu0 0.0
    %9336 = vmatpush1.msra.mxu0 0.0
    %9337 = vmatprep.subr.mxu0 0.0
    %9338 = vmatpush1.msra.mxu0 0.0
    %9339 = vmatprep.subr.mxu0 0.0
    %9340 = vmatpush1.msra.mxu0 0.0
    %9341 = vmatprep.subr.mxu0 0.0
    %9342 = vmatpush1.msra.mxu0 0.0
    %9343 = vmatprep.subr.mxu0 0.0
    %9344 = vmatpush1.msra.mxu0 0.0
    %9345 = vmatprep.subr.mxu0 0.0
    %9346 = vmatpush1.msra.mxu0 0.0
    %9347 = vmatprep.subr.mxu0 0.0
    %9348 = vmatpush1.msra.mxu0 0.0
    %9349 = vmatprep.subr.mxu0 0.0
    %9350 = vmatpush1.msra.mxu0 0.0
    %9351 = vmatprep.subr.mxu0 0.0
    %9352 = vmatpush1.msra.mxu0 0.0
    %9353 = vmatprep.subr.mxu0 0.0
    %9354 = vmatpush1.msra.mxu0 0.0
    %9355 = vmatprep.subr.mxu0 0.0
    %9356 = vmatpush1.msra.mxu0 0.0
    %9357 = vmatprep.subr.mxu0 0.0
    %9358 = vmatpush1.msra.mxu0 0.0
    %9359 = vmatprep.subr.mxu0 0.0
    %9360 = vmatpush1.msra.mxu0 0.0
    %9361 = vmatprep.subr.mxu0 0.0
    %9362 = vmatpush1.msra.mxu0 0.0
    %9363 = vmatprep.subr.mxu0 0.0
    %9364 = vmatpush1.msra.mxu0 0.0
    %9365 = vmatprep.subr.mxu0 0.0
    %9366 = vmatpush1.msra.mxu0 0.0
    %9367 = vmatprep.subr.mxu0 0.0
    %9368 = vmatpush1.msra.mxu0 0.0
    %9369 = vmatprep.subr.mxu0 0.0
    %9370 = vmatpush1.msra.mxu0 0.0
    %9371 = vmatprep.subr.mxu0 0.0
    %9372 = vmatpush1.msra.mxu0 0.0
    %9373 = vmatprep.subr.mxu0 0.0
    %9374 = vmatpush1.msra.mxu0 0.0
    %9375 = vmatprep.mubr.f32.mxu0 0.0
    %9376 = vmatmul.mubr.f32.gmra.mrb[0].mxu0 %v3427
    %v9377 = vpop.f32.mrb[0].mxu0
    %v9378 = vadd.f32 0.0, %v9377
    %v9379 = vpop.f32.mrb[0].mxu0
    %v9380 = vadd.f32 0.0, %v9379
    %9381 = vmatprep.mubr.f32.mxu0 0.0
    %9382 = vmatmul.mubr.f32.gmra.mrb[0].mxu0 %v3430
    %v9383 = vpop.f32.mrb[0].mxu0
    %v9384 = vadd.f32 0.0, %v9383
    %v9385 = vpop.f32.mrb[0].mxu0
    %v9386 = vadd.f32 0.0, %v9385
    %9387 = vmatprep.mubr.f32.mxu0 0.0
    %9388 = vmatmul.mubr.f32.gmra.mrb[0].mxu0 %v3433
    %v9389 = vpop.f32.mrb[0].mxu0
    %v9390 = vadd.f32 0.0, %v9389
    %v9391 = vpop.f32.mrb[0].mxu0
    %v9392 = vadd.f32 0.0, %v9391
    %9393 = vmatprep.mubr.f32.mxu0 0.0
    %9394 = vmatmul.mubr.f32.gmra.mrb[0].mxu0 %v3436
    %v9395 = vpop.f32.mrb[0].mxu0
    %v9396 = vadd.f32 0.0, %v9395
    %v9397 = vpop.f32.mrb[0].mxu0
    %v9398 = vadd.f32 0.0, %v9397
    %9399 = vdwg.mxu0
    %9400 = vmatprep.subr.mxu0 %v8829
    %9401 = vmatpush1.msra.mxu0 %v8827
    %9402 = vmatprep.subr.mxu0 %v8835
    %9403 = vmatpush1.msra.mxu0 %v8833
    %9404 = vmatprep.subr.mxu0 0.0
    %9405 = vmatpush1.msra.mxu0 0.0
    %9406 = vmatprep.subr.mxu0 0.0
    %9407 = vmatpush1.msra.mxu0 0.0
    %9408 = vmatprep.subr.mxu0 0.0
    %9409 = vmatpush1.msra.mxu0 0.0
    %9410 = vmatprep.subr.mxu0 0.0
    %9411 = vmatpush1.msra.mxu0 0.0
    %9412 = vmatprep.subr.mxu0 0.0
    %9413 = vmatpush1.msra.mxu0 0.0
    %9414 = vmatprep.subr.mxu0 0.0
    %9415 = vmatpush1.msra.mxu0 0.0
    %9416 = vmatprep.subr.mxu0 0.0
    %9417 = vmatpush1.msra.mxu0 0.0
    %9418 = vmatprep.subr.mxu0 0.0
    %9419 = vmatpush1.msra.mxu0 0.0
    %9420 = vmatprep.subr.mxu0 0.0
    %9421 = vmatpush1.msra.mxu0 0.0
    %9422 = vmatprep.subr.mxu0 0.0
    %9423 = vmatpush1.msra.mxu0 0.0
    %9424 = vmatprep.subr.mxu0 0.0
    %9425 = vmatpush1.msra.mxu0 0.0
    %9426 = vmatprep.subr.mxu0 0.0
    %9427 = vmatpush1.msra.mxu0 0.0
    %9428 = vmatprep.subr.mxu0 0.0
    %9429 = vmatpush1.msra.mxu0 0.0
    %9430 = vmatprep.subr.mxu0 0.0
    %9431 = vmatpush1.msra.mxu0 0.0
    %9432 = vmatprep.subr.mxu0 0.0
    %9433 = vmatpush1.msra.mxu0 0.0
    %9434 = vmatprep.subr.mxu0 0.0
    %9435 = vmatpush1.msra.mxu0 0.0
    %9436 = vmatprep.subr.mxu0 0.0
    %9437 = vmatpush1.msra.mxu0 0.0
    %9438 = vmatprep.subr.mxu0 0.0
    %9439 = vmatpush1.msra.mxu0 0.0
    %9440 = vmatprep.subr.mxu0 0.0
    %9441 = vmatpush1.msra.mxu0 0.0
    %9442 = vmatprep.subr.mxu0 0.0
    %9443 = vmatpush1.msra.mxu0 0.0
    %9444 = vmatprep.subr.mxu0 0.0
    %9445 = vmatpush1.msra.mxu0 0.0
    %9446 = vmatprep.subr.mxu0 0.0
    %9447 = vmatpush1.msra.mxu0 0.0
    %9448 = vmatprep.subr.mxu0 0.0
    %9449 = vmatpush1.msra.mxu0 0.0
    %9450 = vmatprep.subr.mxu0 0.0
    %9451 = vmatpush1.msra.mxu0 0.0
    %9452 = vmatprep.subr.mxu0 0.0
    %9453 = vmatpush1.msra.mxu0 0.0
    %9454 = vmatprep.subr.mxu0 0.0
    %9455 = vmatpush1.msra.mxu0 0.0
    %9456 = vmatprep.subr.mxu0 0.0
    %9457 = vmatpush1.msra.mxu0 0.0
    %9458 = vmatprep.subr.mxu0 0.0
    %9459 = vmatpush1.msra.mxu0 0.0
    %9460 = vmatprep.subr.mxu0 0.0
    %9461 = vmatpush1.msra.mxu0 0.0
    %9462 = vmatprep.subr.mxu0 0.0
    %9463 = vmatpush1.msra.mxu0 0.0
    %9464 = vmatprep.mubr.f32.mxu0 0.0
    %9465 = vmatmul.mubr.f32.gmra.mrb[0].mxu0 %v3427
    %v9466 = vpop.f32.mrb[0].mxu0
    %v9467 = vadd.f32 0.0, %v9466
    %v9468 = vpop.f32.mrb[0].mxu0
    %v9469 = vadd.f32 0.0, %v9468
    %9470 = vmatprep.mubr.f32.mxu0 0.0
    %9471 = vmatmul.mubr.f32.gmra.mrb[0].mxu0 %v3430
    %v9472 = vpop.f32.mrb[0].mxu0
    %v9473 = vadd.f32 0.0, %v9472
    %v9474 = vpop.f32.mrb[0].mxu0
    %v9475 = vadd.f32 0.0, %v9474
    %9476 = vmatprep.mubr.f32.mxu0 0.0
    %9477 = vmatmul.mubr.f32.gmra.mrb[0].mxu0 %v3433
    %v9478 = vpop.f32.mrb[0].mxu0
    %v9479 = vadd.f32 0.0, %v9478
    %v9480 = vpop.f32.mrb[0].mxu0
    %v9481 = vadd.f32 0.0, %v9480
    %9482 = vmatprep.mubr.f32.mxu0 0.0
    %9483 = vmatmul.mubr.f32.gmra.mrb[0].mxu0 %v3436
    %v9484 = vpop.f32.mrb[0].mxu0
    %v9485 = vadd.f32 0.0, %v9484
    %v9486 = vpop.f32.mrb[0].mxu0
    %v9487 = vadd.f32 0.0, %v9486
    %9488 = vdwg.mxu0
    %9489 = vmatprep.subr.mxu0 %v8906
    %9490 = vmatpush1.msra.mxu0 %v8904
    %9491 = vmatprep.subr.mxu0 %v8912
    %9492 = vmatpush1.msra.mxu0 %v8910
    %9493 = vmatprep.subr.mxu0 0.0
    %9494 = vmatpush1.msra.mxu0 0.0
    %9495 = vmatprep.subr.mxu0 0.0
    %9496 = vmatpush1.msra.mxu0 0.0
    %9497 = vmatprep.subr.mxu0 0.0
    %9498 = vmatpush1.msra.mxu0 0.0
    %9499 = vmatprep.subr.mxu0 0.0
    %9500 = vmatpush1.msra.mxu0 0.0
    %9501 = vmatprep.subr.mxu0 0.0
    %9502 = vmatpush1.msra.mxu0 0.0
    %9503 = vmatprep.subr.mxu0 0.0
    %9504 = vmatpush1.msra.mxu0 0.0
    %9505 = vmatprep.subr.mxu0 0.0
    %9506 = vmatpush1.msra.mxu0 0.0
    %9507 = vmatprep.subr.mxu0 0.0
    %9508 = vmatpush1.msra.mxu0 0.0
    %9509 = vmatprep.subr.mxu0 0.0
    %9510 = vmatpush1.msra.mxu0 0.0
    %9511 = vmatprep.subr.mxu0 0.0
    %9512 = vmatpush1.msra.mxu0 0.0
    %9513 = vmatprep.subr.mxu0 0.0
    %9514 = vmatpush1.msra.mxu0 0.0
    %9515 = vmatprep.subr.mxu0 0.0
    %9516 = vmatpush1.msra.mxu0 0.0
    %9517 = vmatprep.subr.mxu0 0.0
    %9518 = vmatpush1.msra.mxu0 0.0
    %9519 = vmatprep.subr.mxu0 0.0
    %9520 = vmatpush1.msra.mxu0 0.0
    %9521 = vmatprep.subr.mxu0 0.0
    %9522 = vmatpush1.msra.mxu0 0.0
    %9523 = vmatprep.subr.mxu0 0.0
    %9524 = vmatpush1.msra.mxu0 0.0
    %9525 = vmatprep.subr.mxu0 0.0
    %9526 = vmatpush1.msra.mxu0 0.0
    %9527 = vmatprep.subr.mxu0 0.0
    %9528 = vmatpush1.msra.mxu0 0.0
    %9529 = vmatprep.subr.mxu0 0.0
    %9530 = vmatpush1.msra.mxu0 0.0
    %9531 = vmatprep.subr.mxu0 0.0
    %9532 = vmatpush1.msra.mxu0 0.0
    %9533 = vmatprep.subr.mxu0 0.0
    %9534 = vmatpush1.msra.mxu0 0.0
    %9535 = vmatprep.subr.mxu0 0.0
    %9536 = vmatpush1.msra.mxu0 0.0
    %9537 = vmatprep.subr.mxu0 0.0
    %9538 = vmatpush1.msra.mxu0 0.0
    %9539 = vmatprep.subr.mxu0 0.0
    %9540 = vmatpush1.msra.mxu0 0.0
    %9541 = vmatprep.subr.mxu0 0.0
    %9542 = vmatpush1.msra.mxu0 0.0
    %9543 = vmatprep.subr.mxu0 0.0
    %9544 = vmatpush1.msra.mxu0 0.0
    %9545 = vmatprep.subr.mxu0 0.0
    %9546 = vmatpush1.msra.mxu0 0.0
    %9547 = vmatprep.subr.mxu0 0.0
    %9548 = vmatpush1.msra.mxu0 0.0
    %9549 = vmatprep.subr.mxu0 0.0
    %9550 = vmatpush1.msra.mxu0 0.0
    %9551 = vmatprep.subr.mxu0 0.0
    %9552 = vmatpush1.msra.mxu0 0.0
    %9553 = vmatprep.mubr.f32.mxu0 0.0
    %9554 = vmatmul.mubr.f32.gmra.mrb[0].mxu0 %v3427
    %v9555 = vpop.f32.mrb[0].mxu0
    %v9556 = vadd.f32 0.0, %v9555
    %v9557 = vpop.f32.mrb[0].mxu0
    %v9558 = vadd.f32 0.0, %v9557
    %9559 = vmatprep.mubr.f32.mxu0 0.0
    %9560 = vmatmul.mubr.f32.gmra.mrb[0].mxu0 %v3430
    %v9561 = vpop.f32.mrb[0].mxu0
    %v9562 = vadd.f32 0.0, %v9561
    %v9563 = vpop.f32.mrb[0].mxu0
    %v9564 = vadd.f32 0.0, %v9563
    %9565 = vmatprep.mubr.f32.mxu0 0.0
    %9566 = vmatmul.mubr.f32.gmra.mrb[0].mxu0 %v3433
    %v9567 = vpop.f32.mrb[0].mxu0
    %v9568 = vadd.f32 0.0, %v9567
    %v9569 = vpop.f32.mrb[0].mxu0
    %v9570 = vadd.f32 0.0, %v9569
    %9571 = vmatprep.mubr.f32.mxu0 0.0
    %9572 = vmatmul.mubr.f32.gmra.mrb[0].mxu0 %v3436
    %v9573 = vpop.f32.mrb[0].mxu0
    %v9574 = vadd.f32 0.0, %v9573
    %v9575 = vpop.f32.mrb[0].mxu0
    %v9576 = vadd.f32 0.0, %v9575
    %9577 = vdwg.mxu0
    %9578 = vmatprep.subr.mxu0 %v8983
    %9579 = vmatpush1.msra.mxu0 %v8981
    %9580 = vmatprep.subr.mxu0 %v8989
    %9581 = vmatpush1.msra.mxu0 %v8987
    %9582 = vmatprep.subr.mxu0 0.0
    %9583 = vmatpush1.msra.mxu0 0.0
    %9584 = vmatprep.subr.mxu0 0.0
    %9585 = vmatpush1.msra.mxu0 0.0
    %9586 = vmatprep.subr.mxu0 0.0
    %9587 = vmatpush1.msra.mxu0 0.0
    %9588 = vmatprep.subr.mxu0 0.0
    %9589 = vmatpush1.msra.mxu0 0.0
    %9590 = vmatprep.subr.mxu0 0.0
    %9591 = vmatpush1.msra.mxu0 0.0
    %9592 = vmatprep.subr.mxu0 0.0
    %9593 = vmatpush1.msra.mxu0 0.0
    %9594 = vmatprep.subr.mxu0 0.0
    %9595 = vmatpush1.msra.mxu0 0.0
    %9596 = vmatprep.subr.mxu0 0.0
    %9597 = vmatpush1.msra.mxu0 0.0
    %9598 = vmatprep.subr.mxu0 0.0
    %9599 = vmatpush1.msra.mxu0 0.0
    %9600 = vmatprep.subr.mxu0 0.0
    %9601 = vmatpush1.msra.mxu0 0.0
    %9602 = vmatprep.subr.mxu0 0.0
    %9603 = vmatpush1.msra.mxu0 0.0
    %9604 = vmatprep.subr.mxu0 0.0
    %9605 = vmatpush1.msra.mxu0 0.0
    %9606 = vmatprep.subr.mxu0 0.0
    %9607 = vmatpush1.msra.mxu0 0.0
    %9608 = vmatprep.subr.mxu0 0.0
    %9609 = vmatpush1.msra.mxu0 0.0
    %9610 = vmatprep.subr.mxu0 0.0
    %9611 = vmatpush1.msra.mxu0 0.0
    %9612 = vmatprep.subr.mxu0 0.0
    %9613 = vmatpush1.msra.mxu0 0.0
    %9614 = vmatprep.subr.mxu0 0.0
    %9615 = vmatpush1.msra.mxu0 0.0
    %9616 = vmatprep.subr.mxu0 0.0
    %9617 = vmatpush1.msra.mxu0 0.0
    %9618 = vmatprep.subr.mxu0 0.0
    %9619 = vmatpush1.msra.mxu0 0.0
    %9620 = vmatprep.subr.mxu0 0.0
    %9621 = vmatpush1.msra.mxu0 0.0
    %9622 = vmatprep.subr.mxu0 0.0
    %9623 = vmatpush1.msra.mxu0 0.0
    %9624 = vmatprep.subr.mxu0 0.0
    %9625 = vmatpush1.msra.mxu0 0.0
    %9626 = vmatprep.subr.mxu0 0.0
    %9627 = vmatpush1.msra.mxu0 0.0
    %9628 = vmatprep.subr.mxu0 0.0
    %9629 = vmatpush1.msra.mxu0 0.0
    %9630 = vmatprep.subr.mxu0 0.0
    %9631 = vmatpush1.msra.mxu0 0.0
    %9632 = vmatprep.subr.mxu0 0.0
    %9633 = vmatpush1.msra.mxu0 0.0
    %9634 = vmatprep.subr.mxu0 0.0
    %9635 = vmatpush1.msra.mxu0 0.0
    %9636 = vmatprep.subr.mxu0 0.0
    %9637 = vmatpush1.msra.mxu0 0.0
    %9638 = vmatprep.subr.mxu0 0.0
    %9639 = vmatpush1.msra.mxu0 0.0
    %9640 = vmatprep.subr.mxu0 0.0
    %9641 = vmatpush1.msra.mxu0 0.0
    %9642 = vmatprep.mubr.f32.mxu0 0.0
    %9643 = vmatmul.mubr.f32.gmra.mrb[0].mxu0 %v3427
    %v9644 = vpop.f32.mrb[0].mxu0
    %v9645 = vadd.f32 0.0, %v9644
    %v9646 = vpop.f32.mrb[0].mxu0
    %v9647 = vadd.f32 0.0, %v9646
    %9648 = vmatprep.mubr.f32.mxu0 0.0
    %9649 = vmatmul.mubr.f32.gmra.mrb[0].mxu0 %v3430
    %v9650 = vpop.f32.mrb[0].mxu0
    %v9651 = vadd.f32 0.0, %v9650
    %v9652 = vpop.f32.mrb[0].mxu0
    %v9653 = vadd.f32 0.0, %v9652
    %9654 = vmatprep.mubr.f32.mxu0 0.0
    %9655 = vmatmul.mubr.f32.gmra.mrb[0].mxu0 %v3433
    %v9656 = vpop.f32.mrb[0].mxu0
    %v9657 = vadd.f32 0.0, %v9656
    %v9658 = vpop.f32.mrb[0].mxu0
    %v9659 = vadd.f32 0.0, %v9658
    %9660 = vmatprep.mubr.f32.mxu0 0.0
    %9661 = vmatmul.mubr.f32.gmra.mrb[0].mxu0 %v3436
    %v9662 = vpop.f32.mrb[0].mxu0
    %v9663 = vadd.f32 0.0, %v9662
    %v9664 = vpop.f32.mrb[0].mxu0
    %v9665 = vadd.f32 0.0, %v9664
    %9666 = vdwg.mxu0
    %9667 = vmatprep.subr.mxu0 %v9060
    %9668 = vmatpush1.msra.mxu0 %v9058
    %9669 = vmatprep.subr.mxu0 %v9066
    %9670 = vmatpush1.msra.mxu0 %v9064
    %9671 = vmatprep.subr.mxu0 0.0
    %9672 = vmatpush1.msra.mxu0 0.0
    %9673 = vmatprep.subr.mxu0 0.0
    %9674 = vmatpush1.msra.mxu0 0.0
    %9675 = vmatprep.subr.mxu0 0.0
    %9676 = vmatpush1.msra.mxu0 0.0
    %9677 = vmatprep.subr.mxu0 0.0
    %9678 = vmatpush1.msra.mxu0 0.0
    %9679 = vmatprep.subr.mxu0 0.0
    %9680 = vmatpush1.msra.mxu0 0.0
    %9681 = vmatprep.subr.mxu0 0.0
    %9682 = vmatpush1.msra.mxu0 0.0
    %9683 = vmatprep.subr.mxu0 0.0
    %9684 = vmatpush1.msra.mxu0 0.0
    %9685 = vmatprep.subr.mxu0 0.0
    %9686 = vmatpush1.msra.mxu0 0.0
    %9687 = vmatprep.subr.mxu0 0.0
    %9688 = vmatpush1.msra.mxu0 0.0
    %9689 = vmatprep.subr.mxu0 0.0
    %9690 = vmatpush1.msra.mxu0 0.0
    %9691 = vmatprep.subr.mxu0 0.0
    %9692 = vmatpush1.msra.mxu0 0.0
    %9693 = vmatprep.subr.mxu0 0.0
    %9694 = vmatpush1.msra.mxu0 0.0
    %9695 = vmatprep.subr.mxu0 0.0
    %9696 = vmatpush1.msra.mxu0 0.0
    %9697 = vmatprep.subr.mxu0 0.0
    %9698 = vmatpush1.msra.mxu0 0.0
    %9699 = vmatprep.subr.mxu0 0.0
    %9700 = vmatpush1.msra.mxu0 0.0
    %9701 = vmatprep.subr.mxu0 0.0
    %9702 = vmatpush1.msra.mxu0 0.0
    %9703 = vmatprep.subr.mxu0 0.0
    %9704 = vmatpush1.msra.mxu0 0.0
    %9705 = vmatprep.subr.mxu0 0.0
    %9706 = vmatpush1.msra.mxu0 0.0
    %9707 = vmatprep.subr.mxu0 0.0
    %9708 = vmatpush1.msra.mxu0 0.0
    %9709 = vmatprep.subr.mxu0 0.0
    %9710 = vmatpush1.msra.mxu0 0.0
    %9711 = vmatprep.subr.mxu0 0.0
    %9712 = vmatpush1.msra.mxu0 0.0
    %9713 = vmatprep.subr.mxu0 0.0
    %9714 = vmatpush1.msra.mxu0 0.0
    %9715 = vmatprep.subr.mxu0 0.0
    %9716 = vmatpush1.msra.mxu0 0.0
    %9717 = vmatprep.subr.mxu0 0.0
    %9718 = vmatpush1.msra.mxu0 0.0
    %9719 = vmatprep.subr.mxu0 0.0
    %9720 = vmatpush1.msra.mxu0 0.0
    %9721 = vmatprep.subr.mxu0 0.0
    %9722 = vmatpush1.msra.mxu0 0.0
    %9723 = vmatprep.subr.mxu0 0.0
    %9724 = vmatpush1.msra.mxu0 0.0
    %9725 = vmatprep.subr.mxu0 0.0
    %9726 = vmatpush1.msra.mxu0 0.0
    %9727 = vmatprep.subr.mxu0 0.0
    %9728 = vmatpush1.msra.mxu0 0.0
    %9729 = vmatprep.subr.mxu0 0.0
    %9730 = vmatpush1.msra.mxu0 0.0
    %9731 = vmatprep.mubr.f32.mxu0 0.0
    %9732 = vmatmul.mubr.f32.gmra.mrb[0].mxu0 %v3427
    %v9733 = vpop.f32.mrb[0].mxu0
    %v9734 = vadd.f32 0.0, %v9733
    %v9735 = vpop.f32.mrb[0].mxu0
    %v9736 = vadd.f32 0.0, %v9735
    %9737 = vmatprep.mubr.f32.mxu0 0.0
    %9738 = vmatmul.mubr.f32.gmra.mrb[0].mxu0 %v3430
    %v9739 = vpop.f32.mrb[0].mxu0
    %v9740 = vadd.f32 0.0, %v9739
    %v9741 = vpop.f32.mrb[0].mxu0
    %v9742 = vadd.f32 0.0, %v9741
    %9743 = vmatprep.mubr.f32.mxu0 0.0
    %9744 = vmatmul.mubr.f32.gmra.mrb[0].mxu0 %v3433
    %v9745 = vpop.f32.mrb[0].mxu0
    %v9746 = vadd.f32 0.0, %v9745
    %v9747 = vpop.f32.mrb[0].mxu0
    %v9748 = vadd.f32 0.0, %v9747
    %9749 = vmatprep.mubr.f32.mxu0 0.0
    %9750 = vmatmul.mubr.f32.gmra.mrb[0].mxu0 %v3436
    %v9751 = vpop.f32.mrb[0].mxu0
    %v9752 = vadd.f32 0.0, %v9751
    %v9753 = vpop.f32.mrb[0].mxu0
    %v9754 = vadd.f32 0.0, %v9753
    %9755 = vdwg.mxu0
    %9756 = vmatprep.subr.mxu0 %v9137
    %9757 = vmatpush1.msra.mxu0 %v9135
    %9758 = vmatprep.subr.mxu0 %v9143
    %9759 = vmatpush1.msra.mxu0 %v9141
    %9760 = vmatprep.subr.mxu0 0.0
    %9761 = vmatpush1.msra.mxu0 0.0
    %9762 = vmatprep.subr.mxu0 0.0
    %9763 = vmatpush1.msra.mxu0 0.0
    %9764 = vmatprep.subr.mxu0 0.0
    %9765 = vmatpush1.msra.mxu0 0.0
    %9766 = vmatprep.subr.mxu0 0.0
    %9767 = vmatpush1.msra.mxu0 0.0
    %9768 = vmatprep.subr.mxu0 0.0
    %9769 = vmatpush1.msra.mxu0 0.0
    %9770 = vmatprep.subr.mxu0 0.0
    %9771 = vmatpush1.msra.mxu0 0.0
    %9772 = vmatprep.subr.mxu0 0.0
    %9773 = vmatpush1.msra.mxu0 0.0
    %9774 = vmatprep.subr.mxu0 0.0
    %9775 = vmatpush1.msra.mxu0 0.0
    %9776 = vmatprep.subr.mxu0 0.0
    %9777 = vmatpush1.msra.mxu0 0.0
    %9778 = vmatprep.subr.mxu0 0.0
    %9779 = vmatpush1.msra.mxu0 0.0
    %9780 = vmatprep.subr.mxu0 0.0
    %9781 = vmatpush1.msra.mxu0 0.0
    %9782 = vmatprep.subr.mxu0 0.0
    %9783 = vmatpush1.msra.mxu0 0.0
    %9784 = vmatprep.subr.mxu0 0.0
    %9785 = vmatpush1.msra.mxu0 0.0
    %9786 = vmatprep.subr.mxu0 0.0
    %9787 = vmatpush1.msra.mxu0 0.0
    %9788 = vmatprep.subr.mxu0 0.0
    %9789 = vmatpush1.msra.mxu0 0.0
    %9790 = vmatprep.subr.mxu0 0.0
    %9791 = vmatpush1.msra.mxu0 0.0
    %9792 = vmatprep.subr.mxu0 0.0
    %9793 = vmatpush1.msra.mxu0 0.0
    %9794 = vmatprep.subr.mxu0 0.0
    %9795 = vmatpush1.msra.mxu0 0.0
    %9796 = vmatprep.subr.mxu0 0.0
    %9797 = vmatpush1.msra.mxu0 0.0
    %9798 = vmatprep.subr.mxu0 0.0
    %9799 = vmatpush1.msra.mxu0 0.0
    %9800 = vmatprep.subr.mxu0 0.0
    %9801 = vmatpush1.msra.mxu0 0.0
    %9802 = vmatprep.subr.mxu0 0.0
    %9803 = vmatpush1.msra.mxu0 0.0
    %9804 = vmatprep.subr.mxu0 0.0
    %9805 = vmatpush1.msra.mxu0 0.0
    %9806 = vmatprep.subr.mxu0 0.0
    %9807 = vmatpush1.msra.mxu0 0.0
    %9808 = vmatprep.subr.mxu0 0.0
    %9809 = vmatpush1.msra.mxu0 0.0
    %9810 = vmatprep.subr.mxu0 0.0
    %9811 = vmatpush1.msra.mxu0 0.0
    %9812 = vmatprep.subr.mxu0 0.0
    %9813 = vmatpush1.msra.mxu0 0.0
    %9814 = vmatprep.subr.mxu0 0.0
    %9815 = vmatpush1.msra.mxu0 0.0
    %9816 = vmatprep.subr.mxu0 0.0
    %9817 = vmatpush1.msra.mxu0 0.0
    %9818 = vmatprep.subr.mxu0 0.0
    %9819 = vmatpush1.msra.mxu0 0.0
    %9820 = vmatprep.mubr.f32.mxu0 0.0
    %9821 = vmatmul.mubr.f32.gmra.mrb[0].mxu0 %v3427
    %v9822 = vpop.f32.mrb[0].mxu0
    %v9823 = vadd.f32 0.0, %v9822
    %v9824 = vpop.f32.mrb[0].mxu0
    %v9825 = vadd.f32 0.0, %v9824
    %9826 = vmatprep.mubr.f32.mxu0 0.0
    %9827 = vmatmul.mubr.f32.gmra.mrb[0].mxu0 %v3430
    %v9828 = vpop.f32.mrb[0].mxu0
    %v9829 = vadd.f32 0.0, %v9828
    %v9830 = vpop.f32.mrb[0].mxu0
    %v9831 = vadd.f32 0.0, %v9830
    %9832 = vmatprep.mubr.f32.mxu0 0.0
    %9833 = vmatmul.mubr.f32.gmra.mrb[0].mxu0 %v3433
    %v9834 = vpop.f32.mrb[0].mxu0
    %v9835 = vadd.f32 0.0, %v9834
    %v9836 = vpop.f32.mrb[0].mxu0
    %v9837 = vadd.f32 0.0, %v9836
    %9838 = vmatprep.mubr.f32.mxu0 0.0
    %9839 = vmatmul.mubr.f32.gmra.mrb[0].mxu0 %v3436
    %v9840 = vpop.f32.mrb[0].mxu0
    %v9841 = vadd.f32 0.0, %v9840
    %v9842 = vpop.f32.mrb[0].mxu0
    %v9843 = vadd.f32 0.0, %v9842
    %9844 = vdwg.mxu0
    %9845 = vmatprep.subr.mxu0 %v9214
    %9846 = vmatpush1.msra.mxu0 %v9212
    %9847 = vmatprep.subr.mxu0 %v9220
    %9848 = vmatpush1.msra.mxu0 %v9218
    %9849 = vmatprep.subr.mxu0 0.0
    %9850 = vmatpush1.msra.mxu0 0.0
    %9851 = vmatprep.subr.mxu0 0.0
    %9852 = vmatpush1.msra.mxu0 0.0
    %9853 = vmatprep.subr.mxu0 0.0
    %9854 = vmatpush1.msra.mxu0 0.0
    %9855 = vmatprep.subr.mxu0 0.0
    %9856 = vmatpush1.msra.mxu0 0.0
    %9857 = vmatprep.subr.mxu0 0.0
    %9858 = vmatpush1.msra.mxu0 0.0
    %9859 = vmatprep.subr.mxu0 0.0
    %9860 = vmatpush1.msra.mxu0 0.0
    %9861 = vmatprep.subr.mxu0 0.0
    %9862 = vmatpush1.msra.mxu0 0.0
    %9863 = vmatprep.subr.mxu0 0.0
    %9864 = vmatpush1.msra.mxu0 0.0
    %9865 = vmatprep.subr.mxu0 0.0
    %9866 = vmatpush1.msra.mxu0 0.0
    %9867 = vmatprep.subr.mxu0 0.0
    %9868 = vmatpush1.msra.mxu0 0.0
    %9869 = vmatprep.subr.mxu0 0.0
    %9870 = vmatpush1.msra.mxu0 0.0
    %9871 = vmatprep.subr.mxu0 0.0
    %9872 = vmatpush1.msra.mxu0 0.0
    %9873 = vmatprep.subr.mxu0 0.0
    %9874 = vmatpush1.msra.mxu0 0.0
    %9875 = vmatprep.subr.mxu0 0.0
    %9876 = vmatpush1.msra.mxu0 0.0
    %9877 = vmatprep.subr.mxu0 0.0
    %9878 = vmatpush1.msra.mxu0 0.0
    %9879 = vmatprep.subr.mxu0 0.0
    %9880 = vmatpush1.msra.mxu0 0.0
    %9881 = vmatprep.subr.mxu0 0.0
    %9882 = vmatpush1.msra.mxu0 0.0
    %9883 = vmatprep.subr.mxu0 0.0
    %9884 = vmatpush1.msra.mxu0 0.0
    %9885 = vmatprep.subr.mxu0 0.0
    %9886 = vmatpush1.msra.mxu0 0.0
    %9887 = vmatprep.subr.mxu0 0.0
    %9888 = vmatpush1.msra.mxu0 0.0
    %9889 = vmatprep.subr.mxu0 0.0
    %9890 = vmatpush1.msra.mxu0 0.0
    %9891 = vmatprep.subr.mxu0 0.0
    %9892 = vmatpush1.msra.mxu0 0.0
    %9893 = vmatprep.subr.mxu0 0.0
    %9894 = vmatpush1.msra.mxu0 0.0
    %9895 = vmatprep.subr.mxu0 0.0
    %9896 = vmatpush1.msra.mxu0 0.0
    %9897 = vmatprep.subr.mxu0 0.0
    %9898 = vmatpush1.msra.mxu0 0.0
    %9899 = vmatprep.subr.mxu0 0.0
    %9900 = vmatpush1.msra.mxu0 0.0
    %9901 = vmatprep.subr.mxu0 0.0
    %9902 = vmatpush1.msra.mxu0 0.0
    %9903 = vmatprep.subr.mxu0 0.0
    %9904 = vmatpush1.msra.mxu0 0.0
    %9905 = vmatprep.subr.mxu0 0.0
    %9906 = vmatpush1.msra.mxu0 0.0
    %9907 = vmatprep.subr.mxu0 0.0
    %9908 = vmatpush1.msra.mxu0 0.0
    %9909 = vmatprep.mubr.f32.mxu0 0.0
    %9910 = vmatmul.mubr.f32.gmra.mrb[0].mxu0 %v3427
    %v9911 = vpop.f32.mrb[0].mxu0
    %v9912 = vadd.f32 0.0, %v9911
    %v9913 = vpop.f32.mrb[0].mxu0
    %v9914 = vadd.f32 0.0, %v9913
    %9915 = vmatprep.mubr.f32.mxu0 0.0
    %9916 = vmatmul.mubr.f32.gmra.mrb[0].mxu0 %v3430
    %v9917 = vpop.f32.mrb[0].mxu0
    %v9918 = vadd.f32 0.0, %v9917
    %v9919 = vpop.f32.mrb[0].mxu0
    %v9920 = vadd.f32 0.0, %v9919
    %9921 = vmatprep.mubr.f32.mxu0 0.0
    %9922 = vmatmul.mubr.f32.gmra.mrb[0].mxu0 %v3433
    %v9923 = vpop.f32.mrb[0].mxu0
    %v9924 = vadd.f32 0.0, %v9923
    %v9925 = vpop.f32.mrb[0].mxu0
    %v9926 = vadd.f32 0.0, %v9925
    %9927 = vmatprep.mubr.f32.mxu0 0.0
    %9928 = vmatmul.mubr.f32.gmra.mrb[0].mxu0 %v3436
    %v9929 = vpop.f32.mrb[0].mxu0
    %v9930 = vadd.f32 0.0, %v9929
    %v9931 = vpop.f32.mrb[0].mxu0
    %v9932 = vadd.f32 0.0, %v9931
    %9933 = vdwg.mxu0
    %v9934 = vmul.f32 %v2157, %v9289
    %v9935 = vmul.f32 %v2159, %v9291
    %v9936 = vmul.f32 %v2246, %v9378
    %v9937 = vmul.f32 %v2248, %v9380
    %v9938 = vmul.f32 %v2335, %v9467
    %v9939 = vmul.f32 %v2337, %v9469
    %v9940 = vmul.f32 %v2424, %v9556
    %v9941 = vmul.f32 %v2426, %v9558
    %v9942 = vmul.f32 %v2513, %v9645
    %v9943 = vmul.f32 %v2515, %v9647
    %v9944 = vmul.f32 %v2602, %v9734
    %v9945 = vmul.f32 %v2604, %v9736
    %v9946 = vmul.f32 %v2691, %v9823
    %v9947 = vmul.f32 %v2693, %v9825
    %v9948 = vmul.f32 %v2780, %v9912
    %v9949 = vmul.f32 %v2782, %v9914
    %v9950 = vmul.f32 %v2163, %v9295
    %v9951 = vmul.f32 %v2165, %v9297
    %v9952 = vmul.f32 %v2252, %v9384
    %v9953 = vmul.f32 %v2254, %v9386
    %v9954 = vmul.f32 %v2341, %v9473
    %v9955 = vmul.f32 %v2343, %v9475
    %v9956 = vmul.f32 %v2430, %v9562
    %v9957 = vmul.f32 %v2432, %v9564
    %v9958 = vmul.f32 %v2519, %v9651
    %v9959 = vmul.f32 %v2521, %v9653
    %v9960 = vmul.f32 %v2608, %v9740
    %v9961 = vmul.f32 %v2610, %v9742
    %v9962 = vmul.f32 %v2697, %v9829
    %v9963 = vmul.f32 %v2699, %v9831
    %v9964 = vmul.f32 %v2786, %v9918
    %v9965 = vmul.f32 %v2788, %v9920
    %v9966 = vmul.f32 %v2169, %v9301
    %v9967 = vmul.f32 %v2171, %v9303
    %v9968 = vmul.f32 %v2258, %v9390
    %v9969 = vmul.f32 %v2260, %v9392
    %v9970 = vmul.f32 %v2347, %v9479
    %v9971 = vmul.f32 %v2349, %v9481
    %v9972 = vmul.f32 %v2436, %v9568
    %v9973 = vmul.f32 %v2438, %v9570
    %v9974 = vmul.f32 %v2525, %v9657
    %v9975 = vmul.f32 %v2527, %v9659
    %v9976 = vmul.f32 %v2614, %v9746
    %v9977 = vmul.f32 %v2616, %v9748
    %v9978 = vmul.f32 %v2703, %v9835
    %v9979 = vmul.f32 %v2705, %v9837
    %v9980 = vmul.f32 %v2792, %v9924
    %v9981 = vmul.f32 %v2794, %v9926
    %v9982 = vmul.f32 %v2175, %v9307
    %v9983 = vmul.f32 %v2177, %v9309
    %v9984 = vmul.f32 %v2264, %v9396
    %v9985 = vmul.f32 %v2266, %v9398
    %v9986 = vmul.f32 %v2353, %v9485
    %v9987 = vmul.f32 %v2355, %v9487
    %v9988 = vmul.f32 %v2442, %v9574
    %v9989 = vmul.f32 %v2444, %v9576
    %v9990 = vmul.f32 %v2531, %v9663
    %v9991 = vmul.f32 %v2533, %v9665
    %v9992 = vmul.f32 %v2620, %v9752
    %v9993 = vmul.f32 %v2622, %v9754
    %v9994 = vmul.f32 %v2709, %v9841
    %v9995 = vmul.f32 %v2711, %v9843
    %v9996 = vmul.f32 %v2798, %v9930
    %v9997 = vmul.f32 %v2800, %v9932
    %9998 = vmatprep.subr.mxu0 0.0
    %9999 = vmatpush1.msra.mxu0 %v1821
    %10000 = vmatprep.subr.mxu0 0.0
    %10001 = vmatpush1.msra.mxu0 %v1822
    %10002 = vmatprep.subr.mxu0 0.0
    %10003 = vmatpush1.msra.mxu0 %v1823
    %10004 = vmatprep.subr.mxu0 0.0
    %10005 = vmatpush1.msra.mxu0 %v1824
    %10006 = vmatprep.subr.mxu0 0.0
    %10007 = vmatpush1.msra.mxu0 %v1825
    %10008 = vmatprep.subr.mxu0 0.0
    %10009 = vmatpush1.msra.mxu0 %v1826
    %10010 = vmatprep.subr.mxu0 0.0
    %10011 = vmatpush1.msra.mxu0 %v1827
    %10012 = vmatprep.subr.mxu0 0.0
    %10013 = vmatpush1.msra.mxu0 %v1828
    %10014 = vmatprep.subr.mxu0 0.0
    %10015 = vmatpush1.msra.mxu0 %v1829
    %10016 = vmatprep.subr.mxu0 0.0
    %10017 = vmatpush1.msra.mxu0 %v1830
    %10018 = vmatprep.subr.mxu0 0.0
    %10019 = vmatpush1.msra.mxu0 %v1831
    %10020 = vmatprep.subr.mxu0 0.0
    %10021 = vmatpush1.msra.mxu0 %v1832
    %10022 = vmatprep.subr.mxu0 0.0
    %10023 = vmatpush1.msra.mxu0 %v1833
    %10024 = vmatprep.subr.mxu0 0.0
    %10025 = vmatpush1.msra.mxu0 %v1834
    %10026 = vmatprep.subr.mxu0 0.0
    %10027 = vmatpush1.msra.mxu0 %v1835
    %10028 = vmatprep.subr.mxu0 0.0
    %10029 = vmatpush1.msra.mxu0 %v1836
    %10030 = vmatprep.subr.mxu0 0.0
    %10031 = vmatpush1.msra.mxu0 %v1837
    %10032 = vmatprep.subr.mxu0 0.0
    %10033 = vmatpush1.msra.mxu0 %v1838
    %10034 = vmatprep.subr.mxu0 0.0
    %10035 = vmatpush1.msra.mxu0 %v1839
    %10036 = vmatprep.subr.mxu0 0.0
    %10037 = vmatpush1.msra.mxu0 %v1840
    %10038 = vmatprep.subr.mxu0 0.0
    %10039 = vmatpush1.msra.mxu0 %v1841
    %10040 = vmatprep.subr.mxu0 0.0
    %10041 = vmatpush1.msra.mxu0 %v1842
    %10042 = vmatprep.subr.mxu0 0.0
    %10043 = vmatpush1.msra.mxu0 %v1843
    %10044 = vmatprep.subr.mxu0 0.0
    %10045 = vmatpush1.msra.mxu0 %v1844
    %10046 = vmatprep.subr.mxu0 0.0
    %10047 = vmatpush1.msra.mxu0 %v1845
    %10048 = vmatprep.subr.mxu0 0.0
    %10049 = vmatpush1.msra.mxu0 %v1846
    %10050 = vmatprep.subr.mxu0 0.0
    %10051 = vmatpush1.msra.mxu0 %v1847
    %10052 = vmatprep.subr.mxu0 0.0
    %10053 = vmatpush1.msra.mxu0 %v1848
    %10054 = vmatprep.subr.mxu0 0.0
    %10055 = vmatpush1.msra.mxu0 %v1849
    %10056 = vmatprep.subr.mxu0 0.0
    %10057 = vmatpush1.msra.mxu0 %v1850
    %10058 = vmatprep.subr.mxu0 0.0
    %10059 = vmatpush1.msra.mxu0 %v1851
    %10060 = vmatprep.subr.mxu0 0.0
    %10061 = vmatpush1.msra.mxu0 %v1852
    %10062 = vmatprep.mubr.f32.mxu0 %v9935
    %10063 = vmatmul.mubr.f32.gmra.mrb[0].mxu0 %v9934
    %v10064 = vpop.f32.mrb[0].mxu0
    %v10065 = vadd.f32 0.0, %v10064
    %v10066 = vpop.f32.mrb[0].mxu0
    %10067 = vmatprep.mubr.f32.mxu0 %v9951
    %10068 = vmatmul.mubr.f32.gmra.mrb[0].mxu0 %v9950
    %v10069 = vpop.f32.mrb[0].mxu0
    %v10070 = vadd.f32 0.0, %v10069
    %v10071 = vpop.f32.mrb[0].mxu0
    %10072 = vmatprep.mubr.f32.mxu0 %v9967
    %10073 = vmatmul.mubr.f32.gmra.mrb[0].mxu0 %v9966
    %v10074 = vpop.f32.mrb[0].mxu0
    %v10075 = vadd.f32 0.0, %v10074
    %v10076 = vpop.f32.mrb[0].mxu0
    %10077 = vmatprep.mubr.f32.mxu0 %v9983
    %10078 = vmatmul.mubr.f32.gmra.mrb[0].mxu0 %v9982
    %v10079 = vpop.f32.mrb[0].mxu0
    %v10080 = vadd.f32 0.0, %v10079
    %v10081 = vpop.f32.mrb[0].mxu0
    %10082 = vdwg.mxu0
    %10083 = vmatprep.subr.mxu0 0.0
    %10084 = vmatpush1.msra.mxu0 %v1853
    %10085 = vmatprep.subr.mxu0 0.0
    %10086 = vmatpush1.msra.mxu0 %v1854
    %10087 = vmatprep.subr.mxu0 0.0
    %10088 = vmatpush1.msra.mxu0 %v1855
    %10089 = vmatprep.subr.mxu0 0.0
    %10090 = vmatpush1.msra.mxu0 %v1856
    %10091 = vmatprep.subr.mxu0 0.0
    %10092 = vmatpush1.msra.mxu0 %v1857
    %10093 = vmatprep.subr.mxu0 0.0
    %10094 = vmatpush1.msra.mxu0 %v1858
    %10095 = vmatprep.subr.mxu0 0.0
    %10096 = vmatpush1.msra.mxu0 %v1859
    %10097 = vmatprep.subr.mxu0 0.0
    %10098 = vmatpush1.msra.mxu0 %v1860
    %10099 = vmatprep.subr.mxu0 0.0
    %10100 = vmatpush1.msra.mxu0 %v1861
    %10101 = vmatprep.subr.mxu0 0.0
    %10102 = vmatpush1.msra.mxu0 %v1862
    %10103 = vmatprep.subr.mxu0 0.0
    %10104 = vmatpush1.msra.mxu0 %v1863
    %10105 = vmatprep.subr.mxu0 0.0
    %10106 = vmatpush1.msra.mxu0 %v1864
    %10107 = vmatprep.subr.mxu0 0.0
    %10108 = vmatpush1.msra.mxu0 %v1865
    %10109 = vmatprep.subr.mxu0 0.0
    %10110 = vmatpush1.msra.mxu0 %v1866
    %10111 = vmatprep.subr.mxu0 0.0
    %10112 = vmatpush1.msra.mxu0 %v1867
    %10113 = vmatprep.subr.mxu0 0.0
    %10114 = vmatpush1.msra.mxu0 %v1868
    %10115 = vmatprep.subr.mxu0 0.0
    %10116 = vmatpush1.msra.mxu0 %v1869
    %10117 = vmatprep.subr.mxu0 0.0
    %10118 = vmatpush1.msra.mxu0 %v1870
    %10119 = vmatprep.subr.mxu0 0.0
    %10120 = vmatpush1.msra.mxu0 %v1871
    %10121 = vmatprep.subr.mxu0 0.0
    %10122 = vmatpush1.msra.mxu0 %v1872
    %10123 = vmatprep.subr.mxu0 0.0
    %10124 = vmatpush1.msra.mxu0 %v1873
    %10125 = vmatprep.subr.mxu0 0.0
    %10126 = vmatpush1.msra.mxu0 %v1874
    %10127 = vmatprep.subr.mxu0 0.0
    %10128 = vmatpush1.msra.mxu0 %v1875
    %10129 = vmatprep.subr.mxu0 0.0
    %10130 = vmatpush1.msra.mxu0 %v1876
    %10131 = vmatprep.subr.mxu0 0.0
    %10132 = vmatpush1.msra.mxu0 %v1877
    %10133 = vmatprep.subr.mxu0 0.0
    %10134 = vmatpush1.msra.mxu0 %v1878
    %10135 = vmatprep.subr.mxu0 0.0
    %10136 = vmatpush1.msra.mxu0 %v1879
    %10137 = vmatprep.subr.mxu0 0.0
    %10138 = vmatpush1.msra.mxu0 %v1880
    %10139 = vmatprep.subr.mxu0 0.0
    %10140 = vmatpush1.msra.mxu0 %v1881
    %10141 = vmatprep.subr.mxu0 0.0
    %10142 = vmatpush1.msra.mxu0 %v1882
    %10143 = vmatprep.subr.mxu0 0.0
    %10144 = vmatpush1.msra.mxu0 %v1883
    %10145 = vmatprep.subr.mxu0 0.0
    %10146 = vmatpush1.msra.mxu0 %v1884
    %10147 = vmatprep.mubr.f32.mxu0 %v9937
    %10148 = vmatmul.mubr.f32.gmra.mrb[0].mxu0 %v9936
    %v10149 = vpop.f32.mrb[0].mxu0
    %v10150 = vadd.f32 %v10065, %v10149
    %v10151 = vpop.f32.mrb[0].mxu0
    %10152 = vmatprep.mubr.f32.mxu0 %v9953
    %10153 = vmatmul.mubr.f32.gmra.mrb[0].mxu0 %v9952
    %v10154 = vpop.f32.mrb[0].mxu0
    %v10155 = vadd.f32 %v10070, %v10154
    %v10156 = vpop.f32.mrb[0].mxu0
    %10157 = vmatprep.mubr.f32.mxu0 %v9969
    %10158 = vmatmul.mubr.f32.gmra.mrb[0].mxu0 %v9968
    %v10159 = vpop.f32.mrb[0].mxu0
    %v10160 = vadd.f32 %v10075, %v10159
    %v10161 = vpop.f32.mrb[0].mxu0
    %10162 = vmatprep.mubr.f32.mxu0 %v9985
    %10163 = vmatmul.mubr.f32.gmra.mrb[0].mxu0 %v9984
    %v10164 = vpop.f32.mrb[0].mxu0
    %v10165 = vadd.f32 %v10080, %v10164
    %v10166 = vpop.f32.mrb[0].mxu0
    %10167 = vdwg.mxu0
    %10168 = vmatprep.subr.mxu0 0.0
    %10169 = vmatpush1.msra.mxu0 %v1885
    %10170 = vmatprep.subr.mxu0 0.0
    %10171 = vmatpush1.msra.mxu0 %v1886
    %10172 = vmatprep.subr.mxu0 0.0
    %10173 = vmatpush1.msra.mxu0 %v1887
    %10174 = vmatprep.subr.mxu0 0.0
    %10175 = vmatpush1.msra.mxu0 %v1888
    %10176 = vmatprep.subr.mxu0 0.0
    %10177 = vmatpush1.msra.mxu0 %v1889
    %10178 = vmatprep.subr.mxu0 0.0
    %10179 = vmatpush1.msra.mxu0 %v1890
    %10180 = vmatprep.subr.mxu0 0.0
    %10181 = vmatpush1.msra.mxu0 %v1891
    %10182 = vmatprep.subr.mxu0 0.0
    %10183 = vmatpush1.msra.mxu0 %v1892
    %10184 = vmatprep.subr.mxu0 0.0
    %10185 = vmatpush1.msra.mxu0 %v1893
    %10186 = vmatprep.subr.mxu0 0.0
    %10187 = vmatpush1.msra.mxu0 %v1894
    %10188 = vmatprep.subr.mxu0 0.0
    %10189 = vmatpush1.msra.mxu0 %v1895
    %10190 = vmatprep.subr.mxu0 0.0
    %10191 = vmatpush1.msra.mxu0 %v1896
    %10192 = vmatprep.subr.mxu0 0.0
    %10193 = vmatpush1.msra.mxu0 %v1897
    %10194 = vmatprep.subr.mxu0 0.0
    %10195 = vmatpush1.msra.mxu0 %v1898
    %10196 = vmatprep.subr.mxu0 0.0
    %10197 = vmatpush1.msra.mxu0 %v1899
    %10198 = vmatprep.subr.mxu0 0.0
    %10199 = vmatpush1.msra.mxu0 %v1900
    %10200 = vmatprep.subr.mxu0 0.0
    %10201 = vmatpush1.msra.mxu0 %v1901
    %10202 = vmatprep.subr.mxu0 0.0
    %10203 = vmatpush1.msra.mxu0 %v1902
    %10204 = vmatprep.subr.mxu0 0.0
    %10205 = vmatpush1.msra.mxu0 %v1903
    %10206 = vmatprep.subr.mxu0 0.0
    %10207 = vmatpush1.msra.mxu0 %v1904
    %10208 = vmatprep.subr.mxu0 0.0
    %10209 = vmatpush1.msra.mxu0 %v1905
    %10210 = vmatprep.subr.mxu0 0.0
    %10211 = vmatpush1.msra.mxu0 %v1906
    %10212 = vmatprep.subr.mxu0 0.0
    %10213 = vmatpush1.msra.mxu0 %v1907
    %10214 = vmatprep.subr.mxu0 0.0
    %10215 = vmatpush1.msra.mxu0 %v1908
    %10216 = vmatprep.subr.mxu0 0.0
    %10217 = vmatpush1.msra.mxu0 %v1909
    %10218 = vmatprep.subr.mxu0 0.0
    %10219 = vmatpush1.msra.mxu0 %v1910
    %10220 = vmatprep.subr.mxu0 0.0
    %10221 = vmatpush1.msra.mxu0 %v1911
    %10222 = vmatprep.subr.mxu0 0.0
    %10223 = vmatpush1.msra.mxu0 %v1912
    %10224 = vmatprep.subr.mxu0 0.0
    %10225 = vmatpush1.msra.mxu0 %v1913
    %10226 = vmatprep.subr.mxu0 0.0
    %10227 = vmatpush1.msra.mxu0 %v1914
    %10228 = vmatprep.subr.mxu0 0.0
    %10229 = vmatpush1.msra.mxu0 %v1915
    %10230 = vmatprep.subr.mxu0 0.0
    %10231 = vmatpush1.msra.mxu0 %v1916
    %10232 = vmatprep.mubr.f32.mxu0 %v9939
    %10233 = vmatmul.mubr.f32.gmra.mrb[0].mxu0 %v9938
    %v10234 = vpop.f32.mrb[0].mxu0
    %v10235 = vadd.f32 %v10150, %v10234
    %v10236 = vpop.f32.mrb[0].mxu0
    %10237 = vmatprep.mubr.f32.mxu0 %v9955
    %10238 = vmatmul.mubr.f32.gmra.mrb[0].mxu0 %v9954
    %v10239 = vpop.f32.mrb[0].mxu0
    %v10240 = vadd.f32 %v10155, %v10239
    %v10241 = vpop.f32.mrb[0].mxu0
    %10242 = vmatprep.mubr.f32.mxu0 %v9971
    %10243 = vmatmul.mubr.f32.gmra.mrb[0].mxu0 %v9970
    %v10244 = vpop.f32.mrb[0].mxu0
    %v10245 = vadd.f32 %v10160, %v10244
    %v10246 = vpop.f32.mrb[0].mxu0
    %10247 = vmatprep.mubr.f32.mxu0 %v9987
    %10248 = vmatmul.mubr.f32.gmra.mrb[0].mxu0 %v9986
    %v10249 = vpop.f32.mrb[0].mxu0
    %v10250 = vadd.f32 %v10165, %v10249
    %v10251 = vpop.f32.mrb[0].mxu0
    %10252 = vdwg.mxu0
    %10253 = vmatprep.subr.mxu0 0.0
    %10254 = vmatpush1.msra.mxu0 %v1917
    %10255 = vmatprep.subr.mxu0 0.0
    %10256 = vmatpush1.msra.mxu0 %v1918
    %10257 = vmatprep.subr.mxu0 0.0
    %10258 = vmatpush1.msra.mxu0 %v1919
    %10259 = vmatprep.subr.mxu0 0.0
    %10260 = vmatpush1.msra.mxu0 %v1920
    %10261 = vmatprep.subr.mxu0 0.0
    %10262 = vmatpush1.msra.mxu0 %v1921
    %10263 = vmatprep.subr.mxu0 0.0
    %10264 = vmatpush1.msra.mxu0 %v1922
    %10265 = vmatprep.subr.mxu0 0.0
    %10266 = vmatpush1.msra.mxu0 %v1923
    %10267 = vmatprep.subr.mxu0 0.0
    %10268 = vmatpush1.msra.mxu0 %v1924
    %10269 = vmatprep.subr.mxu0 0.0
    %10270 = vmatpush1.msra.mxu0 %v1925
    %10271 = vmatprep.subr.mxu0 0.0
    %10272 = vmatpush1.msra.mxu0 %v1926
    %10273 = vmatprep.subr.mxu0 0.0
    %10274 = vmatpush1.msra.mxu0 %v1927
    %10275 = vmatprep.subr.mxu0 0.0
    %10276 = vmatpush1.msra.mxu0 %v1928
    %10277 = vmatprep.subr.mxu0 0.0
    %10278 = vmatpush1.msra.mxu0 %v1929
    %10279 = vmatprep.subr.mxu0 0.0
    %10280 = vmatpush1.msra.mxu0 %v1930
    %10281 = vmatprep.subr.mxu0 0.0
    %10282 = vmatpush1.msra.mxu0 %v1931
    %10283 = vmatprep.subr.mxu0 0.0
    %10284 = vmatpush1.msra.mxu0 %v1932
    %10285 = vmatprep.subr.mxu0 0.0
    %10286 = vmatpush1.msra.mxu0 %v1933
    %10287 = vmatprep.subr.mxu0 0.0
    %10288 = vmatpush1.msra.mxu0 %v1934
    %10289 = vmatprep.subr.mxu0 0.0
    %10290 = vmatpush1.msra.mxu0 %v1935
    %10291 = vmatprep.subr.mxu0 0.0
    %10292 = vmatpush1.msra.mxu0 %v1936
    %10293 = vmatprep.subr.mxu0 0.0
    %10294 = vmatpush1.msra.mxu0 %v1937
    %10295 = vmatprep.subr.mxu0 0.0
    %10296 = vmatpush1.msra.mxu0 %v1938
    %10297 = vmatprep.subr.mxu0 0.0
    %10298 = vmatpush1.msra.mxu0 %v1939
    %10299 = vmatprep.subr.mxu0 0.0
    %10300 = vmatpush1.msra.mxu0 %v1940
    %10301 = vmatprep.subr.mxu0 0.0
    %10302 = vmatpush1.msra.mxu0 %v1941
    %10303 = vmatprep.subr.mxu0 0.0
    %10304 = vmatpush1.msra.mxu0 %v1942
    %10305 = vmatprep.subr.mxu0 0.0
    %10306 = vmatpush1.msra.mxu0 %v1943
    %10307 = vmatprep.subr.mxu0 0.0
    %10308 = vmatpush1.msra.mxu0 %v1944
    %10309 = vmatprep.subr.mxu0 0.0
    %10310 = vmatpush1.msra.mxu0 %v1945
    %10311 = vmatprep.subr.mxu0 0.0
    %10312 = vmatpush1.msra.mxu0 %v1946
    %10313 = vmatprep.subr.mxu0 0.0
    %10314 = vmatpush1.msra.mxu0 %v1947
    %10315 = vmatprep.subr.mxu0 0.0
    %10316 = vmatpush1.msra.mxu0 %v1948
    %10317 = vmatprep.mubr.f32.mxu0 %v9941
    %10318 = vmatmul.mubr.f32.gmra.mrb[0].mxu0 %v9940
    %v10319 = vpop.f32.mrb[0].mxu0
    %v10320 = vadd.f32 %v10235, %v10319
    %v10321 = vpop.f32.mrb[0].mxu0
    %10322 = vmatprep.mubr.f32.mxu0 %v9957
    %10323 = vmatmul.mubr.f32.gmra.mrb[0].mxu0 %v9956
    %v10324 = vpop.f32.mrb[0].mxu0
    %v10325 = vadd.f32 %v10240, %v10324
    %v10326 = vpop.f32.mrb[0].mxu0
    %10327 = vmatprep.mubr.f32.mxu0 %v9973
    %10328 = vmatmul.mubr.f32.gmra.mrb[0].mxu0 %v9972
    %v10329 = vpop.f32.mrb[0].mxu0
    %v10330 = vadd.f32 %v10245, %v10329
    %v10331 = vpop.f32.mrb[0].mxu0
    %10332 = vmatprep.mubr.f32.mxu0 %v9989
    %10333 = vmatmul.mubr.f32.gmra.mrb[0].mxu0 %v9988
    %v10334 = vpop.f32.mrb[0].mxu0
    %v10335 = vadd.f32 %v10250, %v10334
    %v10336 = vpop.f32.mrb[0].mxu0
    %10337 = vdwg.mxu0
    %10338 = vmatprep.subr.mxu0 0.0
    %10339 = vmatpush1.msra.mxu0 %v1949
    %10340 = vmatprep.subr.mxu0 0.0
    %10341 = vmatpush1.msra.mxu0 %v1950
    %10342 = vmatprep.subr.mxu0 0.0
    %10343 = vmatpush1.msra.mxu0 %v1951
    %10344 = vmatprep.subr.mxu0 0.0
    %10345 = vmatpush1.msra.mxu0 %v1952
    %10346 = vmatprep.subr.mxu0 0.0
    %10347 = vmatpush1.msra.mxu0 %v1953
    %10348 = vmatprep.subr.mxu0 0.0
    %10349 = vmatpush1.msra.mxu0 %v1954
    %10350 = vmatprep.subr.mxu0 0.0
    %10351 = vmatpush1.msra.mxu0 %v1955
    %10352 = vmatprep.subr.mxu0 0.0
    %10353 = vmatpush1.msra.mxu0 %v1956
    %10354 = vmatprep.subr.mxu0 0.0
    %10355 = vmatpush1.msra.mxu0 %v1957
    %10356 = vmatprep.subr.mxu0 0.0
    %10357 = vmatpush1.msra.mxu0 %v1958
    %10358 = vmatprep.subr.mxu0 0.0
    %10359 = vmatpush1.msra.mxu0 %v1959
    %10360 = vmatprep.subr.mxu0 0.0
    %10361 = vmatpush1.msra.mxu0 %v1960
    %10362 = vmatprep.subr.mxu0 0.0
    %10363 = vmatpush1.msra.mxu0 %v1961
    %10364 = vmatprep.subr.mxu0 0.0
    %10365 = vmatpush1.msra.mxu0 %v1962
    %10366 = vmatprep.subr.mxu0 0.0
    %10367 = vmatpush1.msra.mxu0 %v1963
    %10368 = vmatprep.subr.mxu0 0.0
    %10369 = vmatpush1.msra.mxu0 %v1964
    %10370 = vmatprep.subr.mxu0 0.0
    %10371 = vmatpush1.msra.mxu0 %v1965
    %10372 = vmatprep.subr.mxu0 0.0
    %10373 = vmatpush1.msra.mxu0 %v1966
    %10374 = vmatprep.subr.mxu0 0.0
    %10375 = vmatpush1.msra.mxu0 %v1967
    %10376 = vmatprep.subr.mxu0 0.0
    %10377 = vmatpush1.msra.mxu0 %v1968
    %10378 = vmatprep.subr.mxu0 0.0
    %10379 = vmatpush1.msra.mxu0 %v1969
    %10380 = vmatprep.subr.mxu0 0.0
    %10381 = vmatpush1.msra.mxu0 %v1970
    %10382 = vmatprep.subr.mxu0 0.0
    %10383 = vmatpush1.msra.mxu0 %v1971
    %10384 = vmatprep.subr.mxu0 0.0
    %10385 = vmatpush1.msra.mxu0 %v1972
    %10386 = vmatprep.subr.mxu0 0.0
    %10387 = vmatpush1.msra.mxu0 %v1973
    %10388 = vmatprep.subr.mxu0 0.0
    %10389 = vmatpush1.msra.mxu0 %v1974
    %10390 = vmatprep.subr.mxu0 0.0
    %10391 = vmatpush1.msra.mxu0 %v1975
    %10392 = vmatprep.subr.mxu0 0.0
    %10393 = vmatpush1.msra.mxu0 %v1976
    %10394 = vmatprep.subr.mxu0 0.0
    %10395 = vmatpush1.msra.mxu0 %v1977
    %10396 = vmatprep.subr.mxu0 0.0
    %10397 = vmatpush1.msra.mxu0 %v1978
    %10398 = vmatprep.subr.mxu0 0.0
    %10399 = vmatpush1.msra.mxu0 %v1979
    %10400 = vmatprep.subr.mxu0 0.0
    %10401 = vmatpush1.msra.mxu0 %v1980
    %10402 = vmatprep.mubr.f32.mxu0 %v9943
    %10403 = vmatmul.mubr.f32.gmra.mrb[0].mxu0 %v9942
    %v10404 = vpop.f32.mrb[0].mxu0
    %v10405 = vadd.f32 %v10320, %v10404
    %v10406 = vpop.f32.mrb[0].mxu0
    %10407 = vmatprep.mubr.f32.mxu0 %v9959
    %10408 = vmatmul.mubr.f32.gmra.mrb[0].mxu0 %v9958
    %v10409 = vpop.f32.mrb[0].mxu0
    %v10410 = vadd.f32 %v10325, %v10409
    %v10411 = vpop.f32.mrb[0].mxu0
    %10412 = vmatprep.mubr.f32.mxu0 %v9975
    %10413 = vmatmul.mubr.f32.gmra.mrb[0].mxu0 %v9974
    %v10414 = vpop.f32.mrb[0].mxu0
    %v10415 = vadd.f32 %v10330, %v10414
    %v10416 = vpop.f32.mrb[0].mxu0
    %10417 = vmatprep.mubr.f32.mxu0 %v9991
    %10418 = vmatmul.mubr.f32.gmra.mrb[0].mxu0 %v9990
    %v10419 = vpop.f32.mrb[0].mxu0
    %v10420 = vadd.f32 %v10335, %v10419
    %v10421 = vpop.f32.mrb[0].mxu0
    %10422 = vdwg.mxu0
    %10423 = vmatprep.subr.mxu0 0.0
    %10424 = vmatpush1.msra.mxu0 %v1981
    %10425 = vmatprep.subr.mxu0 0.0
    %10426 = vmatpush1.msra.mxu0 %v1982
    %10427 = vmatprep.subr.mxu0 0.0
    %10428 = vmatpush1.msra.mxu0 %v1983
    %10429 = vmatprep.subr.mxu0 0.0
    %10430 = vmatpush1.msra.mxu0 %v1984
    %10431 = vmatprep.subr.mxu0 0.0
    %10432 = vmatpush1.msra.mxu0 %v1985
    %10433 = vmatprep.subr.mxu0 0.0
    %10434 = vmatpush1.msra.mxu0 %v1986
    %10435 = vmatprep.subr.mxu0 0.0
    %10436 = vmatpush1.msra.mxu0 %v1987
    %10437 = vmatprep.subr.mxu0 0.0
    %10438 = vmatpush1.msra.mxu0 %v1988
    %10439 = vmatprep.subr.mxu0 0.0
    %10440 = vmatpush1.msra.mxu0 %v1989
    %10441 = vmatprep.subr.mxu0 0.0
    %10442 = vmatpush1.msra.mxu0 %v1990
    %10443 = vmatprep.subr.mxu0 0.0
    %10444 = vmatpush1.msra.mxu0 %v1991
    %10445 = vmatprep.subr.mxu0 0.0
    %10446 = vmatpush1.msra.mxu0 %v1992
    %10447 = vmatprep.subr.mxu0 0.0
    %10448 = vmatpush1.msra.mxu0 %v1993
    %10449 = vmatprep.subr.mxu0 0.0
    %10450 = vmatpush1.msra.mxu0 %v1994
    %10451 = vmatprep.subr.mxu0 0.0
    %10452 = vmatpush1.msra.mxu0 %v1995
    %10453 = vmatprep.subr.mxu0 0.0
    %10454 = vmatpush1.msra.mxu0 %v1996
    %10455 = vmatprep.subr.mxu0 0.0
    %10456 = vmatpush1.msra.mxu0 %v1997
    %10457 = vmatprep.subr.mxu0 0.0
    %10458 = vmatpush1.msra.mxu0 %v1998
    %10459 = vmatprep.subr.mxu0 0.0
    %10460 = vmatpush1.msra.mxu0 %v1999
    %10461 = vmatprep.subr.mxu0 0.0
    %10462 = vmatpush1.msra.mxu0 %v2000
    %10463 = vmatprep.subr.mxu0 0.0
    %10464 = vmatpush1.msra.mxu0 %v2001
    %10465 = vmatprep.subr.mxu0 0.0
    %10466 = vmatpush1.msra.mxu0 %v2002
    %10467 = vmatprep.subr.mxu0 0.0
    %10468 = vmatpush1.msra.mxu0 %v2003
    %10469 = vmatprep.subr.mxu0 0.0
    %10470 = vmatpush1.msra.mxu0 %v2004
    %10471 = vmatprep.subr.mxu0 0.0
    %10472 = vmatpush1.msra.mxu0 %v2005
    %10473 = vmatprep.subr.mxu0 0.0
    %10474 = vmatpush1.msra.mxu0 %v2006
    %10475 = vmatprep.subr.mxu0 0.0
    %10476 = vmatpush1.msra.mxu0 %v2007
    %10477 = vmatprep.subr.mxu0 0.0
    %10478 = vmatpush1.msra.mxu0 %v2008
    %10479 = vmatprep.subr.mxu0 0.0
    %10480 = vmatpush1.msra.mxu0 %v2009
    %10481 = vmatprep.subr.mxu0 0.0
    %10482 = vmatpush1.msra.mxu0 %v2010
    %10483 = vmatprep.subr.mxu0 0.0
    %10484 = vmatpush1.msra.mxu0 %v2011
    %10485 = vmatprep.subr.mxu0 0.0
    %10486 = vmatpush1.msra.mxu0 %v2012
    %10487 = vmatprep.mubr.f32.mxu0 %v9945
    %10488 = vmatmul.mubr.f32.gmra.mrb[0].mxu0 %v9944
    %v10489 = vpop.f32.mrb[0].mxu0
    %v10490 = vadd.f32 %v10405, %v10489
    %v10491 = vpop.f32.mrb[0].mxu0
    %10492 = vmatprep.mubr.f32.mxu0 %v9961
    %10493 = vmatmul.mubr.f32.gmra.mrb[0].mxu0 %v9960
    %v10494 = vpop.f32.mrb[0].mxu0
    %v10495 = vadd.f32 %v10410, %v10494
    %v10496 = vpop.f32.mrb[0].mxu0
    %10497 = vmatprep.mubr.f32.mxu0 %v9977
    %10498 = vmatmul.mubr.f32.gmra.mrb[0].mxu0 %v9976
    %v10499 = vpop.f32.mrb[0].mxu0
    %v10500 = vadd.f32 %v10415, %v10499
    %v10501 = vpop.f32.mrb[0].mxu0
    %10502 = vmatprep.mubr.f32.mxu0 %v9993
    %10503 = vmatmul.mubr.f32.gmra.mrb[0].mxu0 %v9992
    %v10504 = vpop.f32.mrb[0].mxu0
    %v10505 = vadd.f32 %v10420, %v10504
    %v10506 = vpop.f32.mrb[0].mxu0
    %10507 = vdwg.mxu0
    %10508 = vmatprep.subr.mxu0 0.0
    %10509 = vmatpush1.msra.mxu0 %v2013
    %10510 = vmatprep.subr.mxu0 0.0
    %10511 = vmatpush1.msra.mxu0 %v2014
    %10512 = vmatprep.subr.mxu0 0.0
    %10513 = vmatpush1.msra.mxu0 %v2015
    %10514 = vmatprep.subr.mxu0 0.0
    %10515 = vmatpush1.msra.mxu0 %v2016
    %10516 = vmatprep.subr.mxu0 0.0
    %10517 = vmatpush1.msra.mxu0 %v2017
    %10518 = vmatprep.subr.mxu0 0.0
    %10519 = vmatpush1.msra.mxu0 %v2018
    %10520 = vmatprep.subr.mxu0 0.0
    %10521 = vmatpush1.msra.mxu0 %v2019
    %10522 = vmatprep.subr.mxu0 0.0
    %10523 = vmatpush1.msra.mxu0 %v2020
    %10524 = vmatprep.subr.mxu0 0.0
    %10525 = vmatpush1.msra.mxu0 %v2021
    %10526 = vmatprep.subr.mxu0 0.0
    %10527 = vmatpush1.msra.mxu0 %v2022
    %10528 = vmatprep.subr.mxu0 0.0
    %10529 = vmatpush1.msra.mxu0 %v2023
    %10530 = vmatprep.subr.mxu0 0.0
    %10531 = vmatpush1.msra.mxu0 %v2024
    %10532 = vmatprep.subr.mxu0 0.0
    %10533 = vmatpush1.msra.mxu0 %v2025
    %10534 = vmatprep.subr.mxu0 0.0
    %10535 = vmatpush1.msra.mxu0 %v2026
    %10536 = vmatprep.subr.mxu0 0.0
    %10537 = vmatpush1.msra.mxu0 %v2027
    %10538 = vmatprep.subr.mxu0 0.0
    %10539 = vmatpush1.msra.mxu0 %v2028
    %10540 = vmatprep.subr.mxu0 0.0
    %10541 = vmatpush1.msra.mxu0 %v2029
    %10542 = vmatprep.subr.mxu0 0.0
    %10543 = vmatpush1.msra.mxu0 %v2030
    %10544 = vmatprep.subr.mxu0 0.0
    %10545 = vmatpush1.msra.mxu0 %v2031
    %10546 = vmatprep.subr.mxu0 0.0
    %10547 = vmatpush1.msra.mxu0 %v2032
    %10548 = vmatprep.subr.mxu0 0.0
    %10549 = vmatpush1.msra.mxu0 %v2033
    %10550 = vmatprep.subr.mxu0 0.0
    %10551 = vmatpush1.msra.mxu0 %v2034
    %10552 = vmatprep.subr.mxu0 0.0
    %10553 = vmatpush1.msra.mxu0 %v2035
    %10554 = vmatprep.subr.mxu0 0.0
    %10555 = vmatpush1.msra.mxu0 %v2036
    %10556 = vmatprep.subr.mxu0 0.0
    %10557 = vmatpush1.msra.mxu0 %v2037
    %10558 = vmatprep.subr.mxu0 0.0
    %10559 = vmatpush1.msra.mxu0 %v2038
    %10560 = vmatprep.subr.mxu0 0.0
    %10561 = vmatpush1.msra.mxu0 %v2039
    %10562 = vmatprep.subr.mxu0 0.0
    %10563 = vmatpush1.msra.mxu0 %v2040
    %10564 = vmatprep.subr.mxu0 0.0
    %10565 = vmatpush1.msra.mxu0 %v2041
    %10566 = vmatprep.subr.mxu0 0.0
    %10567 = vmatpush1.msra.mxu0 %v2042
    %10568 = vmatprep.subr.mxu0 0.0
    %10569 = vmatpush1.msra.mxu0 %v2043
    %10570 = vmatprep.subr.mxu0 0.0
    %10571 = vmatpush1.msra.mxu0 %v2044
    %10572 = vmatprep.mubr.f32.mxu0 %v9947
    %10573 = vmatmul.mubr.f32.gmra.mrb[0].mxu0 %v9946
    %v10574 = vpop.f32.mrb[0].mxu0
    %v10575 = vadd.f32 %v10490, %v10574
    %v10576 = vpop.f32.mrb[0].mxu0
    %10577 = vmatprep.mubr.f32.mxu0 %v9963
    %10578 = vmatmul.mubr.f32.gmra.mrb[0].mxu0 %v9962
    %v10579 = vpop.f32.mrb[0].mxu0
    %v10580 = vadd.f32 %v10495, %v10579
    %v10581 = vpop.f32.mrb[0].mxu0
    %10582 = vmatprep.mubr.f32.mxu0 %v9979
    %10583 = vmatmul.mubr.f32.gmra.mrb[0].mxu0 %v9978
    %v10584 = vpop.f32.mrb[0].mxu0
    %v10585 = vadd.f32 %v10500, %v10584
    %v10586 = vpop.f32.mrb[0].mxu0
    %10587 = vmatprep.mubr.f32.mxu0 %v9995
    %10588 = vmatmul.mubr.f32.gmra.mrb[0].mxu0 %v9994
    %v10589 = vpop.f32.mrb[0].mxu0
    %v10590 = vadd.f32 %v10505, %v10589
    %v10591 = vpop.f32.mrb[0].mxu0
    %10592 = vdwg.mxu0
    %10593 = vmatprep.subr.mxu0 0.0
    %10594 = vmatpush1.msra.mxu0 %v2045
    %10595 = vmatprep.subr.mxu0 0.0
    %10596 = vmatpush1.msra.mxu0 %v2046
    %10597 = vmatprep.subr.mxu0 0.0
    %10598 = vmatpush1.msra.mxu0 %v2047
    %10599 = vmatprep.subr.mxu0 0.0
    %10600 = vmatpush1.msra.mxu0 %v2048
    %10601 = vmatprep.subr.mxu0 0.0
    %10602 = vmatpush1.msra.mxu0 %v2049
    %10603 = vmatprep.subr.mxu0 0.0
    %10604 = vmatpush1.msra.mxu0 %v2050
    %10605 = vmatprep.subr.mxu0 0.0
    %10606 = vmatpush1.msra.mxu0 %v2051
    %10607 = vmatprep.subr.mxu0 0.0
    %10608 = vmatpush1.msra.mxu0 %v2052
    %10609 = vmatprep.subr.mxu0 0.0
    %10610 = vmatpush1.msra.mxu0 %v2053
    %10611 = vmatprep.subr.mxu0 0.0
    %10612 = vmatpush1.msra.mxu0 %v2054
    %10613 = vmatprep.subr.mxu0 0.0
    %10614 = vmatpush1.msra.mxu0 %v2055
    %10615 = vmatprep.subr.mxu0 0.0
    %10616 = vmatpush1.msra.mxu0 %v2056
    %10617 = vmatprep.subr.mxu0 0.0
    %10618 = vmatpush1.msra.mxu0 %v2057
    %10619 = vmatprep.subr.mxu0 0.0
    %10620 = vmatpush1.msra.mxu0 %v2058
    %10621 = vmatprep.subr.mxu0 0.0
    %10622 = vmatpush1.msra.mxu0 %v2059
    %10623 = vmatprep.subr.mxu0 0.0
    %10624 = vmatpush1.msra.mxu0 %v2060
    %10625 = vmatprep.subr.mxu0 0.0
    %10626 = vmatpush1.msra.mxu0 %v2061
    %10627 = vmatprep.subr.mxu0 0.0
    %10628 = vmatpush1.msra.mxu0 %v2062
    %10629 = vmatprep.subr.mxu0 0.0
    %10630 = vmatpush1.msra.mxu0 %v2063
    %10631 = vmatprep.subr.mxu0 0.0
    %10632 = vmatpush1.msra.mxu0 %v2064
    %10633 = vmatprep.subr.mxu0 0.0
    %10634 = vmatpush1.msra.mxu0 %v2065
    %10635 = vmatprep.subr.mxu0 0.0
    %10636 = vmatpush1.msra.mxu0 %v2066
    %10637 = vmatprep.subr.mxu0 0.0
    %10638 = vmatpush1.msra.mxu0 %v2067
    %10639 = vmatprep.subr.mxu0 0.0
    %10640 = vmatpush1.msra.mxu0 %v2068
    %10641 = vmatprep.subr.mxu0 0.0
    %10642 = vmatpush1.msra.mxu0 %v2069
    %10643 = vmatprep.subr.mxu0 0.0
    %10644 = vmatpush1.msra.mxu0 %v2070
    %10645 = vmatprep.subr.mxu0 0.0
    %10646 = vmatpush1.msra.mxu0 %v2071
    %10647 = vmatprep.subr.mxu0 0.0
    %10648 = vmatpush1.msra.mxu0 %v2072
    %10649 = vmatprep.subr.mxu0 0.0
    %10650 = vmatpush1.msra.mxu0 %v2073
    %10651 = vmatprep.subr.mxu0 0.0
    %10652 = vmatpush1.msra.mxu0 %v2074
    %10653 = vmatprep.subr.mxu0 0.0
    %10654 = vmatpush1.msra.mxu0 %v2075
    %10655 = vmatprep.subr.mxu0 0.0
    %10656 = vmatpush1.msra.mxu0 %v2076
    %10657 = vmatprep.mubr.f32.mxu0 %v9949
    %10658 = vmatmul.mubr.f32.gmra.mrb[0].mxu0 %v9948
    %v10659 = vpop.f32.mrb[0].mxu0
    %v10660 = vadd.f32 %v10575, %v10659
    %v10661 = vpop.f32.mrb[0].mxu0
    %10662 = vmatprep.mubr.f32.mxu0 %v9965
    %10663 = vmatmul.mubr.f32.gmra.mrb[0].mxu0 %v9964
    %v10664 = vpop.f32.mrb[0].mxu0
    %v10665 = vadd.f32 %v10580, %v10664
    %v10666 = vpop.f32.mrb[0].mxu0
    %10667 = vmatprep.mubr.f32.mxu0 %v9981
    %10668 = vmatmul.mubr.f32.gmra.mrb[0].mxu0 %v9980
    %v10669 = vpop.f32.mrb[0].mxu0
    %v10670 = vadd.f32 %v10585, %v10669
    %v10671 = vpop.f32.mrb[0].mxu0
    %10672 = vmatprep.mubr.f32.mxu0 %v9997
    %10673 = vmatmul.mubr.f32.gmra.mrb[0].mxu0 %v9996
    %v10674 = vpop.f32.mrb[0].mxu0
    %v10675 = vadd.f32 %v10590, %v10674
    %v10676 = vpop.f32.mrb[0].mxu0
    %10677 = vdwg.mxu0
    %10678 = vmatprep.subr.mxu0 0.0
    %10679 = vmatpush1.msra.mxu0 %v106
    %10680 = vmatprep.subr.mxu0 0.0
    %10681 = vmatpush1.msra.mxu0 %v107
    %10682 = vmatprep.subr.mxu0 0.0
    %10683 = vmatpush1.msra.mxu0 %v108
    %10684 = vmatprep.subr.mxu0 0.0
    %10685 = vmatpush1.msra.mxu0 %v109
    %10686 = vmatprep.subr.mxu0 0.0
    %10687 = vmatpush1.msra.mxu0 %v110
    %10688 = vmatprep.subr.mxu0 0.0
    %10689 = vmatpush1.msra.mxu0 %v111
    %10690 = vmatprep.subr.mxu0 0.0
    %10691 = vmatpush1.msra.mxu0 %v112
    %10692 = vmatprep.subr.mxu0 0.0
    %10693 = vmatpush1.msra.mxu0 %v113
    %10694 = vmatprep.subr.mxu0 0.0
    %10695 = vmatpush1.msra.mxu0 0.0
    %10696 = vmatprep.subr.mxu0 0.0
    %10697 = vmatpush1.msra.mxu0 0.0
    %10698 = vmatprep.subr.mxu0 0.0
    %10699 = vmatpush1.msra.mxu0 0.0
    %10700 = vmatprep.subr.mxu0 0.0
    %10701 = vmatpush1.msra.mxu0 0.0
    %10702 = vmatprep.subr.mxu0 0.0
    %10703 = vmatpush1.msra.mxu0 0.0
    %10704 = vmatprep.subr.mxu0 0.0
    %10705 = vmatpush1.msra.mxu0 0.0
    %10706 = vmatprep.subr.mxu0 0.0
    %10707 = vmatpush1.msra.mxu0 0.0
    %10708 = vmatprep.subr.mxu0 0.0
    %10709 = vmatpush1.msra.mxu0 0.0
    %10710 = vmatprep.subr.mxu0 0.0
    %10711 = vmatpush1.msra.mxu0 0.0
    %10712 = vmatprep.subr.mxu0 0.0
    %10713 = vmatpush1.msra.mxu0 0.0
    %10714 = vmatprep.subr.mxu0 0.0
    %10715 = vmatpush1.msra.mxu0 0.0
    %10716 = vmatprep.subr.mxu0 0.0
    %10717 = vmatpush1.msra.mxu0 0.0
    %10718 = vmatprep.subr.mxu0 0.0
    %10719 = vmatpush1.msra.mxu0 0.0
    %10720 = vmatprep.subr.mxu0 0.0
    %10721 = vmatpush1.msra.mxu0 0.0
    %10722 = vmatprep.subr.mxu0 0.0
    %10723 = vmatpush1.msra.mxu0 0.0
    %10724 = vmatprep.subr.mxu0 0.0
    %10725 = vmatpush1.msra.mxu0 0.0
    %10726 = vmatprep.subr.mxu0 0.0
    %10727 = vmatpush1.msra.mxu0 0.0
    %10728 = vmatprep.subr.mxu0 0.0
    %10729 = vmatpush1.msra.mxu0 0.0
    %10730 = vmatprep.subr.mxu0 0.0
    %10731 = vmatpush1.msra.mxu0 0.0
    %10732 = vmatprep.subr.mxu0 0.0
    %10733 = vmatpush1.msra.mxu0 0.0
    %10734 = vmatprep.subr.mxu0 0.0
    %10735 = vmatpush1.msra.mxu0 0.0
    %10736 = vmatprep.subr.mxu0 0.0
    %10737 = vmatpush1.msra.mxu0 0.0
    %10738 = vmatprep.subr.mxu0 0.0
    %10739 = vmatpush1.msra.mxu0 0.0
    %10740 = vmatprep.subr.mxu0 0.0
    %10741 = vmatpush1.msra.mxu0 0.0
    %10742 = vmatprep.mubr.f32.mxu0 0.0
    %10743 = vmatmul.mubr.f32.gmra.mrb[0].mxu0 %v8601
    %v10744 = vpop.f32.mrb[0].mxu0
    %v10745 = vadd.f32 0.0, %v10744
    %v10746 = vpop.f32.mrb[0].mxu0
    %10747 = vmatprep.mubr.f32.mxu0 0.0
    %10748 = vmatmul.mubr.f32.gmra.mrb[0].mxu0 %v8604
    %v10749 = vpop.f32.mrb[0].mxu0
    %v10750 = vadd.f32 0.0, %v10749
    %v10751 = vpop.f32.mrb[0].mxu0
    %10752 = vdwg.mxu0
    %10753 = vmatprep.subr.mxu0 0.0
    %10754 = vmatpush1.msra.mxu0 %v10745
    %10755 = vmatprep.subr.mxu0 0.0
    %10756 = vmatpush1.msra.mxu0 %v10750
    %10757 = vmatprep.subr.mxu0 0.0
    %10758 = vmatpush1.msra.mxu0 0.0
    %10759 = vmatprep.subr.mxu0 0.0
    %10760 = vmatpush1.msra.mxu0 0.0
    %10761 = vmatprep.subr.mxu0 0.0
    %10762 = vmatpush1.msra.mxu0 0.0
    %10763 = vmatprep.subr.mxu0 0.0
    %10764 = vmatpush1.msra.mxu0 0.0
    %10765 = vmatprep.subr.mxu0 0.0
    %10766 = vmatpush1.msra.mxu0 0.0
    %10767 = vmatprep.subr.mxu0 0.0
    %10768 = vmatpush1.msra.mxu0 0.0
    %10769 = vmatprep.subr.mxu0 0.0
    %10770 = vmatpush1.msra.mxu0 0.0
    %10771 = vmatprep.subr.mxu0 0.0
    %10772 = vmatpush1.msra.mxu0 0.0
    %10773 = vmatprep.subr.mxu0 0.0
    %10774 = vmatpush1.msra.mxu0 0.0
    %10775 = vmatprep.subr.mxu0 0.0
    %10776 = vmatpush1.msra.mxu0 0.0
    %10777 = vmatprep.subr.mxu0 0.0
    %10778 = vmatpush1.msra.mxu0 0.0
    %10779 = vmatprep.subr.mxu0 0.0
    %10780 = vmatpush1.msra.mxu0 0.0
    %10781 = vmatprep.subr.mxu0 0.0
    %10782 = vmatpush1.msra.mxu0 0.0
    %10783 = vmatprep.subr.mxu0 0.0
    %10784 = vmatpush1.msra.mxu0 0.0
    %10785 = vmatprep.subr.mxu0 0.0
    %10786 = vmatpush1.msra.mxu0 0.0
    %10787 = vmatprep.subr.mxu0 0.0
    %10788 = vmatpush1.msra.mxu0 0.0
    %10789 = vmatprep.subr.mxu0 0.0
    %10790 = vmatpush1.msra.mxu0 0.0
    %10791 = vmatprep.subr.mxu0 0.0
    %10792 = vmatpush1.msra.mxu0 0.0
    %10793 = vmatprep.subr.mxu0 0.0
    %10794 = vmatpush1.msra.mxu0 0.0
    %10795 = vmatprep.subr.mxu0 0.0
    %10796 = vmatpush1.msra.mxu0 0.0
    %10797 = vmatprep.subr.mxu0 0.0
    %10798 = vmatpush1.msra.mxu0 0.0
    %10799 = vmatprep.subr.mxu0 0.0
    %10800 = vmatpush1.msra.mxu0 0.0
    %10801 = vmatprep.subr.mxu0 0.0
    %10802 = vmatpush1.msra.mxu0 0.0
    %10803 = vmatprep.subr.mxu0 0.0
    %10804 = vmatpush1.msra.mxu0 0.0
    %10805 = vmatprep.subr.mxu0 0.0
    %10806 = vmatpush1.msra.mxu0 0.0
    %10807 = vmatprep.subr.mxu0 0.0
    %10808 = vmatpush1.msra.mxu0 0.0
    %10809 = vmatprep.subr.mxu0 0.0
    %10810 = vmatpush1.msra.mxu0 0.0
    %10811 = vmatprep.subr.mxu0 0.0
    %10812 = vmatpush1.msra.mxu0 0.0
    %10813 = vmatprep.subr.mxu0 0.0
    %10814 = vmatpush1.msra.mxu0 0.0
    %10815 = vmatprep.subr.mxu0 0.0
    %10816 = vmatpush1.msra.mxu0 0.0
    %10817 = vmatprep.mubr.f32.mxu0 0.0
    %10818 = vmatmul.mubr.f32.gmra.mrb[0].mxu0 %v4970
    %v10819 = vpop.f32.mrb[0].mxu0
    %v10820 = vadd.f32 0.0, %v10819
    %v10821 = vpop.f32.mrb[0].mxu0
    %10822 = vmatprep.mubr.f32.mxu0 0.0
    %10823 = vmatmul.mubr.f32.gmra.mrb[0].mxu0 %v4973
    %v10824 = vpop.f32.mrb[0].mxu0
    %v10825 = vadd.f32 0.0, %v10824
    %v10826 = vpop.f32.mrb[0].mxu0
    %10827 = vdwg.mxu0
    %10828 = vmatprep.subr.mxu0 0.0
    %10829 = vmatpush1.msra.mxu0 %v10660
    %10830 = vmatprep.subr.mxu0 0.0
    %10831 = vmatpush1.msra.mxu0 %v10665
    %10832 = vmatprep.subr.mxu0 0.0
    %10833 = vmatpush1.msra.mxu0 %v10670
    %10834 = vmatprep.subr.mxu0 0.0
    %10835 = vmatpush1.msra.mxu0 %v10675
    %10836 = vmatprep.subr.mxu0 0.0
    %10837 = vmatpush1.msra.mxu0 0.0
    %10838 = vmatprep.subr.mxu0 0.0
    %10839 = vmatpush1.msra.mxu0 0.0
    %10840 = vmatprep.subr.mxu0 0.0
    %10841 = vmatpush1.msra.mxu0 0.0
    %10842 = vmatprep.subr.mxu0 0.0
    %10843 = vmatpush1.msra.mxu0 0.0
    %10844 = vmatprep.subr.mxu0 0.0
    %10845 = vmatpush1.msra.mxu0 0.0
    %10846 = vmatprep.subr.mxu0 0.0
    %10847 = vmatpush1.msra.mxu0 0.0
    %10848 = vmatprep.subr.mxu0 0.0
    %10849 = vmatpush1.msra.mxu0 0.0
    %10850 = vmatprep.subr.mxu0 0.0
    %10851 = vmatpush1.msra.mxu0 0.0
    %10852 = vmatprep.subr.mxu0 0.0
    %10853 = vmatpush1.msra.mxu0 0.0
    %10854 = vmatprep.subr.mxu0 0.0
    %10855 = vmatpush1.msra.mxu0 0.0
    %10856 = vmatprep.subr.mxu0 0.0
    %10857 = vmatpush1.msra.mxu0 0.0
    %10858 = vmatprep.subr.mxu0 0.0
    %10859 = vmatpush1.msra.mxu0 0.0
    %10860 = vmatprep.subr.mxu0 0.0
    %10861 = vmatpush1.msra.mxu0 0.0
    %10862 = vmatprep.subr.mxu0 0.0
    %10863 = vmatpush1.msra.mxu0 0.0
    %10864 = vmatprep.subr.mxu0 0.0
    %10865 = vmatpush1.msra.mxu0 0.0
    %10866 = vmatprep.subr.mxu0 0.0
    %10867 = vmatpush1.msra.mxu0 0.0
    %10868 = vmatprep.subr.mxu0 0.0
    %10869 = vmatpush1.msra.mxu0 0.0
    %10870 = vmatprep.subr.mxu0 0.0
    %10871 = vmatpush1.msra.mxu0 0.0
    %10872 = vmatprep.subr.mxu0 0.0
    %10873 = vmatpush1.msra.mxu0 0.0
    %10874 = vmatprep.subr.mxu0 0.0
    %10875 = vmatpush1.msra.mxu0 0.0
    %10876 = vmatprep.subr.mxu0 0.0
    %10877 = vmatpush1.msra.mxu0 0.0
    %10878 = vmatprep.subr.mxu0 0.0
    %10879 = vmatpush1.msra.mxu0 0.0
    %10880 = vmatprep.subr.mxu0 0.0
    %10881 = vmatpush1.msra.mxu0 0.0
    %10882 = vmatprep.subr.mxu0 0.0
    %10883 = vmatpush1.msra.mxu0 0.0
    %10884 = vmatprep.subr.mxu0 0.0
    %10885 = vmatpush1.msra.mxu0 0.0
    %10886 = vmatprep.subr.mxu0 0.0
    %10887 = vmatpush1.msra.mxu0 0.0
    %10888 = vmatprep.subr.mxu0 0.0
    %10889 = vmatpush1.msra.mxu0 0.0
    %10890 = vmatprep.subr.mxu0 0.0
    %10891 = vmatpush1.msra.mxu0 0.0
    %10892 = vmatprep.mubr.f32.mxu0 0.0
    %10893 = vmatmul.mubr.f32.gmra.mrb[0].mxu0 %v5051
    %v10894 = vpop.f32.mrb[0].mxu0
    %v10895 = vadd.f32 %v10820, %v10894
    %v10896 = vpop.f32.mrb[0].mxu0
    %10897 = vmatprep.mubr.f32.mxu0 0.0
    %10898 = vmatmul.mubr.f32.gmra.mrb[0].mxu0 %v5054
    %v10899 = vpop.f32.mrb[0].mxu0
    %v10900 = vadd.f32 %v10825, %v10899
    %v10901 = vpop.f32.mrb[0].mxu0
    %10902 = vdwg.mxu0
    %10903 = vmatprep.subr.mxu0 0.0
    %10904 = vmatpush1.msra.mxu0 %v115
    %10905 = vmatprep.subr.mxu0 0.0
    %10906 = vmatpush1.msra.mxu0 %v116
    %10907 = vmatprep.subr.mxu0 0.0
    %10908 = vmatpush1.msra.mxu0 %v117
    %10909 = vmatprep.subr.mxu0 0.0
    %10910 = vmatpush1.msra.mxu0 %v118
    %10911 = vmatprep.subr.mxu0 0.0
    %10912 = vmatpush1.msra.mxu0 %v119
    %10913 = vmatprep.subr.mxu0 0.0
    %10914 = vmatpush1.msra.mxu0 %v120
    %10915 = vmatprep.subr.mxu0 0.0
    %10916 = vmatpush1.msra.mxu0 %v121
    %10917 = vmatprep.subr.mxu0 0.0
    %10918 = vmatpush1.msra.mxu0 %v122
    %10919 = vmatprep.subr.mxu0 0.0
    %10920 = vmatpush1.msra.mxu0 0.0
    %10921 = vmatprep.subr.mxu0 0.0
    %10922 = vmatpush1.msra.mxu0 0.0
    %10923 = vmatprep.subr.mxu0 0.0
    %10924 = vmatpush1.msra.mxu0 0.0
    %10925 = vmatprep.subr.mxu0 0.0
    %10926 = vmatpush1.msra.mxu0 0.0
    %10927 = vmatprep.subr.mxu0 0.0
    %10928 = vmatpush1.msra.mxu0 0.0
    %10929 = vmatprep.subr.mxu0 0.0
    %10930 = vmatpush1.msra.mxu0 0.0
    %10931 = vmatprep.subr.mxu0 0.0
    %10932 = vmatpush1.msra.mxu0 0.0
    %10933 = vmatprep.subr.mxu0 0.0
    %10934 = vmatpush1.msra.mxu0 0.0
    %10935 = vmatprep.subr.mxu0 0.0
    %10936 = vmatpush1.msra.mxu0 0.0
    %10937 = vmatprep.subr.mxu0 0.0
    %10938 = vmatpush1.msra.mxu0 0.0
    %10939 = vmatprep.subr.mxu0 0.0
    %10940 = vmatpush1.msra.mxu0 0.0
    %10941 = vmatprep.subr.mxu0 0.0
    %10942 = vmatpush1.msra.mxu0 0.0
    %10943 = vmatprep.subr.mxu0 0.0
    %10944 = vmatpush1.msra.mxu0 0.0
    %10945 = vmatprep.subr.mxu0 0.0
    %10946 = vmatpush1.msra.mxu0 0.0
    %10947 = vmatprep.subr.mxu0 0.0
    %10948 = vmatpush1.msra.mxu0 0.0
    %10949 = vmatprep.subr.mxu0 0.0
    %10950 = vmatpush1.msra.mxu0 0.0
    %10951 = vmatprep.subr.mxu0 0.0
    %10952 = vmatpush1.msra.mxu0 0.0
    %10953 = vmatprep.subr.mxu0 0.0
    %10954 = vmatpush1.msra.mxu0 0.0
    %10955 = vmatprep.subr.mxu0 0.0
    %10956 = vmatpush1.msra.mxu0 0.0
    %10957 = vmatprep.subr.mxu0 0.0
    %10958 = vmatpush1.msra.mxu0 0.0
    %10959 = vmatprep.subr.mxu0 0.0
    %10960 = vmatpush1.msra.mxu0 0.0
    %10961 = vmatprep.subr.mxu0 0.0
    %10962 = vmatpush1.msra.mxu0 0.0
    %10963 = vmatprep.subr.mxu0 0.0
    %10964 = vmatpush1.msra.mxu0 0.0
    %10965 = vmatprep.subr.mxu0 0.0
    %10966 = vmatpush1.msra.mxu0 0.0
    %10967 = vmatprep.mubr.f32.mxu0 0.0
    %10968 = vmatmul.mubr.f32.gmra.mrb[0].mxu0 %v8601
    %v10969 = vpop.f32.mrb[0].mxu0
    %v10970 = vadd.f32 0.0, %v10969
    %v10971 = vpop.f32.mrb[0].mxu0
    %10972 = vmatprep.mubr.f32.mxu0 0.0
    %10973 = vmatmul.mubr.f32.gmra.mrb[0].mxu0 %v8604
    %v10974 = vpop.f32.mrb[0].mxu0
    %v10975 = vadd.f32 0.0, %v10974
    %v10976 = vpop.f32.mrb[0].mxu0
    %10977 = vdwg.mxu0
    %v10978 = vadd.f32 %v10895, %v10970
    %v10979 = vadd.f32 %v10900, %v10975
    %v10980 = vadd.f32 %v10978, %v73
    %v10981 = vadd.f32 %v10979, %v73
    %v10982 = vmax.f32 %v10980, 0.0
    %v10983 = vmax.f32 %v10981, 0.0
    %v10985 = vsel %vm2802, %v10982, 0
    %v10988 = vsel %vm2802, %v10983, 0
    %10990 = vmatprep.subr.mxu0 0.0
    %10991 = vmatpush1.msra.mxu0 %v132
    %10992 = vmatprep.subr.mxu0 0.0
    %10993 = vmatpush1.msra.mxu0 %v133
    %10994 = vmatprep.subr.mxu0 0.0
    %10995 = vmatpush1.msra.mxu0 %v134
    %10996 = vmatprep.subr.mxu0 0.0
    %10997 = vmatpush1.msra.mxu0 %v135
    %10998 = vmatprep.subr.mxu0 0.0
    %10999 = vmatpush1.msra.mxu0 %v136
    %11000 = vmatprep.subr.mxu0 0.0
    %11001 = vmatpush1.msra.mxu0 %v137
    %11002 = vmatprep.subr.mxu0 0.0
    %11003 = vmatpush1.msra.mxu0 %v138
    %11004 = vmatprep.subr.mxu0 0.0
    %11005 = vmatpush1.msra.mxu0 %v139
    %11006 = vmatprep.subr.mxu0 0.0
    %11007 = vmatpush1.msra.mxu0 0.0
    %11008 = vmatprep.subr.mxu0 0.0
    %11009 = vmatpush1.msra.mxu0 0.0
    %11010 = vmatprep.subr.mxu0 0.0
    %11011 = vmatpush1.msra.mxu0 0.0
    %11012 = vmatprep.subr.mxu0 0.0
    %11013 = vmatpush1.msra.mxu0 0.0
    %11014 = vmatprep.subr.mxu0 0.0
    %11015 = vmatpush1.msra.mxu0 0.0
    %11016 = vmatprep.subr.mxu0 0.0
    %11017 = vmatpush1.msra.mxu0 0.0
    %11018 = vmatprep.subr.mxu0 0.0
    %11019 = vmatpush1.msra.mxu0 0.0
    %11020 = vmatprep.subr.mxu0 0.0
    %11021 = vmatpush1.msra.mxu0 0.0
    %11022 = vmatprep.subr.mxu0 0.0
    %11023 = vmatpush1.msra.mxu0 0.0
    %11024 = vmatprep.subr.mxu0 0.0
    %11025 = vmatpush1.msra.mxu0 0.0
    %11026 = vmatprep.subr.mxu0 0.0
    %11027 = vmatpush1.msra.mxu0 0.0
    %11028 = vmatprep.subr.mxu0 0.0
    %11029 = vmatpush1.msra.mxu0 0.0
    %11030 = vmatprep.subr.mxu0 0.0
    %11031 = vmatpush1.msra.mxu0 0.0
    %11032 = vmatprep.subr.mxu0 0.0
    %11033 = vmatpush1.msra.mxu0 0.0
    %11034 = vmatprep.subr.mxu0 0.0
    %11035 = vmatpush1.msra.mxu0 0.0
    %11036 = vmatprep.subr.mxu0 0.0
    %11037 = vmatpush1.msra.mxu0 0.0
    %11038 = vmatprep.subr.mxu0 0.0
    %11039 = vmatpush1.msra.mxu0 0.0
    %11040 = vmatprep.subr.mxu0 0.0
    %11041 = vmatpush1.msra.mxu0 0.0
    %11042 = vmatprep.subr.mxu0 0.0
    %11043 = vmatpush1.msra.mxu0 0.0
    %11044 = vmatprep.subr.mxu0 0.0
    %11045 = vmatpush1.msra.mxu0 0.0
    %11046 = vmatprep.subr.mxu0 0.0
    %11047 = vmatpush1.msra.mxu0 0.0
    %11048 = vmatprep.subr.mxu0 0.0
    %11049 = vmatpush1.msra.mxu0 0.0
    %11050 = vmatprep.subr.mxu0 0.0
    %11051 = vmatpush1.msra.mxu0 0.0
    %11052 = vmatprep.subr.mxu0 0.0
    %11053 = vmatpush1.msra.mxu0 0.0
    %11054 = vmatprep.mubr.f32.mxu0 0.0
    %11055 = vmatmul.mubr.f32.gmra.mrb[0].mxu0 %v10985
    %v11056 = vpop.f32.mrb[0].mxu0
    %v11057 = vadd.f32 %v77, %v11056
    %v11058 = vpop.f32.mrb[0].mxu0
    %11059 = vmatprep.mubr.f32.mxu0 0.0
    %11060 = vmatmul.mubr.f32.gmra.mrb[0].mxu0 %v10988
    %v11061 = vpop.f32.mrb[0].mxu0
    %v11062 = vadd.f32 %v77, %v11061
    %v11063 = vpop.f32.mrb[0].mxu0
    %11064 = vdwg.mxu0
    %11065 = vmatprep.subr.mxu0 0.0
    %11066 = vmatpush1.msra.mxu0 %v159
    %11067 = vmatprep.subr.mxu0 0.0
    %11068 = vmatpush1.msra.mxu0 %v160
    %11069 = vmatprep.subr.mxu0 0.0
    %11070 = vmatpush1.msra.mxu0 %v161
    %11071 = vmatprep.subr.mxu0 0.0
    %11072 = vmatpush1.msra.mxu0 %v162
    %11073 = vmatprep.subr.mxu0 0.0
    %11074 = vmatpush1.msra.mxu0 %v163
    %11075 = vmatprep.subr.mxu0 0.0
    %11076 = vmatpush1.msra.mxu0 %v164
    %11077 = vmatprep.subr.mxu0 0.0
    %11078 = vmatpush1.msra.mxu0 %v165
    %11079 = vmatprep.subr.mxu0 0.0
    %11080 = vmatpush1.msra.mxu0 %v166
    %11081 = vmatprep.subr.mxu0 0.0
    %11082 = vmatpush1.msra.mxu0 0.0
    %11083 = vmatprep.subr.mxu0 0.0
    %11084 = vmatpush1.msra.mxu0 0.0
    %11085 = vmatprep.subr.mxu0 0.0
    %11086 = vmatpush1.msra.mxu0 0.0
    %11087 = vmatprep.subr.mxu0 0.0
    %11088 = vmatpush1.msra.mxu0 0.0
    %11089 = vmatprep.subr.mxu0 0.0
    %11090 = vmatpush1.msra.mxu0 0.0
    %11091 = vmatprep.subr.mxu0 0.0
    %11092 = vmatpush1.msra.mxu0 0.0
    %11093 = vmatprep.subr.mxu0 0.0
    %11094 = vmatpush1.msra.mxu0 0.0
    %11095 = vmatprep.subr.mxu0 0.0
    %11096 = vmatpush1.msra.mxu0 0.0
    %11097 = vmatprep.subr.mxu0 0.0
    %11098 = vmatpush1.msra.mxu0 0.0
    %11099 = vmatprep.subr.mxu0 0.0
    %11100 = vmatpush1.msra.mxu0 0.0
    %11101 = vmatprep.subr.mxu0 0.0
    %11102 = vmatpush1.msra.mxu0 0.0
    %11103 = vmatprep.subr.mxu0 0.0
    %11104 = vmatpush1.msra.mxu0 0.0
    %11105 = vmatprep.subr.mxu0 0.0
    %11106 = vmatpush1.msra.mxu0 0.0
    %11107 = vmatprep.subr.mxu0 0.0
    %11108 = vmatpush1.msra.mxu0 0.0
    %11109 = vmatprep.subr.mxu0 0.0
    %11110 = vmatpush1.msra.mxu0 0.0
    %11111 = vmatprep.subr.mxu0 0.0
    %11112 = vmatpush1.msra.mxu0 0.0
    %11113 = vmatprep.subr.mxu0 0.0
    %11114 = vmatpush1.msra.mxu0 0.0
    %11115 = vmatprep.subr.mxu0 0.0
    %11116 = vmatpush1.msra.mxu0 0.0
    %11117 = vmatprep.subr.mxu0 0.0
    %11118 = vmatpush1.msra.mxu0 0.0
    %11119 = vmatprep.subr.mxu0 0.0
    %11120 = vmatpush1.msra.mxu0 0.0
    %11121 = vmatprep.subr.mxu0 0.0
    %11122 = vmatpush1.msra.mxu0 0.0
    %11123 = vmatprep.subr.mxu0 0.0
    %11124 = vmatpush1.msra.mxu0 0.0
    %11125 = vmatprep.subr.mxu0 0.0
    %11126 = vmatpush1.msra.mxu0 0.0
    %11127 = vmatprep.subr.mxu0 0.0
    %11128 = vmatpush1.msra.mxu0 0.0
    %11129 = vmatprep.mubr.f32.mxu0 0.0
    %11130 = vmatmul.mubr.f32.gmra.mrb[0].mxu0 %v8601
    %v11131 = vpop.f32.mrb[0].mxu0
    %v11132 = vadd.f32 0.0, %v11131
    %v11133 = vpop.f32.mrb[0].mxu0
    %11134 = vmatprep.mubr.f32.mxu0 0.0
    %11135 = vmatmul.mubr.f32.gmra.mrb[0].mxu0 %v8604
    %v11136 = vpop.f32.mrb[0].mxu0
    %v11137 = vadd.f32 0.0, %v11136
    %v11138 = vpop.f32.mrb[0].mxu0
    %11139 = vdwg.mxu0
    %v11140 = vadd.f32 %v11057, %v11132
    %v11141 = vadd.f32 %v11062, %v11137
    %v11142 = vadd.f32 %v11140, %v89
    %v11143 = vadd.f32 %v11141, %v89
    %v11144 = vxor.u32 %v11142, 2147483648
    %v11145 = vxor.u32 %v11143, 2147483648
    %v11146 = vmul.f32 %v11144, 1.442695
    %v11147 = vpow.pop %v11146
    %v11148 = vmul.f32 %v11145, 1.442695
    %v11149 = vpow.pop %v11148
    %v11150 = vadd.f32 %v11147, 1.0
    %v11151 = vadd.f32 %v11149, 1.0
    %v11152 = vrcp.pop %v11150
    %v11153 = vmul.f32 1.0, %v11152
    %v11154 = vrcp.pop %v11151
    %v11155 = vmul.f32 1.0, %v11154
    %11156 = vmatprep.subr.mxu0 0.0
    %11157 = vmatpush1.msra.mxu0 %v141
    %11158 = vmatprep.subr.mxu0 0.0
    %11159 = vmatpush1.msra.mxu0 %v142
    %11160 = vmatprep.subr.mxu0 0.0
    %11161 = vmatpush1.msra.mxu0 %v143
    %11162 = vmatprep.subr.mxu0 0.0
    %11163 = vmatpush1.msra.mxu0 %v144
    %11164 = vmatprep.subr.mxu0 0.0
    %11165 = vmatpush1.msra.mxu0 %v145
    %11166 = vmatprep.subr.mxu0 0.0
    %11167 = vmatpush1.msra.mxu0 %v146
    %11168 = vmatprep.subr.mxu0 0.0
    %11169 = vmatpush1.msra.mxu0 %v147
    %11170 = vmatprep.subr.mxu0 0.0
    %11171 = vmatpush1.msra.mxu0 %v148
    %11172 = vmatprep.subr.mxu0 0.0
    %11173 = vmatpush1.msra.mxu0 0.0
    %11174 = vmatprep.subr.mxu0 0.0
    %11175 = vmatpush1.msra.mxu0 0.0
    %11176 = vmatprep.subr.mxu0 0.0
    %11177 = vmatpush1.msra.mxu0 0.0
    %11178 = vmatprep.subr.mxu0 0.0
    %11179 = vmatpush1.msra.mxu0 0.0
    %11180 = vmatprep.subr.mxu0 0.0
    %11181 = vmatpush1.msra.mxu0 0.0
    %11182 = vmatprep.subr.mxu0 0.0
    %11183 = vmatpush1.msra.mxu0 0.0
    %11184 = vmatprep.subr.mxu0 0.0
    %11185 = vmatpush1.msra.mxu0 0.0
    %11186 = vmatprep.subr.mxu0 0.0
    %11187 = vmatpush1.msra.mxu0 0.0
    %11188 = vmatprep.subr.mxu0 0.0
    %11189 = vmatpush1.msra.mxu0 0.0
    %11190 = vmatprep.subr.mxu0 0.0
    %11191 = vmatpush1.msra.mxu0 0.0
    %11192 = vmatprep.subr.mxu0 0.0
    %11193 = vmatpush1.msra.mxu0 0.0
    %11194 = vmatprep.subr.mxu0 0.0
    %11195 = vmatpush1.msra.mxu0 0.0
    %11196 = vmatprep.subr.mxu0 0.0
    %11197 = vmatpush1.msra.mxu0 0.0
    %11198 = vmatprep.subr.mxu0 0.0
    %11199 = vmatpush1.msra.mxu0 0.0
    %11200 = vmatprep.subr.mxu0 0.0
    %11201 = vmatpush1.msra.mxu0 0.0
    %11202 = vmatprep.subr.mxu0 0.0
    %11203 = vmatpush1.msra.mxu0 0.0
    %11204 = vmatprep.subr.mxu0 0.0
    %11205 = vmatpush1.msra.mxu0 0.0
    %11206 = vmatprep.subr.mxu0 0.0
    %11207 = vmatpush1.msra.mxu0 0.0
    %11208 = vmatprep.subr.mxu0 0.0
    %11209 = vmatpush1.msra.mxu0 0.0
    %11210 = vmatprep.subr.mxu0 0.0
    %11211 = vmatpush1.msra.mxu0 0.0
    %11212 = vmatprep.subr.mxu0 0.0
    %11213 = vmatpush1.msra.mxu0 0.0
    %11214 = vmatprep.subr.mxu0 0.0
    %11215 = vmatpush1.msra.mxu0 0.0
    %11216 = vmatprep.subr.mxu0 0.0
    %11217 = vmatpush1.msra.mxu0 0.0
    %11218 = vmatprep.subr.mxu0 0.0
    %11219 = vmatpush1.msra.mxu0 0.0
    %11220 = vmatprep.mubr.f32.mxu0 0.0
    %11221 = vmatmul.mubr.f32.gmra.mrb[0].mxu0 %v10985
    %v11222 = vpop.f32.mrb[0].mxu0
    %v11223 = vadd.f32 %v81, %v11222
    %v11224 = vpop.f32.mrb[0].mxu0
    %11225 = vmatprep.mubr.f32.mxu0 0.0
    %11226 = vmatmul.mubr.f32.gmra.mrb[0].mxu0 %v10988
    %v11227 = vpop.f32.mrb[0].mxu0
    %v11228 = vadd.f32 %v81, %v11227
    %v11229 = vpop.f32.mrb[0].mxu0
    %11230 = vdwg.mxu0
    %11231 = vmatprep.subr.mxu0 0.0
    %11232 = vmatpush1.msra.mxu0 %v168
    %11233 = vmatprep.subr.mxu0 0.0
    %11234 = vmatpush1.msra.mxu0 %v169
    %11235 = vmatprep.subr.mxu0 0.0
    %11236 = vmatpush1.msra.mxu0 %v170
    %11237 = vmatprep.subr.mxu0 0.0
    %11238 = vmatpush1.msra.mxu0 %v171
    %11239 = vmatprep.subr.mxu0 0.0
    %11240 = vmatpush1.msra.mxu0 %v172
    %11241 = vmatprep.subr.mxu0 0.0
    %11242 = vmatpush1.msra.mxu0 %v173
    %11243 = vmatprep.subr.mxu0 0.0
    %11244 = vmatpush1.msra.mxu0 %v174
    %11245 = vmatprep.subr.mxu0 0.0
    %11246 = vmatpush1.msra.mxu0 %v175
    %11247 = vmatprep.subr.mxu0 0.0
    %11248 = vmatpush1.msra.mxu0 0.0
    %11249 = vmatprep.subr.mxu0 0.0
    %11250 = vmatpush1.msra.mxu0 0.0
    %11251 = vmatprep.subr.mxu0 0.0
    %11252 = vmatpush1.msra.mxu0 0.0
    %11253 = vmatprep.subr.mxu0 0.0
    %11254 = vmatpush1.msra.mxu0 0.0
    %11255 = vmatprep.subr.mxu0 0.0
    %11256 = vmatpush1.msra.mxu0 0.0
    %11257 = vmatprep.subr.mxu0 0.0
    %11258 = vmatpush1.msra.mxu0 0.0
    %11259 = vmatprep.subr.mxu0 0.0
    %11260 = vmatpush1.msra.mxu0 0.0
    %11261 = vmatprep.subr.mxu0 0.0
    %11262 = vmatpush1.msra.mxu0 0.0
    %11263 = vmatprep.subr.mxu0 0.0
    %11264 = vmatpush1.msra.mxu0 0.0
    %11265 = vmatprep.subr.mxu0 0.0
    %11266 = vmatpush1.msra.mxu0 0.0
    %11267 = vmatprep.subr.mxu0 0.0
    %11268 = vmatpush1.msra.mxu0 0.0
    %11269 = vmatprep.subr.mxu0 0.0
    %11270 = vmatpush1.msra.mxu0 0.0
    %11271 = vmatprep.subr.mxu0 0.0
    %11272 = vmatpush1.msra.mxu0 0.0
    %11273 = vmatprep.subr.mxu0 0.0
    %11274 = vmatpush1.msra.mxu0 0.0
    %11275 = vmatprep.subr.mxu0 0.0
    %11276 = vmatpush1.msra.mxu0 0.0
    %11277 = vmatprep.subr.mxu0 0.0
    %11278 = vmatpush1.msra.mxu0 0.0
    %11279 = vmatprep.subr.mxu0 0.0
    %11280 = vmatpush1.msra.mxu0 0.0
    %11281 = vmatprep.subr.mxu0 0.0
    %11282 = vmatpush1.msra.mxu0 0.0
    %11283 = vmatprep.subr.mxu0 0.0
    %11284 = vmatpush1.msra.mxu0 0.0
    %11285 = vmatprep.subr.mxu0 0.0
    %11286 = vmatpush1.msra.mxu0 0.0
    %11287 = vmatprep.subr.mxu0 0.0
    %11288 = vmatpush1.msra.mxu0 0.0
    %11289 = vmatprep.subr.mxu0 0.0
    %11290 = vmatpush1.msra.mxu0 0.0
    %11291 = vmatprep.subr.mxu0 0.0
    %11292 = vmatpush1.msra.mxu0 0.0
    %11293 = vmatprep.subr.mxu0 0.0
    %11294 = vmatpush1.msra.mxu0 0.0
    %11295 = vmatprep.mubr.f32.mxu0 0.0
    %11296 = vmatmul.mubr.f32.gmra.mrb[0].mxu0 %v8601
    %v11297 = vpop.f32.mrb[0].mxu0
    %v11298 = vadd.f32 0.0, %v11297
    %v11299 = vpop.f32.mrb[0].mxu0
    %11300 = vmatprep.mubr.f32.mxu0 0.0
    %11301 = vmatmul.mubr.f32.gmra.mrb[0].mxu0 %v8604
    %v11302 = vpop.f32.mrb[0].mxu0
    %v11303 = vadd.f32 0.0, %v11302
    %v11304 = vpop.f32.mrb[0].mxu0
    %11305 = vdwg.mxu0
    %v11306 = vadd.f32 %v11223, %v11298
    %v11307 = vadd.f32 %v11228, %v11303
    %v11308 = vadd.f32 %v11306, %v93
    %v11309 = vadd.f32 %v11307, %v93
    %v11310 = vxor.u32 %v11308, 2147483648
    %v11311 = vxor.u32 %v11309, 2147483648
    %v11312 = vmul.f32 %v11310, 1.442695
    %v11313 = vpow.pop %v11312
    %v11314 = vmul.f32 %v11311, 1.442695
    %v11315 = vpow.pop %v11314
    %v11316 = vadd.f32 %v11313, 1.0
    %v11317 = vadd.f32 %v11315, 1.0
    %v11318 = vrcp.pop %v11316
    %v11319 = vmul.f32 1.0, %v11318
    %v11320 = vrcp.pop %v11317
    %v11321 = vmul.f32 1.0, %v11320
    %11322 = vmatprep.subr.mxu0 0.0
    %11323 = vmatpush1.msra.mxu0 %v150
    %11324 = vmatprep.subr.mxu0 0.0
    %11325 = vmatpush1.msra.mxu0 %v151
    %11326 = vmatprep.subr.mxu0 0.0
    %11327 = vmatpush1.msra.mxu0 %v152
    %11328 = vmatprep.subr.mxu0 0.0
    %11329 = vmatpush1.msra.mxu0 %v153
    %11330 = vmatprep.subr.mxu0 0.0
    %11331 = vmatpush1.msra.mxu0 %v154
    %11332 = vmatprep.subr.mxu0 0.0
    %11333 = vmatpush1.msra.mxu0 %v155
    %11334 = vmatprep.subr.mxu0 0.0
    %11335 = vmatpush1.msra.mxu0 %v156
    %11336 = vmatprep.subr.mxu0 0.0
    %11337 = vmatpush1.msra.mxu0 %v157
    %11338 = vmatprep.subr.mxu0 0.0
    %11339 = vmatpush1.msra.mxu0 0.0
    %11340 = vmatprep.subr.mxu0 0.0
    %11341 = vmatpush1.msra.mxu0 0.0
    %11342 = vmatprep.subr.mxu0 0.0
    %11343 = vmatpush1.msra.mxu0 0.0
    %11344 = vmatprep.subr.mxu0 0.0
    %11345 = vmatpush1.msra.mxu0 0.0
    %11346 = vmatprep.subr.mxu0 0.0
    %11347 = vmatpush1.msra.mxu0 0.0
    %11348 = vmatprep.subr.mxu0 0.0
    %11349 = vmatpush1.msra.mxu0 0.0
    %11350 = vmatprep.subr.mxu0 0.0
    %11351 = vmatpush1.msra.mxu0 0.0
    %11352 = vmatprep.subr.mxu0 0.0
    %11353 = vmatpush1.msra.mxu0 0.0
    %11354 = vmatprep.subr.mxu0 0.0
    %11355 = vmatpush1.msra.mxu0 0.0
    %11356 = vmatprep.subr.mxu0 0.0
    %11357 = vmatpush1.msra.mxu0 0.0
    %11358 = vmatprep.subr.mxu0 0.0
    %11359 = vmatpush1.msra.mxu0 0.0
    %11360 = vmatprep.subr.mxu0 0.0
    %11361 = vmatpush1.msra.mxu0 0.0
    %11362 = vmatprep.subr.mxu0 0.0
    %11363 = vmatpush1.msra.mxu0 0.0
    %11364 = vmatprep.subr.mxu0 0.0
    %11365 = vmatpush1.msra.mxu0 0.0
    %11366 = vmatprep.subr.mxu0 0.0
    %11367 = vmatpush1.msra.mxu0 0.0
    %11368 = vmatprep.subr.mxu0 0.0
    %11369 = vmatpush1.msra.mxu0 0.0
    %11370 = vmatprep.subr.mxu0 0.0
    %11371 = vmatpush1.msra.mxu0 0.0
    %11372 = vmatprep.subr.mxu0 0.0
    %11373 = vmatpush1.msra.mxu0 0.0
    %11374 = vmatprep.subr.mxu0 0.0
    %11375 = vmatpush1.msra.mxu0 0.0
    %11376 = vmatprep.subr.mxu0 0.0
    %11377 = vmatpush1.msra.mxu0 0.0
    %11378 = vmatprep.subr.mxu0 0.0
    %11379 = vmatpush1.msra.mxu0 0.0
    %11380 = vmatprep.subr.mxu0 0.0
    %11381 = vmatpush1.msra.mxu0 0.0
    %11382 = vmatprep.subr.mxu0 0.0
    %11383 = vmatpush1.msra.mxu0 0.0
    %11384 = vmatprep.subr.mxu0 0.0
    %11385 = vmatpush1.msra.mxu0 0.0
    %11386 = vmatprep.mubr.f32.mxu0 0.0
    %11387 = vmatmul.mubr.f32.gmra.mrb[0].mxu0 %v10985
    %v11388 = vpop.f32.mrb[0].mxu0
    %v11389 = vadd.f32 %v85, %v11388
    %v11390 = vpop.f32.mrb[0].mxu0
    %11391 = vmatprep.mubr.f32.mxu0 0.0
    %11392 = vmatmul.mubr.f32.gmra.mrb[0].mxu0 %v10988
    %v11393 = vpop.f32.mrb[0].mxu0
    %v11394 = vadd.f32 %v85, %v11393
    %v11395 = vpop.f32.mrb[0].mxu0
    %11396 = vdwg.mxu0
    %11397 = vmatprep.subr.mxu0 0.0
    %11398 = vmatpush1.msra.mxu0 %v177
    %11399 = vmatprep.subr.mxu0 0.0
    %11400 = vmatpush1.msra.mxu0 %v178
    %11401 = vmatprep.subr.mxu0 0.0
    %11402 = vmatpush1.msra.mxu0 %v179
    %11403 = vmatprep.subr.mxu0 0.0
    %11404 = vmatpush1.msra.mxu0 %v180
    %11405 = vmatprep.subr.mxu0 0.0
    %11406 = vmatpush1.msra.mxu0 %v181
    %11407 = vmatprep.subr.mxu0 0.0
    %11408 = vmatpush1.msra.mxu0 %v182
    %11409 = vmatprep.subr.mxu0 0.0
    %11410 = vmatpush1.msra.mxu0 %v183
    %11411 = vmatprep.subr.mxu0 0.0
    %11412 = vmatpush1.msra.mxu0 %v184
    %11413 = vmatprep.subr.mxu0 0.0
    %11414 = vmatpush1.msra.mxu0 0.0
    %11415 = vmatprep.subr.mxu0 0.0
    %11416 = vmatpush1.msra.mxu0 0.0
    %11417 = vmatprep.subr.mxu0 0.0
    %11418 = vmatpush1.msra.mxu0 0.0
    %11419 = vmatprep.subr.mxu0 0.0
    %11420 = vmatpush1.msra.mxu0 0.0
    %11421 = vmatprep.subr.mxu0 0.0
    %11422 = vmatpush1.msra.mxu0 0.0
    %11423 = vmatprep.subr.mxu0 0.0
    %11424 = vmatpush1.msra.mxu0 0.0
    %11425 = vmatprep.subr.mxu0 0.0
    %11426 = vmatpush1.msra.mxu0 0.0
    %11427 = vmatprep.subr.mxu0 0.0
    %11428 = vmatpush1.msra.mxu0 0.0
    %11429 = vmatprep.subr.mxu0 0.0
    %11430 = vmatpush1.msra.mxu0 0.0
    %11431 = vmatprep.subr.mxu0 0.0
    %11432 = vmatpush1.msra.mxu0 0.0
    %11433 = vmatprep.subr.mxu0 0.0
    %11434 = vmatpush1.msra.mxu0 0.0
    %11435 = vmatprep.subr.mxu0 0.0
    %11436 = vmatpush1.msra.mxu0 0.0
    %11437 = vmatprep.subr.mxu0 0.0
    %11438 = vmatpush1.msra.mxu0 0.0
    %11439 = vmatprep.subr.mxu0 0.0
    %11440 = vmatpush1.msra.mxu0 0.0
    %11441 = vmatprep.subr.mxu0 0.0
    %11442 = vmatpush1.msra.mxu0 0.0
    %11443 = vmatprep.subr.mxu0 0.0
    %11444 = vmatpush1.msra.mxu0 0.0
    %11445 = vmatprep.subr.mxu0 0.0
    %11446 = vmatpush1.msra.mxu0 0.0
    %11447 = vmatprep.subr.mxu0 0.0
    %11448 = vmatpush1.msra.mxu0 0.0
    %11449 = vmatprep.subr.mxu0 0.0
    %11450 = vmatpush1.msra.mxu0 0.0
    %11451 = vmatprep.subr.mxu0 0.0
    %11452 = vmatpush1.msra.mxu0 0.0
    %11453 = vmatprep.subr.mxu0 0.0
    %11454 = vmatpush1.msra.mxu0 0.0
    %11455 = vmatprep.subr.mxu0 0.0
    %11456 = vmatpush1.msra.mxu0 0.0
    %11457 = vmatprep.subr.mxu0 0.0
    %11458 = vmatpush1.msra.mxu0 0.0
    %11459 = vmatprep.subr.mxu0 0.0
    %11460 = vmatpush1.msra.mxu0 0.0
    %11461 = vmatprep.mubr.f32.mxu0 0.0
    %11462 = vmatmul.mubr.f32.gmra.mrb[0].mxu0 %v8601
    %v11463 = vpop.f32.mrb[0].mxu0
    %v11464 = vadd.f32 %v97, %v11463
    %v11465 = vpop.f32.mrb[0].mxu0
    %11466 = vmatprep.mubr.f32.mxu0 0.0
    %11467 = vmatmul.mubr.f32.gmra.mrb[0].mxu0 %v8604
    %v11468 = vpop.f32.mrb[0].mxu0
    %v11469 = vadd.f32 %v97, %v11468
    %v11470 = vpop.f32.mrb[0].mxu0
    %11471 = vdwg.mxu0
    %v11472 = vmul.f32 %v11153, %v11464
    %v11473 = vmul.f32 %v11155, %v11469
    %v11474 = vadd.f32 %v11389, %v11472
    %v11475 = vadd.f32 %v11394, %v11473
    %v11476 = vtanh.pop %v11474
    %v11477 = vtanh.pop %v11475
    %v11478 = vsub.f32 1.0, %v11319
    %v11479 = vsub.f32 1.0, %v11321
    %v11480 = vmul.f32 %v11478, %v11476
    %v11481 = vmul.f32 %v11479, %v11477
    %v11482 = vmul.f32 %v11319, %v8598
    %v11483 = vmul.f32 %v11321, %v8599
    %v11484 = vadd.f32 %v11480, %v11482
    %v11485 = vadd.f32 %v11481, %v11483
    %v11487 = vsel %vm2802, %v11484, 0
    %v11490 = vsel %vm2802, %v11485, 0
    %11492 = vmatprep.subr.mxu0 0.0
    %11493 = vmatpush1.msra.mxu0 %v124
    %11494 = vmatprep.subr.mxu0 0.0
    %11495 = vmatpush1.msra.mxu0 %v125
    %11496 = vmatprep.subr.mxu0 0.0
    %11497 = vmatpush1.msra.mxu0 %v126
    %11498 = vmatprep.subr.mxu0 0.0
    %11499 = vmatpush1.msra.mxu0 %v127
    %11500 = vmatprep.subr.mxu0 0.0
    %11501 = vmatpush1.msra.mxu0 %v128
    %11502 = vmatprep.subr.mxu0 0.0
    %11503 = vmatpush1.msra.mxu0 %v129
    %11504 = vmatprep.subr.mxu0 0.0
    %11505 = vmatpush1.msra.mxu0 %v130
    %11506 = vmatprep.subr.mxu0 0.0
    %11507 = vmatpush1.msra.mxu0 %v131
    %11508 = vmatprep.subr.mxu0 0.0
    %11509 = vmatpush1.msra.mxu0 0.0
    %11510 = vmatprep.subr.mxu0 0.0
    %11511 = vmatpush1.msra.mxu0 0.0
    %11512 = vmatprep.subr.mxu0 0.0
    %11513 = vmatpush1.msra.mxu0 0.0
    %11514 = vmatprep.subr.mxu0 0.0
    %11515 = vmatpush1.msra.mxu0 0.0
    %11516 = vmatprep.subr.mxu0 0.0
    %11517 = vmatpush1.msra.mxu0 0.0
    %11518 = vmatprep.subr.mxu0 0.0
    %11519 = vmatpush1.msra.mxu0 0.0
    %11520 = vmatprep.subr.mxu0 0.0
    %11521 = vmatpush1.msra.mxu0 0.0
    %11522 = vmatprep.subr.mxu0 0.0
    %11523 = vmatpush1.msra.mxu0 0.0
    %11524 = vmatprep.subr.mxu0 0.0
    %11525 = vmatpush1.msra.mxu0 0.0
    %11526 = vmatprep.subr.mxu0 0.0
    %11527 = vmatpush1.msra.mxu0 0.0
    %11528 = vmatprep.subr.mxu0 0.0
    %11529 = vmatpush1.msra.mxu0 0.0
    %11530 = vmatprep.subr.mxu0 0.0
    %11531 = vmatpush1.msra.mxu0 0.0
    %11532 = vmatprep.subr.mxu0 0.0
    %11533 = vmatpush1.msra.mxu0 0.0
    %11534 = vmatprep.subr.mxu0 0.0
    %11535 = vmatpush1.msra.mxu0 0.0
    %11536 = vmatprep.subr.mxu0 0.0
    %11537 = vmatpush1.msra.mxu0 0.0
    %11538 = vmatprep.subr.mxu0 0.0
    %11539 = vmatpush1.msra.mxu0 0.0
    %11540 = vmatprep.subr.mxu0 0.0
    %11541 = vmatpush1.msra.mxu0 0.0
    %11542 = vmatprep.subr.mxu0 0.0
    %11543 = vmatpush1.msra.mxu0 0.0
    %11544 = vmatprep.subr.mxu0 0.0
    %11545 = vmatpush1.msra.mxu0 0.0
    %11546 = vmatprep.subr.mxu0 0.0
    %11547 = vmatpush1.msra.mxu0 0.0
    %11548 = vmatprep.subr.mxu0 0.0
    %11549 = vmatpush1.msra.mxu0 0.0
    %11550 = vmatprep.subr.mxu0 0.0
    %11551 = vmatpush1.msra.mxu0 0.0
    %11552 = vmatprep.subr.mxu0 0.0
    %11553 = vmatpush1.msra.mxu0 0.0
    %11554 = vmatprep.subr.mxu0 0.0
    %11555 = vmatpush1.msra.mxu0 0.0
    %11556 = vmatprep.mubr.f32.mxu0 0.0
    %11557 = vmatmul.mubr.f32.gmra.mrb[0].mxu0 %v11487
    %v11558 = vpop.f32.mrb[0].mxu0
    %v11559 = vadd.f32 0.0, %v11558
    %v11560 = vpop.f32.mrb[0].mxu0
    %11561 = vmatprep.mubr.f32.mxu0 0.0
    %11562 = vmatmul.mubr.f32.gmra.mrb[0].mxu0 %v11490
    %v11563 = vpop.f32.mrb[0].mxu0
    %v11564 = vadd.f32 0.0, %v11563
    %v11565 = vpop.f32.mrb[0].mxu0
    %11566 = vdwg.mxu0
    %v11567 = vlaneseq
    %v11568 = vshrl.u32 %v11567, 7
    %v11569 = vsub.s32 0, %v11568
    %v11570 = vrot.slane %v68, %v11569
    %v11571 = vadd.f32 %v11559, %v11570
    %v11572 = vadd.f32 %v11564, %v11570
    %vm11573 = vcmask 31744
    %v11574 = vsel %vm11573, %v11571, -inf
    %11575 = vmax.xlane.f32.xlu0 %v11574
    %v11576 = vpop.xlane.xlu0 %11575
    %v11577 = vsel %vm11573, %v11572, -inf
    %11578 = vmax.xlane.f32.xlu0 %v11577
    %v11579 = vpop.xlane.xlu0 %11578
    %v11580 = vsub.f32 %v11571, %v11576
    %v11581 = vsub.f32 %v11572, %v11579
    %v11582 = vmul.f32 %v11580, 1.442695
    %v11583 = vpow.pop %v11582
    %v11584 = vmul.f32 %v11581, 1.442695
    %v11585 = vpow.pop %v11584
    %v11586 = vsel %vm11573, %v11583, 0.0
    %11587 = vadd.xlane.f32.xlu0 %v11586
    %v11588 = vpop.xlane.xlu0 %11587
    %v11589 = vsel %vm11573, %v11585, 0.0
    %11590 = vadd.xlane.f32.xlu0 %v11589
    %v11591 = vpop.xlane.xlu0 %11590
    %v11592 = vlog2.pop %v11588
    %v11593 = vmul.f32 %v11592, 0.6931472
    %v11594 = vlog2.pop %v11591
    %v11595 = vmul.f32 %v11594, 0.6931472
    %v11596 = vsub.f32 %v11580, %v11593
    %v11597 = vsub.f32 %v11581, %v11595
    %11598 = vst.msk [vmem:[%s7] sm:$0xff] %vm11573, %v11596
    %11599 = vst.msk [vmem:[%s7 + $0x8] sm:$0xff] %vm11573, %v11597
    // Predicated region
    $region42: #{net_forward.1} parent=1 // pred_check
      _
    $region43: #{net_forward.1} parent=1 // pred_check_branch
      %11601 = sbr.rel (0) target = $region45
    $region44: #{net_forward.1} parent=1 // pred_region
      _
    $region45: #{net_forward.1} parent=1 // pred_fallthru
      _
    // Predicated region
    $region46: #{net_forward.1} parent=1 // pred_check
      _
    $region47: #{net_forward.1} parent=1 // pred_check_branch
      %11603 = sbr.rel (0) target = $region49
    $region48: #{net_forward.1} parent=1 // pred_region
      _
    $region49: #{net_forward.1} parent=1 // pred_fallthru
      _
    %11604 = vsyncpa [#allocation3], 1
    %11605 = vsyncpa [#allocation5], 1

</llo_original>
